<compile_context>
chip_gen: v5e
topology: v5e:2x2
jax: 0.10.0
libtpu: 0.0.40
codegen_flags: <defaults>
</compile_context>

<pallas_src>
import numpy as np

import jax
import jax.numpy as jnp
from jax.experimental import pallas as pl
from jax.experimental.pallas import tpu as pltpu


# ------------------------------------------------------------------ helpers ---

def _shift_rows(x, s):
    """out[i] = x[i + s] (static row shift along axis 0, vacated rows zero-filled)."""
    if s == 0:
        return x
    n = x.shape[0]
    pad = jnp.zeros((abs(s),) + x.shape[1:], x.dtype)
    if s > 0:
        return jnp.concatenate([x[s:], pad], axis=0)
    return jnp.concatenate([pad, x[: n + s]], axis=0)


def _tap_masks(batch, hh, wh, offsets):
    """Per-tap validity masks (len(offsets), batch*hh*wh, 1) for the (b, h, w) row layout."""
    ho, wo = np.meshgrid(np.arange(hh), np.arange(wh), indexing="ij")
    masks = np.zeros((len(offsets), batch * hh * wh, 1), np.float32)
    for t, (dh, dw) in enumerate(offsets):
        v = ((ho + dh >= 0) & (ho + dh < hh) & (wo + dw >= 0) & (wo + dw < wh))
        masks[t, :, 0] = np.tile(v.reshape(-1).astype(np.float32), batch)
    return masks


# -------------------------------------------------------------------- kernel ---

def _make_branch1_kernel(M, wh):
    """Fused forward kernel, closed over static geometry (M = B*hh*wh, wh)."""
    f32, bf16 = jnp.float32, jnp.bfloat16

    # layer1.conv2: 3x3 / stride 2 / pad 1 on the space-to-depth layout.
    # tap (kh,kw) -> (parity plane p, row shift s, needs boundary mask)
    taps1 = []
    for kh in range(3):
        ph, dh = (kh + 1) % 2, (kh - 1) // 2
        for kw in range(3):
            pw, dw = (kw + 1) % 2, (kw - 1) // 2
            taps1.append((2 * ph + pw, dh * wh + dw, (dh != 0) or (dw != 0)))
    # layer2.conv2: 3x3 / stride 1 / pad 1 on the flattened (b,h,w) layout.
    taps2 = []
    for kh in range(3):
        for kw in range(3):
            dh, dw = kh - 1, kw - 1
            taps2.append((dh * wh + dw, (dh != 0) or (dw != 0)))

    def kernel(
        x1_ref, x2_ref, x3_ref, m1_ref, mk2_ref,
        w11_ref, b11_ref,   # layer1.conv1 : 1x1 512 -> 224 (BN folded)
        w12_ref, b12_ref,   # layer1.conv2 : 3x3 s2, long-K (9*224, 224)
        w13_ref, b13_ref,   # layer1.conv3 : 1x1 224 -> 896
        wds_ref, bds_ref,   # layer1.downsample : 1x1 s2 512 -> 896
        wc1_ref, bc1_ref,   # self.conv1 : 1x1 512 -> 64
        w21_ref, b21_ref,   # layer2.conv1 : 1x1 960 -> 240
        w22_ref, b22_ref,   # layer2.conv2 : 3x3 s1, long-K (9*240, 240)
        w23_ref, b23_ref,   # layer2.conv3 : 1x1 240 -> 960
        wc2_ref, bc2_ref,   # self.conv2 : 1x1 512 -> 64
        x12_ref, bf_ref,
    ):
        # ---- layer1.conv1 (1x1, BN+ReLU) on all 4 parity planes at once: M rows = 4M.
        t1 = jnp.dot(x1_ref[...], w11_ref[...], preferred_element_type=f32) + b11_ref[...]
        t1 = jnp.maximum(t1, 0.0).astype(bf16)                          # (4M, 224)

        # ---- layer1.conv2 (3x3 stride 2, BN+ReLU): gather the 9 taps with parity-plane
        # row slices + static shifts + boundary masks (no MXU gather FLOPs), then ONE
        # long-K matmul so the tap reduction accumulates inside the MXU.
        cols = []
        for tap, (p, s, need_mask) in enumerate(taps1):
            g = _shift_rows(t1[p * M:(p + 1) * M], s)                   # (M, 224) bf16
            if need_mask:
                g = g * m1_ref[tap]                                     # (M, 1) bf16
            cols.append(g)
        x9 = jnp.concatenate(cols, axis=-1)                             # (M, 2016)
        t2 = jnp.dot(x9, w12_ref[...], preferred_element_type=f32) + b12_ref[...]
        t2 = jnp.maximum(t2, 0.0).astype(bf16)                          # (M, 224)

        # ---- layer1.downsample (1x1 stride 2, BN): stride-2 sampling == parity plane
        # (0,0) == rows [0, M) of the space-to-depth layout.
        ident = jnp.dot(x1_ref[0:M, :], wds_ref[...], preferred_element_type=f32) + bds_ref[...]

        # ---- layer1.conv3 (1x1, BN) + residual + ReLU
        y1 = jnp.dot(t2, w13_ref[...], preferred_element_type=f32) + b13_ref[...] + ident
        y1 = jnp.maximum(y1, 0.0)                                       # (M, 896) f32

        # ---- self.conv1 on x2 (1x1 512->64, BN+ReLU)
        y2 = jnp.dot(x2_ref[...], wc1_ref[...], preferred_element_type=f32) + bc1_ref[...]
        y2 = jnp.maximum(y2, 0.0)                                       # (M, 64) f32

        # ---- x12_ = cat([layer1(x1), conv1(x2)]): one lane-dense 960-wide store.
        x12_ref[...] = jnp.concatenate([y1, y2], axis=-1).astype(x12_ref.dtype)

        # ---- layer2 (Bottleneck 960->240->960, identity shortcut).  x12_ is re-read
        # from the output ref (already resident in VMEM) instead of kept live in vregs.
        xb = x12_ref[...].astype(bf16)                                  # (M, 960)
        u1 = jnp.dot(xb, w21_ref[...], preferred_element_type=f32) + b21_ref[...]
        u1 = jnp.maximum(u1, 0.0).astype(bf16)                          # (M, 240)

        cols2 = []
        for tap, (s, need_mask) in enumerate(taps2):
            g = _shift_rows(u1, s)                                      # (M, 240) bf16
            if need_mask:
                g = g * mk2_ref[tap]
            cols2.append(g)
        x9b = jnp.concatenate(cols2, axis=-1)                           # (M, 2160)
        u2 = jnp.dot(x9b, w22_ref[...], preferred_element_type=f32) + b22_ref[...]
        u2 = jnp.maximum(u2, 0.0).astype(bf16)                          # (M, 240)

        u3 = (jnp.dot(u2, w23_ref[...], preferred_element_type=f32)
              + b23_ref[...] + x12_ref[...])
        u3 = jnp.maximum(u3, 0.0)                                       # (M, 960) f32

        # ---- self.conv2 on x3 (1x1 512->64, BN+ReLU)
        y3 = jnp.dot(x3_ref[...], wc2_ref[...], preferred_element_type=f32) + bc2_ref[...]
        y3 = jnp.maximum(y3, 0.0)                                       # (M, 64) f32

        # ---- branch_fea = cat([layer2(x12_), conv2(x3)]): lane-dense 1024-wide store.
        bf_ref[...] = jnp.concatenate([u3, y3], axis=-1).astype(bf_ref.dtype)

    return kernel


# ---------------------------------------------------------------- parameters ---

def _init_conv_bn(key, cin, cout, ksize=1, eps=1e-5):
    """Conv weight with eval-mode BN folded in -> (bf16 weight, f32 (1,cout) bias).
    1x1 -> (cin, cout); 3x3 -> (9*cin, cout) long-K layout, tap index kh*3+kw major.
    (To import real PyTorch weights (cout, cin, kh, kw): transpose(2, 3, 1, 0)
     [.reshape(9*cin, cout) for 3x3] and fold the BN scale the same way.)"""
    k1, k2, k3, k4, k5 = jax.random.split(key, 5)
    fan_in = cin * ksize * ksize
    shape = (cin, cout) if ksize == 1 else (ksize * ksize, cin, cout)
    w = jax.random.normal(k1, shape, jnp.float32) * (2.0 / fan_in) ** 0.5
    gamma = 1.0 + 0.1 * jax.random.normal(k2, (cout,), jnp.float32)
    beta = 0.1 * jax.random.normal(k3, (cout,), jnp.float32)
    mean = 0.1 * jax.random.normal(k4, (cout,), jnp.float32)
    var = 1.0 + 0.1 * jax.random.uniform(k5, (cout,), jnp.float32)
    scale = gamma * jax.lax.rsqrt(var + eps)
    bias = (beta - mean * scale).reshape(1, cout).astype(jnp.float32)
    w = (w * scale).astype(jnp.bfloat16)
    if ksize == 3:
        w = w.reshape(ksize * ksize * cin, cout)     # long-K: row = tap*cin + c
    return w, bias


def init_params(key):
    ks = jax.random.split(key, 9)
    return {
        # layer1: Bottleneck(512, 224, stride=2) + downsample Conv(512,896,1,s=2)+BN
        "l1_conv1": _init_conv_bn(ks[0], 512, 224, 1),
        "l1_conv2": _init_conv_bn(ks[1], 224, 224, 3),
        "l1_conv3": _init_conv_bn(ks[2], 224, 896, 1),
        "l1_ds":    _init_conv_bn(ks[3], 512, 896, 1),
        # self.conv1 / self.conv2: 1x1 512->64 + BN + ReLU
        "conv1":    _init_conv_bn(ks[4], 512, 64, 1),
        "conv2":    _init_conv_bn(ks[5], 512, 64, 1),
        # layer2: Bottleneck(960, 240, stride=1), identity shortcut (960 == 240*4)
        "l2_conv1": _init_conv_bn(ks[6], 960, 240, 1),
        "l2_conv2": _init_conv_bn(ks[7], 240, 240, 3),
        "l2_conv3": _init_conv_bn(ks[8], 240, 960, 1),
    }


_WEIGHT_ORDER = ("l1_conv1", "l1_conv2", "l1_conv3", "l1_ds", "conv1",
                 "l2_conv1", "l2_conv2", "l2_conv3", "conv2")


# ------------------------------------------------------------------- forward ---

def branch1_forward(params, x1, x2, x3):
    """NCHW in / NCHW out, matching the PyTorch module.
    x1: (B,512,H,W); x2, x3: (B,512,H/2,W/2).
    Returns (x12_, branch_fea) with 960 and 1024 channels at H/2 x W/2."""
    B, C, H, W = x1.shape
    assert H % 2 == 0 and W % 2 == 0
    hh, wh = H // 2, W // 2
    m2 = hh * wh
    M = B * m2
    assert x2.shape == (B, C, hh, wh) and x3.shape == (B, C, hh, wh)

    # Space-to-depth row layout for x1 with the parity plane OUTERMOST:
    # row = p*(B*m2) + b*m2 + h*wh + w, p = 2*ph + pw, pixel = (2h+ph, 2w+pw).
    # This folds BOTH stride-2 ops (3x3 conv taps + 1x1 downsample) into plain row
    # slices, and folds the batch into the matmul M dimension.
    x1r = jnp.transpose(x1.reshape(B, C, hh, 2, wh, 2), (3, 5, 0, 2, 4, 1))
    x1r = x1r.reshape(4 * M, C).astype(jnp.bfloat16)
    x2r = jnp.transpose(x2, (0, 2, 3, 1)).reshape(M, C).astype(jnp.bfloat16)
    x3r = jnp.transpose(x3, (0, 2, 3, 1)).reshape(M, C).astype(jnp.bfloat16)

    # Tiny per-tap boundary masks (exact 0/1 in bf16); (9, M, 1) each.
    off1 = [((kh - 1) // 2, (kw - 1) // 2) for kh in range(3) for kw in range(3)]
    off2 = [(kh - 1, kw - 1) for kh in range(3) for kw in range(3)]
    m1 = jnp.asarray(_tap_masks(B, hh, wh, off1), jnp.bfloat16)
    mk2 = jnp.asarray(_tap_masks(B, hh, wh, off2), jnp.bfloat16)

    args = [x1r, x2r, x3r, m1, mk2]
    for name in _WEIGHT_ORDER:
        w, b = params[name]
        args += [w, b]

    kernel = _make_branch1_kernel(M, wh)

    # Single invocation (no grid): every operand lives whole in VMEM exactly once
    # (no double-buffering of the ~5 MiB of constant weights), no per-step overhead.
    x12_flat, bf_flat = pl.pallas_call(
        kernel,
        out_shape=(jax.ShapeDtypeStruct((M, 960), jnp.float32),
                   jax.ShapeDtypeStruct((M, 1024), jnp.float32)),
        in_specs=[pl.BlockSpec(memory_space=pltpu.MemorySpace.VMEM) for _ in args],
        out_specs=(pl.BlockSpec(memory_space=pltpu.MemorySpace.VMEM),
                   pl.BlockSpec(memory_space=pltpu.MemorySpace.VMEM)),
        compiler_params=pltpu.CompilerParams(
            # Safe across v5e/v6e (128 MiB physical) and v7x (64 MiB physical).
            vmem_limit_bytes=48 * 1024 * 1024,
        ),
    )(*args)

    # NHWC -> NCHW to match the PyTorch module. Downstream consumers that accept
    # NHWC can take x12_flat/bf_flat directly and skip these HBM round trips.
    x12_ = jnp.transpose(x12_flat.reshape(B, hh, wh, 960), (0, 3, 1, 2))
    branch_fea = jnp.transpose(bf_flat.reshape(B, hh, wh, 1024), (0, 3, 1, 2))
    return x12_, branch_fea


# ---------------------------------------------------------------------- main ---

if __name__ == "__main__":
    key = jax.random.PRNGKey(0)
    pk, k1, k2, k3 = jax.random.split(key, 4)
    params = init_params(pk)

    B, H, W = 2, 8, 8
    x1 = jax.random.normal(k1, (B, 512, H, W), jnp.float32)
    x2 = jax.random.normal(k2, (B, 512, H // 2, W // 2), jnp.float32)
    x3 = jax.random.normal(k3, (B, 512, H // 2, W // 2), jnp.float32)

    fwd = jax.jit(branch1_forward)
    x12_, branch_fea = fwd(params, x1, x2, x3)
    jax.block_until_ready((x12_, branch_fea))

    assert x12_.shape == (B, 960, H // 2, W // 2), x12_.shape
    assert branch_fea.shape == (B, 1024, H // 2, W // 2), branch_fea.shape
    assert bool(jnp.all(jnp.isfinite(x12_))) and bool(jnp.all(jnp.isfinite(branch_fea)))
    print("KERNEL_OK")
</pallas_src>

<mosaic_0001>
module attributes {stable_mosaic.version = 11 : i64} {
  func.func @kernel(%arg0: memref<128x512xbf16, #tpu.memory_space<vmem>>, %arg1: memref<32x512xbf16, #tpu.memory_space<vmem>>, %arg2: memref<32x512xbf16, #tpu.memory_space<vmem>>, %arg3: memref<9x32x1xbf16, #tpu.memory_space<vmem>>, %arg4: memref<9x32x1xbf16, #tpu.memory_space<vmem>>, %arg5: memref<512x224xbf16, #tpu.memory_space<vmem>>, %arg6: memref<1x224xf32, #tpu.memory_space<vmem>>, %arg7: memref<2016x224xbf16, #tpu.memory_space<vmem>>, %arg8: memref<1x224xf32, #tpu.memory_space<vmem>>, %arg9: memref<224x896xbf16, #tpu.memory_space<vmem>>, %arg10: memref<1x896xf32, #tpu.memory_space<vmem>>, %arg11: memref<512x896xbf16, #tpu.memory_space<vmem>>, %arg12: memref<1x896xf32, #tpu.memory_space<vmem>>, %arg13: memref<512x64xbf16, #tpu.memory_space<vmem>>, %arg14: memref<1x64xf32, #tpu.memory_space<vmem>>, %arg15: memref<960x240xbf16, #tpu.memory_space<vmem>>, %arg16: memref<1x240xf32, #tpu.memory_space<vmem>>, %arg17: memref<2160x240xbf16, #tpu.memory_space<vmem>>, %arg18: memref<1x240xf32, #tpu.memory_space<vmem>>, %arg19: memref<240x960xbf16, #tpu.memory_space<vmem>>, %arg20: memref<1x960xf32, #tpu.memory_space<vmem>>, %arg21: memref<512x64xbf16, #tpu.memory_space<vmem>>, %arg22: memref<1x64xf32, #tpu.memory_space<vmem>>, %arg23: memref<32x960xf32, #tpu.memory_space<vmem>>, %arg24: memref<32x1024xf32, #tpu.memory_space<vmem>>) attributes {dimension_semantics = [], scalar_prefetch = 0 : i64, scratch_operands = 0 : i64, tpu.core_type = #tpu.core_type<tc>} {
    %c0 = arith.constant 0 : index
    %c0_0 = arith.constant 0 : index
    %0 = vector.load %arg0[%c0, %c0_0] : memref<128x512xbf16, #tpu.memory_space<vmem>>, vector<128x512xbf16>
    %c0_1 = arith.constant 0 : index
    %c0_2 = arith.constant 0 : index
    %1 = vector.load %arg5[%c0_1, %c0_2] : memref<512x224xbf16, #tpu.memory_space<vmem>>, vector<512x224xbf16>
    %cst = arith.constant dense<0.000000e+00> : vector<128x224xf32>
    %2 = tpu.matmul %0, %1, %cst {dimension_numbers = #tpu.dot_dimension_numbers<[1], [0], [0], [1], [0, 0, 1, 1], [], []>} : vector<128x512xbf16>, vector<512x224xbf16>, vector<128x224xf32> -> vector<128x224xf32>
    %c0_3 = arith.constant 0 : index
    %c0_4 = arith.constant 0 : index
    %3 = vector.load %arg6[%c0_3, %c0_4] : memref<1x224xf32, #tpu.memory_space<vmem>>, vector<1x224xf32>
    %4 = vector.broadcast %3 : vector<1x224xf32> to vector<128x224xf32>
    %5 = arith.addf %2, %4 : vector<128x224xf32>
    %cst_5 = arith.constant 0.000000e+00 : f32
    %6 = vector.broadcast %cst_5 : f32 to vector<128x224xf32>
    %7 = arith.maximumf %5, %6 : vector<128x224xf32>
    %8 = arith.truncf %7 : vector<128x224xf32> to vector<128x224xbf16>
    %9 = vector.extract_strided_slice %8 {offsets = [96, 0], sizes = [32, 224], strides = [1, 1]} : vector<128x224xbf16> to vector<32x224xbf16>
    %cst_6 = arith.constant 0.000000e+00 : bf16
    %10 = vector.broadcast %cst_6 : bf16 to vector<5x224xbf16>
    %11 = vector.extract_strided_slice %9 {offsets = [0, 0], sizes = [27, 224], strides = [1, 1]} : vector<32x224xbf16> to vector<27x224xbf16>
    %12 = tpu.concatenate %10, %11 in 0 : vector<5x224xbf16>, vector<27x224xbf16> -> vector<32x224xbf16>
    %c0_7 = arith.constant 0 : index
    %c0_8 = arith.constant 0 : index
    %c0_9 = arith.constant 0 : index
    %13 = vector.load %arg3[%c0_7, %c0_8, %c0_9] : memref<9x32x1xbf16, #tpu.memory_space<vmem>>, vector<1x32x1xbf16>
    %14 = vector.shape_cast %13 : vector<1x32x1xbf16> to vector<32x1xbf16>
    %15 = vector.broadcast %14 : vector<32x1xbf16> to vector<32x224xbf16>
    %16 = arith.mulf %12, %15 : vector<32x224xbf16>
    %17 = vector.extract_strided_slice %8 {offsets = [64, 0], sizes = [32, 224], strides = [1, 1]} : vector<128x224xbf16> to vector<32x224xbf16>
    %cst_10 = arith.constant 0.000000e+00 : bf16
    %18 = vector.broadcast %cst_10 : bf16 to vector<4x224xbf16>
    %19 = vector.extract_strided_slice %17 {offsets = [0, 0], sizes = [28, 224], strides = [1, 1]} : vector<32x224xbf16> to vector<28x224xbf16>
    %20 = tpu.concatenate %18, %19 in 0 : vector<4x224xbf16>, vector<28x224xbf16> -> vector<32x224xbf16>
    %c1 = arith.constant 1 : index
    %c0_11 = arith.constant 0 : index
    %c0_12 = arith.constant 0 : index
    %21 = vector.load %arg3[%c1, %c0_11, %c0_12] : memref<9x32x1xbf16, #tpu.memory_space<vmem>>, vector<1x32x1xbf16>
    %22 = vector.shape_cast %21 : vector<1x32x1xbf16> to vector<32x1xbf16>
    %23 = vector.broadcast %22 : vector<32x1xbf16> to vector<32x224xbf16>
    %24 = arith.mulf %20, %23 : vector<32x224xbf16>
    %25 = vector.extract_strided_slice %8 {offsets = [96, 0], sizes = [32, 224], strides = [1, 1]} : vector<128x224xbf16> to vector<32x224xbf16>
    %cst_13 = arith.constant 0.000000e+00 : bf16
    %26 = vector.broadcast %cst_13 : bf16 to vector<4x224xbf16>
    %27 = vector.extract_strided_slice %25 {offsets = [0, 0], sizes = [28, 224], strides = [1, 1]} : vector<32x224xbf16> to vector<28x224xbf16>
    %28 = tpu.concatenate %26, %27 in 0 : vector<4x224xbf16>, vector<28x224xbf16> -> vector<32x224xbf16>
    %c2 = arith.constant 2 : index
    %c0_14 = arith.constant 0 : index
    %c0_15 = arith.constant 0 : index
    %29 = vector.load %arg3[%c2, %c0_14, %c0_15] : memref<9x32x1xbf16, #tpu.memory_space<vmem>>, vector<1x32x1xbf16>
    %30 = vector.shape_cast %29 : vector<1x32x1xbf16> to vector<32x1xbf16>
    %31 = vector.broadcast %30 : vector<32x1xbf16> to vector<32x224xbf16>
    %32 = arith.mulf %28, %31 : vector<32x224xbf16>
    %33 = vector.extract_strided_slice %8 {offsets = [32, 0], sizes = [32, 224], strides = [1, 1]} : vector<128x224xbf16> to vector<32x224xbf16>
    %cst_16 = arith.constant 0.000000e+00 : bf16
    %34 = vector.broadcast %cst_16 : bf16 to vector<1x224xbf16>
    %35 = vector.extract_strided_slice %33 {offsets = [0, 0], sizes = [31, 224], strides = [1, 1]} : vector<32x224xbf16> to vector<31x224xbf16>
    %36 = tpu.concatenate %34, %35 in 0 : vector<1x224xbf16>, vector<31x224xbf16> -> vector<32x224xbf16>
    %c3 = arith.constant 3 : index
    %c0_17 = arith.constant 0 : index
    %c0_18 = arith.constant 0 : index
    %37 = vector.load %arg3[%c3, %c0_17, %c0_18] : memref<9x32x1xbf16, #tpu.memory_space<vmem>>, vector<1x32x1xbf16>
    %38 = vector.shape_cast %37 : vector<1x32x1xbf16> to vector<32x1xbf16>
    %39 = vector.broadcast %38 : vector<32x1xbf16> to vector<32x224xbf16>
    %40 = arith.mulf %36, %39 : vector<32x224xbf16>
    %41 = vector.extract_strided_slice %8 {offsets = [0, 0], sizes = [32, 224], strides = [1, 1]} : vector<128x224xbf16> to vector<32x224xbf16>
    %42 = vector.extract_strided_slice %8 {offsets = [32, 0], sizes = [32, 224], strides = [1, 1]} : vector<128x224xbf16> to vector<32x224xbf16>
    %43 = vector.extract_strided_slice %8 {offsets = [96, 0], sizes = [32, 224], strides = [1, 1]} : vector<128x224xbf16> to vector<32x224xbf16>
    %cst_19 = arith.constant 0.000000e+00 : bf16
    %44 = vector.broadcast %cst_19 : bf16 to vector<1x224xbf16>
    %45 = vector.extract_strided_slice %43 {offsets = [0, 0], sizes = [31, 224], strides = [1, 1]} : vector<32x224xbf16> to vector<31x224xbf16>
    %46 = tpu.concatenate %44, %45 in 0 : vector<1x224xbf16>, vector<31x224xbf16> -> vector<32x224xbf16>
    %c6 = arith.constant 6 : index
    %c0_20 = arith.constant 0 : index
    %c0_21 = arith.constant 0 : index
    %47 = vector.load %arg3[%c6, %c0_20, %c0_21] : memref<9x32x1xbf16, #tpu.memory_space<vmem>>, vector<1x32x1xbf16>
    %48 = vector.shape_cast %47 : vector<1x32x1xbf16> to vector<32x1xbf16>
    %49 = vector.broadcast %48 : vector<32x1xbf16> to vector<32x224xbf16>
    %50 = arith.mulf %46, %49 : vector<32x224xbf16>
    %51 = vector.extract_strided_slice %8 {offsets = [64, 0], sizes = [32, 224], strides = [1, 1]} : vector<128x224xbf16> to vector<32x224xbf16>
    %52 = vector.extract_strided_slice %8 {offsets = [96, 0], sizes = [32, 224], strides = [1, 1]} : vector<128x224xbf16> to vector<32x224xbf16>
    %53 = tpu.concatenate %16, %24, %32, %40, %41, %42, %50, %51, %52 in 1 : vector<32x224xbf16>, vector<32x224xbf16>, vector<32x224xbf16>, vector<32x224xbf16>, vector<32x224xbf16>, vector<32x224xbf16>, vector<32x224xbf16>, vector<32x224xbf16>, vector<32x224xbf16> -> vector<32x2016xbf16>
    %c0_22 = arith.constant 0 : index
    %c0_23 = arith.constant 0 : index
    %54 = vector.load %arg7[%c0_22, %c0_23] : memref<2016x224xbf16, #tpu.memory_space<vmem>>, vector<2016x224xbf16>
    %cst_24 = arith.constant dense<0.000000e+00> : vector<32x224xf32>
    %55 = tpu.matmul %53, %54, %cst_24 {dimension_numbers = #tpu.dot_dimension_numbers<[1], [0], [0], [1], [0, 0, 1, 1], [], []>} : vector<32x2016xbf16>, vector<2016x224xbf16>, vector<32x224xf32> -> vector<32x224xf32>
    %c0_25 = arith.constant 0 : index
    %c0_26 = arith.constant 0 : index
    %56 = vector.load %arg8[%c0_25, %c0_26] : memref<1x224xf32, #tpu.memory_space<vmem>>, vector<1x224xf32>
    %57 = vector.broadcast %56 : vector<1x224xf32> to vector<32x224xf32>
    %58 = arith.addf %55, %57 : vector<32x224xf32>
    %cst_27 = arith.constant 0.000000e+00 : f32
    %59 = vector.broadcast %cst_27 : f32 to vector<32x224xf32>
    %60 = arith.maximumf %58, %59 : vector<32x224xf32>
    %61 = arith.truncf %60 : vector<32x224xf32> to vector<32x224xbf16>
    %c0_28 = arith.constant 0 : index
    %c0_29 = arith.constant 0 : index
    %62 = vector.load %arg0[%c0_28, %c0_29] : memref<128x512xbf16, #tpu.memory_space<vmem>>, vector<32x512xbf16>
    %c0_30 = arith.constant 0 : index
    %c0_31 = arith.constant 0 : index
    %63 = vector.load %arg11[%c0_30, %c0_31] : memref<512x896xbf16, #tpu.memory_space<vmem>>, vector<512x896xbf16>
    %cst_32 = arith.constant dense<0.000000e+00> : vector<32x896xf32>
    %64 = tpu.matmul %62, %63, %cst_32 {dimension_numbers = #tpu.dot_dimension_numbers<[1], [0], [0], [1], [0, 0, 1, 1], [], []>} : vector<32x512xbf16>, vector<512x896xbf16>, vector<32x896xf32> -> vector<32x896xf32>
    %c0_33 = arith.constant 0 : index
    %c0_34 = arith.constant 0 : index
    %65 = vector.load %arg12[%c0_33, %c0_34] : memref<1x896xf32, #tpu.memory_space<vmem>>, vector<1x896xf32>
    %66 = vector.broadcast %65 : vector<1x896xf32> to vector<32x896xf32>
    %67 = arith.addf %64, %66 : vector<32x896xf32>
    %c0_35 = arith.constant 0 : index
    %c0_36 = arith.constant 0 : index
    %68 = vector.load %arg9[%c0_35, %c0_36] : memref<224x896xbf16, #tpu.memory_space<vmem>>, vector<224x896xbf16>
    %cst_37 = arith.constant dense<0.000000e+00> : vector<32x896xf32>
    %69 = tpu.matmul %61, %68, %cst_37 {dimension_numbers = #tpu.dot_dimension_numbers<[1], [0], [0], [1], [0, 0, 1, 1], [], []>} : vector<32x224xbf16>, vector<224x896xbf16>, vector<32x896xf32> -> vector<32x896xf32>
    %c0_38 = arith.constant 0 : index
    %c0_39 = arith.constant 0 : index
    %70 = vector.load %arg10[%c0_38, %c0_39] : memref<1x896xf32, #tpu.memory_space<vmem>>, vector<1x896xf32>
    %71 = vector.broadcast %70 : vector<1x896xf32> to vector<32x896xf32>
    %72 = arith.addf %69, %71 : vector<32x896xf32>
    %73 = arith.addf %72, %67 : vector<32x896xf32>
    %cst_40 = arith.constant 0.000000e+00 : f32
    %74 = vector.broadcast %cst_40 : f32 to vector<32x896xf32>
    %75 = arith.maximumf %73, %74 : vector<32x896xf32>
    %c0_41 = arith.constant 0 : index
    %c0_42 = arith.constant 0 : index
    %76 = vector.load %arg1[%c0_41, %c0_42] : memref<32x512xbf16, #tpu.memory_space<vmem>>, vector<32x512xbf16>
    %c0_43 = arith.constant 0 : index
    %c0_44 = arith.constant 0 : index
    %77 = vector.load %arg13[%c0_43, %c0_44] : memref<512x64xbf16, #tpu.memory_space<vmem>>, vector<512x64xbf16>
    %cst_45 = arith.constant dense<0.000000e+00> : vector<32x64xf32>
    %78 = tpu.matmul %76, %77, %cst_45 {dimension_numbers = #tpu.dot_dimension_numbers<[1], [0], [0], [1], [0, 0, 1, 1], [], []>} : vector<32x512xbf16>, vector<512x64xbf16>, vector<32x64xf32> -> vector<32x64xf32>
    %c0_46 = arith.constant 0 : index
    %c0_47 = arith.constant 0 : index
    %79 = vector.load %arg14[%c0_46, %c0_47] : memref<1x64xf32, #tpu.memory_space<vmem>>, vector<1x64xf32>
    %80 = vector.broadcast %79 : vector<1x64xf32> to vector<32x64xf32>
    %81 = arith.addf %78, %80 : vector<32x64xf32>
    %cst_48 = arith.constant 0.000000e+00 : f32
    %82 = vector.broadcast %cst_48 : f32 to vector<32x64xf32>
    %83 = arith.maximumf %81, %82 : vector<32x64xf32>
    %84 = tpu.concatenate %75, %83 in 1 : vector<32x896xf32>, vector<32x64xf32> -> vector<32x960xf32>
    %c0_49 = arith.constant 0 : index
    %c0_50 = arith.constant 0 : index
    %85 = vector.load %arg23[%c0_49, %c0_50] : memref<32x960xf32, #tpu.memory_space<vmem>>, vector<32x960xf32>
    tpu.vector_store %arg23[%c0_49, %c0_50], %84 {strides = array<i32>} : memref<32x960xf32, #tpu.memory_space<vmem>>, vector<32x960xf32>,
    %c0_51 = arith.constant 0 : index
    %c0_52 = arith.constant 0 : index
    %86 = vector.load %arg23[%c0_51, %c0_52] : memref<32x960xf32, #tpu.memory_space<vmem>>, vector<32x960xf32>
    %87 = arith.truncf %86 : vector<32x960xf32> to vector<32x960xbf16>
    %c0_53 = arith.constant 0 : index
    %c0_54 = arith.constant 0 : index
    %88 = vector.load %arg15[%c0_53, %c0_54] : memref<960x240xbf16, #tpu.memory_space<vmem>>, vector<960x240xbf16>
    %cst_55 = arith.constant dense<0.000000e+00> : vector<32x240xf32>
    %89 = tpu.matmul %87, %88, %cst_55 {dimension_numbers = #tpu.dot_dimension_numbers<[1], [0], [0], [1], [0, 0, 1, 1], [], []>} : vector<32x960xbf16>, vector<960x240xbf16>, vector<32x240xf32> -> vector<32x240xf32>
    %c0_56 = arith.constant 0 : index
    %c0_57 = arith.constant 0 : index
    %90 = vector.load %arg16[%c0_56, %c0_57] : memref<1x240xf32, #tpu.memory_space<vmem>>, vector<1x240xf32>
    %91 = vector.broadcast %90 : vector<1x240xf32> to vector<32x240xf32>
    %92 = arith.addf %89, %91 : vector<32x240xf32>
    %cst_58 = arith.constant 0.000000e+00 : f32
    %93 = vector.broadcast %cst_58 : f32 to vector<32x240xf32>
    %94 = arith.maximumf %92, %93 : vector<32x240xf32>
    %95 = arith.truncf %94 : vector<32x240xf32> to vector<32x240xbf16>
    %cst_59 = arith.constant 0.000000e+00 : bf16
    %96 = vector.broadcast %cst_59 : bf16 to vector<5x240xbf16>
    %97 = vector.extract_strided_slice %95 {offsets = [0, 0], sizes = [27, 240], strides = [1, 1]} : vector<32x240xbf16> to vector<27x240xbf16>
    %98 = tpu.concatenate %96, %97 in 0 : vector<5x240xbf16>, vector<27x240xbf16> -> vector<32x240xbf16>
    %c0_60 = arith.constant 0 : index
    %c0_61 = arith.constant 0 : index
    %c0_62 = arith.constant 0 : index
    %99 = vector.load %arg4[%c0_60, %c0_61, %c0_62] : memref<9x32x1xbf16, #tpu.memory_space<vmem>>, vector<1x32x1xbf16>
    %100 = vector.shape_cast %99 : vector<1x32x1xbf16> to vector<32x1xbf16>
    %101 = vector.broadcast %100 : vector<32x1xbf16> to vector<32x240xbf16>
    %102 = arith.mulf %98, %101 : vector<32x240xbf16>
    %cst_63 = arith.constant 0.000000e+00 : bf16
    %103 = vector.broadcast %cst_63 : bf16 to vector<4x240xbf16>
    %104 = vector.extract_strided_slice %95 {offsets = [0, 0], sizes = [28, 240], strides = [1, 1]} : vector<32x240xbf16> to vector<28x240xbf16>
    %105 = tpu.concatenate %103, %104 in 0 : vector<4x240xbf16>, vector<28x240xbf16> -> vector<32x240xbf16>
    %c1_64 = arith.constant 1 : index
    %c0_65 = arith.constant 0 : index
    %c0_66 = arith.constant 0 : index
    %106 = vector.load %arg4[%c1_64, %c0_65, %c0_66] : memref<9x32x1xbf16, #tpu.memory_space<vmem>>, vector<1x32x1xbf16>
    %107 = vector.shape_cast %106 : vector<1x32x1xbf16> to vector<32x1xbf16>
    %108 = vector.broadcast %107 : vector<32x1xbf16> to vector<32x240xbf16>
    %109 = arith.mulf %105, %108 : vector<32x240xbf16>
    %cst_67 = arith.constant 0.000000e+00 : bf16
    %110 = vector.broadcast %cst_67 : bf16 to vector<3x240xbf16>
    %111 = vector.extract_strided_slice %95 {offsets = [0, 0], sizes = [29, 240], strides = [1, 1]} : vector<32x240xbf16> to vector<29x240xbf16>
    %112 = tpu.concatenate %110, %111 in 0 : vector<3x240xbf16>, vector<29x240xbf16> -> vector<32x240xbf16>
    %c2_68 = arith.constant 2 : index
    %c0_69 = arith.constant 0 : index
    %c0_70 = arith.constant 0 : index
    %113 = vector.load %arg4[%c2_68, %c0_69, %c0_70] : memref<9x32x1xbf16, #tpu.memory_space<vmem>>, vector<1x32x1xbf16>
    %114 = vector.shape_cast %113 : vector<1x32x1xbf16> to vector<32x1xbf16>
    %115 = vector.broadcast %114 : vector<32x1xbf16> to vector<32x240xbf16>
    %116 = arith.mulf %112, %115 : vector<32x240xbf16>
    %cst_71 = arith.constant 0.000000e+00 : bf16
    %117 = vector.broadcast %cst_71 : bf16 to vector<1x240xbf16>
    %118 = vector.extract_strided_slice %95 {offsets = [0, 0], sizes = [31, 240], strides = [1, 1]} : vector<32x240xbf16> to vector<31x240xbf16>
    %119 = tpu.concatenate %117, %118 in 0 : vector<1x240xbf16>, vector<31x240xbf16> -> vector<32x240xbf16>
    %c3_72 = arith.constant 3 : index
    %c0_73 = arith.constant 0 : index
    %c0_74 = arith.constant 0 : index
    %120 = vector.load %arg4[%c3_72, %c0_73, %c0_74] : memref<9x32x1xbf16, #tpu.memory_space<vmem>>, vector<1x32x1xbf16>
    %121 = vector.shape_cast %120 : vector<1x32x1xbf16> to vector<32x1xbf16>
    %122 = vector.broadcast %121 : vector<32x1xbf16> to vector<32x240xbf16>
    %123 = arith.mulf %119, %122 : vector<32x240xbf16>
    %cst_75 = arith.constant 0.000000e+00 : bf16
    %124 = vector.broadcast %cst_75 : bf16 to vector<1x240xbf16>
    %125 = vector.extract_strided_slice %95 {offsets = [1, 0], sizes = [31, 240], strides = [1, 1]} : vector<32x240xbf16> to vector<31x240xbf16>
    %126 = tpu.concatenate %125, %124 in 0 : vector<31x240xbf16>, vector<1x240xbf16> -> vector<32x240xbf16>
    %c5 = arith.constant 5 : index
    %c0_76 = arith.constant 0 : index
    %c0_77 = arith.constant 0 : index
    %127 = vector.load %arg4[%c5, %c0_76, %c0_77] : memref<9x32x1xbf16, #tpu.memory_space<vmem>>, vector<1x32x1xbf16>
    %128 = vector.shape_cast %127 : vector<1x32x1xbf16> to vector<32x1xbf16>
    %129 = vector.broadcast %128 : vector<32x1xbf16> to vector<32x240xbf16>
    %130 = arith.mulf %126, %129 : vector<32x240xbf16>
    %cst_78 = arith.constant 0.000000e+00 : bf16
    %131 = vector.broadcast %cst_78 : bf16 to vector<3x240xbf16>
    %132 = vector.extract_strided_slice %95 {offsets = [3, 0], sizes = [29, 240], strides = [1, 1]} : vector<32x240xbf16> to vector<29x240xbf16>
    %133 = tpu.concatenate %132, %131 in 0 : vector<29x240xbf16>, vector<3x240xbf16> -> vector<32x240xbf16>
    %c6_79 = arith.constant 6 : index
    %c0_80 = arith.constant 0 : index
    %c0_81 = arith.constant 0 : index
    %134 = vector.load %arg4[%c6_79, %c0_80, %c0_81] : memref<9x32x1xbf16, #tpu.memory_space<vmem>>, vector<1x32x1xbf16>
    %135 = vector.shape_cast %134 : vector<1x32x1xbf16> to vector<32x1xbf16>
    %136 = vector.broadcast %135 : vector<32x1xbf16> to vector<32x240xbf16>
    %137 = arith.mulf %133, %136 : vector<32x240xbf16>
    %cst_82 = arith.constant 0.000000e+00 : bf16
    %138 = vector.broadcast %cst_82 : bf16 to vector<4x240xbf16>
    %139 = vector.extract_strided_slice %95 {offsets = [4, 0], sizes = [28, 240], strides = [1, 1]} : vector<32x240xbf16> to vector<28x240xbf16>
    %140 = tpu.concatenate %139, %138 in 0 : vector<28x240xbf16>, vector<4x240xbf16> -> vector<32x240xbf16>
    %c7 = arith.constant 7 : index
    %c0_83 = arith.constant 0 : index
    %c0_84 = arith.constant 0 : index
    %141 = vector.load %arg4[%c7, %c0_83, %c0_84] : memref<9x32x1xbf16, #tpu.memory_space<vmem>>, vector<1x32x1xbf16>
    %142 = vector.shape_cast %141 : vector<1x32x1xbf16> to vector<32x1xbf16>
    %143 = vector.broadcast %142 : vector<32x1xbf16> to vector<32x240xbf16>
    %144 = arith.mulf %140, %143 : vector<32x240xbf16>
    %cst_85 = arith.constant 0.000000e+00 : bf16
    %145 = vector.broadcast %cst_85 : bf16 to vector<5x240xbf16>
    %146 = vector.extract_strided_slice %95 {offsets = [5, 0], sizes = [27, 240], strides = [1, 1]} : vector<32x240xbf16> to vector<27x240xbf16>
    %147 = tpu.concatenate %146, %145 in 0 : vector<27x240xbf16>, vector<5x240xbf16> -> vector<32x240xbf16>
    %c8 = arith.constant 8 : index
    %c0_86 = arith.constant 0 : index
    %c0_87 = arith.constant 0 : index
    %148 = vector.load %arg4[%c8, %c0_86, %c0_87] : memref<9x32x1xbf16, #tpu.memory_space<vmem>>, vector<1x32x1xbf16>
    %149 = vector.shape_cast %148 : vector<1x32x1xbf16> to vector<32x1xbf16>
    %150 = vector.broadcast %149 : vector<32x1xbf16> to vector<32x240xbf16>
    %151 = arith.mulf %147, %150 : vector<32x240xbf16>
    %152 = tpu.concatenate %102, %109, %116, %123, %95, %130, %137, %144, %151 in 1 : vector<32x240xbf16>, vector<32x240xbf16>, vector<32x240xbf16>, vector<32x240xbf16>, vector<32x240xbf16>, vector<32x240xbf16>, vector<32x240xbf16>, vector<32x240xbf16>, vector<32x240xbf16> -> vector<32x2160xbf16>
    %c0_88 = arith.constant 0 : index
    %c0_89 = arith.constant 0 : index
    %153 = vector.load %arg17[%c0_88, %c0_89] : memref<2160x240xbf16, #tpu.memory_space<vmem>>, vector<2160x240xbf16>
    %cst_90 = arith.constant dense<0.000000e+00> : vector<32x240xf32>
    %154 = tpu.matmul %152, %153, %cst_90 {dimension_numbers = #tpu.dot_dimension_numbers<[1], [0], [0], [1], [0, 0, 1, 1], [], []>} : vector<32x2160xbf16>, vector<2160x240xbf16>, vector<32x240xf32> -> vector<32x240xf32>
    %c0_91 = arith.constant 0 : index
    %c0_92 = arith.constant 0 : index
    %155 = vector.load %arg18[%c0_91, %c0_92] : memref<1x240xf32, #tpu.memory_space<vmem>>, vector<1x240xf32>
    %156 = vector.broadcast %155 : vector<1x240xf32> to vector<32x240xf32>
    %157 = arith.addf %154, %156 : vector<32x240xf32>
    %cst_93 = arith.constant 0.000000e+00 : f32
    %158 = vector.broadcast %cst_93 : f32 to vector<32x240xf32>
    %159 = arith.maximumf %157, %158 : vector<32x240xf32>
    %160 = arith.truncf %159 : vector<32x240xf32> to vector<32x240xbf16>
    %c0_94 = arith.constant 0 : index
    %c0_95 = arith.constant 0 : index
    %161 = vector.load %arg19[%c0_94, %c0_95] : memref<240x960xbf16, #tpu.memory_space<vmem>>, vector<240x960xbf16>
    %cst_96 = arith.constant dense<0.000000e+00> : vector<32x960xf32>
    %162 = tpu.matmul %160, %161, %cst_96 {dimension_numbers = #tpu.dot_dimension_numbers<[1], [0], [0], [1], [0, 0, 1, 1], [], []>} : vector<32x240xbf16>, vector<240x960xbf16>, vector<32x960xf32> -> vector<32x960xf32>
    %c0_97 = arith.constant 0 : index
    %c0_98 = arith.constant 0 : index
    %163 = vector.load %arg20[%c0_97, %c0_98] : memref<1x960xf32, #tpu.memory_space<vmem>>, vector<1x960xf32>
    %164 = vector.broadcast %163 : vector<1x960xf32> to vector<32x960xf32>
    %165 = arith.addf %162, %164 : vector<32x960xf32>
    %c0_99 = arith.constant 0 : index
    %c0_100 = arith.constant 0 : index
    %166 = vector.load %arg23[%c0_99, %c0_100] : memref<32x960xf32, #tpu.memory_space<vmem>>, vector<32x960xf32>
    %167 = arith.addf %165, %166 : vector<32x960xf32>
    %cst_101 = arith.constant 0.000000e+00 : f32
    %168 = vector.broadcast %cst_101 : f32 to vector<32x960xf32>
    %169 = arith.maximumf %167, %168 : vector<32x960xf32>
    %c0_102 = arith.constant 0 : index
    %c0_103 = arith.constant 0 : index
    %170 = vector.load %arg2[%c0_102, %c0_103] : memref<32x512xbf16, #tpu.memory_space<vmem>>, vector<32x512xbf16>
    %c0_104 = arith.constant 0 : index
    %c0_105 = arith.constant 0 : index
    %171 = vector.load %arg21[%c0_104, %c0_105] : memref<512x64xbf16, #tpu.memory_space<vmem>>, vector<512x64xbf16>
    %cst_106 = arith.constant dense<0.000000e+00> : vector<32x64xf32>
    %172 = tpu.matmul %170, %171, %cst_106 {dimension_numbers = #tpu.dot_dimension_numbers<[1], [0], [0], [1], [0, 0, 1, 1], [], []>} : vector<32x512xbf16>, vector<512x64xbf16>, vector<32x64xf32> -> vector<32x64xf32>
    %c0_107 = arith.constant 0 : index
    %c0_108 = arith.constant 0 : index
    %173 = vector.load %arg22[%c0_107, %c0_108] : memref<1x64xf32, #tpu.memory_space<vmem>>, vector<1x64xf32>
    %174 = vector.broadcast %173 : vector<1x64xf32> to vector<32x64xf32>
    %175 = arith.addf %172, %174 : vector<32x64xf32>
    %cst_109 = arith.constant 0.000000e+00 : f32
    %176 = vector.broadcast %cst_109 : f32 to vector<32x64xf32>
    %177 = arith.maximumf %175, %176 : vector<32x64xf32>
    %178 = tpu.concatenate %169, %177 in 1 : vector<32x960xf32>, vector<32x64xf32> -> vector<32x1024xf32>
    %c0_110 = arith.constant 0 : index
    %c0_111 = arith.constant 0 : index
    %179 = vector.load %arg24[%c0_110, %c0_111] : memref<32x1024xf32, #tpu.memory_space<vmem>>, vector<32x1024xf32>
    tpu.vector_store %arg24[%c0_110, %c0_111], %178 {strides = array<i32>} : memref<32x1024xf32, #tpu.memory_space<vmem>>, vector<32x1024xf32>,
    return
  }
}

</mosaic_0001>

<llo_original>
// kernel: branch1_forward.1
$region0: #{branch1_forward.1}
  #allocation0 [shape = 'u32[]', space=smem, size = 0x4, offset = 0x4, fixed_abs, tag = 'smem constant byte address 0x4 - core index']
  #allocation1 [shape = 'u32[72,128]{1,0:T(1,128)}', space=vmem, size = 0x9000, scoped, tag = 'internal scratch']
  %s0 = inlined_call_operand.vmem [shape: bf16[128,512], index: 0, kind: input, shape index: {}]
  %s1 = inlined_call_operand.vmem [shape: bf16[32,512], index: 1, kind: input, shape index: {}]
  %s2 = inlined_call_operand.vmem [shape: bf16[32,512], index: 2, kind: input, shape index: {}]
  %s3 = inlined_call_operand.vmem [shape: bf16[9,32,1], index: 3, kind: input, shape index: {}]
  %s4 = inlined_call_operand.vmem [shape: bf16[9,32,1], index: 4, kind: input, shape index: {}]
  %s5 = inlined_call_operand.vmem [shape: bf16[512,224], index: 5, kind: input, shape index: {}]
  %s6 = inlined_call_operand.vmem [shape: f32[1,224], index: 6, kind: input, shape index: {}]
  %s7 = inlined_call_operand.vmem [shape: bf16[2016,224], index: 7, kind: input, shape index: {}]
  %s8 = inlined_call_operand.vmem [shape: f32[1,224], index: 8, kind: input, shape index: {}]
  %s9 = inlined_call_operand.vmem [shape: bf16[224,896], index: 9, kind: input, shape index: {}]
  %s10 = inlined_call_operand.vmem [shape: f32[1,896], index: 10, kind: input, shape index: {}]
  %s11 = inlined_call_operand.vmem [shape: bf16[512,896], index: 11, kind: input, shape index: {}]
  %s12 = inlined_call_operand.vmem [shape: f32[1,896], index: 12, kind: input, shape index: {}]
  %s13 = inlined_call_operand.vmem [shape: bf16[512,64], index: 13, kind: input, shape index: {}]
  %s14 = inlined_call_operand.vmem [shape: f32[1,64], index: 14, kind: input, shape index: {}]
  %s15 = inlined_call_operand.vmem [shape: bf16[960,240], index: 15, kind: input, shape index: {}]
  %s16 = inlined_call_operand.vmem [shape: f32[1,240], index: 16, kind: input, shape index: {}]
  %s17 = inlined_call_operand.vmem [shape: bf16[2160,240], index: 17, kind: input, shape index: {}]
  %s18 = inlined_call_operand.vmem [shape: f32[1,240], index: 18, kind: input, shape index: {}]
  %s19 = inlined_call_operand.vmem [shape: bf16[240,960], index: 19, kind: input, shape index: {}]
  %s20 = inlined_call_operand.vmem [shape: f32[1,960], index: 20, kind: input, shape index: {}]
  %s21 = inlined_call_operand.vmem [shape: bf16[512,64], index: 21, kind: input, shape index: {}]
  %s22 = inlined_call_operand.vmem [shape: f32[1,64], index: 22, kind: input, shape index: {}]
  %s23 = inlined_call_operand.vmem [shape: f32[32,960], index: 23, kind: output, shape index: {0}]
  %s24 = inlined_call_operand.vmem [shape: f32[32,1024], index: 24, kind: output, shape index: {1}]
  %25 = xla_tuple %s23, %s24
  %s26 = sld [smem:[#allocation0]]
  $region110: #{branch1_forward.1} parent=0
    _
  %s28 = ssub.s32 1, %s26
  %s29 = scalar_select 0, %s28, %s26
  // Predicated region
  $region2: #{branch1_forward.1} parent=0 // pred_check
    _
  $region3: #{branch1_forward.1} parent=0 // pred_check_branch
    %31 = sbr.rel (0) target = $region5
  $region4: #{branch1_forward.1} parent=0 // pred_region
    _
  $region5: #{branch1_forward.1} parent=0 // pred_fallthru
    _
  // Predicated region
  $region6: #{branch1_forward.1} parent=0 // pred_check
    _
  $region7: #{branch1_forward.1} parent=0 // pred_check_branch
    %33 = sbr.rel (0) target = $region9
  $region8: #{branch1_forward.1} parent=0 // pred_region
    _
  $region9: #{branch1_forward.1} parent=0 // pred_fallthru
    _
  // Predicated region
  $region10: #{branch1_forward.1} parent=0 // pred_check
    _
  $region11: #{branch1_forward.1} parent=0 // pred_check_branch
    %35 = sbr.rel (0) target = $region13
  $region12: #{branch1_forward.1} parent=0 // pred_region
    _
  $region13: #{branch1_forward.1} parent=0 // pred_fallthru
    _
  // Predicated region
  $region14: #{branch1_forward.1} parent=0 // pred_check
    _
  $region15: #{branch1_forward.1} parent=0 // pred_check_branch
    %37 = sbr.rel (0) target = $region17
  $region16: #{branch1_forward.1} parent=0 // pred_region
    _
  $region17: #{branch1_forward.1} parent=0 // pred_fallthru
    _
  // Predicated region
  $region18: #{branch1_forward.1} parent=0 // pred_check
    _
  $region19: #{branch1_forward.1} parent=0 // pred_check_branch
    %39 = sbr.rel (0) target = $region21
  $region20: #{branch1_forward.1} parent=0 // pred_region
    _
  $region21: #{branch1_forward.1} parent=0 // pred_fallthru
    _
  // Predicated region
  $region22: #{branch1_forward.1} parent=0 // pred_check
    _
  $region23: #{branch1_forward.1} parent=0 // pred_check_branch
    %41 = sbr.rel (0) target = $region25
  $region24: #{branch1_forward.1} parent=0 // pred_region
    _
  $region25: #{branch1_forward.1} parent=0 // pred_fallthru
    _
  // Predicated region
  $region26: #{branch1_forward.1} parent=0 // pred_check
    _
  $region27: #{branch1_forward.1} parent=0 // pred_check_branch
    %43 = sbr.rel (0) target = $region29
  $region28: #{branch1_forward.1} parent=0 // pred_region
    _
  $region29: #{branch1_forward.1} parent=0 // pred_fallthru
    _
  // Predicated region
  $region30: #{branch1_forward.1} parent=0 // pred_check
    _
  $region31: #{branch1_forward.1} parent=0 // pred_check_branch
    %45 = sbr.rel (0) target = $region33
  $region32: #{branch1_forward.1} parent=0 // pred_region
    _
  $region33: #{branch1_forward.1} parent=0 // pred_fallthru
    _
  // Predicated region
  $region34: #{branch1_forward.1} parent=0 // pred_check
    _
  $region35: #{branch1_forward.1} parent=0 // pred_check_branch
    %47 = sbr.rel (0) target = $region37
  $region36: #{branch1_forward.1} parent=0 // pred_region
    _
  $region37: #{branch1_forward.1} parent=0 // pred_fallthru
    _
  // Predicated region
  $region38: #{branch1_forward.1} parent=0 // pred_check
    _
  $region39: #{branch1_forward.1} parent=0 // pred_check_branch
    %49 = sbr.rel (0) target = $region41
  $region40: #{branch1_forward.1} parent=0 // pred_region
    _
  $region41: #{branch1_forward.1} parent=0 // pred_fallthru
    _
  // Predicated region
  $region42: #{branch1_forward.1} parent=0 // pred_check
    _
  $region43: #{branch1_forward.1} parent=0 // pred_check_branch
    %51 = sbr.rel (0) target = $region45
  $region44: #{branch1_forward.1} parent=0 // pred_region
    _
  $region45: #{branch1_forward.1} parent=0 // pred_fallthru
    _
  // Predicated region
  $region46: #{branch1_forward.1} parent=0 // pred_check
    _
  $region47: #{branch1_forward.1} parent=0 // pred_check_branch
    %53 = sbr.rel (0) target = $region49
  $region48: #{branch1_forward.1} parent=0 // pred_region
    _
  $region49: #{branch1_forward.1} parent=0 // pred_fallthru
    _
  // Predicated region
  $region50: #{branch1_forward.1} parent=0 // pred_check
    _
  $region51: #{branch1_forward.1} parent=0 // pred_check_branch
    %55 = sbr.rel (0) target = $region53
  $region52: #{branch1_forward.1} parent=0 // pred_region
    _
  $region53: #{branch1_forward.1} parent=0 // pred_fallthru
    _
  // Predicated region
  $region54: #{branch1_forward.1} parent=0 // pred_check
    _
  $region55: #{branch1_forward.1} parent=0 // pred_check_branch
    %57 = sbr.rel (0) target = $region57
  $region56: #{branch1_forward.1} parent=0 // pred_region
    _
  $region57: #{branch1_forward.1} parent=0 // pred_fallthru
    _
  // Predicated region
  $region58: #{branch1_forward.1} parent=0 // pred_check
    _
  $region59: #{branch1_forward.1} parent=0 // pred_check_branch
    %59 = sbr.rel (0) target = $region61
  $region60: #{branch1_forward.1} parent=0 // pred_region
    _
  $region61: #{branch1_forward.1} parent=0 // pred_fallthru
    _
  // Predicated region
  $region62: #{branch1_forward.1} parent=0 // pred_check
    _
  $region63: #{branch1_forward.1} parent=0 // pred_check_branch
    %61 = sbr.rel (0) target = $region65
  $region64: #{branch1_forward.1} parent=0 // pred_region
    _
  $region65: #{branch1_forward.1} parent=0 // pred_fallthru
    _
  // Predicated region
  $region66: #{branch1_forward.1} parent=0 // pred_check
    _
  $region67: #{branch1_forward.1} parent=0 // pred_check_branch
    %63 = sbr.rel (0) target = $region69
  $region68: #{branch1_forward.1} parent=0 // pred_region
    _
  $region69: #{branch1_forward.1} parent=0 // pred_fallthru
    _
  // Predicated region
  $region70: #{branch1_forward.1} parent=0 // pred_check
    _
  $region71: #{branch1_forward.1} parent=0 // pred_check_branch
    %65 = sbr.rel (0) target = $region73
  $region72: #{branch1_forward.1} parent=0 // pred_region
    _
  $region73: #{branch1_forward.1} parent=0 // pred_fallthru
    _
  // Predicated region
  $region74: #{branch1_forward.1} parent=0 // pred_check
    _
  $region75: #{branch1_forward.1} parent=0 // pred_check_branch
    %67 = sbr.rel (0) target = $region77
  $region76: #{branch1_forward.1} parent=0 // pred_region
    _
  $region77: #{branch1_forward.1} parent=0 // pred_fallthru
    _
  // Predicated region
  $region78: #{branch1_forward.1} parent=0 // pred_check
    _
  $region79: #{branch1_forward.1} parent=0 // pred_check_branch
    %69 = sbr.rel (0) target = $region81
  $region80: #{branch1_forward.1} parent=0 // pred_region
    _
  $region81: #{branch1_forward.1} parent=0 // pred_fallthru
    _
  // Predicated region
  $region82: #{branch1_forward.1} parent=0 // pred_check
    _
  $region83: #{branch1_forward.1} parent=0 // pred_check_branch
    %71 = sbr.rel (0) target = $region85
  $region84: #{branch1_forward.1} parent=0 // pred_region
    _
  $region85: #{branch1_forward.1} parent=0 // pred_fallthru
    _
  // Predicated region
  $region86: #{branch1_forward.1} parent=0 // pred_check
    _
  $region87: #{branch1_forward.1} parent=0 // pred_check_branch
    %73 = sbr.rel (0) target = $region89
  $region88: #{branch1_forward.1} parent=0 // pred_region
    _
  $region89: #{branch1_forward.1} parent=0 // pred_fallthru
    _
  // Predicated region
  $region90: #{branch1_forward.1} parent=0 // pred_check
    _
  $region91: #{branch1_forward.1} parent=0 // pred_check_branch
    %75 = sbr.rel (0) target = $region93
  $region92: #{branch1_forward.1} parent=0 // pred_region
    _
  $region93: #{branch1_forward.1} parent=0 // pred_fallthru
    _
  %v77 = vld [vmem:[%s0] sm:$0xff]
  %v78 = vld [vmem:[%s0 + $0x8] sm:$0xff]
  %v79 = vld [vmem:[%s0 + $0x10] sm:$0xff]
  %v80 = vld [vmem:[%s0 + $0x18] sm:$0xff]
  %v81 = vld [vmem:[%s0 + $0x20] sm:$0xff]
  %v82 = vld [vmem:[%s0 + $0x28] sm:$0xff]
  %v83 = vld [vmem:[%s0 + $0x30] sm:$0xff]
  %v84 = vld [vmem:[%s0 + $0x38] sm:$0xff]
  %v85 = vld [vmem:[%s0 + $0x40] sm:$0xff]
  %v86 = vld [vmem:[%s0 + $0x48] sm:$0xff]
  %v87 = vld [vmem:[%s0 + $0x50] sm:$0xff]
  %v88 = vld [vmem:[%s0 + $0x58] sm:$0xff]
  %v89 = vld [vmem:[%s0 + $0x60] sm:$0xff]
  %v90 = vld [vmem:[%s0 + $0x68] sm:$0xff]
  %v91 = vld [vmem:[%s0 + $0x70] sm:$0xff]
  %v92 = vld [vmem:[%s0 + $0x78] sm:$0xff]
  %v93 = vld [vmem:[%s0 + $0x80] sm:$0xff]
  %v94 = vld [vmem:[%s0 + $0x88] sm:$0xff]
  %v95 = vld [vmem:[%s0 + $0x90] sm:$0xff]
  %v96 = vld [vmem:[%s0 + $0x98] sm:$0xff]
  %v97 = vld [vmem:[%s0 + $0xa0] sm:$0xff]
  %v98 = vld [vmem:[%s0 + $0xa8] sm:$0xff]
  %v99 = vld [vmem:[%s0 + $0xb0] sm:$0xff]
  %v100 = vld [vmem:[%s0 + $0xb8] sm:$0xff]
  %v101 = vld [vmem:[%s0 + $0xc0] sm:$0xff]
  %v102 = vld [vmem:[%s0 + $0xc8] sm:$0xff]
  %v103 = vld [vmem:[%s0 + $0xd0] sm:$0xff]
  %v104 = vld [vmem:[%s0 + $0xd8] sm:$0xff]
  %v105 = vld [vmem:[%s0 + $0xe0] sm:$0xff]
  %v106 = vld [vmem:[%s0 + $0xe8] sm:$0xff]
  %v107 = vld [vmem:[%s0 + $0xf0] sm:$0xff]
  %v108 = vld [vmem:[%s0 + $0xf8] sm:$0xff]
  %v109 = vld [vmem:[%s5] sm:$0xff]
  %v110 = vld [vmem:[%s5 + $0x8] sm:$0xff]
  %v111 = vld [vmem:[%s5 + $0x10] sm:$0xff]
  %v112 = vld [vmem:[%s5 + $0x18] sm:$0xff]
  %v113 = vld [vmem:[%s5 + $0x20] sm:$0xff]
  %v114 = vld [vmem:[%s5 + $0x28] sm:$0xff]
  %v115 = vld [vmem:[%s5 + $0x30] sm:$0xff]
  %v116 = vld [vmem:[%s5 + $0x38] sm:$0xff]
  %v117 = vld [vmem:[%s5 + $0x40] sm:$0xff]
  %v118 = vld [vmem:[%s5 + $0x48] sm:$0xff]
  %v119 = vld [vmem:[%s5 + $0x50] sm:$0xff]
  %v120 = vld [vmem:[%s5 + $0x58] sm:$0xff]
  %v121 = vld [vmem:[%s5 + $0x60] sm:$0xff]
  %v122 = vld [vmem:[%s5 + $0x68] sm:$0xff]
  %v123 = vld [vmem:[%s5 + $0x70] sm:$0xff]
  %v124 = vld [vmem:[%s5 + $0x78] sm:$0xff]
  %v125 = vld [vmem:[%s5 + $0x80] sm:$0xff]
  %v126 = vld [vmem:[%s5 + $0x88] sm:$0xff]
  %v127 = vld [vmem:[%s5 + $0x90] sm:$0xff]
  %v128 = vld [vmem:[%s5 + $0x98] sm:$0xff]
  %v129 = vld [vmem:[%s5 + $0xa0] sm:$0xff]
  %v130 = vld [vmem:[%s5 + $0xa8] sm:$0xff]
  %v131 = vld [vmem:[%s5 + $0xb0] sm:$0xff]
  %v132 = vld [vmem:[%s5 + $0xb8] sm:$0xff]
  %v133 = vld [vmem:[%s5 + $0xc0] sm:$0xff]
  %v134 = vld [vmem:[%s5 + $0xc8] sm:$0xff]
  %v135 = vld [vmem:[%s5 + $0xd0] sm:$0xff]
  %v136 = vld [vmem:[%s5 + $0xd8] sm:$0xff]
  %v137 = vld [vmem:[%s5 + $0xe0] sm:$0xff]
  %v138 = vld [vmem:[%s5 + $0xe8] sm:$0xff]
  %v139 = vld [vmem:[%s5 + $0xf0] sm:$0xff]
  %v140 = vld [vmem:[%s5 + $0xf8] sm:$0xff]
  %v141 = vld [vmem:[%s5 + $0x100] sm:$0xff]
  %v142 = vld [vmem:[%s5 + $0x108] sm:$0xff]
  %v143 = vld [vmem:[%s5 + $0x110] sm:$0xff]
  %v144 = vld [vmem:[%s5 + $0x118] sm:$0xff]
  %v145 = vld [vmem:[%s5 + $0x120] sm:$0xff]
  %v146 = vld [vmem:[%s5 + $0x128] sm:$0xff]
  %v147 = vld [vmem:[%s5 + $0x130] sm:$0xff]
  %v148 = vld [vmem:[%s5 + $0x138] sm:$0xff]
  %v149 = vld [vmem:[%s5 + $0x140] sm:$0xff]
  %v150 = vld [vmem:[%s5 + $0x148] sm:$0xff]
  %v151 = vld [vmem:[%s5 + $0x150] sm:$0xff]
  %v152 = vld [vmem:[%s5 + $0x158] sm:$0xff]
  %v153 = vld [vmem:[%s5 + $0x160] sm:$0xff]
  %v154 = vld [vmem:[%s5 + $0x168] sm:$0xff]
  %v155 = vld [vmem:[%s5 + $0x170] sm:$0xff]
  %v156 = vld [vmem:[%s5 + $0x178] sm:$0xff]
  %v157 = vld [vmem:[%s5 + $0x180] sm:$0xff]
  %v158 = vld [vmem:[%s5 + $0x188] sm:$0xff]
  %v159 = vld [vmem:[%s5 + $0x190] sm:$0xff]
  %v160 = vld [vmem:[%s5 + $0x198] sm:$0xff]
  %v161 = vld [vmem:[%s5 + $0x1a0] sm:$0xff]
  %v162 = vld [vmem:[%s5 + $0x1a8] sm:$0xff]
  %v163 = vld [vmem:[%s5 + $0x1b0] sm:$0xff]
  %v164 = vld [vmem:[%s5 + $0x1b8] sm:$0xff]
  %v165 = vld [vmem:[%s5 + $0x1c0] sm:$0xff]
  %v166 = vld [vmem:[%s5 + $0x1c8] sm:$0xff]
  %v167 = vld [vmem:[%s5 + $0x1d0] sm:$0xff]
  %v168 = vld [vmem:[%s5 + $0x1d8] sm:$0xff]
  %v169 = vld [vmem:[%s5 + $0x1e0] sm:$0xff]
  %v170 = vld [vmem:[%s5 + $0x1e8] sm:$0xff]
  %v171 = vld [vmem:[%s5 + $0x1f0] sm:$0xff]
  %v172 = vld [vmem:[%s5 + $0x1f8] sm:$0xff]
  %v173 = vld [vmem:[%s6] sm:$0x3]
  %v175 = vperm.slane %v173, 0
  %v176 = vperm.slane %v173, 1
  %v211 = vunpack.c.l.b16 %v77
  %v212 = vunpack.c.h.b16 %v77
  %v213 = vunpack.c.l.b16 %v78
  %v214 = vunpack.c.h.b16 %v78
  %v215 = vunpack.c.l.b16 %v79
  %v216 = vunpack.c.h.b16 %v79
  %v217 = vunpack.c.l.b16 %v80
  %v218 = vunpack.c.h.b16 %v80
  %v219 = vunpack.c.l.b16 %v81
  %v220 = vunpack.c.h.b16 %v81
  %v221 = vunpack.c.l.b16 %v82
  %v222 = vunpack.c.h.b16 %v82
  %v223 = vunpack.c.l.b16 %v83
  %v224 = vunpack.c.h.b16 %v83
  %v225 = vunpack.c.l.b16 %v84
  %v226 = vunpack.c.h.b16 %v84
  %v227 = vunpack.c.l.b16 %v85
  %v228 = vunpack.c.h.b16 %v85
  %v229 = vunpack.c.l.b16 %v86
  %v230 = vunpack.c.h.b16 %v86
  %v231 = vunpack.c.l.b16 %v87
  %v232 = vunpack.c.h.b16 %v87
  %v233 = vunpack.c.l.b16 %v88
  %v234 = vunpack.c.h.b16 %v88
  %v235 = vunpack.c.l.b16 %v89
  %v236 = vunpack.c.h.b16 %v89
  %v237 = vunpack.c.l.b16 %v90
  %v238 = vunpack.c.h.b16 %v90
  %v239 = vunpack.c.l.b16 %v91
  %v240 = vunpack.c.h.b16 %v91
  %v241 = vunpack.c.l.b16 %v92
  %v242 = vunpack.c.h.b16 %v92
  %v243 = vunpack.c.l.b16 %v93
  %v244 = vunpack.c.h.b16 %v93
  %v245 = vunpack.c.l.b16 %v94
  %v246 = vunpack.c.h.b16 %v94
  %v247 = vunpack.c.l.b16 %v95
  %v248 = vunpack.c.h.b16 %v95
  %v249 = vunpack.c.l.b16 %v96
  %v250 = vunpack.c.h.b16 %v96
  %v251 = vunpack.c.l.b16 %v97
  %v252 = vunpack.c.h.b16 %v97
  %v253 = vunpack.c.l.b16 %v98
  %v254 = vunpack.c.h.b16 %v98
  %v255 = vunpack.c.l.b16 %v99
  %v256 = vunpack.c.h.b16 %v99
  %v257 = vunpack.c.l.b16 %v100
  %v258 = vunpack.c.h.b16 %v100
  %v259 = vunpack.c.l.b16 %v101
  %v260 = vunpack.c.h.b16 %v101
  %v261 = vunpack.c.l.b16 %v102
  %v262 = vunpack.c.h.b16 %v102
  %v263 = vunpack.c.l.b16 %v103
  %v264 = vunpack.c.h.b16 %v103
  %v265 = vunpack.c.l.b16 %v104
  %v266 = vunpack.c.h.b16 %v104
  %v267 = vunpack.c.l.b16 %v105
  %v268 = vunpack.c.h.b16 %v105
  %v269 = vunpack.c.l.b16 %v106
  %v270 = vunpack.c.h.b16 %v106
  %v271 = vunpack.c.l.b16 %v107
  %v272 = vunpack.c.h.b16 %v107
  %v273 = vunpack.c.l.b16 %v108
  %v274 = vunpack.c.h.b16 %v108
  %v275 = vpack.c.b16 %v215, %v211
  %v276 = vpack.c.b16 %v216, %v212
  %v277 = vpack.c.b16 %v217, %v213
  %v278 = vpack.c.b16 %v218, %v214
  %v279 = vpack.c.b16 %v223, %v219
  %v280 = vpack.c.b16 %v224, %v220
  %v281 = vpack.c.b16 %v225, %v221
  %v282 = vpack.c.b16 %v226, %v222
  %v283 = vpack.c.b16 %v231, %v227
  %v284 = vpack.c.b16 %v232, %v228
  %v285 = vpack.c.b16 %v233, %v229
  %v286 = vpack.c.b16 %v234, %v230
  %v287 = vpack.c.b16 %v239, %v235
  %v288 = vpack.c.b16 %v240, %v236
  %v289 = vpack.c.b16 %v241, %v237
  %v290 = vpack.c.b16 %v242, %v238
  %v291 = vpack.c.b16 %v247, %v243
  %v292 = vpack.c.b16 %v248, %v244
  %v293 = vpack.c.b16 %v249, %v245
  %v294 = vpack.c.b16 %v250, %v246
  %v295 = vpack.c.b16 %v255, %v251
  %v296 = vpack.c.b16 %v256, %v252
  %v297 = vpack.c.b16 %v257, %v253
  %v298 = vpack.c.b16 %v258, %v254
  %v299 = vpack.c.b16 %v263, %v259
  %v300 = vpack.c.b16 %v264, %v260
  %v301 = vpack.c.b16 %v265, %v261
  %v302 = vpack.c.b16 %v266, %v262
  %v303 = vpack.c.b16 %v271, %v267
  %v304 = vpack.c.b16 %v272, %v268
  %v305 = vpack.c.b16 %v273, %v269
  %v306 = vpack.c.b16 %v274, %v270
  %v403 = vunpack.c.l.b16 %v109
  %v404 = vunpack.c.h.b16 %v109
  %v405 = vunpack.c.l.b16 %v110
  %v406 = vunpack.c.h.b16 %v110
  %v407 = vunpack.c.l.b16 %v111
  %v408 = vunpack.c.h.b16 %v111
  %v409 = vunpack.c.l.b16 %v112
  %v410 = vunpack.c.h.b16 %v112
  %v411 = vunpack.c.l.b16 %v113
  %v412 = vunpack.c.h.b16 %v113
  %v413 = vunpack.c.l.b16 %v114
  %v414 = vunpack.c.h.b16 %v114
  %v415 = vunpack.c.l.b16 %v115
  %v416 = vunpack.c.h.b16 %v115
  %v417 = vunpack.c.l.b16 %v116
  %v418 = vunpack.c.h.b16 %v116
  %v419 = vunpack.c.l.b16 %v117
  %v420 = vunpack.c.h.b16 %v117
  %v421 = vunpack.c.l.b16 %v118
  %v422 = vunpack.c.h.b16 %v118
  %v423 = vunpack.c.l.b16 %v119
  %v424 = vunpack.c.h.b16 %v119
  %v425 = vunpack.c.l.b16 %v120
  %v426 = vunpack.c.h.b16 %v120
  %v427 = vunpack.c.l.b16 %v121
  %v428 = vunpack.c.h.b16 %v121
  %v429 = vunpack.c.l.b16 %v122
  %v430 = vunpack.c.h.b16 %v122
  %v431 = vunpack.c.l.b16 %v123
  %v432 = vunpack.c.h.b16 %v123
  %v433 = vunpack.c.l.b16 %v124
  %v434 = vunpack.c.h.b16 %v124
  %v435 = vunpack.c.l.b16 %v125
  %v436 = vunpack.c.h.b16 %v125
  %v437 = vunpack.c.l.b16 %v126
  %v438 = vunpack.c.h.b16 %v126
  %v439 = vunpack.c.l.b16 %v127
  %v440 = vunpack.c.h.b16 %v127
  %v441 = vunpack.c.l.b16 %v128
  %v442 = vunpack.c.h.b16 %v128
  %v443 = vunpack.c.l.b16 %v129
  %v444 = vunpack.c.h.b16 %v129
  %v445 = vunpack.c.l.b16 %v130
  %v446 = vunpack.c.h.b16 %v130
  %v447 = vunpack.c.l.b16 %v131
  %v448 = vunpack.c.h.b16 %v131
  %v449 = vunpack.c.l.b16 %v132
  %v450 = vunpack.c.h.b16 %v132
  %v451 = vunpack.c.l.b16 %v133
  %v452 = vunpack.c.h.b16 %v133
  %v453 = vunpack.c.l.b16 %v134
  %v454 = vunpack.c.h.b16 %v134
  %v455 = vunpack.c.l.b16 %v135
  %v456 = vunpack.c.h.b16 %v135
  %v457 = vunpack.c.l.b16 %v136
  %v458 = vunpack.c.h.b16 %v136
  %v459 = vunpack.c.l.b16 %v137
  %v460 = vunpack.c.h.b16 %v137
  %v461 = vunpack.c.l.b16 %v138
  %v462 = vunpack.c.h.b16 %v138
  %v463 = vunpack.c.l.b16 %v139
  %v464 = vunpack.c.h.b16 %v139
  %v465 = vunpack.c.l.b16 %v140
  %v466 = vunpack.c.h.b16 %v140
  %v467 = vunpack.c.l.b16 %v141
  %v468 = vunpack.c.h.b16 %v141
  %v469 = vunpack.c.l.b16 %v142
  %v470 = vunpack.c.h.b16 %v142
  %v471 = vunpack.c.l.b16 %v143
  %v472 = vunpack.c.h.b16 %v143
  %v473 = vunpack.c.l.b16 %v144
  %v474 = vunpack.c.h.b16 %v144
  %v475 = vunpack.c.l.b16 %v145
  %v476 = vunpack.c.h.b16 %v145
  %v477 = vunpack.c.l.b16 %v146
  %v478 = vunpack.c.h.b16 %v146
  %v479 = vunpack.c.l.b16 %v147
  %v480 = vunpack.c.h.b16 %v147
  %v481 = vunpack.c.l.b16 %v148
  %v482 = vunpack.c.h.b16 %v148
  %v483 = vunpack.c.l.b16 %v149
  %v484 = vunpack.c.h.b16 %v149
  %v485 = vunpack.c.l.b16 %v150
  %v486 = vunpack.c.h.b16 %v150
  %v487 = vunpack.c.l.b16 %v151
  %v488 = vunpack.c.h.b16 %v151
  %v489 = vunpack.c.l.b16 %v152
  %v490 = vunpack.c.h.b16 %v152
  %v491 = vunpack.c.l.b16 %v153
  %v492 = vunpack.c.h.b16 %v153
  %v493 = vunpack.c.l.b16 %v154
  %v494 = vunpack.c.h.b16 %v154
  %v495 = vunpack.c.l.b16 %v155
  %v496 = vunpack.c.h.b16 %v155
  %v497 = vunpack.c.l.b16 %v156
  %v498 = vunpack.c.h.b16 %v156
  %v499 = vunpack.c.l.b16 %v157
  %v500 = vunpack.c.h.b16 %v157
  %v501 = vunpack.c.l.b16 %v158
  %v502 = vunpack.c.h.b16 %v158
  %v503 = vunpack.c.l.b16 %v159
  %v504 = vunpack.c.h.b16 %v159
  %v505 = vunpack.c.l.b16 %v160
  %v506 = vunpack.c.h.b16 %v160
  %v507 = vunpack.c.l.b16 %v161
  %v508 = vunpack.c.h.b16 %v161
  %v509 = vunpack.c.l.b16 %v162
  %v510 = vunpack.c.h.b16 %v162
  %v511 = vunpack.c.l.b16 %v163
  %v512 = vunpack.c.h.b16 %v163
  %v513 = vunpack.c.l.b16 %v164
  %v514 = vunpack.c.h.b16 %v164
  %v515 = vunpack.c.l.b16 %v165
  %v516 = vunpack.c.h.b16 %v165
  %v517 = vunpack.c.l.b16 %v166
  %v518 = vunpack.c.h.b16 %v166
  %v519 = vunpack.c.l.b16 %v167
  %v520 = vunpack.c.h.b16 %v167
  %v521 = vunpack.c.l.b16 %v168
  %v522 = vunpack.c.h.b16 %v168
  %v523 = vunpack.c.l.b16 %v169
  %v524 = vunpack.c.h.b16 %v169
  %v525 = vunpack.c.l.b16 %v170
  %v526 = vunpack.c.h.b16 %v170
  %v527 = vunpack.c.l.b16 %v171
  %v528 = vunpack.c.h.b16 %v171
  %v529 = vunpack.c.l.b16 %v172
  %v530 = vunpack.c.h.b16 %v172
  %v531 = vpack.c.b16 %v405, %v403
  %v532 = vpack.c.b16 %v406, %v404
  %v533 = vpack.c.b16 %v409, %v407
  %v534 = vpack.c.b16 %v410, %v408
  %v535 = vpack.c.b16 %v413, %v411
  %v536 = vpack.c.b16 %v414, %v412
  %v537 = vpack.c.b16 %v417, %v415
  %v538 = vpack.c.b16 %v418, %v416
  %v539 = vpack.c.b16 %v421, %v419
  %v540 = vpack.c.b16 %v422, %v420
  %v541 = vpack.c.b16 %v425, %v423
  %v542 = vpack.c.b16 %v426, %v424
  %v543 = vpack.c.b16 %v429, %v427
  %v544 = vpack.c.b16 %v430, %v428
  %v545 = vpack.c.b16 %v433, %v431
  %v546 = vpack.c.b16 %v434, %v432
  %v547 = vpack.c.b16 %v437, %v435
  %v548 = vpack.c.b16 %v438, %v436
  %v549 = vpack.c.b16 %v441, %v439
  %v550 = vpack.c.b16 %v442, %v440
  %v551 = vpack.c.b16 %v445, %v443
  %v552 = vpack.c.b16 %v446, %v444
  %v553 = vpack.c.b16 %v449, %v447
  %v554 = vpack.c.b16 %v450, %v448
  %v555 = vpack.c.b16 %v453, %v451
  %v556 = vpack.c.b16 %v454, %v452
  %v557 = vpack.c.b16 %v457, %v455
  %v558 = vpack.c.b16 %v458, %v456
  %v559 = vpack.c.b16 %v461, %v459
  %v560 = vpack.c.b16 %v462, %v460
  %v561 = vpack.c.b16 %v465, %v463
  %v562 = vpack.c.b16 %v466, %v464
  %v563 = vpack.c.b16 %v469, %v467
  %v564 = vpack.c.b16 %v470, %v468
  %v565 = vpack.c.b16 %v473, %v471
  %v566 = vpack.c.b16 %v474, %v472
  %v567 = vpack.c.b16 %v477, %v475
  %v568 = vpack.c.b16 %v478, %v476
  %v569 = vpack.c.b16 %v481, %v479
  %v570 = vpack.c.b16 %v482, %v480
  %v571 = vpack.c.b16 %v485, %v483
  %v572 = vpack.c.b16 %v486, %v484
  %v573 = vpack.c.b16 %v489, %v487
  %v574 = vpack.c.b16 %v490, %v488
  %v575 = vpack.c.b16 %v493, %v491
  %v576 = vpack.c.b16 %v494, %v492
  %v577 = vpack.c.b16 %v497, %v495
  %v578 = vpack.c.b16 %v498, %v496
  %v579 = vpack.c.b16 %v501, %v499
  %v580 = vpack.c.b16 %v502, %v500
  %v581 = vpack.c.b16 %v505, %v503
  %v582 = vpack.c.b16 %v506, %v504
  %v583 = vpack.c.b16 %v509, %v507
  %v584 = vpack.c.b16 %v510, %v508
  %v585 = vpack.c.b16 %v513, %v511
  %v586 = vpack.c.b16 %v514, %v512
  %v587 = vpack.c.b16 %v517, %v515
  %v588 = vpack.c.b16 %v518, %v516
  %v589 = vpack.c.b16 %v521, %v519
  %v590 = vpack.c.b16 %v522, %v520
  %v591 = vpack.c.b16 %v525, %v523
  %v592 = vpack.c.b16 %v526, %v524
  %v593 = vpack.c.b16 %v529, %v527
  %v594 = vpack.c.b16 %v530, %v528
  %659 = vmatpush.bf16.msra.mxu0 %v545
  %660 = vmatpush.bf16.msra.mxu0 %v543
  %661 = vmatpush.bf16.msra.mxu0 %v541
  %662 = vmatpush.bf16.msra.mxu0 %v539
  %663 = vmatpush.bf16.msra.mxu0 %v537
  %664 = vmatpush.bf16.msra.mxu0 %v535
  %665 = vmatpush.bf16.msra.mxu0 %v533
  %666 = vmatpush.bf16.msra.mxu0 %v531
  %667 = vmatmul.bf16.gmra.mxu0 %v275
  %v668 = vpop.f32.mrf.mxu0
  %v669 = vadd.f32 %v175, %v668
  %v670 = vpop.f32.mrf.mxu0
  %v671 = vadd.f32 %v175, %v670
  %672 = vmatmul.bf16.gmra.mxu0 %v279
  %v673 = vpop.f32.mrf.mxu0
  %v674 = vadd.f32 %v175, %v673
  %v675 = vpop.f32.mrf.mxu0
  %v676 = vadd.f32 %v175, %v675
  %677 = vmatmul.bf16.gmra.mxu0 %v283
  %v678 = vpop.f32.mrf.mxu0
  %v679 = vadd.f32 %v175, %v678
  %v680 = vpop.f32.mrf.mxu0
  %v681 = vadd.f32 %v175, %v680
  %682 = vmatmul.bf16.gmra.mxu0 %v287
  %v683 = vpop.f32.mrf.mxu0
  %v684 = vadd.f32 %v175, %v683
  %v685 = vpop.f32.mrf.mxu0
  %v686 = vadd.f32 %v175, %v685
  %687 = vmatmul.bf16.gmra.mxu0 %v291
  %v688 = vpop.f32.mrf.mxu0
  %v689 = vadd.f32 %v175, %v688
  %v690 = vpop.f32.mrf.mxu0
  %v691 = vadd.f32 %v175, %v690
  %692 = vmatmul.bf16.gmra.mxu0 %v295
  %v693 = vpop.f32.mrf.mxu0
  %v694 = vadd.f32 %v175, %v693
  %v695 = vpop.f32.mrf.mxu0
  %v696 = vadd.f32 %v175, %v695
  %697 = vmatmul.bf16.gmra.mxu0 %v299
  %v698 = vpop.f32.mrf.mxu0
  %v699 = vadd.f32 %v175, %v698
  %v700 = vpop.f32.mrf.mxu0
  %v701 = vadd.f32 %v175, %v700
  %702 = vmatmul.bf16.gmra.mxu0 %v303
  %v703 = vpop.f32.mrf.mxu0
  %v704 = vadd.f32 %v175, %v703
  %v705 = vpop.f32.mrf.mxu0
  %v706 = vadd.f32 %v175, %v705
  %707 = vdwg.mxu0
  %708 = vmatpush.bf16.msra.mxu0 %v561
  %709 = vmatpush.bf16.msra.mxu0 %v559
  %710 = vmatpush.bf16.msra.mxu0 %v557
  %711 = vmatpush.bf16.msra.mxu0 %v555
  %712 = vmatpush.bf16.msra.mxu0 %v553
  %713 = vmatpush.bf16.msra.mxu0 %v551
  %714 = vmatpush.bf16.msra.mxu0 %v549
  %715 = vmatpush.bf16.msra.mxu0 %v547
  %716 = vmatmul.bf16.gmra.mxu0 %v276
  %v717 = vpop.f32.mrf.mxu0
  %v718 = vadd.f32 %v669, %v717
  %v719 = vpop.f32.mrf.mxu0
  %v720 = vadd.f32 %v671, %v719
  %721 = vmatmul.bf16.gmra.mxu0 %v280
  %v722 = vpop.f32.mrf.mxu0
  %v723 = vadd.f32 %v674, %v722
  %v724 = vpop.f32.mrf.mxu0
  %v725 = vadd.f32 %v676, %v724
  %726 = vmatmul.bf16.gmra.mxu0 %v284
  %v727 = vpop.f32.mrf.mxu0
  %v728 = vadd.f32 %v679, %v727
  %v729 = vpop.f32.mrf.mxu0
  %v730 = vadd.f32 %v681, %v729
  %731 = vmatmul.bf16.gmra.mxu0 %v288
  %v732 = vpop.f32.mrf.mxu0
  %v733 = vadd.f32 %v684, %v732
  %v734 = vpop.f32.mrf.mxu0
  %v735 = vadd.f32 %v686, %v734
  %736 = vmatmul.bf16.gmra.mxu0 %v292
  %v737 = vpop.f32.mrf.mxu0
  %v738 = vadd.f32 %v689, %v737
  %v739 = vpop.f32.mrf.mxu0
  %v740 = vadd.f32 %v691, %v739
  %741 = vmatmul.bf16.gmra.mxu0 %v296
  %v742 = vpop.f32.mrf.mxu0
  %v743 = vadd.f32 %v694, %v742
  %v744 = vpop.f32.mrf.mxu0
  %v745 = vadd.f32 %v696, %v744
  %746 = vmatmul.bf16.gmra.mxu0 %v300
  %v747 = vpop.f32.mrf.mxu0
  %v748 = vadd.f32 %v699, %v747
  %v749 = vpop.f32.mrf.mxu0
  %v750 = vadd.f32 %v701, %v749
  %751 = vmatmul.bf16.gmra.mxu0 %v304
  %v752 = vpop.f32.mrf.mxu0
  %v753 = vadd.f32 %v704, %v752
  %v754 = vpop.f32.mrf.mxu0
  %v755 = vadd.f32 %v706, %v754
  %756 = vdwg.mxu0
  %757 = vmatpush.bf16.msra.mxu0 %v577
  %758 = vmatpush.bf16.msra.mxu0 %v575
  %759 = vmatpush.bf16.msra.mxu0 %v573
  %760 = vmatpush.bf16.msra.mxu0 %v571
  %761 = vmatpush.bf16.msra.mxu0 %v569
  %762 = vmatpush.bf16.msra.mxu0 %v567
  %763 = vmatpush.bf16.msra.mxu0 %v565
  %764 = vmatpush.bf16.msra.mxu0 %v563
  %765 = vmatmul.bf16.gmra.mxu0 %v277
  %v766 = vpop.f32.mrf.mxu0
  %v767 = vadd.f32 %v718, %v766
  %v768 = vpop.f32.mrf.mxu0
  %v769 = vadd.f32 %v720, %v768
  %770 = vmatmul.bf16.gmra.mxu0 %v281
  %v771 = vpop.f32.mrf.mxu0
  %v772 = vadd.f32 %v723, %v771
  %v773 = vpop.f32.mrf.mxu0
  %v774 = vadd.f32 %v725, %v773
  %775 = vmatmul.bf16.gmra.mxu0 %v285
  %v776 = vpop.f32.mrf.mxu0
  %v777 = vadd.f32 %v728, %v776
  %v778 = vpop.f32.mrf.mxu0
  %v779 = vadd.f32 %v730, %v778
  %780 = vmatmul.bf16.gmra.mxu0 %v289
  %v781 = vpop.f32.mrf.mxu0
  %v782 = vadd.f32 %v733, %v781
  %v783 = vpop.f32.mrf.mxu0
  %v784 = vadd.f32 %v735, %v783
  %785 = vmatmul.bf16.gmra.mxu0 %v293
  %v786 = vpop.f32.mrf.mxu0
  %v787 = vadd.f32 %v738, %v786
  %v788 = vpop.f32.mrf.mxu0
  %v789 = vadd.f32 %v740, %v788
  %790 = vmatmul.bf16.gmra.mxu0 %v297
  %v791 = vpop.f32.mrf.mxu0
  %v792 = vadd.f32 %v743, %v791
  %v793 = vpop.f32.mrf.mxu0
  %v794 = vadd.f32 %v745, %v793
  %795 = vmatmul.bf16.gmra.mxu0 %v301
  %v796 = vpop.f32.mrf.mxu0
  %v797 = vadd.f32 %v748, %v796
  %v798 = vpop.f32.mrf.mxu0
  %v799 = vadd.f32 %v750, %v798
  %800 = vmatmul.bf16.gmra.mxu0 %v305
  %v801 = vpop.f32.mrf.mxu0
  %v802 = vadd.f32 %v753, %v801
  %v803 = vpop.f32.mrf.mxu0
  %v804 = vadd.f32 %v755, %v803
  %805 = vdwg.mxu0
  %806 = vmatpush.bf16.msra.mxu0 %v593
  %807 = vmatpush.bf16.msra.mxu0 %v591
  %808 = vmatpush.bf16.msra.mxu0 %v589
  %809 = vmatpush.bf16.msra.mxu0 %v587
  %810 = vmatpush.bf16.msra.mxu0 %v585
  %811 = vmatpush.bf16.msra.mxu0 %v583
  %812 = vmatpush.bf16.msra.mxu0 %v581
  %813 = vmatpush.bf16.msra.mxu0 %v579
  %814 = vmatmul.bf16.gmra.mxu0 %v278
  %v815 = vpop.f32.mrf.mxu0
  %v816 = vadd.f32 %v767, %v815
  %v817 = vpop.f32.mrf.mxu0
  %v818 = vadd.f32 %v769, %v817
  %819 = vmatmul.bf16.gmra.mxu0 %v282
  %v820 = vpop.f32.mrf.mxu0
  %v821 = vadd.f32 %v772, %v820
  %v822 = vpop.f32.mrf.mxu0
  %v823 = vadd.f32 %v774, %v822
  %824 = vmatmul.bf16.gmra.mxu0 %v286
  %v825 = vpop.f32.mrf.mxu0
  %v826 = vadd.f32 %v777, %v825
  %v827 = vpop.f32.mrf.mxu0
  %v828 = vadd.f32 %v779, %v827
  %829 = vmatmul.bf16.gmra.mxu0 %v290
  %v830 = vpop.f32.mrf.mxu0
  %v831 = vadd.f32 %v782, %v830
  %v832 = vpop.f32.mrf.mxu0
  %v833 = vadd.f32 %v784, %v832
  %834 = vmatmul.bf16.gmra.mxu0 %v294
  %v835 = vpop.f32.mrf.mxu0
  %v836 = vadd.f32 %v787, %v835
  %v837 = vpop.f32.mrf.mxu0
  %v838 = vadd.f32 %v789, %v837
  %839 = vmatmul.bf16.gmra.mxu0 %v298
  %v840 = vpop.f32.mrf.mxu0
  %v841 = vadd.f32 %v792, %v840
  %v842 = vpop.f32.mrf.mxu0
  %v843 = vadd.f32 %v794, %v842
  %844 = vmatmul.bf16.gmra.mxu0 %v302
  %v845 = vpop.f32.mrf.mxu0
  %v846 = vadd.f32 %v797, %v845
  %v847 = vpop.f32.mrf.mxu0
  %v848 = vadd.f32 %v799, %v847
  %849 = vmatmul.bf16.gmra.mxu0 %v306
  %v850 = vpop.f32.mrf.mxu0
  %v851 = vadd.f32 %v802, %v850
  %v852 = vpop.f32.mrf.mxu0
  %v853 = vadd.f32 %v804, %v852
  %854 = vdwg.mxu0
  %855 = vmatpush.bf16.msra.mxu0 %v546
  %856 = vmatpush.bf16.msra.mxu0 %v544
  %857 = vmatpush.bf16.msra.mxu0 %v542
  %858 = vmatpush.bf16.msra.mxu0 %v540
  %859 = vmatpush.bf16.msra.mxu0 %v538
  %860 = vmatpush.bf16.msra.mxu0 %v536
  %861 = vmatpush.bf16.msra.mxu0 %v534
  %862 = vmatpush.bf16.msra.mxu0 %v532
  %863 = vmatmul.bf16.gmra.mxu0 %v275
  %v864 = vpop.f32.mrf.mxu0
  %v865 = vadd.f32 %v176, %v864
  %v866 = vpop.f32.mrf.mxu0
  %v867 = vadd.f32 %v176, %v866
  %868 = vmatmul.bf16.gmra.mxu0 %v279
  %v869 = vpop.f32.mrf.mxu0
  %v870 = vadd.f32 %v176, %v869
  %v871 = vpop.f32.mrf.mxu0
  %v872 = vadd.f32 %v176, %v871
  %873 = vmatmul.bf16.gmra.mxu0 %v283
  %v874 = vpop.f32.mrf.mxu0
  %v875 = vadd.f32 %v176, %v874
  %v876 = vpop.f32.mrf.mxu0
  %v877 = vadd.f32 %v176, %v876
  %878 = vmatmul.bf16.gmra.mxu0 %v287
  %v879 = vpop.f32.mrf.mxu0
  %v880 = vadd.f32 %v176, %v879
  %v881 = vpop.f32.mrf.mxu0
  %v882 = vadd.f32 %v176, %v881
  %883 = vmatmul.bf16.gmra.mxu0 %v291
  %v884 = vpop.f32.mrf.mxu0
  %v885 = vadd.f32 %v176, %v884
  %v886 = vpop.f32.mrf.mxu0
  %v887 = vadd.f32 %v176, %v886
  %888 = vmatmul.bf16.gmra.mxu0 %v295
  %v889 = vpop.f32.mrf.mxu0
  %v890 = vadd.f32 %v176, %v889
  %v891 = vpop.f32.mrf.mxu0
  %v892 = vadd.f32 %v176, %v891
  %893 = vmatmul.bf16.gmra.mxu0 %v299
  %v894 = vpop.f32.mrf.mxu0
  %v895 = vadd.f32 %v176, %v894
  %v896 = vpop.f32.mrf.mxu0
  %v897 = vadd.f32 %v176, %v896
  %898 = vmatmul.bf16.gmra.mxu0 %v303
  %v899 = vpop.f32.mrf.mxu0
  %v900 = vadd.f32 %v176, %v899
  %v901 = vpop.f32.mrf.mxu0
  %v902 = vadd.f32 %v176, %v901
  %903 = vdwg.mxu0
  %904 = vmatpush.bf16.msra.mxu0 %v562
  %905 = vmatpush.bf16.msra.mxu0 %v560
  %906 = vmatpush.bf16.msra.mxu0 %v558
  %907 = vmatpush.bf16.msra.mxu0 %v556
  %908 = vmatpush.bf16.msra.mxu0 %v554
  %909 = vmatpush.bf16.msra.mxu0 %v552
  %910 = vmatpush.bf16.msra.mxu0 %v550
  %911 = vmatpush.bf16.msra.mxu0 %v548
  %912 = vmatmul.bf16.gmra.mxu0 %v276
  %v913 = vpop.f32.mrf.mxu0
  %v914 = vadd.f32 %v865, %v913
  %v915 = vpop.f32.mrf.mxu0
  %v916 = vadd.f32 %v867, %v915
  %917 = vmatmul.bf16.gmra.mxu0 %v280
  %v918 = vpop.f32.mrf.mxu0
  %v919 = vadd.f32 %v870, %v918
  %v920 = vpop.f32.mrf.mxu0
  %v921 = vadd.f32 %v872, %v920
  %922 = vmatmul.bf16.gmra.mxu0 %v284
  %v923 = vpop.f32.mrf.mxu0
  %v924 = vadd.f32 %v875, %v923
  %v925 = vpop.f32.mrf.mxu0
  %v926 = vadd.f32 %v877, %v925
  %927 = vmatmul.bf16.gmra.mxu0 %v288
  %v928 = vpop.f32.mrf.mxu0
  %v929 = vadd.f32 %v880, %v928
  %v930 = vpop.f32.mrf.mxu0
  %v931 = vadd.f32 %v882, %v930
  %932 = vmatmul.bf16.gmra.mxu0 %v292
  %v933 = vpop.f32.mrf.mxu0
  %v934 = vadd.f32 %v885, %v933
  %v935 = vpop.f32.mrf.mxu0
  %v936 = vadd.f32 %v887, %v935
  %937 = vmatmul.bf16.gmra.mxu0 %v296
  %v938 = vpop.f32.mrf.mxu0
  %v939 = vadd.f32 %v890, %v938
  %v940 = vpop.f32.mrf.mxu0
  %v941 = vadd.f32 %v892, %v940
  %942 = vmatmul.bf16.gmra.mxu0 %v300
  %v943 = vpop.f32.mrf.mxu0
  %v944 = vadd.f32 %v895, %v943
  %v945 = vpop.f32.mrf.mxu0
  %v946 = vadd.f32 %v897, %v945
  %947 = vmatmul.bf16.gmra.mxu0 %v304
  %v948 = vpop.f32.mrf.mxu0
  %v949 = vadd.f32 %v900, %v948
  %v950 = vpop.f32.mrf.mxu0
  %v951 = vadd.f32 %v902, %v950
  %952 = vdwg.mxu0
  %953 = vmatpush.bf16.msra.mxu0 %v578
  %954 = vmatpush.bf16.msra.mxu0 %v576
  %955 = vmatpush.bf16.msra.mxu0 %v574
  %956 = vmatpush.bf16.msra.mxu0 %v572
  %957 = vmatpush.bf16.msra.mxu0 %v570
  %958 = vmatpush.bf16.msra.mxu0 %v568
  %959 = vmatpush.bf16.msra.mxu0 %v566
  %960 = vmatpush.bf16.msra.mxu0 %v564
  %961 = vmatmul.bf16.gmra.mxu0 %v277
  %v962 = vpop.f32.mrf.mxu0
  %v963 = vadd.f32 %v914, %v962
  %v964 = vpop.f32.mrf.mxu0
  %v965 = vadd.f32 %v916, %v964
  %966 = vmatmul.bf16.gmra.mxu0 %v281
  %v967 = vpop.f32.mrf.mxu0
  %v968 = vadd.f32 %v919, %v967
  %v969 = vpop.f32.mrf.mxu0
  %v970 = vadd.f32 %v921, %v969
  %971 = vmatmul.bf16.gmra.mxu0 %v285
  %v972 = vpop.f32.mrf.mxu0
  %v973 = vadd.f32 %v924, %v972
  %v974 = vpop.f32.mrf.mxu0
  %v975 = vadd.f32 %v926, %v974
  %976 = vmatmul.bf16.gmra.mxu0 %v289
  %v977 = vpop.f32.mrf.mxu0
  %v978 = vadd.f32 %v929, %v977
  %v979 = vpop.f32.mrf.mxu0
  %v980 = vadd.f32 %v931, %v979
  %981 = vmatmul.bf16.gmra.mxu0 %v293
  %v982 = vpop.f32.mrf.mxu0
  %v983 = vadd.f32 %v934, %v982
  %v984 = vpop.f32.mrf.mxu0
  %v985 = vadd.f32 %v936, %v984
  %986 = vmatmul.bf16.gmra.mxu0 %v297
  %v987 = vpop.f32.mrf.mxu0
  %v988 = vadd.f32 %v939, %v987
  %v989 = vpop.f32.mrf.mxu0
  %v990 = vadd.f32 %v941, %v989
  %991 = vmatmul.bf16.gmra.mxu0 %v301
  %v992 = vpop.f32.mrf.mxu0
  %v993 = vadd.f32 %v944, %v992
  %v994 = vpop.f32.mrf.mxu0
  %v995 = vadd.f32 %v946, %v994
  %996 = vmatmul.bf16.gmra.mxu0 %v305
  %v997 = vpop.f32.mrf.mxu0
  %v998 = vadd.f32 %v949, %v997
  %v999 = vpop.f32.mrf.mxu0
  %v1000 = vadd.f32 %v951, %v999
  %1001 = vdwg.mxu0
  %1002 = vmatpush.bf16.msra.mxu0 %v594
  %1003 = vmatpush.bf16.msra.mxu0 %v592
  %1004 = vmatpush.bf16.msra.mxu0 %v590
  %1005 = vmatpush.bf16.msra.mxu0 %v588
  %1006 = vmatpush.bf16.msra.mxu0 %v586
  %1007 = vmatpush.bf16.msra.mxu0 %v584
  %1008 = vmatpush.bf16.msra.mxu0 %v582
  %1009 = vmatpush.bf16.msra.mxu0 %v580
  %1010 = vmatmul.bf16.gmra.mxu0 %v278
  %v1011 = vpop.f32.mrf.mxu0
  %v1012 = vadd.f32 %v963, %v1011
  %v1013 = vpop.f32.mrf.mxu0
  %v1014 = vadd.f32 %v965, %v1013
  %1015 = vmatmul.bf16.gmra.mxu0 %v282
  %v1016 = vpop.f32.mrf.mxu0
  %v1017 = vadd.f32 %v968, %v1016
  %v1018 = vpop.f32.mrf.mxu0
  %v1019 = vadd.f32 %v970, %v1018
  %1020 = vmatmul.bf16.gmra.mxu0 %v286
  %v1021 = vpop.f32.mrf.mxu0
  %v1022 = vadd.f32 %v973, %v1021
  %v1023 = vpop.f32.mrf.mxu0
  %v1024 = vadd.f32 %v975, %v1023
  %1025 = vmatmul.bf16.gmra.mxu0 %v290
  %v1026 = vpop.f32.mrf.mxu0
  %v1027 = vadd.f32 %v978, %v1026
  %v1028 = vpop.f32.mrf.mxu0
  %v1029 = vadd.f32 %v980, %v1028
  %1030 = vmatmul.bf16.gmra.mxu0 %v294
  %v1031 = vpop.f32.mrf.mxu0
  %v1032 = vadd.f32 %v983, %v1031
  %v1033 = vpop.f32.mrf.mxu0
  %v1034 = vadd.f32 %v985, %v1033
  %1035 = vmatmul.bf16.gmra.mxu0 %v298
  %v1036 = vpop.f32.mrf.mxu0
  %v1037 = vadd.f32 %v988, %v1036
  %v1038 = vpop.f32.mrf.mxu0
  %v1039 = vadd.f32 %v990, %v1038
  %1040 = vmatmul.bf16.gmra.mxu0 %v302
  %v1041 = vpop.f32.mrf.mxu0
  %v1042 = vadd.f32 %v993, %v1041
  %v1043 = vpop.f32.mrf.mxu0
  %v1044 = vadd.f32 %v995, %v1043
  %1045 = vmatmul.bf16.gmra.mxu0 %v306
  %v1046 = vpop.f32.mrf.mxu0
  %v1047 = vadd.f32 %v998, %v1046
  %v1048 = vpop.f32.mrf.mxu0
  %v1049 = vadd.f32 %v1000, %v1048
  %1050 = vdwg.mxu0
  %v1051 = vmax.f32 %v816, 0.0
  %v1052 = vmax.f32 %v1012, 0.0
  %v1053 = vmax.f32 %v818, 0.0
  %v1054 = vmax.f32 %v1014, 0.0
  %v1055 = vmax.f32 %v821, 0.0
  %v1056 = vmax.f32 %v1017, 0.0
  %v1057 = vmax.f32 %v823, 0.0
  %v1058 = vmax.f32 %v1019, 0.0
  %v1059 = vmax.f32 %v826, 0.0
  %v1060 = vmax.f32 %v1022, 0.0
  %v1061 = vmax.f32 %v828, 0.0
  %v1062 = vmax.f32 %v1024, 0.0
  %v1063 = vmax.f32 %v831, 0.0
  %v1064 = vmax.f32 %v1027, 0.0
  %v1065 = vmax.f32 %v833, 0.0
  %v1066 = vmax.f32 %v1029, 0.0
  %v1067 = vmax.f32 %v836, 0.0
  %v1068 = vmax.f32 %v1032, 0.0
  %v1069 = vmax.f32 %v838, 0.0
  %v1070 = vmax.f32 %v1034, 0.0
  %v1071 = vmax.f32 %v841, 0.0
  %v1072 = vmax.f32 %v1037, 0.0
  %v1073 = vmax.f32 %v843, 0.0
  %v1074 = vmax.f32 %v1039, 0.0
  %v1075 = vmax.f32 %v846, 0.0
  %v1076 = vmax.f32 %v1042, 0.0
  %v1077 = vmax.f32 %v848, 0.0
  %v1078 = vmax.f32 %v1044, 0.0
  %v1079 = vmax.f32 %v851, 0.0
  %v1080 = vmax.f32 %v1047, 0.0
  %v1081 = vmax.f32 %v853, 0.0
  %v1082 = vmax.f32 %v1049, 0.0
  %v1083 = vpack.c.bf16 %v1052, %v1051
  %v1084 = vpack.c.bf16 %v1054, %v1053
  %v1085 = vpack.c.bf16 %v1056, %v1055
  %v1086 = vpack.c.bf16 %v1058, %v1057
  %v1087 = vpack.c.bf16 %v1060, %v1059
  %v1088 = vpack.c.bf16 %v1062, %v1061
  %v1089 = vpack.c.bf16 %v1064, %v1063
  %v1090 = vpack.c.bf16 %v1066, %v1065
  %v1091 = vpack.c.bf16 %v1068, %v1067
  %v1092 = vpack.c.bf16 %v1070, %v1069
  %v1093 = vpack.c.bf16 %v1072, %v1071
  %v1094 = vpack.c.bf16 %v1074, %v1073
  %v1095 = vpack.c.bf16 %v1076, %v1075
  %v1096 = vpack.c.bf16 %v1078, %v1077
  %v1097 = vpack.c.bf16 %v1080, %v1079
  %v1098 = vpack.c.bf16 %v1082, %v1081
  %v1103 = vunpack.c.l.b16 %v1095
  %v1104 = vunpack.c.h.b16 %v1095
  %v1105 = vunpack.c.l.b16 %v1096
  %v1106 = vunpack.c.h.b16 %v1096
  %v1107 = vunpack.c.l.b16 %v1097
  %v1108 = vunpack.c.h.b16 %v1097
  %v1109 = vunpack.c.l.b16 %v1098
  %v1110 = vunpack.c.h.b16 %v1098
  %v1111 = vpack.c.b16 %v1105, %v1103
  %v1112 = vpack.c.b16 %v1106, %v1104
  %v1113 = vpack.c.b16 %v1109, %v1107
  %v1114 = vpack.c.b16 %v1110, %v1108
  %vm1115 = vsmask.f32 2304
  %v1117 = vshrl.u32 %v1111, 16
  %v1119 = vrot.slane %v1117, 5
  %v1120 = vshll.u32 %v1111, 16
  %v1122 = vrot.slane %v1120, 6
  %v1123 = vor.u32 %v1119, %v1122
  %v1125 = vshrl.u32 %v1112, 16
  %v1127 = vrot.slane %v1125, 5
  %v1128 = vshll.u32 %v1112, 16
  %v1130 = vrot.slane %v1128, 6
  %v1131 = vor.u32 %v1127, %v1130
  %v1133 = vshrl.u32 %v1113, 16
  %v1135 = vrot.slane %v1133, 5
  %v1136 = vshll.u32 %v1113, 16
  %v1138 = vrot.slane %v1136, 6
  %v1139 = vor.u32 %v1135, %v1138
  %v1140 = vsel %vm1115, %v1123, %v1139
  %v1142 = vshrl.u32 %v1114, 16
  %v1144 = vrot.slane %v1142, 5
  %v1145 = vshll.u32 %v1114, 16
  %v1147 = vrot.slane %v1145, 6
  %v1148 = vor.u32 %v1144, %v1147
  %v1149 = vsel %vm1115, %v1131, %v1148
  %vm1154 = vcmask 1042432
  %vm1155 = vmand %vm1154, %vm1115
  %v1156 = vsel %vm1155, 0, %v1123
  %v1157 = vsel %vm1155, 0, %v1131
  %v1158 = vld [vmem:[%s3] sm:$0xf]
  %v1159 = vld [vmem:[%s3 + $0x4] sm:$0xf]
  %v1160 = vld [vmem:[%s3 + $0x8] sm:$0xf]
  %v1161 = vld [vmem:[%s3 + $0xc] sm:$0xf]
  %1163 = vset.pattern.permute.xlu0 0
  %1164 = vperm.xlu0 %1163, %v1158
  %v1165 = vpop.permute.xlu0 %1164
  %v1168 = vunpack.c.l.s4 839922192
  %v1169 = vunpack.c.0.s8 %v1168
  %v1170 = vperm.slane %v1165, %v1169
  %1172 = vset.pattern.permute.xlu0 0
  %1173 = vperm.xlu0 %1172, %v1159
  %v1174 = vpop.permute.xlu0 %1173
  %v1177 = vunpack.c.l.s4 839922192
  %v1178 = vunpack.c.0.s8 %v1177
  %v1179 = vperm.slane %v1174, %v1178
  %1181 = vset.pattern.permute.xlu0 0
  %1182 = vperm.xlu0 %1181, %v1160
  %v1183 = vpop.permute.xlu0 %1182
  %v1186 = vunpack.c.l.s4 839922192
  %v1187 = vunpack.c.0.s8 %v1186
  %v1188 = vperm.slane %v1183, %v1187
  %1190 = vset.pattern.permute.xlu0 0
  %1191 = vperm.xlu0 %1190, %v1161
  %v1192 = vpop.permute.xlu0 %1191
  %v1195 = vunpack.c.l.s4 839922192
  %v1196 = vunpack.c.0.s8 %v1195
  %v1197 = vperm.slane %v1192, %v1196
  %v1198 = vunpack.c.l.bf16 %v1156
  %v1199 = vunpack.c.l.bf16 %v1157
  %v1200 = vunpack.c.h.bf16 %v1156
  %v1201 = vunpack.c.h.bf16 %v1157
  %v1202 = vunpack.c.l.bf16 %v1140
  %v1203 = vunpack.c.l.bf16 %v1149
  %v1204 = vunpack.c.h.bf16 %v1140
  %v1205 = vunpack.c.h.bf16 %v1149
  %v1206 = vunpack.c.l.bf16 %v1170
  %v1207 = vunpack.c.l.bf16 %v1179
  %v1208 = vunpack.c.l.bf16 %v1188
  %v1209 = vunpack.c.l.bf16 %v1197
  %v1210 = vmul.f32 %v1198, %v1206
  %v1211 = vmul.f32 %v1199, %v1206
  %v1212 = vmul.f32 %v1200, %v1207
  %v1213 = vmul.f32 %v1201, %v1207
  %v1214 = vmul.f32 %v1202, %v1208
  %v1215 = vmul.f32 %v1203, %v1208
  %v1216 = vmul.f32 %v1204, %v1209
  %v1217 = vmul.f32 %v1205, %v1209
  %v1218 = vpack.c.bf16 %v1211, %v1210
  %v1219 = vpack.c.bf16 %v1213, %v1212
  %v1220 = vpack.c.bf16 %v1215, %v1214
  %v1221 = vpack.c.bf16 %v1217, %v1216
  %v1226 = vunpack.c.l.b16 %v1091
  %v1227 = vunpack.c.h.b16 %v1091
  %v1228 = vunpack.c.l.b16 %v1092
  %v1229 = vunpack.c.h.b16 %v1092
  %v1230 = vunpack.c.l.b16 %v1093
  %v1231 = vunpack.c.h.b16 %v1093
  %v1232 = vunpack.c.l.b16 %v1094
  %v1233 = vunpack.c.h.b16 %v1094
  %v1234 = vpack.c.b16 %v1228, %v1226
  %v1235 = vpack.c.b16 %v1229, %v1227
  %v1236 = vpack.c.b16 %v1232, %v1230
  %v1237 = vpack.c.b16 %v1233, %v1231
  %vm1238 = vcmask 1041408
  %v1239 = vrot.slane %v1234, 6
  %v1240 = vrot.slane %v1235, 6
  %v1241 = vrot.slane %v1236, 6
  %v1242 = vsel %vm1238, %v1239, %v1241
  %v1243 = vrot.slane %v1237, 6
  %v1244 = vsel %vm1238, %v1240, %v1243
  %vm1247 = vcmask 1041408
  %v1250 = vsel %vm1247, 0, %v1239
  %v1253 = vsel %vm1247, 0, %v1240
  %s1255 = scalar_lea.vmem %s3, 16
  %v1256 = vld [vmem:[%s1255] sm:$0xf]
  %v1257 = vld [vmem:[%s1255 + $0x4] sm:$0xf]
  %v1258 = vld [vmem:[%s1255 + $0x8] sm:$0xf]
  %v1259 = vld [vmem:[%s1255 + $0xc] sm:$0xf]
  %1261 = vset.pattern.permute.xlu0 0
  %1262 = vperm.xlu0 %1261, %v1256
  %v1263 = vpop.permute.xlu0 %1262
  %v1266 = vunpack.c.l.s4 839922192
  %v1267 = vunpack.c.0.s8 %v1266
  %v1268 = vperm.slane %v1263, %v1267
  %1270 = vset.pattern.permute.xlu0 0
  %1271 = vperm.xlu0 %1270, %v1257
  %v1272 = vpop.permute.xlu0 %1271
  %v1275 = vunpack.c.l.s4 839922192
  %v1276 = vunpack.c.0.s8 %v1275
  %v1277 = vperm.slane %v1272, %v1276
  %1279 = vset.pattern.permute.xlu0 0
  %1280 = vperm.xlu0 %1279, %v1258
  %v1281 = vpop.permute.xlu0 %1280
  %v1284 = vunpack.c.l.s4 839922192
  %v1285 = vunpack.c.0.s8 %v1284
  %v1286 = vperm.slane %v1281, %v1285
  %1288 = vset.pattern.permute.xlu0 0
  %1289 = vperm.xlu0 %1288, %v1259
  %v1290 = vpop.permute.xlu0 %1289
  %v1293 = vunpack.c.l.s4 839922192
  %v1294 = vunpack.c.0.s8 %v1293
  %v1295 = vperm.slane %v1290, %v1294
  %v1296 = vunpack.c.l.bf16 %v1250
  %v1297 = vunpack.c.l.bf16 %v1253
  %v1298 = vunpack.c.h.bf16 %v1250
  %v1299 = vunpack.c.h.bf16 %v1253
  %v1300 = vunpack.c.l.bf16 %v1242
  %v1301 = vunpack.c.l.bf16 %v1244
  %v1302 = vunpack.c.h.bf16 %v1242
  %v1303 = vunpack.c.h.bf16 %v1244
  %v1304 = vunpack.c.l.bf16 %v1268
  %v1305 = vunpack.c.l.bf16 %v1277
  %v1306 = vunpack.c.l.bf16 %v1286
  %v1307 = vunpack.c.l.bf16 %v1295
  %v1308 = vmul.f32 %v1296, %v1304
  %v1309 = vmul.f32 %v1297, %v1304
  %v1310 = vmul.f32 %v1298, %v1305
  %v1311 = vmul.f32 %v1299, %v1305
  %v1312 = vmul.f32 %v1300, %v1306
  %v1313 = vmul.f32 %v1301, %v1306
  %v1314 = vmul.f32 %v1302, %v1307
  %v1315 = vmul.f32 %v1303, %v1307
  %v1316 = vpack.c.bf16 %v1309, %v1308
  %v1317 = vpack.c.bf16 %v1311, %v1310
  %v1318 = vpack.c.bf16 %v1313, %v1312
  %v1319 = vpack.c.bf16 %v1315, %v1314
  %v1320 = vrot.slane %v1111, 6
  %v1321 = vrot.slane %v1112, 6
  %v1322 = vrot.slane %v1113, 6
  %v1323 = vsel %vm1238, %v1320, %v1322
  %v1324 = vrot.slane %v1114, 6
  %v1325 = vsel %vm1238, %v1321, %v1324
  %v1329 = vsel %vm1247, 0, %v1320
  %v1332 = vsel %vm1247, 0, %v1321
  %s1334 = scalar_lea.vmem %s3, 32
  %v1335 = vld [vmem:[%s1334] sm:$0xf]
  %v1336 = vld [vmem:[%s1334 + $0x4] sm:$0xf]
  %v1337 = vld [vmem:[%s1334 + $0x8] sm:$0xf]
  %v1338 = vld [vmem:[%s1334 + $0xc] sm:$0xf]
  %1340 = vset.pattern.permute.xlu0 0
  %1341 = vperm.xlu0 %1340, %v1335
  %v1342 = vpop.permute.xlu0 %1341
  %v1345 = vunpack.c.l.s4 839922192
  %v1346 = vunpack.c.0.s8 %v1345
  %v1347 = vperm.slane %v1342, %v1346
  %1349 = vset.pattern.permute.xlu0 0
  %1350 = vperm.xlu0 %1349, %v1336
  %v1351 = vpop.permute.xlu0 %1350
  %v1354 = vunpack.c.l.s4 839922192
  %v1355 = vunpack.c.0.s8 %v1354
  %v1356 = vperm.slane %v1351, %v1355
  %1358 = vset.pattern.permute.xlu0 0
  %1359 = vperm.xlu0 %1358, %v1337
  %v1360 = vpop.permute.xlu0 %1359
  %v1363 = vunpack.c.l.s4 839922192
  %v1364 = vunpack.c.0.s8 %v1363
  %v1365 = vperm.slane %v1360, %v1364
  %1367 = vset.pattern.permute.xlu0 0
  %1368 = vperm.xlu0 %1367, %v1338
  %v1369 = vpop.permute.xlu0 %1368
  %v1372 = vunpack.c.l.s4 839922192
  %v1373 = vunpack.c.0.s8 %v1372
  %v1374 = vperm.slane %v1369, %v1373
  %v1375 = vunpack.c.l.bf16 %v1329
  %v1376 = vunpack.c.l.bf16 %v1332
  %v1377 = vunpack.c.h.bf16 %v1329
  %v1378 = vunpack.c.h.bf16 %v1332
  %v1379 = vunpack.c.l.bf16 %v1323
  %v1380 = vunpack.c.l.bf16 %v1325
  %v1381 = vunpack.c.h.bf16 %v1323
  %v1382 = vunpack.c.h.bf16 %v1325
  %v1383 = vunpack.c.l.bf16 %v1347
  %v1384 = vunpack.c.l.bf16 %v1356
  %v1385 = vunpack.c.l.bf16 %v1365
  %v1386 = vunpack.c.l.bf16 %v1374
  %v1387 = vmul.f32 %v1375, %v1383
  %v1388 = vmul.f32 %v1376, %v1383
  %v1389 = vmul.f32 %v1377, %v1384
  %v1390 = vmul.f32 %v1378, %v1384
  %v1391 = vmul.f32 %v1379, %v1385
  %v1392 = vmul.f32 %v1380, %v1385
  %v1393 = vmul.f32 %v1381, %v1386
  %v1394 = vmul.f32 %v1382, %v1386
  %v1395 = vpack.c.bf16 %v1388, %v1387
  %v1396 = vpack.c.bf16 %v1390, %v1389
  %v1397 = vpack.c.bf16 %v1392, %v1391
  %v1398 = vpack.c.bf16 %v1394, %v1393
  %v1403 = vunpack.c.l.b16 %v1087
  %v1404 = vunpack.c.h.b16 %v1087
  %v1405 = vunpack.c.l.b16 %v1088
  %v1406 = vunpack.c.h.b16 %v1088
  %v1407 = vunpack.c.l.b16 %v1089
  %v1408 = vunpack.c.h.b16 %v1089
  %v1409 = vunpack.c.l.b16 %v1090
  %v1410 = vunpack.c.h.b16 %v1090
  %v1411 = vpack.c.b16 %v1405, %v1403
  %v1412 = vpack.c.b16 %v1406, %v1404
  %v1413 = vpack.c.b16 %v1409, %v1407
  %v1414 = vpack.c.b16 %v1410, %v1408
  %vm1415 = vsmask.f32 256
  %v1417 = vshrl.u32 %v1411, 16
  %v1419 = vrot.slane %v1417, 7
  %v1420 = vshll.u32 %v1411, 16
  %v1422 = vor.u32 %v1419, %v1420
  %v1424 = vshrl.u32 %v1412, 16
  %v1426 = vrot.slane %v1424, 7
  %v1427 = vshll.u32 %v1412, 16
  %v1429 = vor.u32 %v1426, %v1427
  %v1431 = vshrl.u32 %v1413, 16
  %v1433 = vrot.slane %v1431, 7
  %v1434 = vshll.u32 %v1413, 16
  %v1436 = vor.u32 %v1433, %v1434
  %v1437 = vsel %vm1415, %v1419, %v1436
  %v1439 = vshrl.u32 %v1414, 16
  %v1441 = vrot.slane %v1439, 7
  %v1442 = vshll.u32 %v1414, 16
  %v1444 = vor.u32 %v1441, %v1442
  %v1445 = vsel %vm1415, %v1426, %v1444
  %vm1450 = vcmask 1040384
  %vm1451 = vmand %vm1450, %vm1415
  %v1452 = vsel %vm1451, 0, %v1422
  %v1453 = vsel %vm1451, 0, %v1429
  %s1454 = scalar_lea.vmem %s3, 48
  %v1455 = vld [vmem:[%s1454] sm:$0xf]
  %v1456 = vld [vmem:[%s1454 + $0x4] sm:$0xf]
  %v1457 = vld [vmem:[%s1454 + $0x8] sm:$0xf]
  %v1458 = vld [vmem:[%s1454 + $0xc] sm:$0xf]
  %1460 = vset.pattern.permute.xlu0 0
  %1461 = vperm.xlu0 %1460, %v1455
  %v1462 = vpop.permute.xlu0 %1461
  %v1465 = vunpack.c.l.s4 839922192
  %v1466 = vunpack.c.0.s8 %v1465
  %v1467 = vperm.slane %v1462, %v1466
  %1469 = vset.pattern.permute.xlu0 0
  %1470 = vperm.xlu0 %1469, %v1456
  %v1471 = vpop.permute.xlu0 %1470
  %v1474 = vunpack.c.l.s4 839922192
  %v1475 = vunpack.c.0.s8 %v1474
  %v1476 = vperm.slane %v1471, %v1475
  %1478 = vset.pattern.permute.xlu0 0
  %1479 = vperm.xlu0 %1478, %v1457
  %v1480 = vpop.permute.xlu0 %1479
  %v1483 = vunpack.c.l.s4 839922192
  %v1484 = vunpack.c.0.s8 %v1483
  %v1485 = vperm.slane %v1480, %v1484
  %1487 = vset.pattern.permute.xlu0 0
  %1488 = vperm.xlu0 %1487, %v1458
  %v1489 = vpop.permute.xlu0 %1488
  %v1492 = vunpack.c.l.s4 839922192
  %v1493 = vunpack.c.0.s8 %v1492
  %v1494 = vperm.slane %v1489, %v1493
  %v1495 = vunpack.c.l.bf16 %v1452
  %v1496 = vunpack.c.l.bf16 %v1453
  %v1497 = vunpack.c.h.bf16 %v1452
  %v1498 = vunpack.c.h.bf16 %v1453
  %v1499 = vunpack.c.l.bf16 %v1437
  %v1500 = vunpack.c.l.bf16 %v1445
  %v1501 = vunpack.c.h.bf16 %v1437
  %v1502 = vunpack.c.h.bf16 %v1445
  %v1503 = vunpack.c.l.bf16 %v1467
  %v1504 = vunpack.c.l.bf16 %v1476
  %v1505 = vunpack.c.l.bf16 %v1485
  %v1506 = vunpack.c.l.bf16 %v1494
  %v1507 = vmul.f32 %v1495, %v1503
  %v1508 = vmul.f32 %v1496, %v1503
  %v1509 = vmul.f32 %v1497, %v1504
  %v1510 = vmul.f32 %v1498, %v1504
  %v1511 = vmul.f32 %v1499, %v1505
  %v1512 = vmul.f32 %v1500, %v1505
  %v1513 = vmul.f32 %v1501, %v1506
  %v1514 = vmul.f32 %v1502, %v1506
  %v1515 = vpack.c.bf16 %v1508, %v1507
  %v1516 = vpack.c.bf16 %v1510, %v1509
  %v1517 = vpack.c.bf16 %v1512, %v1511
  %v1518 = vpack.c.bf16 %v1514, %v1513
  %v1519 = vrot.slane %v1117, 7
  %v1520 = vor.u32 %v1519, %v1120
  %v1521 = vrot.slane %v1125, 7
  %v1522 = vor.u32 %v1521, %v1128
  %v1523 = vrot.slane %v1133, 7
  %v1524 = vor.u32 %v1523, %v1136
  %v1525 = vsel %vm1415, %v1519, %v1524
  %v1526 = vrot.slane %v1142, 7
  %v1527 = vor.u32 %v1526, %v1145
  %v1528 = vsel %vm1415, %v1521, %v1527
  %v1533 = vsel %vm1451, 0, %v1520
  %v1534 = vsel %vm1451, 0, %v1522
  %s1535 = scalar_lea.vmem %s3, 96
  %v1536 = vld [vmem:[%s1535] sm:$0xf]
  %v1537 = vld [vmem:[%s1535 + $0x4] sm:$0xf]
  %v1538 = vld [vmem:[%s1535 + $0x8] sm:$0xf]
  %v1539 = vld [vmem:[%s1535 + $0xc] sm:$0xf]
  %1541 = vset.pattern.permute.xlu0 0
  %1542 = vperm.xlu0 %1541, %v1536
  %v1543 = vpop.permute.xlu0 %1542
  %v1546 = vunpack.c.l.s4 839922192
  %v1547 = vunpack.c.0.s8 %v1546
  %v1548 = vperm.slane %v1543, %v1547
  %1550 = vset.pattern.permute.xlu0 0
  %1551 = vperm.xlu0 %1550, %v1537
  %v1552 = vpop.permute.xlu0 %1551
  %v1555 = vunpack.c.l.s4 839922192
  %v1556 = vunpack.c.0.s8 %v1555
  %v1557 = vperm.slane %v1552, %v1556
  %1559 = vset.pattern.permute.xlu0 0
  %1560 = vperm.xlu0 %1559, %v1538
  %v1561 = vpop.permute.xlu0 %1560
  %v1564 = vunpack.c.l.s4 839922192
  %v1565 = vunpack.c.0.s8 %v1564
  %v1566 = vperm.slane %v1561, %v1565
  %1568 = vset.pattern.permute.xlu0 0
  %1569 = vperm.xlu0 %1568, %v1539
  %v1570 = vpop.permute.xlu0 %1569
  %v1573 = vunpack.c.l.s4 839922192
  %v1574 = vunpack.c.0.s8 %v1573
  %v1575 = vperm.slane %v1570, %v1574
  %v1576 = vunpack.c.l.bf16 %v1533
  %v1577 = vunpack.c.l.bf16 %v1534
  %v1578 = vunpack.c.h.bf16 %v1533
  %v1579 = vunpack.c.h.bf16 %v1534
  %v1580 = vunpack.c.l.bf16 %v1525
  %v1581 = vunpack.c.l.bf16 %v1528
  %v1582 = vunpack.c.h.bf16 %v1525
  %v1583 = vunpack.c.h.bf16 %v1528
  %v1584 = vunpack.c.l.bf16 %v1548
  %v1585 = vunpack.c.l.bf16 %v1557
  %v1586 = vunpack.c.l.bf16 %v1566
  %v1587 = vunpack.c.l.bf16 %v1575
  %v1588 = vmul.f32 %v1576, %v1584
  %v1589 = vmul.f32 %v1577, %v1584
  %v1590 = vmul.f32 %v1578, %v1585
  %v1591 = vmul.f32 %v1579, %v1585
  %v1592 = vmul.f32 %v1580, %v1586
  %v1593 = vmul.f32 %v1581, %v1586
  %v1594 = vmul.f32 %v1582, %v1587
  %v1595 = vmul.f32 %v1583, %v1587
  %v1596 = vpack.c.bf16 %v1589, %v1588
  %v1597 = vpack.c.bf16 %v1591, %v1590
  %v1598 = vpack.c.bf16 %v1593, %v1592
  %v1599 = vpack.c.bf16 %v1595, %v1594
  %v1604 = vunpack.c.l.b16 %v1218
  %v1605 = vunpack.c.h.b16 %v1218
  %v1606 = vunpack.c.l.b16 %v1219
  %v1607 = vunpack.c.h.b16 %v1219
  %v1608 = vunpack.c.l.b16 %v1220
  %v1609 = vunpack.c.h.b16 %v1220
  %v1610 = vunpack.c.l.b16 %v1221
  %v1611 = vunpack.c.h.b16 %v1221
  %v1612 = vpack.c.b16 %v1606, %v1604
  %v1613 = vpack.c.b16 %v1607, %v1605
  %v1614 = vpack.c.b16 %v1610, %v1608
  %v1615 = vpack.c.b16 %v1611, %v1609
  %v1622 = vunpack.c.l.b16 %v1316
  %v1623 = vunpack.c.h.b16 %v1316
  %v1624 = vunpack.c.l.b16 %v1317
  %v1625 = vunpack.c.h.b16 %v1317
  %v1626 = vunpack.c.l.b16 %v1318
  %v1627 = vunpack.c.h.b16 %v1318
  %v1628 = vunpack.c.l.b16 %v1319
  %v1629 = vunpack.c.h.b16 %v1319
  %v1630 = vpack.c.b16 %v1624, %v1622
  %v1631 = vpack.c.b16 %v1625, %v1623
  %v1632 = vpack.c.b16 %v1628, %v1626
  %v1633 = vpack.c.b16 %v1629, %v1627
  %1634 = vrot.lane.b32.xlu0 %v1630, 96
  %v1635 = vpop.permute.xlu0 %1634
  %1636 = vrot.lane.b32.xlu0 %v1631, 96
  %v1637 = vpop.permute.xlu0 %1636
  %1638 = vrot.lane.b32.xlu0 %v1632, 96
  %v1639 = vpop.permute.xlu0 %1638
  %1640 = vrot.lane.b32.xlu0 %v1633, 96
  %v1641 = vpop.permute.xlu0 %1640
  %vm1642 = vcmask 785408
  %v1643 = vsel %vm1642, %v1635, %v1637
  %v1644 = vsel %vm1642, %v1639, %v1641
  %v1651 = vunpack.c.l.b16 %v1395
  %v1652 = vunpack.c.h.b16 %v1395
  %v1653 = vunpack.c.l.b16 %v1396
  %v1654 = vunpack.c.h.b16 %v1396
  %v1655 = vunpack.c.l.b16 %v1397
  %v1656 = vunpack.c.h.b16 %v1397
  %v1657 = vunpack.c.l.b16 %v1398
  %v1658 = vunpack.c.h.b16 %v1398
  %v1659 = vpack.c.b16 %v1653, %v1651
  %v1660 = vpack.c.b16 %v1654, %v1652
  %v1661 = vpack.c.b16 %v1657, %v1655
  %v1662 = vpack.c.b16 %v1658, %v1656
  %1663 = vrot.lane.b32.xlu0 %v1659, 64
  %v1664 = vpop.permute.xlu0 %1663
  %1665 = vrot.lane.b32.xlu0 %v1660, 64
  %v1666 = vpop.permute.xlu0 %1665
  %1667 = vrot.lane.b32.xlu0 %v1661, 64
  %v1668 = vpop.permute.xlu0 %1667
  %1669 = vrot.lane.b32.xlu0 %v1662, 64
  %v1670 = vpop.permute.xlu0 %1669
  %vm1671 = vcmask 523264
  %v1672 = vsel %vm1671, %v1664, %v1666
  %v1673 = vsel %vm1671, %v1668, %v1670
  %v1680 = vunpack.c.l.b16 %v1515
  %v1681 = vunpack.c.h.b16 %v1515
  %v1682 = vunpack.c.l.b16 %v1516
  %v1683 = vunpack.c.h.b16 %v1516
  %v1684 = vunpack.c.l.b16 %v1517
  %v1685 = vunpack.c.h.b16 %v1517
  %v1686 = vunpack.c.l.b16 %v1518
  %v1687 = vunpack.c.h.b16 %v1518
  %v1688 = vpack.c.b16 %v1682, %v1680
  %v1689 = vpack.c.b16 %v1683, %v1681
  %v1690 = vpack.c.b16 %v1686, %v1684
  %v1691 = vpack.c.b16 %v1687, %v1685
  %1692 = vrot.lane.b32.xlu0 %v1688, 32
  %v1693 = vpop.permute.xlu0 %1692
  %1694 = vrot.lane.b32.xlu0 %v1689, 32
  %v1695 = vpop.permute.xlu0 %1694
  %1696 = vrot.lane.b32.xlu0 %v1690, 32
  %v1697 = vpop.permute.xlu0 %1696
  %1698 = vrot.lane.b32.xlu0 %v1691, 32
  %v1699 = vpop.permute.xlu0 %1698
  %vm1700 = vcmask 261120
  %v1701 = vsel %vm1700, %v1693, %v1695
  %v1702 = vsel %vm1700, %v1697, %v1699
  %v1709 = vunpack.c.l.b16 %v1083
  %v1710 = vunpack.c.h.b16 %v1083
  %v1711 = vunpack.c.l.b16 %v1084
  %v1712 = vunpack.c.h.b16 %v1084
  %v1713 = vunpack.c.l.b16 %v1085
  %v1714 = vunpack.c.h.b16 %v1085
  %v1715 = vunpack.c.l.b16 %v1086
  %v1716 = vunpack.c.h.b16 %v1086
  %v1717 = vpack.c.b16 %v1711, %v1709
  %v1718 = vpack.c.b16 %v1712, %v1710
  %v1719 = vpack.c.b16 %v1715, %v1713
  %v1720 = vpack.c.b16 %v1716, %v1714
  %1723 = vrot.lane.b32.xlu0 %v1411, 96
  %v1724 = vpop.permute.xlu0 %1723
  %1725 = vrot.lane.b32.xlu0 %v1412, 96
  %v1726 = vpop.permute.xlu0 %1725
  %1727 = vrot.lane.b32.xlu0 %v1413, 96
  %v1728 = vpop.permute.xlu0 %1727
  %1729 = vrot.lane.b32.xlu0 %v1414, 96
  %v1730 = vpop.permute.xlu0 %1729
  %v1731 = vsel %vm1642, %v1724, %v1726
  %v1732 = vsel %vm1642, %v1728, %v1730
  %v1739 = vunpack.c.l.b16 %v1596
  %v1740 = vunpack.c.h.b16 %v1596
  %v1741 = vunpack.c.l.b16 %v1597
  %v1742 = vunpack.c.h.b16 %v1597
  %v1743 = vunpack.c.l.b16 %v1598
  %v1744 = vunpack.c.h.b16 %v1598
  %v1745 = vunpack.c.l.b16 %v1599
  %v1746 = vunpack.c.h.b16 %v1599
  %v1747 = vpack.c.b16 %v1741, %v1739
  %v1748 = vpack.c.b16 %v1742, %v1740
  %v1749 = vpack.c.b16 %v1745, %v1743
  %v1750 = vpack.c.b16 %v1746, %v1744
  %1751 = vrot.lane.b32.xlu0 %v1747, 64
  %v1752 = vpop.permute.xlu0 %1751
  %1753 = vrot.lane.b32.xlu0 %v1748, 64
  %v1754 = vpop.permute.xlu0 %1753
  %1755 = vrot.lane.b32.xlu0 %v1749, 64
  %v1756 = vpop.permute.xlu0 %1755
  %1757 = vrot.lane.b32.xlu0 %v1750, 64
  %v1758 = vpop.permute.xlu0 %1757
  %v1759 = vsel %vm1671, %v1752, %v1754
  %v1760 = vsel %vm1671, %v1756, %v1758
  %1763 = vrot.lane.b32.xlu0 %v1234, 32
  %v1764 = vpop.permute.xlu0 %1763
  %1765 = vrot.lane.b32.xlu0 %v1235, 32
  %v1766 = vpop.permute.xlu0 %1765
  %1767 = vrot.lane.b32.xlu0 %v1236, 32
  %v1768 = vpop.permute.xlu0 %1767
  %1769 = vrot.lane.b32.xlu0 %v1237, 32
  %v1770 = vpop.permute.xlu0 %1769
  %v1771 = vsel %vm1700, %v1764, %v1766
  %v1772 = vsel %vm1700, %v1768, %v1770
  %vm1777 = vcmask 785408
  %v1780 = vsel %vm1777, %v1613, %v1635
  %v1784 = vsel %vm1777, %v1615, %v1639
  %vm1786 = vcmask 523264
  %v1789 = vsel %vm1786, %v1637, %v1664
  %v1793 = vsel %vm1786, %v1641, %v1668
  %vm1795 = vcmask 261120
  %v1798 = vsel %vm1795, %v1666, %v1693
  %v1802 = vsel %vm1795, %v1670, %v1697
  %v1806 = vsel %vm1777, %v1718, %v1724
  %v1810 = vsel %vm1777, %v1720, %v1728
  %v1814 = vsel %vm1786, %v1726, %v1752
  %v1818 = vsel %vm1786, %v1730, %v1756
  %v1822 = vsel %vm1795, %v1754, %v1764
  %v1826 = vsel %vm1795, %v1758, %v1768
  %v1828 = vld [vmem:[%s7] sm:$0xff]
  %v1829 = vld [vmem:[%s7 + $0x8] sm:$0xff]
  %v1830 = vld [vmem:[%s7 + $0x10] sm:$0xff]
  %v1831 = vld [vmem:[%s7 + $0x18] sm:$0xff]
  %v1832 = vld [vmem:[%s7 + $0x20] sm:$0xff]
  %v1833 = vld [vmem:[%s7 + $0x28] sm:$0xff]
  %v1834 = vld [vmem:[%s7 + $0x30] sm:$0xff]
  %v1835 = vld [vmem:[%s7 + $0x38] sm:$0xff]
  %v1836 = vld [vmem:[%s7 + $0x40] sm:$0xff]
  %v1837 = vld [vmem:[%s7 + $0x48] sm:$0xff]
  %v1838 = vld [vmem:[%s7 + $0x50] sm:$0xff]
  %v1839 = vld [vmem:[%s7 + $0x58] sm:$0xff]
  %v1840 = vld [vmem:[%s7 + $0x60] sm:$0xff]
  %v1841 = vld [vmem:[%s7 + $0x68] sm:$0xff]
  %v1842 = vld [vmem:[%s7 + $0x70] sm:$0xff]
  %v1843 = vld [vmem:[%s7 + $0x78] sm:$0xff]
  %v1844 = vld [vmem:[%s7 + $0x80] sm:$0xff]
  %v1845 = vld [vmem:[%s7 + $0x88] sm:$0xff]
  %v1846 = vld [vmem:[%s7 + $0x90] sm:$0xff]
  %v1847 = vld [vmem:[%s7 + $0x98] sm:$0xff]
  %v1848 = vld [vmem:[%s7 + $0xa0] sm:$0xff]
  %v1849 = vld [vmem:[%s7 + $0xa8] sm:$0xff]
  %v1850 = vld [vmem:[%s7 + $0xb0] sm:$0xff]
  %v1851 = vld [vmem:[%s7 + $0xb8] sm:$0xff]
  %v1852 = vld [vmem:[%s7 + $0xc0] sm:$0xff]
  %v1853 = vld [vmem:[%s7 + $0xc8] sm:$0xff]
  %v1854 = vld [vmem:[%s7 + $0xd0] sm:$0xff]
  %v1855 = vld [vmem:[%s7 + $0xd8] sm:$0xff]
  %v1856 = vld [vmem:[%s7 + $0xe0] sm:$0xff]
  %v1857 = vld [vmem:[%s7 + $0xe8] sm:$0xff]
  %v1858 = vld [vmem:[%s7 + $0xf0] sm:$0xff]
  %v1859 = vld [vmem:[%s7 + $0xf8] sm:$0xff]
  %v1860 = vld [vmem:[%s7 + $0x100] sm:$0xff]
  %v1861 = vld [vmem:[%s7 + $0x108] sm:$0xff]
  %v1862 = vld [vmem:[%s7 + $0x110] sm:$0xff]
  %v1863 = vld [vmem:[%s7 + $0x118] sm:$0xff]
  %v1864 = vld [vmem:[%s7 + $0x120] sm:$0xff]
  %v1865 = vld [vmem:[%s7 + $0x128] sm:$0xff]
  %v1866 = vld [vmem:[%s7 + $0x130] sm:$0xff]
  %v1867 = vld [vmem:[%s7 + $0x138] sm:$0xff]
  %v1868 = vld [vmem:[%s7 + $0x140] sm:$0xff]
  %v1869 = vld [vmem:[%s7 + $0x148] sm:$0xff]
  %v1870 = vld [vmem:[%s7 + $0x150] sm:$0xff]
  %v1871 = vld [vmem:[%s7 + $0x158] sm:$0xff]
  %v1872 = vld [vmem:[%s7 + $0x160] sm:$0xff]
  %v1873 = vld [vmem:[%s7 + $0x168] sm:$0xff]
  %v1874 = vld [vmem:[%s7 + $0x170] sm:$0xff]
  %v1875 = vld [vmem:[%s7 + $0x178] sm:$0xff]
  %v1876 = vld [vmem:[%s7 + $0x180] sm:$0xff]
  %v1877 = vld [vmem:[%s7 + $0x188] sm:$0xff]
  %v1878 = vld [vmem:[%s7 + $0x190] sm:$0xff]
  %v1879 = vld [vmem:[%s7 + $0x198] sm:$0xff]
  %v1880 = vld [vmem:[%s7 + $0x1a0] sm:$0xff]
  %v1881 = vld [vmem:[%s7 + $0x1a8] sm:$0xff]
  %v1882 = vld [vmem:[%s7 + $0x1b0] sm:$0xff]
  %v1883 = vld [vmem:[%s7 + $0x1b8] sm:$0xff]
  %v1884 = vld [vmem:[%s7 + $0x1c0] sm:$0xff]
  %v1885 = vld [vmem:[%s7 + $0x1c8] sm:$0xff]
  %v1886 = vld [vmem:[%s7 + $0x1d0] sm:$0xff]
  %v1887 = vld [vmem:[%s7 + $0x1d8] sm:$0xff]
  %v1888 = vld [vmem:[%s7 + $0x1e0] sm:$0xff]
  %v1889 = vld [vmem:[%s7 + $0x1e8] sm:$0xff]
  %v1890 = vld [vmem:[%s7 + $0x1f0] sm:$0xff]
  %v1891 = vld [vmem:[%s7 + $0x1f8] sm:$0xff]
  %v1892 = vld [vmem:[%s7 + $0x200] sm:$0xff]
  %v1893 = vld [vmem:[%s7 + $0x208] sm:$0xff]
  %v1894 = vld [vmem:[%s7 + $0x210] sm:$0xff]
  %v1895 = vld [vmem:[%s7 + $0x218] sm:$0xff]
  %v1896 = vld [vmem:[%s7 + $0x220] sm:$0xff]
  %v1897 = vld [vmem:[%s7 + $0x228] sm:$0xff]
  %v1898 = vld [vmem:[%s7 + $0x230] sm:$0xff]
  %v1899 = vld [vmem:[%s7 + $0x238] sm:$0xff]
  %v1900 = vld [vmem:[%s7 + $0x240] sm:$0xff]
  %v1901 = vld [vmem:[%s7 + $0x248] sm:$0xff]
  %v1902 = vld [vmem:[%s7 + $0x250] sm:$0xff]
  %v1903 = vld [vmem:[%s7 + $0x258] sm:$0xff]
  %v1904 = vld [vmem:[%s7 + $0x260] sm:$0xff]
  %v1905 = vld [vmem:[%s7 + $0x268] sm:$0xff]
  %v1906 = vld [vmem:[%s7 + $0x270] sm:$0xff]
  %v1907 = vld [vmem:[%s7 + $0x278] sm:$0xff]
  %v1908 = vld [vmem:[%s7 + $0x280] sm:$0xff]
  %v1909 = vld [vmem:[%s7 + $0x288] sm:$0xff]
  %v1910 = vld [vmem:[%s7 + $0x290] sm:$0xff]
  %v1911 = vld [vmem:[%s7 + $0x298] sm:$0xff]
  %v1912 = vld [vmem:[%s7 + $0x2a0] sm:$0xff]
  %v1913 = vld [vmem:[%s7 + $0x2a8] sm:$0xff]
  %v1914 = vld [vmem:[%s7 + $0x2b0] sm:$0xff]
  %v1915 = vld [vmem:[%s7 + $0x2b8] sm:$0xff]
  %v1916 = vld [vmem:[%s7 + $0x2c0] sm:$0xff]
  %v1917 = vld [vmem:[%s7 + $0x2c8] sm:$0xff]
  %v1918 = vld [vmem:[%s7 + $0x2d0] sm:$0xff]
  %v1919 = vld [vmem:[%s7 + $0x2d8] sm:$0xff]
  %v1920 = vld [vmem:[%s7 + $0x2e0] sm:$0xff]
  %v1921 = vld [vmem:[%s7 + $0x2e8] sm:$0xff]
  %v1922 = vld [vmem:[%s7 + $0x2f0] sm:$0xff]
  %v1923 = vld [vmem:[%s7 + $0x2f8] sm:$0xff]
  %v1924 = vld [vmem:[%s7 + $0x300] sm:$0xff]
  %v1925 = vld [vmem:[%s7 + $0x308] sm:$0xff]
  %v1926 = vld [vmem:[%s7 + $0x310] sm:$0xff]
  %v1927 = vld [vmem:[%s7 + $0x318] sm:$0xff]
  %v1928 = vld [vmem:[%s7 + $0x320] sm:$0xff]
  %v1929 = vld [vmem:[%s7 + $0x328] sm:$0xff]
  %v1930 = vld [vmem:[%s7 + $0x330] sm:$0xff]
  %v1931 = vld [vmem:[%s7 + $0x338] sm:$0xff]
  %v1932 = vld [vmem:[%s7 + $0x340] sm:$0xff]
  %v1933 = vld [vmem:[%s7 + $0x348] sm:$0xff]
  %v1934 = vld [vmem:[%s7 + $0x350] sm:$0xff]
  %v1935 = vld [vmem:[%s7 + $0x358] sm:$0xff]
  %v1936 = vld [vmem:[%s7 + $0x360] sm:$0xff]
  %v1937 = vld [vmem:[%s7 + $0x368] sm:$0xff]
  %v1938 = vld [vmem:[%s7 + $0x370] sm:$0xff]
  %v1939 = vld [vmem:[%s7 + $0x378] sm:$0xff]
  %v1940 = vld [vmem:[%s7 + $0x380] sm:$0xff]
  %v1941 = vld [vmem:[%s7 + $0x388] sm:$0xff]
  %v1942 = vld [vmem:[%s7 + $0x390] sm:$0xff]
  %v1943 = vld [vmem:[%s7 + $0x398] sm:$0xff]
  %v1944 = vld [vmem:[%s7 + $0x3a0] sm:$0xff]
  %v1945 = vld [vmem:[%s7 + $0x3a8] sm:$0xff]
  %v1946 = vld [vmem:[%s7 + $0x3b0] sm:$0xff]
  %v1947 = vld [vmem:[%s7 + $0x3b8] sm:$0xff]
  %v1948 = vld [vmem:[%s7 + $0x3c0] sm:$0xff]
  %v1949 = vld [vmem:[%s7 + $0x3c8] sm:$0xff]
  %v1950 = vld [vmem:[%s7 + $0x3d0] sm:$0xff]
  %v1951 = vld [vmem:[%s7 + $0x3d8] sm:$0xff]
  %v1952 = vld [vmem:[%s7 + $0x3e0] sm:$0xff]
  %v1953 = vld [vmem:[%s7 + $0x3e8] sm:$0xff]
  %v1954 = vld [vmem:[%s7 + $0x3f0] sm:$0xff]
  %v1955 = vld [vmem:[%s7 + $0x3f8] sm:$0xff]
  %v1956 = vld [vmem:[%s7 + $0x400] sm:$0xff]
  %v1957 = vld [vmem:[%s7 + $0x408] sm:$0xff]
  %v1958 = vld [vmem:[%s7 + $0x410] sm:$0xff]
  %v1959 = vld [vmem:[%s7 + $0x418] sm:$0xff]
  %v1960 = vld [vmem:[%s7 + $0x420] sm:$0xff]
  %v1961 = vld [vmem:[%s7 + $0x428] sm:$0xff]
  %v1962 = vld [vmem:[%s7 + $0x430] sm:$0xff]
  %v1963 = vld [vmem:[%s7 + $0x438] sm:$0xff]
  %v1964 = vld [vmem:[%s7 + $0x440] sm:$0xff]
  %v1965 = vld [vmem:[%s7 + $0x448] sm:$0xff]
  %v1966 = vld [vmem:[%s7 + $0x450] sm:$0xff]
  %v1967 = vld [vmem:[%s7 + $0x458] sm:$0xff]
  %v1968 = vld [vmem:[%s7 + $0x460] sm:$0xff]
  %v1969 = vld [vmem:[%s7 + $0x468] sm:$0xff]
  %v1970 = vld [vmem:[%s7 + $0x470] sm:$0xff]
  %v1971 = vld [vmem:[%s7 + $0x478] sm:$0xff]
  %v1972 = vld [vmem:[%s7 + $0x480] sm:$0xff]
  %v1973 = vld [vmem:[%s7 + $0x488] sm:$0xff]
  %v1974 = vld [vmem:[%s7 + $0x490] sm:$0xff]
  %v1975 = vld [vmem:[%s7 + $0x498] sm:$0xff]
  %v1976 = vld [vmem:[%s7 + $0x4a0] sm:$0xff]
  %v1977 = vld [vmem:[%s7 + $0x4a8] sm:$0xff]
  %v1978 = vld [vmem:[%s7 + $0x4b0] sm:$0xff]
  %v1979 = vld [vmem:[%s7 + $0x4b8] sm:$0xff]
  %v1980 = vld [vmem:[%s7 + $0x4c0] sm:$0xff]
  %v1981 = vld [vmem:[%s7 + $0x4c8] sm:$0xff]
  %v1982 = vld [vmem:[%s7 + $0x4d0] sm:$0xff]
  %v1983 = vld [vmem:[%s7 + $0x4d8] sm:$0xff]
  %v1984 = vld [vmem:[%s7 + $0x4e0] sm:$0xff]
  %v1985 = vld [vmem:[%s7 + $0x4e8] sm:$0xff]
  %v1986 = vld [vmem:[%s7 + $0x4f0] sm:$0xff]
  %v1987 = vld [vmem:[%s7 + $0x4f8] sm:$0xff]
  %v1988 = vld [vmem:[%s7 + $0x500] sm:$0xff]
  %v1989 = vld [vmem:[%s7 + $0x508] sm:$0xff]
  %v1990 = vld [vmem:[%s7 + $0x510] sm:$0xff]
  %v1991 = vld [vmem:[%s7 + $0x518] sm:$0xff]
  %v1992 = vld [vmem:[%s7 + $0x520] sm:$0xff]
  %v1993 = vld [vmem:[%s7 + $0x528] sm:$0xff]
  %v1994 = vld [vmem:[%s7 + $0x530] sm:$0xff]
  %v1995 = vld [vmem:[%s7 + $0x538] sm:$0xff]
  %v1996 = vld [vmem:[%s7 + $0x540] sm:$0xff]
  %v1997 = vld [vmem:[%s7 + $0x548] sm:$0xff]
  %v1998 = vld [vmem:[%s7 + $0x550] sm:$0xff]
  %v1999 = vld [vmem:[%s7 + $0x558] sm:$0xff]
  %v2000 = vld [vmem:[%s7 + $0x560] sm:$0xff]
  %v2001 = vld [vmem:[%s7 + $0x568] sm:$0xff]
  %v2002 = vld [vmem:[%s7 + $0x570] sm:$0xff]
  %v2003 = vld [vmem:[%s7 + $0x578] sm:$0xff]
  %v2004 = vld [vmem:[%s7 + $0x580] sm:$0xff]
  %v2005 = vld [vmem:[%s7 + $0x588] sm:$0xff]
  %v2006 = vld [vmem:[%s7 + $0x590] sm:$0xff]
  %v2007 = vld [vmem:[%s7 + $0x598] sm:$0xff]
  %v2008 = vld [vmem:[%s7 + $0x5a0] sm:$0xff]
  %v2009 = vld [vmem:[%s7 + $0x5a8] sm:$0xff]
  %v2010 = vld [vmem:[%s7 + $0x5b0] sm:$0xff]
  %v2011 = vld [vmem:[%s7 + $0x5b8] sm:$0xff]
  %v2012 = vld [vmem:[%s7 + $0x5c0] sm:$0xff]
  %v2013 = vld [vmem:[%s7 + $0x5c8] sm:$0xff]
  %v2014 = vld [vmem:[%s7 + $0x5d0] sm:$0xff]
  %v2015 = vld [vmem:[%s7 + $0x5d8] sm:$0xff]
  %v2016 = vld [vmem:[%s7 + $0x5e0] sm:$0xff]
  %v2017 = vld [vmem:[%s7 + $0x5e8] sm:$0xff]
  %v2018 = vld [vmem:[%s7 + $0x5f0] sm:$0xff]
  %v2019 = vld [vmem:[%s7 + $0x5f8] sm:$0xff]
  %v2020 = vld [vmem:[%s7 + $0x600] sm:$0xff]
  %v2021 = vld [vmem:[%s7 + $0x608] sm:$0xff]
  %v2022 = vld [vmem:[%s7 + $0x610] sm:$0xff]
  %v2023 = vld [vmem:[%s7 + $0x618] sm:$0xff]
  %v2024 = vld [vmem:[%s7 + $0x620] sm:$0xff]
  %v2025 = vld [vmem:[%s7 + $0x628] sm:$0xff]
  %v2026 = vld [vmem:[%s7 + $0x630] sm:$0xff]
  %v2027 = vld [vmem:[%s7 + $0x638] sm:$0xff]
  %v2028 = vld [vmem:[%s7 + $0x640] sm:$0xff]
  %v2029 = vld [vmem:[%s7 + $0x648] sm:$0xff]
  %v2030 = vld [vmem:[%s7 + $0x650] sm:$0xff]
  %v2031 = vld [vmem:[%s7 + $0x658] sm:$0xff]
  %v2032 = vld [vmem:[%s7 + $0x660] sm:$0xff]
  %v2033 = vld [vmem:[%s7 + $0x668] sm:$0xff]
  %v2034 = vld [vmem:[%s7 + $0x670] sm:$0xff]
  %v2035 = vld [vmem:[%s7 + $0x678] sm:$0xff]
  %v2036 = vld [vmem:[%s7 + $0x680] sm:$0xff]
  %v2037 = vld [vmem:[%s7 + $0x688] sm:$0xff]
  %v2038 = vld [vmem:[%s7 + $0x690] sm:$0xff]
  %v2039 = vld [vmem:[%s7 + $0x698] sm:$0xff]
  %v2040 = vld [vmem:[%s7 + $0x6a0] sm:$0xff]
  %v2041 = vld [vmem:[%s7 + $0x6a8] sm:$0xff]
  %v2042 = vld [vmem:[%s7 + $0x6b0] sm:$0xff]
  %v2043 = vld [vmem:[%s7 + $0x6b8] sm:$0xff]
  %v2044 = vld [vmem:[%s7 + $0x6c0] sm:$0xff]
  %v2045 = vld [vmem:[%s7 + $0x6c8] sm:$0xff]
  %v2046 = vld [vmem:[%s7 + $0x6d0] sm:$0xff]
  %v2047 = vld [vmem:[%s7 + $0x6d8] sm:$0xff]
  %v2048 = vld [vmem:[%s7 + $0x6e0] sm:$0xff]
  %v2049 = vld [vmem:[%s7 + $0x6e8] sm:$0xff]
  %v2050 = vld [vmem:[%s7 + $0x6f0] sm:$0xff]
  %v2051 = vld [vmem:[%s7 + $0x6f8] sm:$0xff]
  %v2052 = vld [vmem:[%s7 + $0x700] sm:$0xff]
  %v2053 = vld [vmem:[%s7 + $0x708] sm:$0xff]
  %v2054 = vld [vmem:[%s7 + $0x710] sm:$0xff]
  %v2055 = vld [vmem:[%s7 + $0x718] sm:$0xff]
  %v2056 = vld [vmem:[%s7 + $0x720] sm:$0xff]
  %v2057 = vld [vmem:[%s7 + $0x728] sm:$0xff]
  %v2058 = vld [vmem:[%s7 + $0x730] sm:$0xff]
  %v2059 = vld [vmem:[%s7 + $0x738] sm:$0xff]
  %v2060 = vld [vmem:[%s7 + $0x740] sm:$0xff]
  %v2061 = vld [vmem:[%s7 + $0x748] sm:$0xff]
  %v2062 = vld [vmem:[%s7 + $0x750] sm:$0xff]
  %v2063 = vld [vmem:[%s7 + $0x758] sm:$0xff]
  %v2064 = vld [vmem:[%s7 + $0x760] sm:$0xff]
  %v2065 = vld [vmem:[%s7 + $0x768] sm:$0xff]
  %v2066 = vld [vmem:[%s7 + $0x770] sm:$0xff]
  %v2067 = vld [vmem:[%s7 + $0x778] sm:$0xff]
  %v2068 = vld [vmem:[%s7 + $0x780] sm:$0xff]
  %v2069 = vld [vmem:[%s7 + $0x788] sm:$0xff]
  %v2070 = vld [vmem:[%s7 + $0x790] sm:$0xff]
  %v2071 = vld [vmem:[%s7 + $0x798] sm:$0xff]
  %v2072 = vld [vmem:[%s7 + $0x7a0] sm:$0xff]
  %v2073 = vld [vmem:[%s7 + $0x7a8] sm:$0xff]
  %v2074 = vld [vmem:[%s7 + $0x7b0] sm:$0xff]
  %v2075 = vld [vmem:[%s7 + $0x7b8] sm:$0xff]
  %v2076 = vld [vmem:[%s7 + $0x7c0] sm:$0xff]
  %v2077 = vld [vmem:[%s7 + $0x7c8] sm:$0xff]
  %v2078 = vld [vmem:[%s7 + $0x7d0] sm:$0xff]
  %v2079 = vld [vmem:[%s7 + $0x7d8] sm:$0xff]
  %v2080 = vld [vmem:[%s8] sm:$0x3]
  %v2082 = vperm.slane %v2080, 0
  %v2083 = vperm.slane %v2080, 1
  %v2338 = vunpack.c.l.b16 %v1828
  %v2339 = vunpack.c.h.b16 %v1828
  %v2340 = vunpack.c.l.b16 %v1829
  %v2341 = vunpack.c.h.b16 %v1829
  %v2342 = vunpack.c.l.b16 %v1830
  %v2343 = vunpack.c.h.b16 %v1830
  %v2344 = vunpack.c.l.b16 %v1831
  %v2345 = vunpack.c.h.b16 %v1831
  %v2346 = vunpack.c.l.b16 %v1832
  %v2347 = vunpack.c.h.b16 %v1832
  %v2348 = vunpack.c.l.b16 %v1833
  %v2349 = vunpack.c.h.b16 %v1833
  %v2350 = vunpack.c.l.b16 %v1834
  %v2351 = vunpack.c.h.b16 %v1834
  %v2352 = vunpack.c.l.b16 %v1835
  %v2353 = vunpack.c.h.b16 %v1835
  %v2354 = vunpack.c.l.b16 %v1836
  %v2355 = vunpack.c.h.b16 %v1836
  %v2356 = vunpack.c.l.b16 %v1837
  %v2357 = vunpack.c.h.b16 %v1837
  %v2358 = vunpack.c.l.b16 %v1838
  %v2359 = vunpack.c.h.b16 %v1838
  %v2360 = vunpack.c.l.b16 %v1839
  %v2361 = vunpack.c.h.b16 %v1839
  %v2362 = vunpack.c.l.b16 %v1840
  %v2363 = vunpack.c.h.b16 %v1840
  %v2364 = vunpack.c.l.b16 %v1841
  %v2365 = vunpack.c.h.b16 %v1841
  %v2366 = vunpack.c.l.b16 %v1842
  %v2367 = vunpack.c.h.b16 %v1842
  %v2368 = vunpack.c.l.b16 %v1843
  %v2369 = vunpack.c.h.b16 %v1843
  %v2370 = vunpack.c.l.b16 %v1844
  %v2371 = vunpack.c.h.b16 %v1844
  %v2372 = vunpack.c.l.b16 %v1845
  %v2373 = vunpack.c.h.b16 %v1845
  %v2374 = vunpack.c.l.b16 %v1846
  %v2375 = vunpack.c.h.b16 %v1846
  %v2376 = vunpack.c.l.b16 %v1847
  %v2377 = vunpack.c.h.b16 %v1847
  %v2378 = vunpack.c.l.b16 %v1848
  %v2379 = vunpack.c.h.b16 %v1848
  %v2380 = vunpack.c.l.b16 %v1849
  %v2381 = vunpack.c.h.b16 %v1849
  %v2382 = vunpack.c.l.b16 %v1850
  %v2383 = vunpack.c.h.b16 %v1850
  %v2384 = vunpack.c.l.b16 %v1851
  %v2385 = vunpack.c.h.b16 %v1851
  %v2386 = vunpack.c.l.b16 %v1852
  %v2387 = vunpack.c.h.b16 %v1852
  %v2388 = vunpack.c.l.b16 %v1853
  %v2389 = vunpack.c.h.b16 %v1853
  %v2390 = vunpack.c.l.b16 %v1854
  %v2391 = vunpack.c.h.b16 %v1854
  %v2392 = vunpack.c.l.b16 %v1855
  %v2393 = vunpack.c.h.b16 %v1855
  %v2394 = vunpack.c.l.b16 %v1856
  %v2395 = vunpack.c.h.b16 %v1856
  %v2396 = vunpack.c.l.b16 %v1857
  %v2397 = vunpack.c.h.b16 %v1857
  %v2398 = vunpack.c.l.b16 %v1858
  %v2399 = vunpack.c.h.b16 %v1858
  %v2400 = vunpack.c.l.b16 %v1859
  %v2401 = vunpack.c.h.b16 %v1859
  %v2402 = vunpack.c.l.b16 %v1860
  %v2403 = vunpack.c.h.b16 %v1860
  %v2404 = vunpack.c.l.b16 %v1861
  %v2405 = vunpack.c.h.b16 %v1861
  %v2406 = vunpack.c.l.b16 %v1862
  %v2407 = vunpack.c.h.b16 %v1862
  %v2408 = vunpack.c.l.b16 %v1863
  %v2409 = vunpack.c.h.b16 %v1863
  %v2410 = vunpack.c.l.b16 %v1864
  %v2411 = vunpack.c.h.b16 %v1864
  %v2412 = vunpack.c.l.b16 %v1865
  %v2413 = vunpack.c.h.b16 %v1865
  %v2414 = vunpack.c.l.b16 %v1866
  %v2415 = vunpack.c.h.b16 %v1866
  %v2416 = vunpack.c.l.b16 %v1867
  %v2417 = vunpack.c.h.b16 %v1867
  %v2418 = vunpack.c.l.b16 %v1868
  %v2419 = vunpack.c.h.b16 %v1868
  %v2420 = vunpack.c.l.b16 %v1869
  %v2421 = vunpack.c.h.b16 %v1869
  %v2422 = vunpack.c.l.b16 %v1870
  %v2423 = vunpack.c.h.b16 %v1870
  %v2424 = vunpack.c.l.b16 %v1871
  %v2425 = vunpack.c.h.b16 %v1871
  %v2426 = vunpack.c.l.b16 %v1872
  %v2427 = vunpack.c.h.b16 %v1872
  %v2428 = vunpack.c.l.b16 %v1873
  %v2429 = vunpack.c.h.b16 %v1873
  %v2430 = vunpack.c.l.b16 %v1874
  %v2431 = vunpack.c.h.b16 %v1874
  %v2432 = vunpack.c.l.b16 %v1875
  %v2433 = vunpack.c.h.b16 %v1875
  %v2434 = vunpack.c.l.b16 %v1876
  %v2435 = vunpack.c.h.b16 %v1876
  %v2436 = vunpack.c.l.b16 %v1877
  %v2437 = vunpack.c.h.b16 %v1877
  %v2438 = vunpack.c.l.b16 %v1878
  %v2439 = vunpack.c.h.b16 %v1878
  %v2440 = vunpack.c.l.b16 %v1879
  %v2441 = vunpack.c.h.b16 %v1879
  %v2442 = vunpack.c.l.b16 %v1880
  %v2443 = vunpack.c.h.b16 %v1880
  %v2444 = vunpack.c.l.b16 %v1881
  %v2445 = vunpack.c.h.b16 %v1881
  %v2446 = vunpack.c.l.b16 %v1882
  %v2447 = vunpack.c.h.b16 %v1882
  %v2448 = vunpack.c.l.b16 %v1883
  %v2449 = vunpack.c.h.b16 %v1883
  %v2450 = vunpack.c.l.b16 %v1884
  %v2451 = vunpack.c.h.b16 %v1884
  %v2452 = vunpack.c.l.b16 %v1885
  %v2453 = vunpack.c.h.b16 %v1885
  %v2454 = vunpack.c.l.b16 %v1886
  %v2455 = vunpack.c.h.b16 %v1886
  %v2456 = vunpack.c.l.b16 %v1887
  %v2457 = vunpack.c.h.b16 %v1887
  %v2458 = vunpack.c.l.b16 %v1888
  %v2459 = vunpack.c.h.b16 %v1888
  %v2460 = vunpack.c.l.b16 %v1889
  %v2461 = vunpack.c.h.b16 %v1889
  %v2462 = vunpack.c.l.b16 %v1890
  %v2463 = vunpack.c.h.b16 %v1890
  %v2464 = vunpack.c.l.b16 %v1891
  %v2465 = vunpack.c.h.b16 %v1891
  %v2466 = vunpack.c.l.b16 %v1892
  %v2467 = vunpack.c.h.b16 %v1892
  %v2468 = vunpack.c.l.b16 %v1893
  %v2469 = vunpack.c.h.b16 %v1893
  %v2470 = vunpack.c.l.b16 %v1894
  %v2471 = vunpack.c.h.b16 %v1894
  %v2472 = vunpack.c.l.b16 %v1895
  %v2473 = vunpack.c.h.b16 %v1895
  %v2474 = vunpack.c.l.b16 %v1896
  %v2475 = vunpack.c.h.b16 %v1896
  %v2476 = vunpack.c.l.b16 %v1897
  %v2477 = vunpack.c.h.b16 %v1897
  %v2478 = vunpack.c.l.b16 %v1898
  %v2479 = vunpack.c.h.b16 %v1898
  %v2480 = vunpack.c.l.b16 %v1899
  %v2481 = vunpack.c.h.b16 %v1899
  %v2482 = vunpack.c.l.b16 %v1900
  %v2483 = vunpack.c.h.b16 %v1900
  %v2484 = vunpack.c.l.b16 %v1901
  %v2485 = vunpack.c.h.b16 %v1901
  %v2486 = vunpack.c.l.b16 %v1902
  %v2487 = vunpack.c.h.b16 %v1902
  %v2488 = vunpack.c.l.b16 %v1903
  %v2489 = vunpack.c.h.b16 %v1903
  %v2490 = vunpack.c.l.b16 %v1904
  %v2491 = vunpack.c.h.b16 %v1904
  %v2492 = vunpack.c.l.b16 %v1905
  %v2493 = vunpack.c.h.b16 %v1905
  %v2494 = vunpack.c.l.b16 %v1906
  %v2495 = vunpack.c.h.b16 %v1906
  %v2496 = vunpack.c.l.b16 %v1907
  %v2497 = vunpack.c.h.b16 %v1907
  %v2498 = vunpack.c.l.b16 %v1908
  %v2499 = vunpack.c.h.b16 %v1908
  %v2500 = vunpack.c.l.b16 %v1909
  %v2501 = vunpack.c.h.b16 %v1909
  %v2502 = vunpack.c.l.b16 %v1910
  %v2503 = vunpack.c.h.b16 %v1910
  %v2504 = vunpack.c.l.b16 %v1911
  %v2505 = vunpack.c.h.b16 %v1911
  %v2506 = vunpack.c.l.b16 %v1912
  %v2507 = vunpack.c.h.b16 %v1912
  %v2508 = vunpack.c.l.b16 %v1913
  %v2509 = vunpack.c.h.b16 %v1913
  %v2510 = vunpack.c.l.b16 %v1914
  %v2511 = vunpack.c.h.b16 %v1914
  %v2512 = vunpack.c.l.b16 %v1915
  %v2513 = vunpack.c.h.b16 %v1915
  %v2514 = vunpack.c.l.b16 %v1916
  %v2515 = vunpack.c.h.b16 %v1916
  %v2516 = vunpack.c.l.b16 %v1917
  %v2517 = vunpack.c.h.b16 %v1917
  %v2518 = vunpack.c.l.b16 %v1918
  %v2519 = vunpack.c.h.b16 %v1918
  %v2520 = vunpack.c.l.b16 %v1919
  %v2521 = vunpack.c.h.b16 %v1919
  %v2522 = vunpack.c.l.b16 %v1920
  %v2523 = vunpack.c.h.b16 %v1920
  %v2524 = vunpack.c.l.b16 %v1921
  %v2525 = vunpack.c.h.b16 %v1921
  %v2526 = vunpack.c.l.b16 %v1922
  %v2527 = vunpack.c.h.b16 %v1922
  %v2528 = vunpack.c.l.b16 %v1923
  %v2529 = vunpack.c.h.b16 %v1923
  %v2530 = vunpack.c.l.b16 %v1924
  %v2531 = vunpack.c.h.b16 %v1924
  %v2532 = vunpack.c.l.b16 %v1925
  %v2533 = vunpack.c.h.b16 %v1925
  %v2534 = vunpack.c.l.b16 %v1926
  %v2535 = vunpack.c.h.b16 %v1926
  %v2536 = vunpack.c.l.b16 %v1927
  %v2537 = vunpack.c.h.b16 %v1927
  %v2538 = vunpack.c.l.b16 %v1928
  %v2539 = vunpack.c.h.b16 %v1928
  %v2540 = vunpack.c.l.b16 %v1929
  %v2541 = vunpack.c.h.b16 %v1929
  %v2542 = vunpack.c.l.b16 %v1930
  %v2543 = vunpack.c.h.b16 %v1930
  %v2544 = vunpack.c.l.b16 %v1931
  %v2545 = vunpack.c.h.b16 %v1931
  %v2546 = vunpack.c.l.b16 %v1932
  %v2547 = vunpack.c.h.b16 %v1932
  %v2548 = vunpack.c.l.b16 %v1933
  %v2549 = vunpack.c.h.b16 %v1933
  %v2550 = vunpack.c.l.b16 %v1934
  %v2551 = vunpack.c.h.b16 %v1934
  %v2552 = vunpack.c.l.b16 %v1935
  %v2553 = vunpack.c.h.b16 %v1935
  %v2554 = vunpack.c.l.b16 %v1936
  %v2555 = vunpack.c.h.b16 %v1936
  %v2556 = vunpack.c.l.b16 %v1937
  %v2557 = vunpack.c.h.b16 %v1937
  %v2558 = vunpack.c.l.b16 %v1938
  %v2559 = vunpack.c.h.b16 %v1938
  %v2560 = vunpack.c.l.b16 %v1939
  %v2561 = vunpack.c.h.b16 %v1939
  %v2562 = vunpack.c.l.b16 %v1940
  %v2563 = vunpack.c.h.b16 %v1940
  %v2564 = vunpack.c.l.b16 %v1941
  %v2565 = vunpack.c.h.b16 %v1941
  %v2566 = vunpack.c.l.b16 %v1942
  %v2567 = vunpack.c.h.b16 %v1942
  %v2568 = vunpack.c.l.b16 %v1943
  %v2569 = vunpack.c.h.b16 %v1943
  %v2570 = vunpack.c.l.b16 %v1944
  %v2571 = vunpack.c.h.b16 %v1944
  %v2572 = vunpack.c.l.b16 %v1945
  %v2573 = vunpack.c.h.b16 %v1945
  %v2574 = vunpack.c.l.b16 %v1946
  %v2575 = vunpack.c.h.b16 %v1946
  %v2576 = vunpack.c.l.b16 %v1947
  %v2577 = vunpack.c.h.b16 %v1947
  %v2578 = vunpack.c.l.b16 %v1948
  %v2579 = vunpack.c.h.b16 %v1948
  %v2580 = vunpack.c.l.b16 %v1949
  %v2581 = vunpack.c.h.b16 %v1949
  %v2582 = vunpack.c.l.b16 %v1950
  %v2583 = vunpack.c.h.b16 %v1950
  %v2584 = vunpack.c.l.b16 %v1951
  %v2585 = vunpack.c.h.b16 %v1951
  %v2586 = vunpack.c.l.b16 %v1952
  %v2587 = vunpack.c.h.b16 %v1952
  %v2588 = vunpack.c.l.b16 %v1953
  %v2589 = vunpack.c.h.b16 %v1953
  %v2590 = vunpack.c.l.b16 %v1954
  %v2591 = vunpack.c.h.b16 %v1954
  %v2592 = vunpack.c.l.b16 %v1955
  %v2593 = vunpack.c.h.b16 %v1955
  %v2594 = vunpack.c.l.b16 %v1956
  %v2595 = vunpack.c.h.b16 %v1956
  %v2596 = vunpack.c.l.b16 %v1957
  %v2597 = vunpack.c.h.b16 %v1957
  %v2598 = vunpack.c.l.b16 %v1958
  %v2599 = vunpack.c.h.b16 %v1958
  %v2600 = vunpack.c.l.b16 %v1959
  %v2601 = vunpack.c.h.b16 %v1959
  %v2602 = vunpack.c.l.b16 %v1960
  %v2603 = vunpack.c.h.b16 %v1960
  %v2604 = vunpack.c.l.b16 %v1961
  %v2605 = vunpack.c.h.b16 %v1961
  %v2606 = vunpack.c.l.b16 %v1962
  %v2607 = vunpack.c.h.b16 %v1962
  %v2608 = vunpack.c.l.b16 %v1963
  %v2609 = vunpack.c.h.b16 %v1963
  %v2610 = vunpack.c.l.b16 %v1964
  %v2611 = vunpack.c.h.b16 %v1964
  %v2612 = vunpack.c.l.b16 %v1965
  %v2613 = vunpack.c.h.b16 %v1965
  %v2614 = vunpack.c.l.b16 %v1966
  %v2615 = vunpack.c.h.b16 %v1966
  %v2616 = vunpack.c.l.b16 %v1967
  %v2617 = vunpack.c.h.b16 %v1967
  %v2618 = vunpack.c.l.b16 %v1968
  %v2619 = vunpack.c.h.b16 %v1968
  %v2620 = vunpack.c.l.b16 %v1969
  %v2621 = vunpack.c.h.b16 %v1969
  %v2622 = vunpack.c.l.b16 %v1970
  %v2623 = vunpack.c.h.b16 %v1970
  %v2624 = vunpack.c.l.b16 %v1971
  %v2625 = vunpack.c.h.b16 %v1971
  %v2626 = vunpack.c.l.b16 %v1972
  %v2627 = vunpack.c.h.b16 %v1972
  %v2628 = vunpack.c.l.b16 %v1973
  %v2629 = vunpack.c.h.b16 %v1973
  %v2630 = vunpack.c.l.b16 %v1974
  %v2631 = vunpack.c.h.b16 %v1974
  %v2632 = vunpack.c.l.b16 %v1975
  %v2633 = vunpack.c.h.b16 %v1975
  %v2634 = vunpack.c.l.b16 %v1976
  %v2635 = vunpack.c.h.b16 %v1976
  %v2636 = vunpack.c.l.b16 %v1977
  %v2637 = vunpack.c.h.b16 %v1977
  %v2638 = vunpack.c.l.b16 %v1978
  %v2639 = vunpack.c.h.b16 %v1978
  %v2640 = vunpack.c.l.b16 %v1979
  %v2641 = vunpack.c.h.b16 %v1979
  %v2642 = vunpack.c.l.b16 %v1980
  %v2643 = vunpack.c.h.b16 %v1980
  %v2644 = vunpack.c.l.b16 %v1981
  %v2645 = vunpack.c.h.b16 %v1981
  %v2646 = vunpack.c.l.b16 %v1982
  %v2647 = vunpack.c.h.b16 %v1982
  %v2648 = vunpack.c.l.b16 %v1983
  %v2649 = vunpack.c.h.b16 %v1983
  %v2650 = vunpack.c.l.b16 %v1984
  %v2651 = vunpack.c.h.b16 %v1984
  %v2652 = vunpack.c.l.b16 %v1985
  %v2653 = vunpack.c.h.b16 %v1985
  %v2654 = vunpack.c.l.b16 %v1986
  %v2655 = vunpack.c.h.b16 %v1986
  %v2656 = vunpack.c.l.b16 %v1987
  %v2657 = vunpack.c.h.b16 %v1987
  %v2658 = vunpack.c.l.b16 %v1988
  %v2659 = vunpack.c.h.b16 %v1988
  %v2660 = vunpack.c.l.b16 %v1989
  %v2661 = vunpack.c.h.b16 %v1989
  %v2662 = vunpack.c.l.b16 %v1990
  %v2663 = vunpack.c.h.b16 %v1990
  %v2664 = vunpack.c.l.b16 %v1991
  %v2665 = vunpack.c.h.b16 %v1991
  %v2666 = vunpack.c.l.b16 %v1992
  %v2667 = vunpack.c.h.b16 %v1992
  %v2668 = vunpack.c.l.b16 %v1993
  %v2669 = vunpack.c.h.b16 %v1993
  %v2670 = vunpack.c.l.b16 %v1994
  %v2671 = vunpack.c.h.b16 %v1994
  %v2672 = vunpack.c.l.b16 %v1995
  %v2673 = vunpack.c.h.b16 %v1995
  %v2674 = vunpack.c.l.b16 %v1996
  %v2675 = vunpack.c.h.b16 %v1996
  %v2676 = vunpack.c.l.b16 %v1997
  %v2677 = vunpack.c.h.b16 %v1997
  %v2678 = vunpack.c.l.b16 %v1998
  %v2679 = vunpack.c.h.b16 %v1998
  %v2680 = vunpack.c.l.b16 %v1999
  %v2681 = vunpack.c.h.b16 %v1999
  %v2682 = vunpack.c.l.b16 %v2000
  %v2683 = vunpack.c.h.b16 %v2000
  %v2684 = vunpack.c.l.b16 %v2001
  %v2685 = vunpack.c.h.b16 %v2001
  %v2686 = vunpack.c.l.b16 %v2002
  %v2687 = vunpack.c.h.b16 %v2002
  %v2688 = vunpack.c.l.b16 %v2003
  %v2689 = vunpack.c.h.b16 %v2003
  %v2690 = vunpack.c.l.b16 %v2004
  %v2691 = vunpack.c.h.b16 %v2004
  %v2692 = vunpack.c.l.b16 %v2005
  %v2693 = vunpack.c.h.b16 %v2005
  %v2694 = vunpack.c.l.b16 %v2006
  %v2695 = vunpack.c.h.b16 %v2006
  %v2696 = vunpack.c.l.b16 %v2007
  %v2697 = vunpack.c.h.b16 %v2007
  %v2698 = vunpack.c.l.b16 %v2008
  %v2699 = vunpack.c.h.b16 %v2008
  %v2700 = vunpack.c.l.b16 %v2009
  %v2701 = vunpack.c.h.b16 %v2009
  %v2702 = vunpack.c.l.b16 %v2010
  %v2703 = vunpack.c.h.b16 %v2010
  %v2704 = vunpack.c.l.b16 %v2011
  %v2705 = vunpack.c.h.b16 %v2011
  %v2706 = vunpack.c.l.b16 %v2012
  %v2707 = vunpack.c.h.b16 %v2012
  %v2708 = vunpack.c.l.b16 %v2013
  %v2709 = vunpack.c.h.b16 %v2013
  %v2710 = vunpack.c.l.b16 %v2014
  %v2711 = vunpack.c.h.b16 %v2014
  %v2712 = vunpack.c.l.b16 %v2015
  %v2713 = vunpack.c.h.b16 %v2015
  %v2714 = vunpack.c.l.b16 %v2016
  %v2715 = vunpack.c.h.b16 %v2016
  %v2716 = vunpack.c.l.b16 %v2017
  %v2717 = vunpack.c.h.b16 %v2017
  %v2718 = vunpack.c.l.b16 %v2018
  %v2719 = vunpack.c.h.b16 %v2018
  %v2720 = vunpack.c.l.b16 %v2019
  %v2721 = vunpack.c.h.b16 %v2019
  %v2722 = vunpack.c.l.b16 %v2020
  %v2723 = vunpack.c.h.b16 %v2020
  %v2724 = vunpack.c.l.b16 %v2021
  %v2725 = vunpack.c.h.b16 %v2021
  %v2726 = vunpack.c.l.b16 %v2022
  %v2727 = vunpack.c.h.b16 %v2022
  %v2728 = vunpack.c.l.b16 %v2023
  %v2729 = vunpack.c.h.b16 %v2023
  %v2730 = vunpack.c.l.b16 %v2024
  %v2731 = vunpack.c.h.b16 %v2024
  %v2732 = vunpack.c.l.b16 %v2025
  %v2733 = vunpack.c.h.b16 %v2025
  %v2734 = vunpack.c.l.b16 %v2026
  %v2735 = vunpack.c.h.b16 %v2026
  %v2736 = vunpack.c.l.b16 %v2027
  %v2737 = vunpack.c.h.b16 %v2027
  %v2738 = vunpack.c.l.b16 %v2028
  %v2739 = vunpack.c.h.b16 %v2028
  %v2740 = vunpack.c.l.b16 %v2029
  %v2741 = vunpack.c.h.b16 %v2029
  %v2742 = vunpack.c.l.b16 %v2030
  %v2743 = vunpack.c.h.b16 %v2030
  %v2744 = vunpack.c.l.b16 %v2031
  %v2745 = vunpack.c.h.b16 %v2031
  %v2746 = vunpack.c.l.b16 %v2032
  %v2747 = vunpack.c.h.b16 %v2032
  %v2748 = vunpack.c.l.b16 %v2033
  %v2749 = vunpack.c.h.b16 %v2033
  %v2750 = vunpack.c.l.b16 %v2034
  %v2751 = vunpack.c.h.b16 %v2034
  %v2752 = vunpack.c.l.b16 %v2035
  %v2753 = vunpack.c.h.b16 %v2035
  %v2754 = vunpack.c.l.b16 %v2036
  %v2755 = vunpack.c.h.b16 %v2036
  %v2756 = vunpack.c.l.b16 %v2037
  %v2757 = vunpack.c.h.b16 %v2037
  %v2758 = vunpack.c.l.b16 %v2038
  %v2759 = vunpack.c.h.b16 %v2038
  %v2760 = vunpack.c.l.b16 %v2039
  %v2761 = vunpack.c.h.b16 %v2039
  %v2762 = vunpack.c.l.b16 %v2040
  %v2763 = vunpack.c.h.b16 %v2040
  %v2764 = vunpack.c.l.b16 %v2041
  %v2765 = vunpack.c.h.b16 %v2041
  %v2766 = vunpack.c.l.b16 %v2042
  %v2767 = vunpack.c.h.b16 %v2042
  %v2768 = vunpack.c.l.b16 %v2043
  %v2769 = vunpack.c.h.b16 %v2043
  %v2770 = vunpack.c.l.b16 %v2044
  %v2771 = vunpack.c.h.b16 %v2044
  %v2772 = vunpack.c.l.b16 %v2045
  %v2773 = vunpack.c.h.b16 %v2045
  %v2774 = vunpack.c.l.b16 %v2046
  %v2775 = vunpack.c.h.b16 %v2046
  %v2776 = vunpack.c.l.b16 %v2047
  %v2777 = vunpack.c.h.b16 %v2047
  %v2778 = vunpack.c.l.b16 %v2048
  %v2779 = vunpack.c.h.b16 %v2048
  %v2780 = vunpack.c.l.b16 %v2049
  %v2781 = vunpack.c.h.b16 %v2049
  %v2782 = vunpack.c.l.b16 %v2050
  %v2783 = vunpack.c.h.b16 %v2050
  %v2784 = vunpack.c.l.b16 %v2051
  %v2785 = vunpack.c.h.b16 %v2051
  %v2786 = vunpack.c.l.b16 %v2052
  %v2787 = vunpack.c.h.b16 %v2052
  %v2788 = vunpack.c.l.b16 %v2053
  %v2789 = vunpack.c.h.b16 %v2053
  %v2790 = vunpack.c.l.b16 %v2054
  %v2791 = vunpack.c.h.b16 %v2054
  %v2792 = vunpack.c.l.b16 %v2055
  %v2793 = vunpack.c.h.b16 %v2055
  %v2794 = vunpack.c.l.b16 %v2056
  %v2795 = vunpack.c.h.b16 %v2056
  %v2796 = vunpack.c.l.b16 %v2057
  %v2797 = vunpack.c.h.b16 %v2057
  %v2798 = vunpack.c.l.b16 %v2058
  %v2799 = vunpack.c.h.b16 %v2058
  %v2800 = vunpack.c.l.b16 %v2059
  %v2801 = vunpack.c.h.b16 %v2059
  %v2802 = vunpack.c.l.b16 %v2060
  %v2803 = vunpack.c.h.b16 %v2060
  %v2804 = vunpack.c.l.b16 %v2061
  %v2805 = vunpack.c.h.b16 %v2061
  %v2806 = vunpack.c.l.b16 %v2062
  %v2807 = vunpack.c.h.b16 %v2062
  %v2808 = vunpack.c.l.b16 %v2063
  %v2809 = vunpack.c.h.b16 %v2063
  %v2810 = vunpack.c.l.b16 %v2064
  %v2811 = vunpack.c.h.b16 %v2064
  %v2812 = vunpack.c.l.b16 %v2065
  %v2813 = vunpack.c.h.b16 %v2065
  %v2814 = vunpack.c.l.b16 %v2066
  %v2815 = vunpack.c.h.b16 %v2066
  %v2816 = vunpack.c.l.b16 %v2067
  %v2817 = vunpack.c.h.b16 %v2067
  %v2818 = vunpack.c.l.b16 %v2068
  %v2819 = vunpack.c.h.b16 %v2068
  %v2820 = vunpack.c.l.b16 %v2069
  %v2821 = vunpack.c.h.b16 %v2069
  %v2822 = vunpack.c.l.b16 %v2070
  %v2823 = vunpack.c.h.b16 %v2070
  %v2824 = vunpack.c.l.b16 %v2071
  %v2825 = vunpack.c.h.b16 %v2071
  %v2826 = vunpack.c.l.b16 %v2072
  %v2827 = vunpack.c.h.b16 %v2072
  %v2828 = vunpack.c.l.b16 %v2073
  %v2829 = vunpack.c.h.b16 %v2073
  %v2830 = vunpack.c.l.b16 %v2074
  %v2831 = vunpack.c.h.b16 %v2074
  %v2832 = vunpack.c.l.b16 %v2075
  %v2833 = vunpack.c.h.b16 %v2075
  %v2834 = vunpack.c.l.b16 %v2076
  %v2835 = vunpack.c.h.b16 %v2076
  %v2836 = vunpack.c.l.b16 %v2077
  %v2837 = vunpack.c.h.b16 %v2077
  %v2838 = vunpack.c.l.b16 %v2078
  %v2839 = vunpack.c.h.b16 %v2078
  %v2840 = vunpack.c.l.b16 %v2079
  %v2841 = vunpack.c.h.b16 %v2079
  %v2842 = vpack.c.b16 %v2340, %v2338
  %v2843 = vpack.c.b16 %v2341, %v2339
  %v2844 = vpack.c.b16 %v2344, %v2342
  %v2845 = vpack.c.b16 %v2345, %v2343
  %v2846 = vpack.c.b16 %v2348, %v2346
  %v2847 = vpack.c.b16 %v2349, %v2347
  %v2848 = vpack.c.b16 %v2352, %v2350
  %v2849 = vpack.c.b16 %v2353, %v2351
  %v2850 = vpack.c.b16 %v2356, %v2354
  %v2851 = vpack.c.b16 %v2357, %v2355
  %v2852 = vpack.c.b16 %v2360, %v2358
  %v2853 = vpack.c.b16 %v2361, %v2359
  %v2854 = vpack.c.b16 %v2364, %v2362
  %v2855 = vpack.c.b16 %v2365, %v2363
  %v2856 = vpack.c.b16 %v2368, %v2366
  %v2857 = vpack.c.b16 %v2369, %v2367
  %v2858 = vpack.c.b16 %v2372, %v2370
  %v2859 = vpack.c.b16 %v2373, %v2371
  %v2860 = vpack.c.b16 %v2376, %v2374
  %v2861 = vpack.c.b16 %v2377, %v2375
  %v2862 = vpack.c.b16 %v2380, %v2378
  %v2863 = vpack.c.b16 %v2381, %v2379
  %v2864 = vpack.c.b16 %v2384, %v2382
  %v2865 = vpack.c.b16 %v2385, %v2383
  %v2866 = vpack.c.b16 %v2388, %v2386
  %v2867 = vpack.c.b16 %v2389, %v2387
  %v2868 = vpack.c.b16 %v2392, %v2390
  %v2869 = vpack.c.b16 %v2393, %v2391
  %v2870 = vpack.c.b16 %v2396, %v2394
  %v2871 = vpack.c.b16 %v2397, %v2395
  %v2872 = vpack.c.b16 %v2400, %v2398
  %v2873 = vpack.c.b16 %v2401, %v2399
  %v2874 = vpack.c.b16 %v2404, %v2402
  %v2875 = vpack.c.b16 %v2405, %v2403
  %v2876 = vpack.c.b16 %v2408, %v2406
  %v2877 = vpack.c.b16 %v2409, %v2407
  %v2878 = vpack.c.b16 %v2412, %v2410
  %v2879 = vpack.c.b16 %v2413, %v2411
  %v2880 = vpack.c.b16 %v2416, %v2414
  %v2881 = vpack.c.b16 %v2417, %v2415
  %v2882 = vpack.c.b16 %v2420, %v2418
  %v2883 = vpack.c.b16 %v2421, %v2419
  %v2884 = vpack.c.b16 %v2424, %v2422
  %v2885 = vpack.c.b16 %v2425, %v2423
  %v2886 = vpack.c.b16 %v2428, %v2426
  %v2887 = vpack.c.b16 %v2429, %v2427
  %v2888 = vpack.c.b16 %v2432, %v2430
  %v2889 = vpack.c.b16 %v2433, %v2431
  %v2890 = vpack.c.b16 %v2436, %v2434
  %v2891 = vpack.c.b16 %v2437, %v2435
  %v2892 = vpack.c.b16 %v2440, %v2438
  %v2893 = vpack.c.b16 %v2441, %v2439
  %v2894 = vpack.c.b16 %v2444, %v2442
  %v2895 = vpack.c.b16 %v2445, %v2443
  %v2896 = vpack.c.b16 %v2448, %v2446
  %v2897 = vpack.c.b16 %v2449, %v2447
  %v2898 = vpack.c.b16 %v2452, %v2450
  %v2899 = vpack.c.b16 %v2453, %v2451
  %v2900 = vpack.c.b16 %v2456, %v2454
  %v2901 = vpack.c.b16 %v2457, %v2455
  %v2902 = vpack.c.b16 %v2460, %v2458
  %v2903 = vpack.c.b16 %v2461, %v2459
  %v2904 = vpack.c.b16 %v2464, %v2462
  %v2905 = vpack.c.b16 %v2465, %v2463
  %v2906 = vpack.c.b16 %v2468, %v2466
  %v2907 = vpack.c.b16 %v2469, %v2467
  %v2908 = vpack.c.b16 %v2472, %v2470
  %v2909 = vpack.c.b16 %v2473, %v2471
  %v2910 = vpack.c.b16 %v2476, %v2474
  %v2911 = vpack.c.b16 %v2477, %v2475
  %v2912 = vpack.c.b16 %v2480, %v2478
  %v2913 = vpack.c.b16 %v2481, %v2479
  %v2914 = vpack.c.b16 %v2484, %v2482
  %v2915 = vpack.c.b16 %v2485, %v2483
  %v2916 = vpack.c.b16 %v2488, %v2486
  %v2917 = vpack.c.b16 %v2489, %v2487
  %v2918 = vpack.c.b16 %v2492, %v2490
  %v2919 = vpack.c.b16 %v2493, %v2491
  %v2920 = vpack.c.b16 %v2496, %v2494
  %v2921 = vpack.c.b16 %v2497, %v2495
  %v2922 = vpack.c.b16 %v2500, %v2498
  %v2923 = vpack.c.b16 %v2501, %v2499
  %v2924 = vpack.c.b16 %v2504, %v2502
  %v2925 = vpack.c.b16 %v2505, %v2503
  %v2926 = vpack.c.b16 %v2508, %v2506
  %v2927 = vpack.c.b16 %v2509, %v2507
  %v2928 = vpack.c.b16 %v2512, %v2510
  %v2929 = vpack.c.b16 %v2513, %v2511
  %v2930 = vpack.c.b16 %v2516, %v2514
  %v2931 = vpack.c.b16 %v2517, %v2515
  %v2932 = vpack.c.b16 %v2520, %v2518
  %v2933 = vpack.c.b16 %v2521, %v2519
  %v2934 = vpack.c.b16 %v2524, %v2522
  %v2935 = vpack.c.b16 %v2525, %v2523
  %v2936 = vpack.c.b16 %v2528, %v2526
  %v2937 = vpack.c.b16 %v2529, %v2527
  %v2938 = vpack.c.b16 %v2532, %v2530
  %v2939 = vpack.c.b16 %v2533, %v2531
  %v2940 = vpack.c.b16 %v2536, %v2534
  %v2941 = vpack.c.b16 %v2537, %v2535
  %v2942 = vpack.c.b16 %v2540, %v2538
  %v2943 = vpack.c.b16 %v2541, %v2539
  %v2944 = vpack.c.b16 %v2544, %v2542
  %v2945 = vpack.c.b16 %v2545, %v2543
  %v2946 = vpack.c.b16 %v2548, %v2546
  %v2947 = vpack.c.b16 %v2549, %v2547
  %v2948 = vpack.c.b16 %v2552, %v2550
  %v2949 = vpack.c.b16 %v2553, %v2551
  %v2950 = vpack.c.b16 %v2556, %v2554
  %v2951 = vpack.c.b16 %v2557, %v2555
  %v2952 = vpack.c.b16 %v2560, %v2558
  %v2953 = vpack.c.b16 %v2561, %v2559
  %v2954 = vpack.c.b16 %v2564, %v2562
  %v2955 = vpack.c.b16 %v2565, %v2563
  %v2956 = vpack.c.b16 %v2568, %v2566
  %v2957 = vpack.c.b16 %v2569, %v2567
  %v2958 = vpack.c.b16 %v2572, %v2570
  %v2959 = vpack.c.b16 %v2573, %v2571
  %v2960 = vpack.c.b16 %v2576, %v2574
  %v2961 = vpack.c.b16 %v2577, %v2575
  %v2962 = vpack.c.b16 %v2580, %v2578
  %v2963 = vpack.c.b16 %v2581, %v2579
  %v2964 = vpack.c.b16 %v2584, %v2582
  %v2965 = vpack.c.b16 %v2585, %v2583
  %v2966 = vpack.c.b16 %v2588, %v2586
  %v2967 = vpack.c.b16 %v2589, %v2587
  %v2968 = vpack.c.b16 %v2592, %v2590
  %v2969 = vpack.c.b16 %v2593, %v2591
  %v2970 = vpack.c.b16 %v2596, %v2594
  %v2971 = vpack.c.b16 %v2597, %v2595
  %v2972 = vpack.c.b16 %v2600, %v2598
  %v2973 = vpack.c.b16 %v2601, %v2599
  %v2974 = vpack.c.b16 %v2604, %v2602
  %v2975 = vpack.c.b16 %v2605, %v2603
  %v2976 = vpack.c.b16 %v2608, %v2606
  %v2977 = vpack.c.b16 %v2609, %v2607
  %v2978 = vpack.c.b16 %v2612, %v2610
  %v2979 = vpack.c.b16 %v2613, %v2611
  %v2980 = vpack.c.b16 %v2616, %v2614
  %v2981 = vpack.c.b16 %v2617, %v2615
  %v2982 = vpack.c.b16 %v2620, %v2618
  %v2983 = vpack.c.b16 %v2621, %v2619
  %v2984 = vpack.c.b16 %v2624, %v2622
  %v2985 = vpack.c.b16 %v2625, %v2623
  %v2986 = vpack.c.b16 %v2628, %v2626
  %v2987 = vpack.c.b16 %v2629, %v2627
  %v2988 = vpack.c.b16 %v2632, %v2630
  %v2989 = vpack.c.b16 %v2633, %v2631
  %v2990 = vpack.c.b16 %v2636, %v2634
  %v2991 = vpack.c.b16 %v2637, %v2635
  %v2992 = vpack.c.b16 %v2640, %v2638
  %v2993 = vpack.c.b16 %v2641, %v2639
  %v2994 = vpack.c.b16 %v2644, %v2642
  %v2995 = vpack.c.b16 %v2645, %v2643
  %v2996 = vpack.c.b16 %v2648, %v2646
  %v2997 = vpack.c.b16 %v2649, %v2647
  %v2998 = vpack.c.b16 %v2652, %v2650
  %v2999 = vpack.c.b16 %v2653, %v2651
  %v3000 = vpack.c.b16 %v2656, %v2654
  %v3001 = vpack.c.b16 %v2657, %v2655
  %v3002 = vpack.c.b16 %v2660, %v2658
  %v3003 = vpack.c.b16 %v2661, %v2659
  %v3004 = vpack.c.b16 %v2664, %v2662
  %v3005 = vpack.c.b16 %v2665, %v2663
  %v3006 = vpack.c.b16 %v2668, %v2666
  %v3007 = vpack.c.b16 %v2669, %v2667
  %v3008 = vpack.c.b16 %v2672, %v2670
  %v3009 = vpack.c.b16 %v2673, %v2671
  %v3010 = vpack.c.b16 %v2676, %v2674
  %v3011 = vpack.c.b16 %v2677, %v2675
  %v3012 = vpack.c.b16 %v2680, %v2678
  %v3013 = vpack.c.b16 %v2681, %v2679
  %v3014 = vpack.c.b16 %v2684, %v2682
  %v3015 = vpack.c.b16 %v2685, %v2683
  %v3016 = vpack.c.b16 %v2688, %v2686
  %v3017 = vpack.c.b16 %v2689, %v2687
  %v3018 = vpack.c.b16 %v2692, %v2690
  %v3019 = vpack.c.b16 %v2693, %v2691
  %v3020 = vpack.c.b16 %v2696, %v2694
  %v3021 = vpack.c.b16 %v2697, %v2695
  %v3022 = vpack.c.b16 %v2700, %v2698
  %v3023 = vpack.c.b16 %v2701, %v2699
  %v3024 = vpack.c.b16 %v2704, %v2702
  %v3025 = vpack.c.b16 %v2705, %v2703
  %v3026 = vpack.c.b16 %v2708, %v2706
  %v3027 = vpack.c.b16 %v2709, %v2707
  %v3028 = vpack.c.b16 %v2712, %v2710
  %v3029 = vpack.c.b16 %v2713, %v2711
  %v3030 = vpack.c.b16 %v2716, %v2714
  %v3031 = vpack.c.b16 %v2717, %v2715
  %v3032 = vpack.c.b16 %v2720, %v2718
  %v3033 = vpack.c.b16 %v2721, %v2719
  %v3034 = vpack.c.b16 %v2724, %v2722
  %v3035 = vpack.c.b16 %v2725, %v2723
  %v3036 = vpack.c.b16 %v2728, %v2726
  %v3037 = vpack.c.b16 %v2729, %v2727
  %v3038 = vpack.c.b16 %v2732, %v2730
  %v3039 = vpack.c.b16 %v2733, %v2731
  %v3040 = vpack.c.b16 %v2736, %v2734
  %v3041 = vpack.c.b16 %v2737, %v2735
  %v3042 = vpack.c.b16 %v2740, %v2738
  %v3043 = vpack.c.b16 %v2741, %v2739
  %v3044 = vpack.c.b16 %v2744, %v2742
  %v3045 = vpack.c.b16 %v2745, %v2743
  %v3046 = vpack.c.b16 %v2748, %v2746
  %v3047 = vpack.c.b16 %v2749, %v2747
  %v3048 = vpack.c.b16 %v2752, %v2750
  %v3049 = vpack.c.b16 %v2753, %v2751
  %v3050 = vpack.c.b16 %v2756, %v2754
  %v3051 = vpack.c.b16 %v2757, %v2755
  %v3052 = vpack.c.b16 %v2760, %v2758
  %v3053 = vpack.c.b16 %v2761, %v2759
  %v3054 = vpack.c.b16 %v2764, %v2762
  %v3055 = vpack.c.b16 %v2765, %v2763
  %v3056 = vpack.c.b16 %v2768, %v2766
  %v3057 = vpack.c.b16 %v2769, %v2767
  %v3058 = vpack.c.b16 %v2772, %v2770
  %v3059 = vpack.c.b16 %v2773, %v2771
  %v3060 = vpack.c.b16 %v2776, %v2774
  %v3061 = vpack.c.b16 %v2777, %v2775
  %v3062 = vpack.c.b16 %v2780, %v2778
  %v3063 = vpack.c.b16 %v2781, %v2779
  %v3064 = vpack.c.b16 %v2784, %v2782
  %v3065 = vpack.c.b16 %v2785, %v2783
  %v3066 = vpack.c.b16 %v2788, %v2786
  %v3067 = vpack.c.b16 %v2789, %v2787
  %v3068 = vpack.c.b16 %v2792, %v2790
  %v3069 = vpack.c.b16 %v2793, %v2791
  %v3070 = vpack.c.b16 %v2796, %v2794
  %v3071 = vpack.c.b16 %v2797, %v2795
  %v3072 = vpack.c.b16 %v2800, %v2798
  %v3073 = vpack.c.b16 %v2801, %v2799
  %v3074 = vpack.c.b16 %v2804, %v2802
  %v3075 = vpack.c.b16 %v2805, %v2803
  %v3076 = vpack.c.b16 %v2808, %v2806
  %v3077 = vpack.c.b16 %v2809, %v2807
  %v3078 = vpack.c.b16 %v2812, %v2810
  %v3079 = vpack.c.b16 %v2813, %v2811
  %v3080 = vpack.c.b16 %v2816, %v2814
  %v3081 = vpack.c.b16 %v2817, %v2815
  %v3082 = vpack.c.b16 %v2820, %v2818
  %v3083 = vpack.c.b16 %v2821, %v2819
  %v3084 = vpack.c.b16 %v2824, %v2822
  %v3085 = vpack.c.b16 %v2825, %v2823
  %v3086 = vpack.c.b16 %v2828, %v2826
  %v3087 = vpack.c.b16 %v2829, %v2827
  %v3088 = vpack.c.b16 %v2832, %v2830
  %v3089 = vpack.c.b16 %v2833, %v2831
  %v3090 = vpack.c.b16 %v2836, %v2834
  %v3091 = vpack.c.b16 %v2837, %v2835
  %v3092 = vpack.c.b16 %v2840, %v2838
  %v3093 = vpack.c.b16 %v2841, %v2839
  %v3346 = vsel %vm1777, %v1112, 0
  %v3348 = vsel %vm1777, %v1114, 0
  %3350 = vmatpush.bf16.msra.mxu0 %v2856
  %3351 = vmatpush.bf16.msra.mxu0 %v2854
  %3352 = vmatpush.bf16.msra.mxu0 %v2852
  %3353 = vmatpush.bf16.msra.mxu0 %v2850
  %3354 = vmatpush.bf16.msra.mxu0 %v2848
  %3355 = vmatpush.bf16.msra.mxu0 %v2846
  %3356 = vmatpush.bf16.msra.mxu0 %v2844
  %3357 = vmatpush.bf16.msra.mxu0 %v2842
  %3358 = vmatmul.bf16.gmra.mxu0 %v1612
  %v3359 = vpop.f32.mrf.mxu0
  %v3360 = vadd.f32 %v2082, %v3359
  %v3361 = vpop.f32.mrf.mxu0
  %v3362 = vadd.f32 %v2082, %v3361
  %3363 = vmatmul.bf16.gmra.mxu0 %v1614
  %v3364 = vpop.f32.mrf.mxu0
  %v3365 = vadd.f32 %v2082, %v3364
  %v3366 = vpop.f32.mrf.mxu0
  %v3367 = vadd.f32 %v2082, %v3366
  %3368 = vdwg.mxu0
  %3369 = vmatpush.bf16.msra.mxu0 %v2872
  %3370 = vmatpush.bf16.msra.mxu0 %v2870
  %3371 = vmatpush.bf16.msra.mxu0 %v2868
  %3372 = vmatpush.bf16.msra.mxu0 %v2866
  %3373 = vmatpush.bf16.msra.mxu0 %v2864
  %3374 = vmatpush.bf16.msra.mxu0 %v2862
  %3375 = vmatpush.bf16.msra.mxu0 %v2860
  %3376 = vmatpush.bf16.msra.mxu0 %v2858
  %3377 = vmatmul.bf16.gmra.mxu0 %v1780
  %v3378 = vpop.f32.mrf.mxu0
  %v3379 = vadd.f32 %v3360, %v3378
  %v3380 = vpop.f32.mrf.mxu0
  %v3381 = vadd.f32 %v3362, %v3380
  %3382 = vmatmul.bf16.gmra.mxu0 %v1784
  %v3383 = vpop.f32.mrf.mxu0
  %v3384 = vadd.f32 %v3365, %v3383
  %v3385 = vpop.f32.mrf.mxu0
  %v3386 = vadd.f32 %v3367, %v3385
  %3387 = vdwg.mxu0
  %3388 = vmatpush.bf16.msra.mxu0 %v2888
  %3389 = vmatpush.bf16.msra.mxu0 %v2886
  %3390 = vmatpush.bf16.msra.mxu0 %v2884
  %3391 = vmatpush.bf16.msra.mxu0 %v2882
  %3392 = vmatpush.bf16.msra.mxu0 %v2880
  %3393 = vmatpush.bf16.msra.mxu0 %v2878
  %3394 = vmatpush.bf16.msra.mxu0 %v2876
  %3395 = vmatpush.bf16.msra.mxu0 %v2874
  %3396 = vmatmul.bf16.gmra.mxu0 %v1643
  %v3397 = vpop.f32.mrf.mxu0
  %v3398 = vadd.f32 %v3379, %v3397
  %v3399 = vpop.f32.mrf.mxu0
  %v3400 = vadd.f32 %v3381, %v3399
  %3401 = vmatmul.bf16.gmra.mxu0 %v1644
  %v3402 = vpop.f32.mrf.mxu0
  %v3403 = vadd.f32 %v3384, %v3402
  %v3404 = vpop.f32.mrf.mxu0
  %v3405 = vadd.f32 %v3386, %v3404
  %3406 = vdwg.mxu0
  %3407 = vmatpush.bf16.msra.mxu0 %v2904
  %3408 = vmatpush.bf16.msra.mxu0 %v2902
  %3409 = vmatpush.bf16.msra.mxu0 %v2900
  %3410 = vmatpush.bf16.msra.mxu0 %v2898
  %3411 = vmatpush.bf16.msra.mxu0 %v2896
  %3412 = vmatpush.bf16.msra.mxu0 %v2894
  %3413 = vmatpush.bf16.msra.mxu0 %v2892
  %3414 = vmatpush.bf16.msra.mxu0 %v2890
  %3415 = vmatmul.bf16.gmra.mxu0 %v1789
  %v3416 = vpop.f32.mrf.mxu0
  %v3417 = vadd.f32 %v3398, %v3416
  %v3418 = vpop.f32.mrf.mxu0
  %v3419 = vadd.f32 %v3400, %v3418
  %3420 = vmatmul.bf16.gmra.mxu0 %v1793
  %v3421 = vpop.f32.mrf.mxu0
  %v3422 = vadd.f32 %v3403, %v3421
  %v3423 = vpop.f32.mrf.mxu0
  %v3424 = vadd.f32 %v3405, %v3423
  %3425 = vdwg.mxu0
  %3426 = vmatpush.bf16.msra.mxu0 %v2920
  %3427 = vmatpush.bf16.msra.mxu0 %v2918
  %3428 = vmatpush.bf16.msra.mxu0 %v2916
  %3429 = vmatpush.bf16.msra.mxu0 %v2914
  %3430 = vmatpush.bf16.msra.mxu0 %v2912
  %3431 = vmatpush.bf16.msra.mxu0 %v2910
  %3432 = vmatpush.bf16.msra.mxu0 %v2908
  %3433 = vmatpush.bf16.msra.mxu0 %v2906
  %3434 = vmatmul.bf16.gmra.mxu0 %v1672
  %v3435 = vpop.f32.mrf.mxu0
  %v3436 = vadd.f32 %v3417, %v3435
  %v3437 = vpop.f32.mrf.mxu0
  %v3438 = vadd.f32 %v3419, %v3437
  %3439 = vmatmul.bf16.gmra.mxu0 %v1673
  %v3440 = vpop.f32.mrf.mxu0
  %v3441 = vadd.f32 %v3422, %v3440
  %v3442 = vpop.f32.mrf.mxu0
  %v3443 = vadd.f32 %v3424, %v3442
  %3444 = vdwg.mxu0
  %3445 = vmatpush.bf16.msra.mxu0 %v2936
  %3446 = vmatpush.bf16.msra.mxu0 %v2934
  %3447 = vmatpush.bf16.msra.mxu0 %v2932
  %3448 = vmatpush.bf16.msra.mxu0 %v2930
  %3449 = vmatpush.bf16.msra.mxu0 %v2928
  %3450 = vmatpush.bf16.msra.mxu0 %v2926
  %3451 = vmatpush.bf16.msra.mxu0 %v2924
  %3452 = vmatpush.bf16.msra.mxu0 %v2922
  %3453 = vmatmul.bf16.gmra.mxu0 %v1798
  %v3454 = vpop.f32.mrf.mxu0
  %v3455 = vadd.f32 %v3436, %v3454
  %v3456 = vpop.f32.mrf.mxu0
  %v3457 = vadd.f32 %v3438, %v3456
  %3458 = vmatmul.bf16.gmra.mxu0 %v1802
  %v3459 = vpop.f32.mrf.mxu0
  %v3460 = vadd.f32 %v3441, %v3459
  %v3461 = vpop.f32.mrf.mxu0
  %v3462 = vadd.f32 %v3443, %v3461
  %3463 = vdwg.mxu0
  %3464 = vmatpush.bf16.msra.mxu0 %v2952
  %3465 = vmatpush.bf16.msra.mxu0 %v2950
  %3466 = vmatpush.bf16.msra.mxu0 %v2948
  %3467 = vmatpush.bf16.msra.mxu0 %v2946
  %3468 = vmatpush.bf16.msra.mxu0 %v2944
  %3469 = vmatpush.bf16.msra.mxu0 %v2942
  %3470 = vmatpush.bf16.msra.mxu0 %v2940
  %3471 = vmatpush.bf16.msra.mxu0 %v2938
  %3472 = vmatmul.bf16.gmra.mxu0 %v1701
  %v3473 = vpop.f32.mrf.mxu0
  %v3474 = vadd.f32 %v3455, %v3473
  %v3475 = vpop.f32.mrf.mxu0
  %v3476 = vadd.f32 %v3457, %v3475
  %3477 = vmatmul.bf16.gmra.mxu0 %v1702
  %v3478 = vpop.f32.mrf.mxu0
  %v3479 = vadd.f32 %v3460, %v3478
  %v3480 = vpop.f32.mrf.mxu0
  %v3481 = vadd.f32 %v3462, %v3480
  %3482 = vdwg.mxu0
  %3483 = vmatpush.bf16.msra.mxu0 %v2968
  %3484 = vmatpush.bf16.msra.mxu0 %v2966
  %3485 = vmatpush.bf16.msra.mxu0 %v2964
  %3486 = vmatpush.bf16.msra.mxu0 %v2962
  %3487 = vmatpush.bf16.msra.mxu0 %v2960
  %3488 = vmatpush.bf16.msra.mxu0 %v2958
  %3489 = vmatpush.bf16.msra.mxu0 %v2956
  %3490 = vmatpush.bf16.msra.mxu0 %v2954
  %3491 = vmatmul.bf16.gmra.mxu0 %v1717
  %v3492 = vpop.f32.mrf.mxu0
  %v3493 = vadd.f32 %v3474, %v3492
  %v3494 = vpop.f32.mrf.mxu0
  %v3495 = vadd.f32 %v3476, %v3494
  %3496 = vmatmul.bf16.gmra.mxu0 %v1719
  %v3497 = vpop.f32.mrf.mxu0
  %v3498 = vadd.f32 %v3479, %v3497
  %v3499 = vpop.f32.mrf.mxu0
  %v3500 = vadd.f32 %v3481, %v3499
  %3501 = vdwg.mxu0
  %3502 = vmatpush.bf16.msra.mxu0 %v2984
  %3503 = vmatpush.bf16.msra.mxu0 %v2982
  %3504 = vmatpush.bf16.msra.mxu0 %v2980
  %3505 = vmatpush.bf16.msra.mxu0 %v2978
  %3506 = vmatpush.bf16.msra.mxu0 %v2976
  %3507 = vmatpush.bf16.msra.mxu0 %v2974
  %3508 = vmatpush.bf16.msra.mxu0 %v2972
  %3509 = vmatpush.bf16.msra.mxu0 %v2970
  %3510 = vmatmul.bf16.gmra.mxu0 %v1806
  %v3511 = vpop.f32.mrf.mxu0
  %v3512 = vadd.f32 %v3493, %v3511
  %v3513 = vpop.f32.mrf.mxu0
  %v3514 = vadd.f32 %v3495, %v3513
  %3515 = vmatmul.bf16.gmra.mxu0 %v1810
  %v3516 = vpop.f32.mrf.mxu0
  %v3517 = vadd.f32 %v3498, %v3516
  %v3518 = vpop.f32.mrf.mxu0
  %v3519 = vadd.f32 %v3500, %v3518
  %3520 = vdwg.mxu0
  %3521 = vmatpush.bf16.msra.mxu0 %v3000
  %3522 = vmatpush.bf16.msra.mxu0 %v2998
  %3523 = vmatpush.bf16.msra.mxu0 %v2996
  %3524 = vmatpush.bf16.msra.mxu0 %v2994
  %3525 = vmatpush.bf16.msra.mxu0 %v2992
  %3526 = vmatpush.bf16.msra.mxu0 %v2990
  %3527 = vmatpush.bf16.msra.mxu0 %v2988
  %3528 = vmatpush.bf16.msra.mxu0 %v2986
  %3529 = vmatmul.bf16.gmra.mxu0 %v1731
  %v3530 = vpop.f32.mrf.mxu0
  %v3531 = vadd.f32 %v3512, %v3530
  %v3532 = vpop.f32.mrf.mxu0
  %v3533 = vadd.f32 %v3514, %v3532
  %3534 = vmatmul.bf16.gmra.mxu0 %v1732
  %v3535 = vpop.f32.mrf.mxu0
  %v3536 = vadd.f32 %v3517, %v3535
  %v3537 = vpop.f32.mrf.mxu0
  %v3538 = vadd.f32 %v3519, %v3537
  %3539 = vdwg.mxu0
  %3540 = vmatpush.bf16.msra.mxu0 %v3016
  %3541 = vmatpush.bf16.msra.mxu0 %v3014
  %3542 = vmatpush.bf16.msra.mxu0 %v3012
  %3543 = vmatpush.bf16.msra.mxu0 %v3010
  %3544 = vmatpush.bf16.msra.mxu0 %v3008
  %3545 = vmatpush.bf16.msra.mxu0 %v3006
  %3546 = vmatpush.bf16.msra.mxu0 %v3004
  %3547 = vmatpush.bf16.msra.mxu0 %v3002
  %3548 = vmatmul.bf16.gmra.mxu0 %v1814
  %v3549 = vpop.f32.mrf.mxu0
  %v3550 = vadd.f32 %v3531, %v3549
  %v3551 = vpop.f32.mrf.mxu0
  %v3552 = vadd.f32 %v3533, %v3551
  %3553 = vmatmul.bf16.gmra.mxu0 %v1818
  %v3554 = vpop.f32.mrf.mxu0
  %v3555 = vadd.f32 %v3536, %v3554
  %v3556 = vpop.f32.mrf.mxu0
  %v3557 = vadd.f32 %v3538, %v3556
  %3558 = vdwg.mxu0
  %3559 = vmatpush.bf16.msra.mxu0 %v3032
  %3560 = vmatpush.bf16.msra.mxu0 %v3030
  %3561 = vmatpush.bf16.msra.mxu0 %v3028
  %3562 = vmatpush.bf16.msra.mxu0 %v3026
  %3563 = vmatpush.bf16.msra.mxu0 %v3024
  %3564 = vmatpush.bf16.msra.mxu0 %v3022
  %3565 = vmatpush.bf16.msra.mxu0 %v3020
  %3566 = vmatpush.bf16.msra.mxu0 %v3018
  %3567 = vmatmul.bf16.gmra.mxu0 %v1759
  %v3568 = vpop.f32.mrf.mxu0
  %v3569 = vadd.f32 %v3550, %v3568
  %v3570 = vpop.f32.mrf.mxu0
  %v3571 = vadd.f32 %v3552, %v3570
  %3572 = vmatmul.bf16.gmra.mxu0 %v1760
  %v3573 = vpop.f32.mrf.mxu0
  %v3574 = vadd.f32 %v3555, %v3573
  %v3575 = vpop.f32.mrf.mxu0
  %v3576 = vadd.f32 %v3557, %v3575
  %3577 = vdwg.mxu0
  %3578 = vmatpush.bf16.msra.mxu0 %v3048
  %3579 = vmatpush.bf16.msra.mxu0 %v3046
  %3580 = vmatpush.bf16.msra.mxu0 %v3044
  %3581 = vmatpush.bf16.msra.mxu0 %v3042
  %3582 = vmatpush.bf16.msra.mxu0 %v3040
  %3583 = vmatpush.bf16.msra.mxu0 %v3038
  %3584 = vmatpush.bf16.msra.mxu0 %v3036
  %3585 = vmatpush.bf16.msra.mxu0 %v3034
  %3586 = vmatmul.bf16.gmra.mxu0 %v1822
  %v3587 = vpop.f32.mrf.mxu0
  %v3588 = vadd.f32 %v3569, %v3587
  %v3589 = vpop.f32.mrf.mxu0
  %v3590 = vadd.f32 %v3571, %v3589
  %3591 = vmatmul.bf16.gmra.mxu0 %v1826
  %v3592 = vpop.f32.mrf.mxu0
  %v3593 = vadd.f32 %v3574, %v3592
  %v3594 = vpop.f32.mrf.mxu0
  %v3595 = vadd.f32 %v3576, %v3594
  %3596 = vdwg.mxu0
  %3597 = vmatpush.bf16.msra.mxu0 %v3064
  %3598 = vmatpush.bf16.msra.mxu0 %v3062
  %3599 = vmatpush.bf16.msra.mxu0 %v3060
  %3600 = vmatpush.bf16.msra.mxu0 %v3058
  %3601 = vmatpush.bf16.msra.mxu0 %v3056
  %3602 = vmatpush.bf16.msra.mxu0 %v3054
  %3603 = vmatpush.bf16.msra.mxu0 %v3052
  %3604 = vmatpush.bf16.msra.mxu0 %v3050
  %3605 = vmatmul.bf16.gmra.mxu0 %v1771
  %v3606 = vpop.f32.mrf.mxu0
  %v3607 = vadd.f32 %v3588, %v3606
  %v3608 = vpop.f32.mrf.mxu0
  %v3609 = vadd.f32 %v3590, %v3608
  %3610 = vmatmul.bf16.gmra.mxu0 %v1772
  %v3611 = vpop.f32.mrf.mxu0
  %v3612 = vadd.f32 %v3593, %v3611
  %v3613 = vpop.f32.mrf.mxu0
  %v3614 = vadd.f32 %v3595, %v3613
  %3615 = vdwg.mxu0
  %3616 = vmatpush.bf16.msra.mxu0 %v3080
  %3617 = vmatpush.bf16.msra.mxu0 %v3078
  %3618 = vmatpush.bf16.msra.mxu0 %v3076
  %3619 = vmatpush.bf16.msra.mxu0 %v3074
  %3620 = vmatpush.bf16.msra.mxu0 %v3072
  %3621 = vmatpush.bf16.msra.mxu0 %v3070
  %3622 = vmatpush.bf16.msra.mxu0 %v3068
  %3623 = vmatpush.bf16.msra.mxu0 %v3066
  %3624 = vmatmul.bf16.gmra.mxu0 %v1111
  %v3625 = vpop.f32.mrf.mxu0
  %v3626 = vadd.f32 %v3607, %v3625
  %v3627 = vpop.f32.mrf.mxu0
  %v3628 = vadd.f32 %v3609, %v3627
  %3629 = vmatmul.bf16.gmra.mxu0 %v1113
  %v3630 = vpop.f32.mrf.mxu0
  %v3631 = vadd.f32 %v3612, %v3630
  %v3632 = vpop.f32.mrf.mxu0
  %v3633 = vadd.f32 %v3614, %v3632
  %3634 = vdwg.mxu0
  %3635 = vmatpush.bf16.msra.mxu0 0
  %3636 = vmatpush.bf16.msra.mxu0 0
  %3637 = vmatpush.bf16.msra.mxu0 %v3092
  %3638 = vmatpush.bf16.msra.mxu0 %v3090
  %3639 = vmatpush.bf16.msra.mxu0 %v3088
  %3640 = vmatpush.bf16.msra.mxu0 %v3086
  %3641 = vmatpush.bf16.msra.mxu0 %v3084
  %3642 = vmatpush.bf16.msra.mxu0 %v3082
  %3643 = vmatmul.bf16.gmra.mxu0 %v3346
  %v3644 = vpop.f32.mrf.mxu0
  %v3645 = vadd.f32 %v3626, %v3644
  %v3646 = vpop.f32.mrf.mxu0
  %v3647 = vadd.f32 %v3628, %v3646
  %3648 = vmatmul.bf16.gmra.mxu0 %v3348
  %v3649 = vpop.f32.mrf.mxu0
  %v3650 = vadd.f32 %v3631, %v3649
  %v3651 = vpop.f32.mrf.mxu0
  %v3652 = vadd.f32 %v3633, %v3651
  %3653 = vdwg.mxu0
  %3654 = vmatpush.bf16.msra.mxu0 %v2857
  %3655 = vmatpush.bf16.msra.mxu0 %v2855
  %3656 = vmatpush.bf16.msra.mxu0 %v2853
  %3657 = vmatpush.bf16.msra.mxu0 %v2851
  %3658 = vmatpush.bf16.msra.mxu0 %v2849
  %3659 = vmatpush.bf16.msra.mxu0 %v2847
  %3660 = vmatpush.bf16.msra.mxu0 %v2845
  %3661 = vmatpush.bf16.msra.mxu0 %v2843
  %3662 = vmatmul.bf16.gmra.mxu0 %v1612
  %v3663 = vpop.f32.mrf.mxu0
  %v3664 = vadd.f32 %v2083, %v3663
  %v3665 = vpop.f32.mrf.mxu0
  %v3666 = vadd.f32 %v2083, %v3665
  %3667 = vmatmul.bf16.gmra.mxu0 %v1614
  %v3668 = vpop.f32.mrf.mxu0
  %v3669 = vadd.f32 %v2083, %v3668
  %v3670 = vpop.f32.mrf.mxu0
  %v3671 = vadd.f32 %v2083, %v3670
  %3672 = vdwg.mxu0
  %3673 = vmatpush.bf16.msra.mxu0 %v2873
  %3674 = vmatpush.bf16.msra.mxu0 %v2871
  %3675 = vmatpush.bf16.msra.mxu0 %v2869
  %3676 = vmatpush.bf16.msra.mxu0 %v2867
  %3677 = vmatpush.bf16.msra.mxu0 %v2865
  %3678 = vmatpush.bf16.msra.mxu0 %v2863
  %3679 = vmatpush.bf16.msra.mxu0 %v2861
  %3680 = vmatpush.bf16.msra.mxu0 %v2859
  %3681 = vmatmul.bf16.gmra.mxu0 %v1780
  %v3682 = vpop.f32.mrf.mxu0
  %v3683 = vadd.f32 %v3664, %v3682
  %v3684 = vpop.f32.mrf.mxu0
  %v3685 = vadd.f32 %v3666, %v3684
  %3686 = vmatmul.bf16.gmra.mxu0 %v1784
  %v3687 = vpop.f32.mrf.mxu0
  %v3688 = vadd.f32 %v3669, %v3687
  %v3689 = vpop.f32.mrf.mxu0
  %v3690 = vadd.f32 %v3671, %v3689
  %3691 = vdwg.mxu0
  %3692 = vmatpush.bf16.msra.mxu0 %v2889
  %3693 = vmatpush.bf16.msra.mxu0 %v2887
  %3694 = vmatpush.bf16.msra.mxu0 %v2885
  %3695 = vmatpush.bf16.msra.mxu0 %v2883
  %3696 = vmatpush.bf16.msra.mxu0 %v2881
  %3697 = vmatpush.bf16.msra.mxu0 %v2879
  %3698 = vmatpush.bf16.msra.mxu0 %v2877
  %3699 = vmatpush.bf16.msra.mxu0 %v2875
  %3700 = vmatmul.bf16.gmra.mxu0 %v1643
  %v3701 = vpop.f32.mrf.mxu0
  %v3702 = vadd.f32 %v3683, %v3701
  %v3703 = vpop.f32.mrf.mxu0
  %v3704 = vadd.f32 %v3685, %v3703
  %3705 = vmatmul.bf16.gmra.mxu0 %v1644
  %v3706 = vpop.f32.mrf.mxu0
  %v3707 = vadd.f32 %v3688, %v3706
  %v3708 = vpop.f32.mrf.mxu0
  %v3709 = vadd.f32 %v3690, %v3708
  %3710 = vdwg.mxu0
  %3711 = vmatpush.bf16.msra.mxu0 %v2905
  %3712 = vmatpush.bf16.msra.mxu0 %v2903
  %3713 = vmatpush.bf16.msra.mxu0 %v2901
  %3714 = vmatpush.bf16.msra.mxu0 %v2899
  %3715 = vmatpush.bf16.msra.mxu0 %v2897
  %3716 = vmatpush.bf16.msra.mxu0 %v2895
  %3717 = vmatpush.bf16.msra.mxu0 %v2893
  %3718 = vmatpush.bf16.msra.mxu0 %v2891
  %3719 = vmatmul.bf16.gmra.mxu0 %v1789
  %v3720 = vpop.f32.mrf.mxu0
  %v3721 = vadd.f32 %v3702, %v3720
  %v3722 = vpop.f32.mrf.mxu0
  %v3723 = vadd.f32 %v3704, %v3722
  %3724 = vmatmul.bf16.gmra.mxu0 %v1793
  %v3725 = vpop.f32.mrf.mxu0
  %v3726 = vadd.f32 %v3707, %v3725
  %v3727 = vpop.f32.mrf.mxu0
  %v3728 = vadd.f32 %v3709, %v3727
  %3729 = vdwg.mxu0
  %3730 = vmatpush.bf16.msra.mxu0 %v2921
  %3731 = vmatpush.bf16.msra.mxu0 %v2919
  %3732 = vmatpush.bf16.msra.mxu0 %v2917
  %3733 = vmatpush.bf16.msra.mxu0 %v2915
  %3734 = vmatpush.bf16.msra.mxu0 %v2913
  %3735 = vmatpush.bf16.msra.mxu0 %v2911
  %3736 = vmatpush.bf16.msra.mxu0 %v2909
  %3737 = vmatpush.bf16.msra.mxu0 %v2907
  %3738 = vmatmul.bf16.gmra.mxu0 %v1672
  %v3739 = vpop.f32.mrf.mxu0
  %v3740 = vadd.f32 %v3721, %v3739
  %v3741 = vpop.f32.mrf.mxu0
  %v3742 = vadd.f32 %v3723, %v3741
  %3743 = vmatmul.bf16.gmra.mxu0 %v1673
  %v3744 = vpop.f32.mrf.mxu0
  %v3745 = vadd.f32 %v3726, %v3744
  %v3746 = vpop.f32.mrf.mxu0
  %v3747 = vadd.f32 %v3728, %v3746
  %3748 = vdwg.mxu0
  %3749 = vmatpush.bf16.msra.mxu0 %v2937
  %3750 = vmatpush.bf16.msra.mxu0 %v2935
  %3751 = vmatpush.bf16.msra.mxu0 %v2933
  %3752 = vmatpush.bf16.msra.mxu0 %v2931
  %3753 = vmatpush.bf16.msra.mxu0 %v2929
  %3754 = vmatpush.bf16.msra.mxu0 %v2927
  %3755 = vmatpush.bf16.msra.mxu0 %v2925
  %3756 = vmatpush.bf16.msra.mxu0 %v2923
  %3757 = vmatmul.bf16.gmra.mxu0 %v1798
  %v3758 = vpop.f32.mrf.mxu0
  %v3759 = vadd.f32 %v3740, %v3758
  %v3760 = vpop.f32.mrf.mxu0
  %v3761 = vadd.f32 %v3742, %v3760
  %3762 = vmatmul.bf16.gmra.mxu0 %v1802
  %v3763 = vpop.f32.mrf.mxu0
  %v3764 = vadd.f32 %v3745, %v3763
  %v3765 = vpop.f32.mrf.mxu0
  %v3766 = vadd.f32 %v3747, %v3765
  %3767 = vdwg.mxu0
  %3768 = vmatpush.bf16.msra.mxu0 %v2953
  %3769 = vmatpush.bf16.msra.mxu0 %v2951
  %3770 = vmatpush.bf16.msra.mxu0 %v2949
  %3771 = vmatpush.bf16.msra.mxu0 %v2947
  %3772 = vmatpush.bf16.msra.mxu0 %v2945
  %3773 = vmatpush.bf16.msra.mxu0 %v2943
  %3774 = vmatpush.bf16.msra.mxu0 %v2941
  %3775 = vmatpush.bf16.msra.mxu0 %v2939
  %3776 = vmatmul.bf16.gmra.mxu0 %v1701
  %v3777 = vpop.f32.mrf.mxu0
  %v3778 = vadd.f32 %v3759, %v3777
  %v3779 = vpop.f32.mrf.mxu0
  %v3780 = vadd.f32 %v3761, %v3779
  %3781 = vmatmul.bf16.gmra.mxu0 %v1702
  %v3782 = vpop.f32.mrf.mxu0
  %v3783 = vadd.f32 %v3764, %v3782
  %v3784 = vpop.f32.mrf.mxu0
  %v3785 = vadd.f32 %v3766, %v3784
  %3786 = vdwg.mxu0
  %3787 = vmatpush.bf16.msra.mxu0 %v2969
  %3788 = vmatpush.bf16.msra.mxu0 %v2967
  %3789 = vmatpush.bf16.msra.mxu0 %v2965
  %3790 = vmatpush.bf16.msra.mxu0 %v2963
  %3791 = vmatpush.bf16.msra.mxu0 %v2961
  %3792 = vmatpush.bf16.msra.mxu0 %v2959
  %3793 = vmatpush.bf16.msra.mxu0 %v2957
  %3794 = vmatpush.bf16.msra.mxu0 %v2955
  %3795 = vmatmul.bf16.gmra.mxu0 %v1717
  %v3796 = vpop.f32.mrf.mxu0
  %v3797 = vadd.f32 %v3778, %v3796
  %v3798 = vpop.f32.mrf.mxu0
  %v3799 = vadd.f32 %v3780, %v3798
  %3800 = vmatmul.bf16.gmra.mxu0 %v1719
  %v3801 = vpop.f32.mrf.mxu0
  %v3802 = vadd.f32 %v3783, %v3801
  %v3803 = vpop.f32.mrf.mxu0
  %v3804 = vadd.f32 %v3785, %v3803
  %3805 = vdwg.mxu0
  %3806 = vmatpush.bf16.msra.mxu0 %v2985
  %3807 = vmatpush.bf16.msra.mxu0 %v2983
  %3808 = vmatpush.bf16.msra.mxu0 %v2981
  %3809 = vmatpush.bf16.msra.mxu0 %v2979
  %3810 = vmatpush.bf16.msra.mxu0 %v2977
  %3811 = vmatpush.bf16.msra.mxu0 %v2975
  %3812 = vmatpush.bf16.msra.mxu0 %v2973
  %3813 = vmatpush.bf16.msra.mxu0 %v2971
  %3814 = vmatmul.bf16.gmra.mxu0 %v1806
  %v3815 = vpop.f32.mrf.mxu0
  %v3816 = vadd.f32 %v3797, %v3815
  %v3817 = vpop.f32.mrf.mxu0
  %v3818 = vadd.f32 %v3799, %v3817
  %3819 = vmatmul.bf16.gmra.mxu0 %v1810
  %v3820 = vpop.f32.mrf.mxu0
  %v3821 = vadd.f32 %v3802, %v3820
  %v3822 = vpop.f32.mrf.mxu0
  %v3823 = vadd.f32 %v3804, %v3822
  %3824 = vdwg.mxu0
  %3825 = vmatpush.bf16.msra.mxu0 %v3001
  %3826 = vmatpush.bf16.msra.mxu0 %v2999
  %3827 = vmatpush.bf16.msra.mxu0 %v2997
  %3828 = vmatpush.bf16.msra.mxu0 %v2995
  %3829 = vmatpush.bf16.msra.mxu0 %v2993
  %3830 = vmatpush.bf16.msra.mxu0 %v2991
  %3831 = vmatpush.bf16.msra.mxu0 %v2989
  %3832 = vmatpush.bf16.msra.mxu0 %v2987
  %3833 = vmatmul.bf16.gmra.mxu0 %v1731
  %v3834 = vpop.f32.mrf.mxu0
  %v3835 = vadd.f32 %v3816, %v3834
  %v3836 = vpop.f32.mrf.mxu0
  %v3837 = vadd.f32 %v3818, %v3836
  %3838 = vmatmul.bf16.gmra.mxu0 %v1732
  %v3839 = vpop.f32.mrf.mxu0
  %v3840 = vadd.f32 %v3821, %v3839
  %v3841 = vpop.f32.mrf.mxu0
  %v3842 = vadd.f32 %v3823, %v3841
  %3843 = vdwg.mxu0
  %3844 = vmatpush.bf16.msra.mxu0 %v3017
  %3845 = vmatpush.bf16.msra.mxu0 %v3015
  %3846 = vmatpush.bf16.msra.mxu0 %v3013
  %3847 = vmatpush.bf16.msra.mxu0 %v3011
  %3848 = vmatpush.bf16.msra.mxu0 %v3009
  %3849 = vmatpush.bf16.msra.mxu0 %v3007
  %3850 = vmatpush.bf16.msra.mxu0 %v3005
  %3851 = vmatpush.bf16.msra.mxu0 %v3003
  %3852 = vmatmul.bf16.gmra.mxu0 %v1814
  %v3853 = vpop.f32.mrf.mxu0
  %v3854 = vadd.f32 %v3835, %v3853
  %v3855 = vpop.f32.mrf.mxu0
  %v3856 = vadd.f32 %v3837, %v3855
  %3857 = vmatmul.bf16.gmra.mxu0 %v1818
  %v3858 = vpop.f32.mrf.mxu0
  %v3859 = vadd.f32 %v3840, %v3858
  %v3860 = vpop.f32.mrf.mxu0
  %v3861 = vadd.f32 %v3842, %v3860
  %3862 = vdwg.mxu0
  %3863 = vmatpush.bf16.msra.mxu0 %v3033
  %3864 = vmatpush.bf16.msra.mxu0 %v3031
  %3865 = vmatpush.bf16.msra.mxu0 %v3029
  %3866 = vmatpush.bf16.msra.mxu0 %v3027
  %3867 = vmatpush.bf16.msra.mxu0 %v3025
  %3868 = vmatpush.bf16.msra.mxu0 %v3023
  %3869 = vmatpush.bf16.msra.mxu0 %v3021
  %3870 = vmatpush.bf16.msra.mxu0 %v3019
  %3871 = vmatmul.bf16.gmra.mxu0 %v1759
  %v3872 = vpop.f32.mrf.mxu0
  %v3873 = vadd.f32 %v3854, %v3872
  %v3874 = vpop.f32.mrf.mxu0
  %v3875 = vadd.f32 %v3856, %v3874
  %3876 = vmatmul.bf16.gmra.mxu0 %v1760
  %v3877 = vpop.f32.mrf.mxu0
  %v3878 = vadd.f32 %v3859, %v3877
  %v3879 = vpop.f32.mrf.mxu0
  %v3880 = vadd.f32 %v3861, %v3879
  %3881 = vdwg.mxu0
  %3882 = vmatpush.bf16.msra.mxu0 %v3049
  %3883 = vmatpush.bf16.msra.mxu0 %v3047
  %3884 = vmatpush.bf16.msra.mxu0 %v3045
  %3885 = vmatpush.bf16.msra.mxu0 %v3043
  %3886 = vmatpush.bf16.msra.mxu0 %v3041
  %3887 = vmatpush.bf16.msra.mxu0 %v3039
  %3888 = vmatpush.bf16.msra.mxu0 %v3037
  %3889 = vmatpush.bf16.msra.mxu0 %v3035
  %3890 = vmatmul.bf16.gmra.mxu0 %v1822
  %v3891 = vpop.f32.mrf.mxu0
  %v3892 = vadd.f32 %v3873, %v3891
  %v3893 = vpop.f32.mrf.mxu0
  %v3894 = vadd.f32 %v3875, %v3893
  %3895 = vmatmul.bf16.gmra.mxu0 %v1826
  %v3896 = vpop.f32.mrf.mxu0
  %v3897 = vadd.f32 %v3878, %v3896
  %v3898 = vpop.f32.mrf.mxu0
  %v3899 = vadd.f32 %v3880, %v3898
  %3900 = vdwg.mxu0
  %3901 = vmatpush.bf16.msra.mxu0 %v3065
  %3902 = vmatpush.bf16.msra.mxu0 %v3063
  %3903 = vmatpush.bf16.msra.mxu0 %v3061
  %3904 = vmatpush.bf16.msra.mxu0 %v3059
  %3905 = vmatpush.bf16.msra.mxu0 %v3057
  %3906 = vmatpush.bf16.msra.mxu0 %v3055
  %3907 = vmatpush.bf16.msra.mxu0 %v3053
  %3908 = vmatpush.bf16.msra.mxu0 %v3051
  %3909 = vmatmul.bf16.gmra.mxu0 %v1771
  %v3910 = vpop.f32.mrf.mxu0
  %v3911 = vadd.f32 %v3892, %v3910
  %v3912 = vpop.f32.mrf.mxu0
  %v3913 = vadd.f32 %v3894, %v3912
  %3914 = vmatmul.bf16.gmra.mxu0 %v1772
  %v3915 = vpop.f32.mrf.mxu0
  %v3916 = vadd.f32 %v3897, %v3915
  %v3917 = vpop.f32.mrf.mxu0
  %v3918 = vadd.f32 %v3899, %v3917
  %3919 = vdwg.mxu0
  %3920 = vmatpush.bf16.msra.mxu0 %v3081
  %3921 = vmatpush.bf16.msra.mxu0 %v3079
  %3922 = vmatpush.bf16.msra.mxu0 %v3077
  %3923 = vmatpush.bf16.msra.mxu0 %v3075
  %3924 = vmatpush.bf16.msra.mxu0 %v3073
  %3925 = vmatpush.bf16.msra.mxu0 %v3071
  %3926 = vmatpush.bf16.msra.mxu0 %v3069
  %3927 = vmatpush.bf16.msra.mxu0 %v3067
  %3928 = vmatmul.bf16.gmra.mxu0 %v1111
  %v3929 = vpop.f32.mrf.mxu0
  %v3930 = vadd.f32 %v3911, %v3929
  %v3931 = vpop.f32.mrf.mxu0
  %v3932 = vadd.f32 %v3913, %v3931
  %3933 = vmatmul.bf16.gmra.mxu0 %v1113
  %v3934 = vpop.f32.mrf.mxu0
  %v3935 = vadd.f32 %v3916, %v3934
  %v3936 = vpop.f32.mrf.mxu0
  %v3937 = vadd.f32 %v3918, %v3936
  %3938 = vdwg.mxu0
  %3939 = vmatpush.bf16.msra.mxu0 0
  %3940 = vmatpush.bf16.msra.mxu0 0
  %3941 = vmatpush.bf16.msra.mxu0 %v3093
  %3942 = vmatpush.bf16.msra.mxu0 %v3091
  %3943 = vmatpush.bf16.msra.mxu0 %v3089
  %3944 = vmatpush.bf16.msra.mxu0 %v3087
  %3945 = vmatpush.bf16.msra.mxu0 %v3085
  %3946 = vmatpush.bf16.msra.mxu0 %v3083
  %3947 = vmatmul.bf16.gmra.mxu0 %v3346
  %v3948 = vpop.f32.mrf.mxu0
  %v3949 = vadd.f32 %v3930, %v3948
  %v3950 = vpop.f32.mrf.mxu0
  %v3951 = vadd.f32 %v3932, %v3950
  %3952 = vmatmul.bf16.gmra.mxu0 %v3348
  %v3953 = vpop.f32.mrf.mxu0
  %v3954 = vadd.f32 %v3935, %v3953
  %v3955 = vpop.f32.mrf.mxu0
  %v3956 = vadd.f32 %v3937, %v3955
  %3957 = vdwg.mxu0
  %v3958 = vmax.f32 %v3645, 0.0
  %v3959 = vmax.f32 %v3949, 0.0
  %v3960 = vmax.f32 %v3647, 0.0
  %v3961 = vmax.f32 %v3951, 0.0
  %v3962 = vmax.f32 %v3650, 0.0
  %v3963 = vmax.f32 %v3954, 0.0
  %v3964 = vmax.f32 %v3652, 0.0
  %v3965 = vmax.f32 %v3956, 0.0
  %v3966 = vpack.c.bf16 %v3960, %v3958
  %v3967 = vpack.c.bf16 %v3961, %v3959
  %v3968 = vpack.c.bf16 %v3964, %v3962
  %v3969 = vpack.c.bf16 %v3965, %v3963
  %v3970 = vld [vmem:[%s0] sm:$0xff]
  %v3971 = vld [vmem:[%s0 + $0x8] sm:$0xff]
  %v3972 = vld [vmem:[%s0 + $0x10] sm:$0xff]
  %v3973 = vld [vmem:[%s0 + $0x18] sm:$0xff]
  %v3974 = vld [vmem:[%s0 + $0x20] sm:$0xff]
  %v3975 = vld [vmem:[%s0 + $0x28] sm:$0xff]
  %v3976 = vld [vmem:[%s0 + $0x30] sm:$0xff]
  %v3977 = vld [vmem:[%s0 + $0x38] sm:$0xff]
  %v3978 = vld [vmem:[%s11] sm:$0xff]
  %v3979 = vld [vmem:[%s11 + $0x8] sm:$0xff]
  %v3980 = vld [vmem:[%s11 + $0x10] sm:$0xff]
  %v3981 = vld [vmem:[%s11 + $0x18] sm:$0xf]
  %v3982 = vld [vmem:[%s11 + $0x1c] sm:$0xff]
  %v3983 = vld [vmem:[%s11 + $0x24] sm:$0xff]
  %v3984 = vld [vmem:[%s11 + $0x2c] sm:$0xff]
  %v3985 = vld [vmem:[%s11 + $0x34] sm:$0xf]
  %v3986 = vld [vmem:[%s11 + $0x38] sm:$0xff]
  %v3987 = vld [vmem:[%s11 + $0x40] sm:$0xff]
  %v3988 = vld [vmem:[%s11 + $0x48] sm:$0xff]
  %v3989 = vld [vmem:[%s11 + $0x50] sm:$0xf]
  %v3990 = vld [vmem:[%s11 + $0x54] sm:$0xff]
  %v3991 = vld [vmem:[%s11 + $0x5c] sm:$0xff]
  %v3992 = vld [vmem:[%s11 + $0x64] sm:$0xff]
  %v3993 = vld [vmem:[%s11 + $0x6c] sm:$0xf]
  %v3994 = vld [vmem:[%s11 + $0x70] sm:$0xff]
  %v3995 = vld [vmem:[%s11 + $0x78] sm:$0xff]
  %v3996 = vld [vmem:[%s11 + $0x80] sm:$0xff]
  %v3997 = vld [vmem:[%s11 + $0x88] sm:$0xf]
  %v3998 = vld [vmem:[%s11 + $0x8c] sm:$0xff]
  %v3999 = vld [vmem:[%s11 + $0x94] sm:$0xff]
  %v4000 = vld [vmem:[%s11 + $0x9c] sm:$0xff]
  %v4001 = vld [vmem:[%s11 + $0xa4] sm:$0xf]
  %v4002 = vld [vmem:[%s11 + $0xa8] sm:$0xff]
  %v4003 = vld [vmem:[%s11 + $0xb0] sm:$0xff]
  %v4004 = vld [vmem:[%s11 + $0xb8] sm:$0xff]
  %v4005 = vld [vmem:[%s11 + $0xc0] sm:$0xf]
  %v4006 = vld [vmem:[%s11 + $0xc4] sm:$0xff]
  %v4007 = vld [vmem:[%s11 + $0xcc] sm:$0xff]
  %v4008 = vld [vmem:[%s11 + $0xd4] sm:$0xff]
  %v4009 = vld [vmem:[%s11 + $0xdc] sm:$0xf]
  %v4010 = vld [vmem:[%s11 + $0xe0] sm:$0xff]
  %v4011 = vld [vmem:[%s11 + $0xe8] sm:$0xff]
  %v4012 = vld [vmem:[%s11 + $0xf0] sm:$0xff]
  %v4013 = vld [vmem:[%s11 + $0xf8] sm:$0xf]
  %v4014 = vld [vmem:[%s11 + $0xfc] sm:$0xff]
  %v4015 = vld [vmem:[%s11 + $0x104] sm:$0xff]
  %v4016 = vld [vmem:[%s11 + $0x10c] sm:$0xff]
  %v4017 = vld [vmem:[%s11 + $0x114] sm:$0xf]
  %v4018 = vld [vmem:[%s11 + $0x118] sm:$0xff]
  %v4019 = vld [vmem:[%s11 + $0x120] sm:$0xff]
  %v4020 = vld [vmem:[%s11 + $0x128] sm:$0xff]
  %v4021 = vld [vmem:[%s11 + $0x130] sm:$0xf]
  %v4022 = vld [vmem:[%s11 + $0x134] sm:$0xff]
  %v4023 = vld [vmem:[%s11 + $0x13c] sm:$0xff]
  %v4024 = vld [vmem:[%s11 + $0x144] sm:$0xff]
  %v4025 = vld [vmem:[%s11 + $0x14c] sm:$0xf]
  %v4026 = vld [vmem:[%s11 + $0x150] sm:$0xff]
  %v4027 = vld [vmem:[%s11 + $0x158] sm:$0xff]
  %v4028 = vld [vmem:[%s11 + $0x160] sm:$0xff]
  %v4029 = vld [vmem:[%s11 + $0x168] sm:$0xf]
  %v4030 = vld [vmem:[%s11 + $0x16c] sm:$0xff]
  %v4031 = vld [vmem:[%s11 + $0x174] sm:$0xff]
  %v4032 = vld [vmem:[%s11 + $0x17c] sm:$0xff]
  %v4033 = vld [vmem:[%s11 + $0x184] sm:$0xf]
  %v4034 = vld [vmem:[%s11 + $0x188] sm:$0xff]
  %v4035 = vld [vmem:[%s11 + $0x190] sm:$0xff]
  %v4036 = vld [vmem:[%s11 + $0x198] sm:$0xff]
  %v4037 = vld [vmem:[%s11 + $0x1a0] sm:$0xf]
  %v4038 = vld [vmem:[%s11 + $0x1a4] sm:$0xff]
  %v4039 = vld [vmem:[%s11 + $0x1ac] sm:$0xff]
  %v4040 = vld [vmem:[%s11 + $0x1b4] sm:$0xff]
  %v4041 = vld [vmem:[%s11 + $0x1bc] sm:$0xf]
  %v4042 = vld [vmem:[%s11 + $0x1c0] sm:$0xff]
  %v4043 = vld [vmem:[%s11 + $0x1c8] sm:$0xff]
  %v4044 = vld [vmem:[%s11 + $0x1d0] sm:$0xff]
  %v4045 = vld [vmem:[%s11 + $0x1d8] sm:$0xf]
  %v4046 = vld [vmem:[%s11 + $0x1dc] sm:$0xff]
  %v4047 = vld [vmem:[%s11 + $0x1e4] sm:$0xff]
  %v4048 = vld [vmem:[%s11 + $0x1ec] sm:$0xff]
  %v4049 = vld [vmem:[%s11 + $0x1f4] sm:$0xf]
  %v4050 = vld [vmem:[%s11 + $0x1f8] sm:$0xff]
  %v4051 = vld [vmem:[%s11 + $0x200] sm:$0xff]
  %v4052 = vld [vmem:[%s11 + $0x208] sm:$0xff]
  %v4053 = vld [vmem:[%s11 + $0x210] sm:$0xf]
  %v4054 = vld [vmem:[%s11 + $0x214] sm:$0xff]
  %v4055 = vld [vmem:[%s11 + $0x21c] sm:$0xff]
  %v4056 = vld [vmem:[%s11 + $0x224] sm:$0xff]
  %v4057 = vld [vmem:[%s11 + $0x22c] sm:$0xf]
  %v4058 = vld [vmem:[%s11 + $0x230] sm:$0xff]
  %v4059 = vld [vmem:[%s11 + $0x238] sm:$0xff]
  %v4060 = vld [vmem:[%s11 + $0x240] sm:$0xff]
  %v4061 = vld [vmem:[%s11 + $0x248] sm:$0xf]
  %v4062 = vld [vmem:[%s11 + $0x24c] sm:$0xff]
  %v4063 = vld [vmem:[%s11 + $0x254] sm:$0xff]
  %v4064 = vld [vmem:[%s11 + $0x25c] sm:$0xff]
  %v4065 = vld [vmem:[%s11 + $0x264] sm:$0xf]
  %v4066 = vld [vmem:[%s11 + $0x268] sm:$0xff]
  %v4067 = vld [vmem:[%s11 + $0x270] sm:$0xff]
  %v4068 = vld [vmem:[%s11 + $0x278] sm:$0xff]
  %v4069 = vld [vmem:[%s11 + $0x280] sm:$0xf]
  %v4070 = vld [vmem:[%s11 + $0x284] sm:$0xff]
  %v4071 = vld [vmem:[%s11 + $0x28c] sm:$0xff]
  %v4072 = vld [vmem:[%s11 + $0x294] sm:$0xff]
  %v4073 = vld [vmem:[%s11 + $0x29c] sm:$0xf]
  %v4074 = vld [vmem:[%s11 + $0x2a0] sm:$0xff]
  %v4075 = vld [vmem:[%s11 + $0x2a8] sm:$0xff]
  %v4076 = vld [vmem:[%s11 + $0x2b0] sm:$0xff]
  %v4077 = vld [vmem:[%s11 + $0x2b8] sm:$0xf]
  %v4078 = vld [vmem:[%s11 + $0x2bc] sm:$0xff]
  %v4079 = vld [vmem:[%s11 + $0x2c4] sm:$0xff]
  %v4080 = vld [vmem:[%s11 + $0x2cc] sm:$0xff]
  %v4081 = vld [vmem:[%s11 + $0x2d4] sm:$0xf]
  %v4082 = vld [vmem:[%s11 + $0x2d8] sm:$0xff]
  %v4083 = vld [vmem:[%s11 + $0x2e0] sm:$0xff]
  %v4084 = vld [vmem:[%s11 + $0x2e8] sm:$0xff]
  %v4085 = vld [vmem:[%s11 + $0x2f0] sm:$0xf]
  %v4086 = vld [vmem:[%s11 + $0x2f4] sm:$0xff]
  %v4087 = vld [vmem:[%s11 + $0x2fc] sm:$0xff]
  %v4088 = vld [vmem:[%s11 + $0x304] sm:$0xff]
  %v4089 = vld [vmem:[%s11 + $0x30c] sm:$0xf]
  %v4090 = vld [vmem:[%s11 + $0x310] sm:$0xff]
  %v4091 = vld [vmem:[%s11 + $0x318] sm:$0xff]
  %v4092 = vld [vmem:[%s11 + $0x320] sm:$0xff]
  %v4093 = vld [vmem:[%s11 + $0x328] sm:$0xf]
  %v4094 = vld [vmem:[%s11 + $0x32c] sm:$0xff]
  %v4095 = vld [vmem:[%s11 + $0x334] sm:$0xff]
  %v4096 = vld [vmem:[%s11 + $0x33c] sm:$0xff]
  %v4097 = vld [vmem:[%s11 + $0x344] sm:$0xf]
  %v4098 = vld [vmem:[%s11 + $0x348] sm:$0xff]
  %v4099 = vld [vmem:[%s11 + $0x350] sm:$0xff]
  %v4100 = vld [vmem:[%s11 + $0x358] sm:$0xff]
  %v4101 = vld [vmem:[%s11 + $0x360] sm:$0xf]
  %v4102 = vld [vmem:[%s11 + $0x364] sm:$0xff]
  %v4103 = vld [vmem:[%s11 + $0x36c] sm:$0xff]
  %v4104 = vld [vmem:[%s11 + $0x374] sm:$0xff]
  %v4105 = vld [vmem:[%s11 + $0x37c] sm:$0xf]
  %v4106 = vld [vmem:[%s11 + $0x380] sm:$0xff]
  %v4107 = vld [vmem:[%s11 + $0x388] sm:$0xff]
  %v4108 = vld [vmem:[%s11 + $0x390] sm:$0xff]
  %v4109 = vld [vmem:[%s11 + $0x398] sm:$0xf]
  %v4110 = vld [vmem:[%s11 + $0x39c] sm:$0xff]
  %v4111 = vld [vmem:[%s11 + $0x3a4] sm:$0xff]
  %v4112 = vld [vmem:[%s11 + $0x3ac] sm:$0xff]
  %v4113 = vld [vmem:[%s11 + $0x3b4] sm:$0xf]
  %v4114 = vld [vmem:[%s11 + $0x3b8] sm:$0xff]
  %v4115 = vld [vmem:[%s11 + $0x3c0] sm:$0xff]
  %v4116 = vld [vmem:[%s11 + $0x3c8] sm:$0xff]
  %v4117 = vld [vmem:[%s11 + $0x3d0] sm:$0xf]
  %v4118 = vld [vmem:[%s11 + $0x3d4] sm:$0xff]
  %v4119 = vld [vmem:[%s11 + $0x3dc] sm:$0xff]
  %v4120 = vld [vmem:[%s11 + $0x3e4] sm:$0xff]
  %v4121 = vld [vmem:[%s11 + $0x3ec] sm:$0xf]
  %v4122 = vld [vmem:[%s11 + $0x3f0] sm:$0xff]
  %v4123 = vld [vmem:[%s11 + $0x3f8] sm:$0xff]
  %v4124 = vld [vmem:[%s11 + $0x400] sm:$0xff]
  %v4125 = vld [vmem:[%s11 + $0x408] sm:$0xf]
  %v4126 = vld [vmem:[%s11 + $0x40c] sm:$0xff]
  %v4127 = vld [vmem:[%s11 + $0x414] sm:$0xff]
  %v4128 = vld [vmem:[%s11 + $0x41c] sm:$0xff]
  %v4129 = vld [vmem:[%s11 + $0x424] sm:$0xf]
  %v4130 = vld [vmem:[%s11 + $0x428] sm:$0xff]
  %v4131 = vld [vmem:[%s11 + $0x430] sm:$0xff]
  %v4132 = vld [vmem:[%s11 + $0x438] sm:$0xff]
  %v4133 = vld [vmem:[%s11 + $0x440] sm:$0xf]
  %v4134 = vld [vmem:[%s11 + $0x444] sm:$0xff]
  %v4135 = vld [vmem:[%s11 + $0x44c] sm:$0xff]
  %v4136 = vld [vmem:[%s11 + $0x454] sm:$0xff]
  %v4137 = vld [vmem:[%s11 + $0x45c] sm:$0xf]
  %v4138 = vld [vmem:[%s11 + $0x460] sm:$0xff]
  %v4139 = vld [vmem:[%s11 + $0x468] sm:$0xff]
  %v4140 = vld [vmem:[%s11 + $0x470] sm:$0xff]
  %v4141 = vld [vmem:[%s11 + $0x478] sm:$0xf]
  %v4142 = vld [vmem:[%s11 + $0x47c] sm:$0xff]
  %v4143 = vld [vmem:[%s11 + $0x484] sm:$0xff]
  %v4144 = vld [vmem:[%s11 + $0x48c] sm:$0xff]
  %v4145 = vld [vmem:[%s11 + $0x494] sm:$0xf]
  %v4146 = vld [vmem:[%s11 + $0x498] sm:$0xff]
  %v4147 = vld [vmem:[%s11 + $0x4a0] sm:$0xff]
  %v4148 = vld [vmem:[%s11 + $0x4a8] sm:$0xff]
  %v4149 = vld [vmem:[%s11 + $0x4b0] sm:$0xf]
  %v4150 = vld [vmem:[%s11 + $0x4b4] sm:$0xff]
  %v4151 = vld [vmem:[%s11 + $0x4bc] sm:$0xff]
  %v4152 = vld [vmem:[%s11 + $0x4c4] sm:$0xff]
  %v4153 = vld [vmem:[%s11 + $0x4cc] sm:$0xf]
  %v4154 = vld [vmem:[%s11 + $0x4d0] sm:$0xff]
  %v4155 = vld [vmem:[%s11 + $0x4d8] sm:$0xff]
  %v4156 = vld [vmem:[%s11 + $0x4e0] sm:$0xff]
  %v4157 = vld [vmem:[%s11 + $0x4e8] sm:$0xf]
  %v4158 = vld [vmem:[%s11 + $0x4ec] sm:$0xff]
  %v4159 = vld [vmem:[%s11 + $0x4f4] sm:$0xff]
  %v4160 = vld [vmem:[%s11 + $0x4fc] sm:$0xff]
  %v4161 = vld [vmem:[%s11 + $0x504] sm:$0xf]
  %v4162 = vld [vmem:[%s11 + $0x508] sm:$0xff]
  %v4163 = vld [vmem:[%s11 + $0x510] sm:$0xff]
  %v4164 = vld [vmem:[%s11 + $0x518] sm:$0xff]
  %v4165 = vld [vmem:[%s11 + $0x520] sm:$0xf]
  %v4166 = vld [vmem:[%s11 + $0x524] sm:$0xff]
  %v4167 = vld [vmem:[%s11 + $0x52c] sm:$0xff]
  %v4168 = vld [vmem:[%s11 + $0x534] sm:$0xff]
  %v4169 = vld [vmem:[%s11 + $0x53c] sm:$0xf]
  %v4170 = vld [vmem:[%s11 + $0x540] sm:$0xff]
  %v4171 = vld [vmem:[%s11 + $0x548] sm:$0xff]
  %v4172 = vld [vmem:[%s11 + $0x550] sm:$0xff]
  %v4173 = vld [vmem:[%s11 + $0x558] sm:$0xf]
  %v4174 = vld [vmem:[%s11 + $0x55c] sm:$0xff]
  %v4175 = vld [vmem:[%s11 + $0x564] sm:$0xff]
  %v4176 = vld [vmem:[%s11 + $0x56c] sm:$0xff]
  %v4177 = vld [vmem:[%s11 + $0x574] sm:$0xf]
  %v4178 = vld [vmem:[%s11 + $0x578] sm:$0xff]
  %v4179 = vld [vmem:[%s11 + $0x580] sm:$0xff]
  %v4180 = vld [vmem:[%s11 + $0x588] sm:$0xff]
  %v4181 = vld [vmem:[%s11 + $0x590] sm:$0xf]
  %v4182 = vld [vmem:[%s11 + $0x594] sm:$0xff]
  %v4183 = vld [vmem:[%s11 + $0x59c] sm:$0xff]
  %v4184 = vld [vmem:[%s11 + $0x5a4] sm:$0xff]
  %v4185 = vld [vmem:[%s11 + $0x5ac] sm:$0xf]
  %v4186 = vld [vmem:[%s11 + $0x5b0] sm:$0xff]
  %v4187 = vld [vmem:[%s11 + $0x5b8] sm:$0xff]
  %v4188 = vld [vmem:[%s11 + $0x5c0] sm:$0xff]
  %v4189 = vld [vmem:[%s11 + $0x5c8] sm:$0xf]
  %v4190 = vld [vmem:[%s11 + $0x5cc] sm:$0xff]
  %v4191 = vld [vmem:[%s11 + $0x5d4] sm:$0xff]
  %v4192 = vld [vmem:[%s11 + $0x5dc] sm:$0xff]
  %v4193 = vld [vmem:[%s11 + $0x5e4] sm:$0xf]
  %v4194 = vld [vmem:[%s11 + $0x5e8] sm:$0xff]
  %v4195 = vld [vmem:[%s11 + $0x5f0] sm:$0xff]
  %v4196 = vld [vmem:[%s11 + $0x5f8] sm:$0xff]
  %v4197 = vld [vmem:[%s11 + $0x600] sm:$0xf]
  %v4198 = vld [vmem:[%s11 + $0x604] sm:$0xff]
  %v4199 = vld [vmem:[%s11 + $0x60c] sm:$0xff]
  %v4200 = vld [vmem:[%s11 + $0x614] sm:$0xff]
  %v4201 = vld [vmem:[%s11 + $0x61c] sm:$0xf]
  %v4202 = vld [vmem:[%s11 + $0x620] sm:$0xff]
  %v4203 = vld [vmem:[%s11 + $0x628] sm:$0xff]
  %v4204 = vld [vmem:[%s11 + $0x630] sm:$0xff]
  %v4205 = vld [vmem:[%s11 + $0x638] sm:$0xf]
  %v4206 = vld [vmem:[%s11 + $0x63c] sm:$0xff]
  %v4207 = vld [vmem:[%s11 + $0x644] sm:$0xff]
  %v4208 = vld [vmem:[%s11 + $0x64c] sm:$0xff]
  %v4209 = vld [vmem:[%s11 + $0x654] sm:$0xf]
  %v4210 = vld [vmem:[%s11 + $0x658] sm:$0xff]
  %v4211 = vld [vmem:[%s11 + $0x660] sm:$0xff]
  %v4212 = vld [vmem:[%s11 + $0x668] sm:$0xff]
  %v4213 = vld [vmem:[%s11 + $0x670] sm:$0xf]
  %v4214 = vld [vmem:[%s11 + $0x674] sm:$0xff]
  %v4215 = vld [vmem:[%s11 + $0x67c] sm:$0xff]
  %v4216 = vld [vmem:[%s11 + $0x684] sm:$0xff]
  %v4217 = vld [vmem:[%s11 + $0x68c] sm:$0xf]
  %v4218 = vld [vmem:[%s11 + $0x690] sm:$0xff]
  %v4219 = vld [vmem:[%s11 + $0x698] sm:$0xff]
  %v4220 = vld [vmem:[%s11 + $0x6a0] sm:$0xff]
  %v4221 = vld [vmem:[%s11 + $0x6a8] sm:$0xf]
  %v4222 = vld [vmem:[%s11 + $0x6ac] sm:$0xff]
  %v4223 = vld [vmem:[%s11 + $0x6b4] sm:$0xff]
  %v4224 = vld [vmem:[%s11 + $0x6bc] sm:$0xff]
  %v4225 = vld [vmem:[%s11 + $0x6c4] sm:$0xf]
  %v4226 = vld [vmem:[%s11 + $0x6c8] sm:$0xff]
  %v4227 = vld [vmem:[%s11 + $0x6d0] sm:$0xff]
  %v4228 = vld [vmem:[%s11 + $0x6d8] sm:$0xff]
  %v4229 = vld [vmem:[%s11 + $0x6e0] sm:$0xf]
  %v4230 = vld [vmem:[%s11 + $0x6e4] sm:$0xff]
  %v4231 = vld [vmem:[%s11 + $0x6ec] sm:$0xff]
  %v4232 = vld [vmem:[%s11 + $0x6f4] sm:$0xff]
  %v4233 = vld [vmem:[%s11 + $0x6fc] sm:$0xf]
  %v4234 = vld [vmem:[%s12] sm:$0xff]
  %v4236 = vperm.slane %v4234, 0
  %v4237 = vperm.slane %v4234, 1
  %v4238 = vperm.slane %v4234, 2
  %v4239 = vperm.slane %v4234, 3
  %v4240 = vperm.slane %v4234, 4
  %v4241 = vperm.slane %v4234, 5
  %v4242 = vperm.slane %v4234, 6
  %v4258 = vunpack.c.l.b16 %v3970
  %v4259 = vunpack.c.h.b16 %v3970
  %v4260 = vunpack.c.l.b16 %v3971
  %v4261 = vunpack.c.h.b16 %v3971
  %v4262 = vunpack.c.l.b16 %v3972
  %v4263 = vunpack.c.h.b16 %v3972
  %v4264 = vunpack.c.l.b16 %v3973
  %v4265 = vunpack.c.h.b16 %v3973
  %v4266 = vunpack.c.l.b16 %v3974
  %v4267 = vunpack.c.h.b16 %v3974
  %v4268 = vunpack.c.l.b16 %v3975
  %v4269 = vunpack.c.h.b16 %v3975
  %v4270 = vunpack.c.l.b16 %v3976
  %v4271 = vunpack.c.h.b16 %v3976
  %v4272 = vunpack.c.l.b16 %v3977
  %v4273 = vunpack.c.h.b16 %v3977
  %v4274 = vpack.c.b16 %v4262, %v4258
  %v4275 = vpack.c.b16 %v4263, %v4259
  %v4276 = vpack.c.b16 %v4264, %v4260
  %v4277 = vpack.c.b16 %v4265, %v4261
  %v4278 = vpack.c.b16 %v4270, %v4266
  %v4279 = vpack.c.b16 %v4271, %v4267
  %v4280 = vpack.c.b16 %v4272, %v4268
  %v4281 = vpack.c.b16 %v4273, %v4269
  %v4546 = vunpack.c.l.b16 %v3978
  %v4547 = vunpack.c.h.b16 %v3978
  %v4548 = vunpack.c.l.b16 %v3979
  %v4549 = vunpack.c.h.b16 %v3979
  %v4550 = vunpack.c.l.b16 %v3980
  %v4551 = vunpack.c.h.b16 %v3980
  %v4552 = vunpack.c.l.b16 %v3981
  %v4553 = vunpack.c.l.b16 %v3982
  %v4554 = vunpack.c.h.b16 %v3982
  %v4555 = vunpack.c.l.b16 %v3983
  %v4556 = vunpack.c.h.b16 %v3983
  %v4557 = vunpack.c.l.b16 %v3984
  %v4558 = vunpack.c.h.b16 %v3984
  %v4559 = vunpack.c.l.b16 %v3985
  %v4560 = vunpack.c.l.b16 %v3986
  %v4561 = vunpack.c.h.b16 %v3986
  %v4562 = vunpack.c.l.b16 %v3987
  %v4563 = vunpack.c.h.b16 %v3987
  %v4564 = vunpack.c.l.b16 %v3988
  %v4565 = vunpack.c.h.b16 %v3988
  %v4566 = vunpack.c.l.b16 %v3989
  %v4567 = vunpack.c.l.b16 %v3990
  %v4568 = vunpack.c.h.b16 %v3990
  %v4569 = vunpack.c.l.b16 %v3991
  %v4570 = vunpack.c.h.b16 %v3991
  %v4571 = vunpack.c.l.b16 %v3992
  %v4572 = vunpack.c.h.b16 %v3992
  %v4573 = vunpack.c.l.b16 %v3993
  %v4574 = vunpack.c.l.b16 %v3994
  %v4575 = vunpack.c.h.b16 %v3994
  %v4576 = vunpack.c.l.b16 %v3995
  %v4577 = vunpack.c.h.b16 %v3995
  %v4578 = vunpack.c.l.b16 %v3996
  %v4579 = vunpack.c.h.b16 %v3996
  %v4580 = vunpack.c.l.b16 %v3997
  %v4581 = vunpack.c.l.b16 %v3998
  %v4582 = vunpack.c.h.b16 %v3998
  %v4583 = vunpack.c.l.b16 %v3999
  %v4584 = vunpack.c.h.b16 %v3999
  %v4585 = vunpack.c.l.b16 %v4000
  %v4586 = vunpack.c.h.b16 %v4000
  %v4587 = vunpack.c.l.b16 %v4001
  %v4588 = vunpack.c.l.b16 %v4002
  %v4589 = vunpack.c.h.b16 %v4002
  %v4590 = vunpack.c.l.b16 %v4003
  %v4591 = vunpack.c.h.b16 %v4003
  %v4592 = vunpack.c.l.b16 %v4004
  %v4593 = vunpack.c.h.b16 %v4004
  %v4594 = vunpack.c.l.b16 %v4005
  %v4595 = vunpack.c.l.b16 %v4006
  %v4596 = vunpack.c.h.b16 %v4006
  %v4597 = vunpack.c.l.b16 %v4007
  %v4598 = vunpack.c.h.b16 %v4007
  %v4599 = vunpack.c.l.b16 %v4008
  %v4600 = vunpack.c.h.b16 %v4008
  %v4601 = vunpack.c.l.b16 %v4009
  %v4602 = vunpack.c.l.b16 %v4010
  %v4603 = vunpack.c.h.b16 %v4010
  %v4604 = vunpack.c.l.b16 %v4011
  %v4605 = vunpack.c.h.b16 %v4011
  %v4606 = vunpack.c.l.b16 %v4012
  %v4607 = vunpack.c.h.b16 %v4012
  %v4608 = vunpack.c.l.b16 %v4013
  %v4609 = vunpack.c.l.b16 %v4014
  %v4610 = vunpack.c.h.b16 %v4014
  %v4611 = vunpack.c.l.b16 %v4015
  %v4612 = vunpack.c.h.b16 %v4015
  %v4613 = vunpack.c.l.b16 %v4016
  %v4614 = vunpack.c.h.b16 %v4016
  %v4615 = vunpack.c.l.b16 %v4017
  %v4616 = vunpack.c.l.b16 %v4018
  %v4617 = vunpack.c.h.b16 %v4018
  %v4618 = vunpack.c.l.b16 %v4019
  %v4619 = vunpack.c.h.b16 %v4019
  %v4620 = vunpack.c.l.b16 %v4020
  %v4621 = vunpack.c.h.b16 %v4020
  %v4622 = vunpack.c.l.b16 %v4021
  %v4623 = vunpack.c.l.b16 %v4022
  %v4624 = vunpack.c.h.b16 %v4022
  %v4625 = vunpack.c.l.b16 %v4023
  %v4626 = vunpack.c.h.b16 %v4023
  %v4627 = vunpack.c.l.b16 %v4024
  %v4628 = vunpack.c.h.b16 %v4024
  %v4629 = vunpack.c.l.b16 %v4025
  %v4630 = vunpack.c.l.b16 %v4026
  %v4631 = vunpack.c.h.b16 %v4026
  %v4632 = vunpack.c.l.b16 %v4027
  %v4633 = vunpack.c.h.b16 %v4027
  %v4634 = vunpack.c.l.b16 %v4028
  %v4635 = vunpack.c.h.b16 %v4028
  %v4636 = vunpack.c.l.b16 %v4029
  %v4637 = vunpack.c.l.b16 %v4030
  %v4638 = vunpack.c.h.b16 %v4030
  %v4639 = vunpack.c.l.b16 %v4031
  %v4640 = vunpack.c.h.b16 %v4031
  %v4641 = vunpack.c.l.b16 %v4032
  %v4642 = vunpack.c.h.b16 %v4032
  %v4643 = vunpack.c.l.b16 %v4033
  %v4644 = vunpack.c.l.b16 %v4034
  %v4645 = vunpack.c.h.b16 %v4034
  %v4646 = vunpack.c.l.b16 %v4035
  %v4647 = vunpack.c.h.b16 %v4035
  %v4648 = vunpack.c.l.b16 %v4036
  %v4649 = vunpack.c.h.b16 %v4036
  %v4650 = vunpack.c.l.b16 %v4037
  %v4651 = vunpack.c.l.b16 %v4038
  %v4652 = vunpack.c.h.b16 %v4038
  %v4653 = vunpack.c.l.b16 %v4039
  %v4654 = vunpack.c.h.b16 %v4039
  %v4655 = vunpack.c.l.b16 %v4040
  %v4656 = vunpack.c.h.b16 %v4040
  %v4657 = vunpack.c.l.b16 %v4041
  %v4658 = vunpack.c.l.b16 %v4042
  %v4659 = vunpack.c.h.b16 %v4042
  %v4660 = vunpack.c.l.b16 %v4043
  %v4661 = vunpack.c.h.b16 %v4043
  %v4662 = vunpack.c.l.b16 %v4044
  %v4663 = vunpack.c.h.b16 %v4044
  %v4664 = vunpack.c.l.b16 %v4045
  %v4665 = vunpack.c.l.b16 %v4046
  %v4666 = vunpack.c.h.b16 %v4046
  %v4667 = vunpack.c.l.b16 %v4047
  %v4668 = vunpack.c.h.b16 %v4047
  %v4669 = vunpack.c.l.b16 %v4048
  %v4670 = vunpack.c.h.b16 %v4048
  %v4671 = vunpack.c.l.b16 %v4049
  %v4672 = vunpack.c.l.b16 %v4050
  %v4673 = vunpack.c.h.b16 %v4050
  %v4674 = vunpack.c.l.b16 %v4051
  %v4675 = vunpack.c.h.b16 %v4051
  %v4676 = vunpack.c.l.b16 %v4052
  %v4677 = vunpack.c.h.b16 %v4052
  %v4678 = vunpack.c.l.b16 %v4053
  %v4679 = vunpack.c.l.b16 %v4054
  %v4680 = vunpack.c.h.b16 %v4054
  %v4681 = vunpack.c.l.b16 %v4055
  %v4682 = vunpack.c.h.b16 %v4055
  %v4683 = vunpack.c.l.b16 %v4056
  %v4684 = vunpack.c.h.b16 %v4056
  %v4685 = vunpack.c.l.b16 %v4057
  %v4686 = vunpack.c.l.b16 %v4058
  %v4687 = vunpack.c.h.b16 %v4058
  %v4688 = vunpack.c.l.b16 %v4059
  %v4689 = vunpack.c.h.b16 %v4059
  %v4690 = vunpack.c.l.b16 %v4060
  %v4691 = vunpack.c.h.b16 %v4060
  %v4692 = vunpack.c.l.b16 %v4061
  %v4693 = vunpack.c.l.b16 %v4062
  %v4694 = vunpack.c.h.b16 %v4062
  %v4695 = vunpack.c.l.b16 %v4063
  %v4696 = vunpack.c.h.b16 %v4063
  %v4697 = vunpack.c.l.b16 %v4064
  %v4698 = vunpack.c.h.b16 %v4064
  %v4699 = vunpack.c.l.b16 %v4065
  %v4700 = vunpack.c.l.b16 %v4066
  %v4701 = vunpack.c.h.b16 %v4066
  %v4702 = vunpack.c.l.b16 %v4067
  %v4703 = vunpack.c.h.b16 %v4067
  %v4704 = vunpack.c.l.b16 %v4068
  %v4705 = vunpack.c.h.b16 %v4068
  %v4706 = vunpack.c.l.b16 %v4069
  %v4707 = vunpack.c.l.b16 %v4070
  %v4708 = vunpack.c.h.b16 %v4070
  %v4709 = vunpack.c.l.b16 %v4071
  %v4710 = vunpack.c.h.b16 %v4071
  %v4711 = vunpack.c.l.b16 %v4072
  %v4712 = vunpack.c.h.b16 %v4072
  %v4713 = vunpack.c.l.b16 %v4073
  %v4714 = vunpack.c.l.b16 %v4074
  %v4715 = vunpack.c.h.b16 %v4074
  %v4716 = vunpack.c.l.b16 %v4075
  %v4717 = vunpack.c.h.b16 %v4075
  %v4718 = vunpack.c.l.b16 %v4076
  %v4719 = vunpack.c.h.b16 %v4076
  %v4720 = vunpack.c.l.b16 %v4077
  %v4721 = vunpack.c.l.b16 %v4078
  %v4722 = vunpack.c.h.b16 %v4078
  %v4723 = vunpack.c.l.b16 %v4079
  %v4724 = vunpack.c.h.b16 %v4079
  %v4725 = vunpack.c.l.b16 %v4080
  %v4726 = vunpack.c.h.b16 %v4080
  %v4727 = vunpack.c.l.b16 %v4081
  %v4728 = vunpack.c.l.b16 %v4082
  %v4729 = vunpack.c.h.b16 %v4082
  %v4730 = vunpack.c.l.b16 %v4083
  %v4731 = vunpack.c.h.b16 %v4083
  %v4732 = vunpack.c.l.b16 %v4084
  %v4733 = vunpack.c.h.b16 %v4084
  %v4734 = vunpack.c.l.b16 %v4085
  %v4735 = vunpack.c.l.b16 %v4086
  %v4736 = vunpack.c.h.b16 %v4086
  %v4737 = vunpack.c.l.b16 %v4087
  %v4738 = vunpack.c.h.b16 %v4087
  %v4739 = vunpack.c.l.b16 %v4088
  %v4740 = vunpack.c.h.b16 %v4088
  %v4741 = vunpack.c.l.b16 %v4089
  %v4742 = vunpack.c.l.b16 %v4090
  %v4743 = vunpack.c.h.b16 %v4090
  %v4744 = vunpack.c.l.b16 %v4091
  %v4745 = vunpack.c.h.b16 %v4091
  %v4746 = vunpack.c.l.b16 %v4092
  %v4747 = vunpack.c.h.b16 %v4092
  %v4748 = vunpack.c.l.b16 %v4093
  %v4749 = vunpack.c.l.b16 %v4094
  %v4750 = vunpack.c.h.b16 %v4094
  %v4751 = vunpack.c.l.b16 %v4095
  %v4752 = vunpack.c.h.b16 %v4095
  %v4753 = vunpack.c.l.b16 %v4096
  %v4754 = vunpack.c.h.b16 %v4096
  %v4755 = vunpack.c.l.b16 %v4097
  %v4756 = vunpack.c.l.b16 %v4098
  %v4757 = vunpack.c.h.b16 %v4098
  %v4758 = vunpack.c.l.b16 %v4099
  %v4759 = vunpack.c.h.b16 %v4099
  %v4760 = vunpack.c.l.b16 %v4100
  %v4761 = vunpack.c.h.b16 %v4100
  %v4762 = vunpack.c.l.b16 %v4101
  %v4763 = vunpack.c.l.b16 %v4102
  %v4764 = vunpack.c.h.b16 %v4102
  %v4765 = vunpack.c.l.b16 %v4103
  %v4766 = vunpack.c.h.b16 %v4103
  %v4767 = vunpack.c.l.b16 %v4104
  %v4768 = vunpack.c.h.b16 %v4104
  %v4769 = vunpack.c.l.b16 %v4105
  %v4770 = vunpack.c.l.b16 %v4106
  %v4771 = vunpack.c.h.b16 %v4106
  %v4772 = vunpack.c.l.b16 %v4107
  %v4773 = vunpack.c.h.b16 %v4107
  %v4774 = vunpack.c.l.b16 %v4108
  %v4775 = vunpack.c.h.b16 %v4108
  %v4776 = vunpack.c.l.b16 %v4109
  %v4777 = vunpack.c.l.b16 %v4110
  %v4778 = vunpack.c.h.b16 %v4110
  %v4779 = vunpack.c.l.b16 %v4111
  %v4780 = vunpack.c.h.b16 %v4111
  %v4781 = vunpack.c.l.b16 %v4112
  %v4782 = vunpack.c.h.b16 %v4112
  %v4783 = vunpack.c.l.b16 %v4113
  %v4784 = vunpack.c.l.b16 %v4114
  %v4785 = vunpack.c.h.b16 %v4114
  %v4786 = vunpack.c.l.b16 %v4115
  %v4787 = vunpack.c.h.b16 %v4115
  %v4788 = vunpack.c.l.b16 %v4116
  %v4789 = vunpack.c.h.b16 %v4116
  %v4790 = vunpack.c.l.b16 %v4117
  %v4791 = vunpack.c.l.b16 %v4118
  %v4792 = vunpack.c.h.b16 %v4118
  %v4793 = vunpack.c.l.b16 %v4119
  %v4794 = vunpack.c.h.b16 %v4119
  %v4795 = vunpack.c.l.b16 %v4120
  %v4796 = vunpack.c.h.b16 %v4120
  %v4797 = vunpack.c.l.b16 %v4121
  %v4798 = vunpack.c.l.b16 %v4122
  %v4799 = vunpack.c.h.b16 %v4122
  %v4800 = vunpack.c.l.b16 %v4123
  %v4801 = vunpack.c.h.b16 %v4123
  %v4802 = vunpack.c.l.b16 %v4124
  %v4803 = vunpack.c.h.b16 %v4124
  %v4804 = vunpack.c.l.b16 %v4125
  %v4805 = vunpack.c.l.b16 %v4126
  %v4806 = vunpack.c.h.b16 %v4126
  %v4807 = vunpack.c.l.b16 %v4127
  %v4808 = vunpack.c.h.b16 %v4127
  %v4809 = vunpack.c.l.b16 %v4128
  %v4810 = vunpack.c.h.b16 %v4128
  %v4811 = vunpack.c.l.b16 %v4129
  %v4812 = vunpack.c.l.b16 %v4130
  %v4813 = vunpack.c.h.b16 %v4130
  %v4814 = vunpack.c.l.b16 %v4131
  %v4815 = vunpack.c.h.b16 %v4131
  %v4816 = vunpack.c.l.b16 %v4132
  %v4817 = vunpack.c.h.b16 %v4132
  %v4818 = vunpack.c.l.b16 %v4133
  %v4819 = vunpack.c.l.b16 %v4134
  %v4820 = vunpack.c.h.b16 %v4134
  %v4821 = vunpack.c.l.b16 %v4135
  %v4822 = vunpack.c.h.b16 %v4135
  %v4823 = vunpack.c.l.b16 %v4136
  %v4824 = vunpack.c.h.b16 %v4136
  %v4825 = vunpack.c.l.b16 %v4137
  %v4826 = vunpack.c.l.b16 %v4138
  %v4827 = vunpack.c.h.b16 %v4138
  %v4828 = vunpack.c.l.b16 %v4139
  %v4829 = vunpack.c.h.b16 %v4139
  %v4830 = vunpack.c.l.b16 %v4140
  %v4831 = vunpack.c.h.b16 %v4140
  %v4832 = vunpack.c.l.b16 %v4141
  %v4833 = vunpack.c.l.b16 %v4142
  %v4834 = vunpack.c.h.b16 %v4142
  %v4835 = vunpack.c.l.b16 %v4143
  %v4836 = vunpack.c.h.b16 %v4143
  %v4837 = vunpack.c.l.b16 %v4144
  %v4838 = vunpack.c.h.b16 %v4144
  %v4839 = vunpack.c.l.b16 %v4145
  %v4840 = vunpack.c.l.b16 %v4146
  %v4841 = vunpack.c.h.b16 %v4146
  %v4842 = vunpack.c.l.b16 %v4147
  %v4843 = vunpack.c.h.b16 %v4147
  %v4844 = vunpack.c.l.b16 %v4148
  %v4845 = vunpack.c.h.b16 %v4148
  %v4846 = vunpack.c.l.b16 %v4149
  %v4847 = vunpack.c.l.b16 %v4150
  %v4848 = vunpack.c.h.b16 %v4150
  %v4849 = vunpack.c.l.b16 %v4151
  %v4850 = vunpack.c.h.b16 %v4151
  %v4851 = vunpack.c.l.b16 %v4152
  %v4852 = vunpack.c.h.b16 %v4152
  %v4853 = vunpack.c.l.b16 %v4153
  %v4854 = vunpack.c.l.b16 %v4154
  %v4855 = vunpack.c.h.b16 %v4154
  %v4856 = vunpack.c.l.b16 %v4155
  %v4857 = vunpack.c.h.b16 %v4155
  %v4858 = vunpack.c.l.b16 %v4156
  %v4859 = vunpack.c.h.b16 %v4156
  %v4860 = vunpack.c.l.b16 %v4157
  %v4861 = vunpack.c.l.b16 %v4158
  %v4862 = vunpack.c.h.b16 %v4158
  %v4863 = vunpack.c.l.b16 %v4159
  %v4864 = vunpack.c.h.b16 %v4159
  %v4865 = vunpack.c.l.b16 %v4160
  %v4866 = vunpack.c.h.b16 %v4160
  %v4867 = vunpack.c.l.b16 %v4161
  %v4868 = vunpack.c.l.b16 %v4162
  %v4869 = vunpack.c.h.b16 %v4162
  %v4870 = vunpack.c.l.b16 %v4163
  %v4871 = vunpack.c.h.b16 %v4163
  %v4872 = vunpack.c.l.b16 %v4164
  %v4873 = vunpack.c.h.b16 %v4164
  %v4874 = vunpack.c.l.b16 %v4165
  %v4875 = vunpack.c.l.b16 %v4166
  %v4876 = vunpack.c.h.b16 %v4166
  %v4877 = vunpack.c.l.b16 %v4167
  %v4878 = vunpack.c.h.b16 %v4167
  %v4879 = vunpack.c.l.b16 %v4168
  %v4880 = vunpack.c.h.b16 %v4168
  %v4881 = vunpack.c.l.b16 %v4169
  %v4882 = vunpack.c.l.b16 %v4170
  %v4883 = vunpack.c.h.b16 %v4170
  %v4884 = vunpack.c.l.b16 %v4171
  %v4885 = vunpack.c.h.b16 %v4171
  %v4886 = vunpack.c.l.b16 %v4172
  %v4887 = vunpack.c.h.b16 %v4172
  %v4888 = vunpack.c.l.b16 %v4173
  %v4889 = vunpack.c.l.b16 %v4174
  %v4890 = vunpack.c.h.b16 %v4174
  %v4891 = vunpack.c.l.b16 %v4175
  %v4892 = vunpack.c.h.b16 %v4175
  %v4893 = vunpack.c.l.b16 %v4176
  %v4894 = vunpack.c.h.b16 %v4176
  %v4895 = vunpack.c.l.b16 %v4177
  %v4896 = vunpack.c.l.b16 %v4178
  %v4897 = vunpack.c.h.b16 %v4178
  %v4898 = vunpack.c.l.b16 %v4179
  %v4899 = vunpack.c.h.b16 %v4179
  %v4900 = vunpack.c.l.b16 %v4180
  %v4901 = vunpack.c.h.b16 %v4180
  %v4902 = vunpack.c.l.b16 %v4181
  %v4903 = vunpack.c.l.b16 %v4182
  %v4904 = vunpack.c.h.b16 %v4182
  %v4905 = vunpack.c.l.b16 %v4183
  %v4906 = vunpack.c.h.b16 %v4183
  %v4907 = vunpack.c.l.b16 %v4184
  %v4908 = vunpack.c.h.b16 %v4184
  %v4909 = vunpack.c.l.b16 %v4185
  %v4910 = vunpack.c.l.b16 %v4186
  %v4911 = vunpack.c.h.b16 %v4186
  %v4912 = vunpack.c.l.b16 %v4187
  %v4913 = vunpack.c.h.b16 %v4187
  %v4914 = vunpack.c.l.b16 %v4188
  %v4915 = vunpack.c.h.b16 %v4188
  %v4916 = vunpack.c.l.b16 %v4189
  %v4917 = vunpack.c.l.b16 %v4190
  %v4918 = vunpack.c.h.b16 %v4190
  %v4919 = vunpack.c.l.b16 %v4191
  %v4920 = vunpack.c.h.b16 %v4191
  %v4921 = vunpack.c.l.b16 %v4192
  %v4922 = vunpack.c.h.b16 %v4192
  %v4923 = vunpack.c.l.b16 %v4193
  %v4924 = vunpack.c.l.b16 %v4194
  %v4925 = vunpack.c.h.b16 %v4194
  %v4926 = vunpack.c.l.b16 %v4195
  %v4927 = vunpack.c.h.b16 %v4195
  %v4928 = vunpack.c.l.b16 %v4196
  %v4929 = vunpack.c.h.b16 %v4196
  %v4930 = vunpack.c.l.b16 %v4197
  %v4931 = vunpack.c.l.b16 %v4198
  %v4932 = vunpack.c.h.b16 %v4198
  %v4933 = vunpack.c.l.b16 %v4199
  %v4934 = vunpack.c.h.b16 %v4199
  %v4935 = vunpack.c.l.b16 %v4200
  %v4936 = vunpack.c.h.b16 %v4200
  %v4937 = vunpack.c.l.b16 %v4201
  %v4938 = vunpack.c.l.b16 %v4202
  %v4939 = vunpack.c.h.b16 %v4202
  %v4940 = vunpack.c.l.b16 %v4203
  %v4941 = vunpack.c.h.b16 %v4203
  %v4942 = vunpack.c.l.b16 %v4204
  %v4943 = vunpack.c.h.b16 %v4204
  %v4944 = vunpack.c.l.b16 %v4205
  %v4945 = vunpack.c.l.b16 %v4206
  %v4946 = vunpack.c.h.b16 %v4206
  %v4947 = vunpack.c.l.b16 %v4207
  %v4948 = vunpack.c.h.b16 %v4207
  %v4949 = vunpack.c.l.b16 %v4208
  %v4950 = vunpack.c.h.b16 %v4208
  %v4951 = vunpack.c.l.b16 %v4209
  %v4952 = vunpack.c.l.b16 %v4210
  %v4953 = vunpack.c.h.b16 %v4210
  %v4954 = vunpack.c.l.b16 %v4211
  %v4955 = vunpack.c.h.b16 %v4211
  %v4956 = vunpack.c.l.b16 %v4212
  %v4957 = vunpack.c.h.b16 %v4212
  %v4958 = vunpack.c.l.b16 %v4213
  %v4959 = vunpack.c.l.b16 %v4214
  %v4960 = vunpack.c.h.b16 %v4214
  %v4961 = vunpack.c.l.b16 %v4215
  %v4962 = vunpack.c.h.b16 %v4215
  %v4963 = vunpack.c.l.b16 %v4216
  %v4964 = vunpack.c.h.b16 %v4216
  %v4965 = vunpack.c.l.b16 %v4217
  %v4966 = vunpack.c.l.b16 %v4218
  %v4967 = vunpack.c.h.b16 %v4218
  %v4968 = vunpack.c.l.b16 %v4219
  %v4969 = vunpack.c.h.b16 %v4219
  %v4970 = vunpack.c.l.b16 %v4220
  %v4971 = vunpack.c.h.b16 %v4220
  %v4972 = vunpack.c.l.b16 %v4221
  %v4973 = vunpack.c.l.b16 %v4222
  %v4974 = vunpack.c.h.b16 %v4222
  %v4975 = vunpack.c.l.b16 %v4223
  %v4976 = vunpack.c.h.b16 %v4223
  %v4977 = vunpack.c.l.b16 %v4224
  %v4978 = vunpack.c.h.b16 %v4224
  %v4979 = vunpack.c.l.b16 %v4225
  %v4980 = vunpack.c.l.b16 %v4226
  %v4981 = vunpack.c.h.b16 %v4226
  %v4982 = vunpack.c.l.b16 %v4227
  %v4983 = vunpack.c.h.b16 %v4227
  %v4984 = vunpack.c.l.b16 %v4228
  %v4985 = vunpack.c.h.b16 %v4228
  %v4986 = vunpack.c.l.b16 %v4229
  %v4987 = vunpack.c.l.b16 %v4230
  %v4988 = vunpack.c.h.b16 %v4230
  %v4989 = vunpack.c.l.b16 %v4231
  %v4990 = vunpack.c.h.b16 %v4231
  %v4991 = vunpack.c.l.b16 %v4232
  %v4992 = vunpack.c.h.b16 %v4232
  %v4993 = vunpack.c.l.b16 %v4233
  %v4994 = vpack.c.b16 %v4553, %v4546
  %v4995 = vpack.c.b16 %v4554, %v4547
  %v4996 = vpack.c.b16 %v4555, %v4548
  %v4997 = vpack.c.b16 %v4556, %v4549
  %v4998 = vpack.c.b16 %v4557, %v4550
  %v4999 = vpack.c.b16 %v4558, %v4551
  %v5000 = vpack.c.b16 %v4559, %v4552
  %v5001 = vpack.c.b16 %v4567, %v4560
  %v5002 = vpack.c.b16 %v4568, %v4561
  %v5003 = vpack.c.b16 %v4569, %v4562
  %v5004 = vpack.c.b16 %v4570, %v4563
  %v5005 = vpack.c.b16 %v4571, %v4564
  %v5006 = vpack.c.b16 %v4572, %v4565
  %v5007 = vpack.c.b16 %v4573, %v4566
  %v5008 = vpack.c.b16 %v4581, %v4574
  %v5009 = vpack.c.b16 %v4582, %v4575
  %v5010 = vpack.c.b16 %v4583, %v4576
  %v5011 = vpack.c.b16 %v4584, %v4577
  %v5012 = vpack.c.b16 %v4585, %v4578
  %v5013 = vpack.c.b16 %v4586, %v4579
  %v5014 = vpack.c.b16 %v4587, %v4580
  %v5015 = vpack.c.b16 %v4595, %v4588
  %v5016 = vpack.c.b16 %v4596, %v4589
  %v5017 = vpack.c.b16 %v4597, %v4590
  %v5018 = vpack.c.b16 %v4598, %v4591
  %v5019 = vpack.c.b16 %v4599, %v4592
  %v5020 = vpack.c.b16 %v4600, %v4593
  %v5021 = vpack.c.b16 %v4601, %v4594
  %v5022 = vpack.c.b16 %v4609, %v4602
  %v5023 = vpack.c.b16 %v4610, %v4603
  %v5024 = vpack.c.b16 %v4611, %v4604
  %v5025 = vpack.c.b16 %v4612, %v4605
  %v5026 = vpack.c.b16 %v4613, %v4606
  %v5027 = vpack.c.b16 %v4614, %v4607
  %v5028 = vpack.c.b16 %v4615, %v4608
  %v5029 = vpack.c.b16 %v4623, %v4616
  %v5030 = vpack.c.b16 %v4624, %v4617
  %v5031 = vpack.c.b16 %v4625, %v4618
  %v5032 = vpack.c.b16 %v4626, %v4619
  %v5033 = vpack.c.b16 %v4627, %v4620
  %v5034 = vpack.c.b16 %v4628, %v4621
  %v5035 = vpack.c.b16 %v4629, %v4622
  %v5036 = vpack.c.b16 %v4637, %v4630
  %v5037 = vpack.c.b16 %v4638, %v4631
  %v5038 = vpack.c.b16 %v4639, %v4632
  %v5039 = vpack.c.b16 %v4640, %v4633
  %v5040 = vpack.c.b16 %v4641, %v4634
  %v5041 = vpack.c.b16 %v4642, %v4635
  %v5042 = vpack.c.b16 %v4643, %v4636
  %v5043 = vpack.c.b16 %v4651, %v4644
  %v5044 = vpack.c.b16 %v4652, %v4645
  %v5045 = vpack.c.b16 %v4653, %v4646
  %v5046 = vpack.c.b16 %v4654, %v4647
  %v5047 = vpack.c.b16 %v4655, %v4648
  %v5048 = vpack.c.b16 %v4656, %v4649
  %v5049 = vpack.c.b16 %v4657, %v4650
  %v5050 = vpack.c.b16 %v4665, %v4658
  %v5051 = vpack.c.b16 %v4666, %v4659
  %v5052 = vpack.c.b16 %v4667, %v4660
  %v5053 = vpack.c.b16 %v4668, %v4661
  %v5054 = vpack.c.b16 %v4669, %v4662
  %v5055 = vpack.c.b16 %v4670, %v4663
  %v5056 = vpack.c.b16 %v4671, %v4664
  %v5057 = vpack.c.b16 %v4679, %v4672
  %v5058 = vpack.c.b16 %v4680, %v4673
  %v5059 = vpack.c.b16 %v4681, %v4674
  %v5060 = vpack.c.b16 %v4682, %v4675
  %v5061 = vpack.c.b16 %v4683, %v4676
  %v5062 = vpack.c.b16 %v4684, %v4677
  %v5063 = vpack.c.b16 %v4685, %v4678
  %v5064 = vpack.c.b16 %v4693, %v4686
  %v5065 = vpack.c.b16 %v4694, %v4687
  %v5066 = vpack.c.b16 %v4695, %v4688
  %v5067 = vpack.c.b16 %v4696, %v4689
  %v5068 = vpack.c.b16 %v4697, %v4690
  %v5069 = vpack.c.b16 %v4698, %v4691
  %v5070 = vpack.c.b16 %v4699, %v4692
  %v5071 = vpack.c.b16 %v4707, %v4700
  %v5072 = vpack.c.b16 %v4708, %v4701
  %v5073 = vpack.c.b16 %v4709, %v4702
  %v5074 = vpack.c.b16 %v4710, %v4703
  %v5075 = vpack.c.b16 %v4711, %v4704
  %v5076 = vpack.c.b16 %v4712, %v4705
  %v5077 = vpack.c.b16 %v4713, %v4706
  %v5078 = vpack.c.b16 %v4721, %v4714
  %v5079 = vpack.c.b16 %v4722, %v4715
  %v5080 = vpack.c.b16 %v4723, %v4716
  %v5081 = vpack.c.b16 %v4724, %v4717
  %v5082 = vpack.c.b16 %v4725, %v4718
  %v5083 = vpack.c.b16 %v4726, %v4719
  %v5084 = vpack.c.b16 %v4727, %v4720
  %v5085 = vpack.c.b16 %v4735, %v4728
  %v5086 = vpack.c.b16 %v4736, %v4729
  %v5087 = vpack.c.b16 %v4737, %v4730
  %v5088 = vpack.c.b16 %v4738, %v4731
  %v5089 = vpack.c.b16 %v4739, %v4732
  %v5090 = vpack.c.b16 %v4740, %v4733
  %v5091 = vpack.c.b16 %v4741, %v4734
  %v5092 = vpack.c.b16 %v4749, %v4742
  %v5093 = vpack.c.b16 %v4750, %v4743
  %v5094 = vpack.c.b16 %v4751, %v4744
  %v5095 = vpack.c.b16 %v4752, %v4745
  %v5096 = vpack.c.b16 %v4753, %v4746
  %v5097 = vpack.c.b16 %v4754, %v4747
  %v5098 = vpack.c.b16 %v4755, %v4748
  %v5099 = vpack.c.b16 %v4763, %v4756
  %v5100 = vpack.c.b16 %v4764, %v4757
  %v5101 = vpack.c.b16 %v4765, %v4758
  %v5102 = vpack.c.b16 %v4766, %v4759
  %v5103 = vpack.c.b16 %v4767, %v4760
  %v5104 = vpack.c.b16 %v4768, %v4761
  %v5105 = vpack.c.b16 %v4769, %v4762
  %v5106 = vpack.c.b16 %v4777, %v4770
  %v5107 = vpack.c.b16 %v4778, %v4771
  %v5108 = vpack.c.b16 %v4779, %v4772
  %v5109 = vpack.c.b16 %v4780, %v4773
  %v5110 = vpack.c.b16 %v4781, %v4774
  %v5111 = vpack.c.b16 %v4782, %v4775
  %v5112 = vpack.c.b16 %v4783, %v4776
  %v5113 = vpack.c.b16 %v4791, %v4784
  %v5114 = vpack.c.b16 %v4792, %v4785
  %v5115 = vpack.c.b16 %v4793, %v4786
  %v5116 = vpack.c.b16 %v4794, %v4787
  %v5117 = vpack.c.b16 %v4795, %v4788
  %v5118 = vpack.c.b16 %v4796, %v4789
  %v5119 = vpack.c.b16 %v4797, %v4790
  %v5120 = vpack.c.b16 %v4805, %v4798
  %v5121 = vpack.c.b16 %v4806, %v4799
  %v5122 = vpack.c.b16 %v4807, %v4800
  %v5123 = vpack.c.b16 %v4808, %v4801
  %v5124 = vpack.c.b16 %v4809, %v4802
  %v5125 = vpack.c.b16 %v4810, %v4803
  %v5126 = vpack.c.b16 %v4811, %v4804
  %v5127 = vpack.c.b16 %v4819, %v4812
  %v5128 = vpack.c.b16 %v4820, %v4813
  %v5129 = vpack.c.b16 %v4821, %v4814
  %v5130 = vpack.c.b16 %v4822, %v4815
  %v5131 = vpack.c.b16 %v4823, %v4816
  %v5132 = vpack.c.b16 %v4824, %v4817
  %v5133 = vpack.c.b16 %v4825, %v4818
  %v5134 = vpack.c.b16 %v4833, %v4826
  %v5135 = vpack.c.b16 %v4834, %v4827
  %v5136 = vpack.c.b16 %v4835, %v4828
  %v5137 = vpack.c.b16 %v4836, %v4829
  %v5138 = vpack.c.b16 %v4837, %v4830
  %v5139 = vpack.c.b16 %v4838, %v4831
  %v5140 = vpack.c.b16 %v4839, %v4832
  %v5141 = vpack.c.b16 %v4847, %v4840
  %v5142 = vpack.c.b16 %v4848, %v4841
  %v5143 = vpack.c.b16 %v4849, %v4842
  %v5144 = vpack.c.b16 %v4850, %v4843
  %v5145 = vpack.c.b16 %v4851, %v4844
  %v5146 = vpack.c.b16 %v4852, %v4845
  %v5147 = vpack.c.b16 %v4853, %v4846
  %v5148 = vpack.c.b16 %v4861, %v4854
  %v5149 = vpack.c.b16 %v4862, %v4855
  %v5150 = vpack.c.b16 %v4863, %v4856
  %v5151 = vpack.c.b16 %v4864, %v4857
  %v5152 = vpack.c.b16 %v4865, %v4858
  %v5153 = vpack.c.b16 %v4866, %v4859
  %v5154 = vpack.c.b16 %v4867, %v4860
  %v5155 = vpack.c.b16 %v4875, %v4868
  %v5156 = vpack.c.b16 %v4876, %v4869
  %v5157 = vpack.c.b16 %v4877, %v4870
  %v5158 = vpack.c.b16 %v4878, %v4871
  %v5159 = vpack.c.b16 %v4879, %v4872
  %v5160 = vpack.c.b16 %v4880, %v4873
  %v5161 = vpack.c.b16 %v4881, %v4874
  %v5162 = vpack.c.b16 %v4889, %v4882
  %v5163 = vpack.c.b16 %v4890, %v4883
  %v5164 = vpack.c.b16 %v4891, %v4884
  %v5165 = vpack.c.b16 %v4892, %v4885
  %v5166 = vpack.c.b16 %v4893, %v4886
  %v5167 = vpack.c.b16 %v4894, %v4887
  %v5168 = vpack.c.b16 %v4895, %v4888
  %v5169 = vpack.c.b16 %v4903, %v4896
  %v5170 = vpack.c.b16 %v4904, %v4897
  %v5171 = vpack.c.b16 %v4905, %v4898
  %v5172 = vpack.c.b16 %v4906, %v4899
  %v5173 = vpack.c.b16 %v4907, %v4900
  %v5174 = vpack.c.b16 %v4908, %v4901
  %v5175 = vpack.c.b16 %v4909, %v4902
  %v5176 = vpack.c.b16 %v4917, %v4910
  %v5177 = vpack.c.b16 %v4918, %v4911
  %v5178 = vpack.c.b16 %v4919, %v4912
  %v5179 = vpack.c.b16 %v4920, %v4913
  %v5180 = vpack.c.b16 %v4921, %v4914
  %v5181 = vpack.c.b16 %v4922, %v4915
  %v5182 = vpack.c.b16 %v4923, %v4916
  %v5183 = vpack.c.b16 %v4931, %v4924
  %v5184 = vpack.c.b16 %v4932, %v4925
  %v5185 = vpack.c.b16 %v4933, %v4926
  %v5186 = vpack.c.b16 %v4934, %v4927
  %v5187 = vpack.c.b16 %v4935, %v4928
  %v5188 = vpack.c.b16 %v4936, %v4929
  %v5189 = vpack.c.b16 %v4937, %v4930
  %v5190 = vpack.c.b16 %v4945, %v4938
  %v5191 = vpack.c.b16 %v4946, %v4939
  %v5192 = vpack.c.b16 %v4947, %v4940
  %v5193 = vpack.c.b16 %v4948, %v4941
  %v5194 = vpack.c.b16 %v4949, %v4942
  %v5195 = vpack.c.b16 %v4950, %v4943
  %v5196 = vpack.c.b16 %v4951, %v4944
  %v5197 = vpack.c.b16 %v4959, %v4952
  %v5198 = vpack.c.b16 %v4960, %v4953
  %v5199 = vpack.c.b16 %v4961, %v4954
  %v5200 = vpack.c.b16 %v4962, %v4955
  %v5201 = vpack.c.b16 %v4963, %v4956
  %v5202 = vpack.c.b16 %v4964, %v4957
  %v5203 = vpack.c.b16 %v4965, %v4958
  %v5204 = vpack.c.b16 %v4973, %v4966
  %v5205 = vpack.c.b16 %v4974, %v4967
  %v5206 = vpack.c.b16 %v4975, %v4968
  %v5207 = vpack.c.b16 %v4976, %v4969
  %v5208 = vpack.c.b16 %v4977, %v4970
  %v5209 = vpack.c.b16 %v4978, %v4971
  %v5210 = vpack.c.b16 %v4979, %v4972
  %v5211 = vpack.c.b16 %v4987, %v4980
  %v5212 = vpack.c.b16 %v4988, %v4981
  %v5213 = vpack.c.b16 %v4989, %v4982
  %v5214 = vpack.c.b16 %v4990, %v4983
  %v5215 = vpack.c.b16 %v4991, %v4984
  %v5216 = vpack.c.b16 %v4992, %v4985
  %v5217 = vpack.c.b16 %v4993, %v4986
  %5442 = vmatpush.bf16.msra.mxu0 %v5043
  %5443 = vmatpush.bf16.msra.mxu0 %v5036
  %5444 = vmatpush.bf16.msra.mxu0 %v5029
  %5445 = vmatpush.bf16.msra.mxu0 %v5022
  %5446 = vmatpush.bf16.msra.mxu0 %v5015
  %5447 = vmatpush.bf16.msra.mxu0 %v5008
  %5448 = vmatpush.bf16.msra.mxu0 %v5001
  %5449 = vmatpush.bf16.msra.mxu0 %v4994
  %5450 = vmatmul.bf16.gmra.mxu0 %v4274
  %v5451 = vpop.f32.mrf.mxu0
  %v5452 = vadd.f32 %v4236, %v5451
  %v5453 = vpop.f32.mrf.mxu0
  %v5454 = vadd.f32 %v4236, %v5453
  %5455 = vmatmul.bf16.gmra.mxu0 %v4278
  %v5456 = vpop.f32.mrf.mxu0
  %v5457 = vadd.f32 %v4236, %v5456
  %v5458 = vpop.f32.mrf.mxu0
  %v5459 = vadd.f32 %v4236, %v5458
  %5460 = vdwg.mxu0
  %5461 = vmatpush.bf16.msra.mxu0 %v5099
  %5462 = vmatpush.bf16.msra.mxu0 %v5092
  %5463 = vmatpush.bf16.msra.mxu0 %v5085
  %5464 = vmatpush.bf16.msra.mxu0 %v5078
  %5465 = vmatpush.bf16.msra.mxu0 %v5071
  %5466 = vmatpush.bf16.msra.mxu0 %v5064
  %5467 = vmatpush.bf16.msra.mxu0 %v5057
  %5468 = vmatpush.bf16.msra.mxu0 %v5050
  %5469 = vmatmul.bf16.gmra.mxu0 %v4275
  %v5470 = vpop.f32.mrf.mxu0
  %v5471 = vadd.f32 %v5452, %v5470
  %v5472 = vpop.f32.mrf.mxu0
  %v5473 = vadd.f32 %v5454, %v5472
  %5474 = vmatmul.bf16.gmra.mxu0 %v4279
  %v5475 = vpop.f32.mrf.mxu0
  %v5476 = vadd.f32 %v5457, %v5475
  %v5477 = vpop.f32.mrf.mxu0
  %v5478 = vadd.f32 %v5459, %v5477
  %5479 = vdwg.mxu0
  %5480 = vmatpush.bf16.msra.mxu0 %v5155
  %5481 = vmatpush.bf16.msra.mxu0 %v5148
  %5482 = vmatpush.bf16.msra.mxu0 %v5141
  %5483 = vmatpush.bf16.msra.mxu0 %v5134
  %5484 = vmatpush.bf16.msra.mxu0 %v5127
  %5485 = vmatpush.bf16.msra.mxu0 %v5120
  %5486 = vmatpush.bf16.msra.mxu0 %v5113
  %5487 = vmatpush.bf16.msra.mxu0 %v5106
  %5488 = vmatmul.bf16.gmra.mxu0 %v4276
  %v5489 = vpop.f32.mrf.mxu0
  %v5490 = vadd.f32 %v5471, %v5489
  %v5491 = vpop.f32.mrf.mxu0
  %v5492 = vadd.f32 %v5473, %v5491
  %5493 = vmatmul.bf16.gmra.mxu0 %v4280
  %v5494 = vpop.f32.mrf.mxu0
  %v5495 = vadd.f32 %v5476, %v5494
  %v5496 = vpop.f32.mrf.mxu0
  %v5497 = vadd.f32 %v5478, %v5496
  %5498 = vdwg.mxu0
  %5499 = vmatpush.bf16.msra.mxu0 %v5211
  %5500 = vmatpush.bf16.msra.mxu0 %v5204
  %5501 = vmatpush.bf16.msra.mxu0 %v5197
  %5502 = vmatpush.bf16.msra.mxu0 %v5190
  %5503 = vmatpush.bf16.msra.mxu0 %v5183
  %5504 = vmatpush.bf16.msra.mxu0 %v5176
  %5505 = vmatpush.bf16.msra.mxu0 %v5169
  %5506 = vmatpush.bf16.msra.mxu0 %v5162
  %5507 = vmatmul.bf16.gmra.mxu0 %v4277
  %v5508 = vpop.f32.mrf.mxu0
  %v5509 = vadd.f32 %v5490, %v5508
  %v5510 = vpop.f32.mrf.mxu0
  %v5511 = vadd.f32 %v5492, %v5510
  %5512 = vmatmul.bf16.gmra.mxu0 %v4281
  %v5513 = vpop.f32.mrf.mxu0
  %v5514 = vadd.f32 %v5495, %v5513
  %v5515 = vpop.f32.mrf.mxu0
  %v5516 = vadd.f32 %v5497, %v5515
  %5517 = vdwg.mxu0
  %5518 = vmatpush.bf16.msra.mxu0 %v5044
  %5519 = vmatpush.bf16.msra.mxu0 %v5037
  %5520 = vmatpush.bf16.msra.mxu0 %v5030
  %5521 = vmatpush.bf16.msra.mxu0 %v5023
  %5522 = vmatpush.bf16.msra.mxu0 %v5016
  %5523 = vmatpush.bf16.msra.mxu0 %v5009
  %5524 = vmatpush.bf16.msra.mxu0 %v5002
  %5525 = vmatpush.bf16.msra.mxu0 %v4995
  %5526 = vmatmul.bf16.gmra.mxu0 %v4274
  %v5527 = vpop.f32.mrf.mxu0
  %v5528 = vadd.f32 %v4237, %v5527
  %v5529 = vpop.f32.mrf.mxu0
  %v5530 = vadd.f32 %v4237, %v5529
  %5531 = vmatmul.bf16.gmra.mxu0 %v4278
  %v5532 = vpop.f32.mrf.mxu0
  %v5533 = vadd.f32 %v4237, %v5532
  %v5534 = vpop.f32.mrf.mxu0
  %v5535 = vadd.f32 %v4237, %v5534
  %5536 = vdwg.mxu0
  %5537 = vmatpush.bf16.msra.mxu0 %v5100
  %5538 = vmatpush.bf16.msra.mxu0 %v5093
  %5539 = vmatpush.bf16.msra.mxu0 %v5086
  %5540 = vmatpush.bf16.msra.mxu0 %v5079
  %5541 = vmatpush.bf16.msra.mxu0 %v5072
  %5542 = vmatpush.bf16.msra.mxu0 %v5065
  %5543 = vmatpush.bf16.msra.mxu0 %v5058
  %5544 = vmatpush.bf16.msra.mxu0 %v5051
  %5545 = vmatmul.bf16.gmra.mxu0 %v4275
  %v5546 = vpop.f32.mrf.mxu0
  %v5547 = vadd.f32 %v5528, %v5546
  %v5548 = vpop.f32.mrf.mxu0
  %v5549 = vadd.f32 %v5530, %v5548
  %5550 = vmatmul.bf16.gmra.mxu0 %v4279
  %v5551 = vpop.f32.mrf.mxu0
  %v5552 = vadd.f32 %v5533, %v5551
  %v5553 = vpop.f32.mrf.mxu0
  %v5554 = vadd.f32 %v5535, %v5553
  %5555 = vdwg.mxu0
  %5556 = vmatpush.bf16.msra.mxu0 %v5156
  %5557 = vmatpush.bf16.msra.mxu0 %v5149
  %5558 = vmatpush.bf16.msra.mxu0 %v5142
  %5559 = vmatpush.bf16.msra.mxu0 %v5135
  %5560 = vmatpush.bf16.msra.mxu0 %v5128
  %5561 = vmatpush.bf16.msra.mxu0 %v5121
  %5562 = vmatpush.bf16.msra.mxu0 %v5114
  %5563 = vmatpush.bf16.msra.mxu0 %v5107
  %5564 = vmatmul.bf16.gmra.mxu0 %v4276
  %v5565 = vpop.f32.mrf.mxu0
  %v5566 = vadd.f32 %v5547, %v5565
  %v5567 = vpop.f32.mrf.mxu0
  %v5568 = vadd.f32 %v5549, %v5567
  %5569 = vmatmul.bf16.gmra.mxu0 %v4280
  %v5570 = vpop.f32.mrf.mxu0
  %v5571 = vadd.f32 %v5552, %v5570
  %v5572 = vpop.f32.mrf.mxu0
  %v5573 = vadd.f32 %v5554, %v5572
  %5574 = vdwg.mxu0
  %5575 = vmatpush.bf16.msra.mxu0 %v5212
  %5576 = vmatpush.bf16.msra.mxu0 %v5205
  %5577 = vmatpush.bf16.msra.mxu0 %v5198
  %5578 = vmatpush.bf16.msra.mxu0 %v5191
  %5579 = vmatpush.bf16.msra.mxu0 %v5184
  %5580 = vmatpush.bf16.msra.mxu0 %v5177
  %5581 = vmatpush.bf16.msra.mxu0 %v5170
  %5582 = vmatpush.bf16.msra.mxu0 %v5163
  %5583 = vmatmul.bf16.gmra.mxu0 %v4277
  %v5584 = vpop.f32.mrf.mxu0
  %v5585 = vadd.f32 %v5566, %v5584
  %v5586 = vpop.f32.mrf.mxu0
  %v5587 = vadd.f32 %v5568, %v5586
  %5588 = vmatmul.bf16.gmra.mxu0 %v4281
  %v5589 = vpop.f32.mrf.mxu0
  %v5590 = vadd.f32 %v5571, %v5589
  %v5591 = vpop.f32.mrf.mxu0
  %v5592 = vadd.f32 %v5573, %v5591
  %5593 = vdwg.mxu0
  %5594 = vmatpush.bf16.msra.mxu0 %v5045
  %5595 = vmatpush.bf16.msra.mxu0 %v5038
  %5596 = vmatpush.bf16.msra.mxu0 %v5031
  %5597 = vmatpush.bf16.msra.mxu0 %v5024
  %5598 = vmatpush.bf16.msra.mxu0 %v5017
  %5599 = vmatpush.bf16.msra.mxu0 %v5010
  %5600 = vmatpush.bf16.msra.mxu0 %v5003
  %5601 = vmatpush.bf16.msra.mxu0 %v4996
  %5602 = vmatmul.bf16.gmra.mxu0 %v4274
  %v5603 = vpop.f32.mrf.mxu0
  %v5604 = vadd.f32 %v4238, %v5603
  %v5605 = vpop.f32.mrf.mxu0
  %v5606 = vadd.f32 %v4238, %v5605
  %5607 = vmatmul.bf16.gmra.mxu0 %v4278
  %v5608 = vpop.f32.mrf.mxu0
  %v5609 = vadd.f32 %v4238, %v5608
  %v5610 = vpop.f32.mrf.mxu0
  %v5611 = vadd.f32 %v4238, %v5610
  %5612 = vdwg.mxu0
  %5613 = vmatpush.bf16.msra.mxu0 %v5101
  %5614 = vmatpush.bf16.msra.mxu0 %v5094
  %5615 = vmatpush.bf16.msra.mxu0 %v5087
  %5616 = vmatpush.bf16.msra.mxu0 %v5080
  %5617 = vmatpush.bf16.msra.mxu0 %v5073
  %5618 = vmatpush.bf16.msra.mxu0 %v5066
  %5619 = vmatpush.bf16.msra.mxu0 %v5059
  %5620 = vmatpush.bf16.msra.mxu0 %v5052
  %5621 = vmatmul.bf16.gmra.mxu0 %v4275
  %v5622 = vpop.f32.mrf.mxu0
  %v5623 = vadd.f32 %v5604, %v5622
  %v5624 = vpop.f32.mrf.mxu0
  %v5625 = vadd.f32 %v5606, %v5624
  %5626 = vmatmul.bf16.gmra.mxu0 %v4279
  %v5627 = vpop.f32.mrf.mxu0
  %v5628 = vadd.f32 %v5609, %v5627
  %v5629 = vpop.f32.mrf.mxu0
  %v5630 = vadd.f32 %v5611, %v5629
  %5631 = vdwg.mxu0
  %5632 = vmatpush.bf16.msra.mxu0 %v5157
  %5633 = vmatpush.bf16.msra.mxu0 %v5150
  %5634 = vmatpush.bf16.msra.mxu0 %v5143
  %5635 = vmatpush.bf16.msra.mxu0 %v5136
  %5636 = vmatpush.bf16.msra.mxu0 %v5129
  %5637 = vmatpush.bf16.msra.mxu0 %v5122
  %5638 = vmatpush.bf16.msra.mxu0 %v5115
  %5639 = vmatpush.bf16.msra.mxu0 %v5108
  %5640 = vmatmul.bf16.gmra.mxu0 %v4276
  %v5641 = vpop.f32.mrf.mxu0
  %v5642 = vadd.f32 %v5623, %v5641
  %v5643 = vpop.f32.mrf.mxu0
  %v5644 = vadd.f32 %v5625, %v5643
  %5645 = vmatmul.bf16.gmra.mxu0 %v4280
  %v5646 = vpop.f32.mrf.mxu0
  %v5647 = vadd.f32 %v5628, %v5646
  %v5648 = vpop.f32.mrf.mxu0
  %v5649 = vadd.f32 %v5630, %v5648
  %5650 = vdwg.mxu0
  %5651 = vmatpush.bf16.msra.mxu0 %v5213
  %5652 = vmatpush.bf16.msra.mxu0 %v5206
  %5653 = vmatpush.bf16.msra.mxu0 %v5199
  %5654 = vmatpush.bf16.msra.mxu0 %v5192
  %5655 = vmatpush.bf16.msra.mxu0 %v5185
  %5656 = vmatpush.bf16.msra.mxu0 %v5178
  %5657 = vmatpush.bf16.msra.mxu0 %v5171
  %5658 = vmatpush.bf16.msra.mxu0 %v5164
  %5659 = vmatmul.bf16.gmra.mxu0 %v4277
  %v5660 = vpop.f32.mrf.mxu0
  %v5661 = vadd.f32 %v5642, %v5660
  %v5662 = vpop.f32.mrf.mxu0
  %v5663 = vadd.f32 %v5644, %v5662
  %5664 = vmatmul.bf16.gmra.mxu0 %v4281
  %v5665 = vpop.f32.mrf.mxu0
  %v5666 = vadd.f32 %v5647, %v5665
  %v5667 = vpop.f32.mrf.mxu0
  %v5668 = vadd.f32 %v5649, %v5667
  %5669 = vdwg.mxu0
  %5670 = vmatpush.bf16.msra.mxu0 %v5046
  %5671 = vmatpush.bf16.msra.mxu0 %v5039
  %5672 = vmatpush.bf16.msra.mxu0 %v5032
  %5673 = vmatpush.bf16.msra.mxu0 %v5025
  %5674 = vmatpush.bf16.msra.mxu0 %v5018
  %5675 = vmatpush.bf16.msra.mxu0 %v5011
  %5676 = vmatpush.bf16.msra.mxu0 %v5004
  %5677 = vmatpush.bf16.msra.mxu0 %v4997
  %5678 = vmatmul.bf16.gmra.mxu0 %v4274
  %v5679 = vpop.f32.mrf.mxu0
  %v5680 = vadd.f32 %v4239, %v5679
  %v5681 = vpop.f32.mrf.mxu0
  %v5682 = vadd.f32 %v4239, %v5681
  %5683 = vmatmul.bf16.gmra.mxu0 %v4278
  %v5684 = vpop.f32.mrf.mxu0
  %v5685 = vadd.f32 %v4239, %v5684
  %v5686 = vpop.f32.mrf.mxu0
  %v5687 = vadd.f32 %v4239, %v5686
  %5688 = vdwg.mxu0
  %5689 = vmatpush.bf16.msra.mxu0 %v5102
  %5690 = vmatpush.bf16.msra.mxu0 %v5095
  %5691 = vmatpush.bf16.msra.mxu0 %v5088
  %5692 = vmatpush.bf16.msra.mxu0 %v5081
  %5693 = vmatpush.bf16.msra.mxu0 %v5074
  %5694 = vmatpush.bf16.msra.mxu0 %v5067
  %5695 = vmatpush.bf16.msra.mxu0 %v5060
  %5696 = vmatpush.bf16.msra.mxu0 %v5053
  %5697 = vmatmul.bf16.gmra.mxu0 %v4275
  %v5698 = vpop.f32.mrf.mxu0
  %v5699 = vadd.f32 %v5680, %v5698
  %v5700 = vpop.f32.mrf.mxu0
  %v5701 = vadd.f32 %v5682, %v5700
  %5702 = vmatmul.bf16.gmra.mxu0 %v4279
  %v5703 = vpop.f32.mrf.mxu0
  %v5704 = vadd.f32 %v5685, %v5703
  %v5705 = vpop.f32.mrf.mxu0
  %v5706 = vadd.f32 %v5687, %v5705
  %5707 = vdwg.mxu0
  %5708 = vmatpush.bf16.msra.mxu0 %v5158
  %5709 = vmatpush.bf16.msra.mxu0 %v5151
  %5710 = vmatpush.bf16.msra.mxu0 %v5144
  %5711 = vmatpush.bf16.msra.mxu0 %v5137
  %5712 = vmatpush.bf16.msra.mxu0 %v5130
  %5713 = vmatpush.bf16.msra.mxu0 %v5123
  %5714 = vmatpush.bf16.msra.mxu0 %v5116
  %5715 = vmatpush.bf16.msra.mxu0 %v5109
  %5716 = vmatmul.bf16.gmra.mxu0 %v4276
  %v5717 = vpop.f32.mrf.mxu0
  %v5718 = vadd.f32 %v5699, %v5717
  %v5719 = vpop.f32.mrf.mxu0
  %v5720 = vadd.f32 %v5701, %v5719
  %5721 = vmatmul.bf16.gmra.mxu0 %v4280
  %v5722 = vpop.f32.mrf.mxu0
  %v5723 = vadd.f32 %v5704, %v5722
  %v5724 = vpop.f32.mrf.mxu0
  %v5725 = vadd.f32 %v5706, %v5724
  %5726 = vdwg.mxu0
  %5727 = vmatpush.bf16.msra.mxu0 %v5214
  %5728 = vmatpush.bf16.msra.mxu0 %v5207
  %5729 = vmatpush.bf16.msra.mxu0 %v5200
  %5730 = vmatpush.bf16.msra.mxu0 %v5193
  %5731 = vmatpush.bf16.msra.mxu0 %v5186
  %5732 = vmatpush.bf16.msra.mxu0 %v5179
  %5733 = vmatpush.bf16.msra.mxu0 %v5172
  %5734 = vmatpush.bf16.msra.mxu0 %v5165
  %5735 = vmatmul.bf16.gmra.mxu0 %v4277
  %v5736 = vpop.f32.mrf.mxu0
  %v5737 = vadd.f32 %v5718, %v5736
  %v5738 = vpop.f32.mrf.mxu0
  %v5739 = vadd.f32 %v5720, %v5738
  %5740 = vmatmul.bf16.gmra.mxu0 %v4281
  %v5741 = vpop.f32.mrf.mxu0
  %v5742 = vadd.f32 %v5723, %v5741
  %v5743 = vpop.f32.mrf.mxu0
  %v5744 = vadd.f32 %v5725, %v5743
  %5745 = vdwg.mxu0
  %5746 = vmatpush.bf16.msra.mxu0 %v5047
  %5747 = vmatpush.bf16.msra.mxu0 %v5040
  %5748 = vmatpush.bf16.msra.mxu0 %v5033
  %5749 = vmatpush.bf16.msra.mxu0 %v5026
  %5750 = vmatpush.bf16.msra.mxu0 %v5019
  %5751 = vmatpush.bf16.msra.mxu0 %v5012
  %5752 = vmatpush.bf16.msra.mxu0 %v5005
  %5753 = vmatpush.bf16.msra.mxu0 %v4998
  %5754 = vmatmul.bf16.gmra.mxu0 %v4274
  %v5755 = vpop.f32.mrf.mxu0
  %v5756 = vadd.f32 %v4240, %v5755
  %v5757 = vpop.f32.mrf.mxu0
  %v5758 = vadd.f32 %v4240, %v5757
  %5759 = vmatmul.bf16.gmra.mxu0 %v4278
  %v5760 = vpop.f32.mrf.mxu0
  %v5761 = vadd.f32 %v4240, %v5760
  %v5762 = vpop.f32.mrf.mxu0
  %v5763 = vadd.f32 %v4240, %v5762
  %5764 = vdwg.mxu0
  %5765 = vmatpush.bf16.msra.mxu0 %v5103
  %5766 = vmatpush.bf16.msra.mxu0 %v5096
  %5767 = vmatpush.bf16.msra.mxu0 %v5089
  %5768 = vmatpush.bf16.msra.mxu0 %v5082
  %5769 = vmatpush.bf16.msra.mxu0 %v5075
  %5770 = vmatpush.bf16.msra.mxu0 %v5068
  %5771 = vmatpush.bf16.msra.mxu0 %v5061
  %5772 = vmatpush.bf16.msra.mxu0 %v5054
  %5773 = vmatmul.bf16.gmra.mxu0 %v4275
  %v5774 = vpop.f32.mrf.mxu0
  %v5775 = vadd.f32 %v5756, %v5774
  %v5776 = vpop.f32.mrf.mxu0
  %v5777 = vadd.f32 %v5758, %v5776
  %5778 = vmatmul.bf16.gmra.mxu0 %v4279
  %v5779 = vpop.f32.mrf.mxu0
  %v5780 = vadd.f32 %v5761, %v5779
  %v5781 = vpop.f32.mrf.mxu0
  %v5782 = vadd.f32 %v5763, %v5781
  %5783 = vdwg.mxu0
  %5784 = vmatpush.bf16.msra.mxu0 %v5159
  %5785 = vmatpush.bf16.msra.mxu0 %v5152
  %5786 = vmatpush.bf16.msra.mxu0 %v5145
  %5787 = vmatpush.bf16.msra.mxu0 %v5138
  %5788 = vmatpush.bf16.msra.mxu0 %v5131
  %5789 = vmatpush.bf16.msra.mxu0 %v5124
  %5790 = vmatpush.bf16.msra.mxu0 %v5117
  %5791 = vmatpush.bf16.msra.mxu0 %v5110
  %5792 = vmatmul.bf16.gmra.mxu0 %v4276
  %v5793 = vpop.f32.mrf.mxu0
  %v5794 = vadd.f32 %v5775, %v5793
  %v5795 = vpop.f32.mrf.mxu0
  %v5796 = vadd.f32 %v5777, %v5795
  %5797 = vmatmul.bf16.gmra.mxu0 %v4280
  %v5798 = vpop.f32.mrf.mxu0
  %v5799 = vadd.f32 %v5780, %v5798
  %v5800 = vpop.f32.mrf.mxu0
  %v5801 = vadd.f32 %v5782, %v5800
  %5802 = vdwg.mxu0
  %5803 = vmatpush.bf16.msra.mxu0 %v5215
  %5804 = vmatpush.bf16.msra.mxu0 %v5208
  %5805 = vmatpush.bf16.msra.mxu0 %v5201
  %5806 = vmatpush.bf16.msra.mxu0 %v5194
  %5807 = vmatpush.bf16.msra.mxu0 %v5187
  %5808 = vmatpush.bf16.msra.mxu0 %v5180
  %5809 = vmatpush.bf16.msra.mxu0 %v5173
  %5810 = vmatpush.bf16.msra.mxu0 %v5166
  %5811 = vmatmul.bf16.gmra.mxu0 %v4277
  %v5812 = vpop.f32.mrf.mxu0
  %v5813 = vadd.f32 %v5794, %v5812
  %v5814 = vpop.f32.mrf.mxu0
  %v5815 = vadd.f32 %v5796, %v5814
  %5816 = vmatmul.bf16.gmra.mxu0 %v4281
  %v5817 = vpop.f32.mrf.mxu0
  %v5818 = vadd.f32 %v5799, %v5817
  %v5819 = vpop.f32.mrf.mxu0
  %v5820 = vadd.f32 %v5801, %v5819
  %5821 = vdwg.mxu0
  %5822 = vmatpush.bf16.msra.mxu0 %v5048
  %5823 = vmatpush.bf16.msra.mxu0 %v5041
  %5824 = vmatpush.bf16.msra.mxu0 %v5034
  %5825 = vmatpush.bf16.msra.mxu0 %v5027
  %5826 = vmatpush.bf16.msra.mxu0 %v5020
  %5827 = vmatpush.bf16.msra.mxu0 %v5013
  %5828 = vmatpush.bf16.msra.mxu0 %v5006
  %5829 = vmatpush.bf16.msra.mxu0 %v4999
  %5830 = vmatmul.bf16.gmra.mxu0 %v4274
  %v5831 = vpop.f32.mrf.mxu0
  %v5832 = vadd.f32 %v4241, %v5831
  %v5833 = vpop.f32.mrf.mxu0
  %v5834 = vadd.f32 %v4241, %v5833
  %5835 = vmatmul.bf16.gmra.mxu0 %v4278
  %v5836 = vpop.f32.mrf.mxu0
  %v5837 = vadd.f32 %v4241, %v5836
  %v5838 = vpop.f32.mrf.mxu0
  %v5839 = vadd.f32 %v4241, %v5838
  %5840 = vdwg.mxu0
  %5841 = vmatpush.bf16.msra.mxu0 %v5104
  %5842 = vmatpush.bf16.msra.mxu0 %v5097
  %5843 = vmatpush.bf16.msra.mxu0 %v5090
  %5844 = vmatpush.bf16.msra.mxu0 %v5083
  %5845 = vmatpush.bf16.msra.mxu0 %v5076
  %5846 = vmatpush.bf16.msra.mxu0 %v5069
  %5847 = vmatpush.bf16.msra.mxu0 %v5062
  %5848 = vmatpush.bf16.msra.mxu0 %v5055
  %5849 = vmatmul.bf16.gmra.mxu0 %v4275
  %v5850 = vpop.f32.mrf.mxu0
  %v5851 = vadd.f32 %v5832, %v5850
  %v5852 = vpop.f32.mrf.mxu0
  %v5853 = vadd.f32 %v5834, %v5852
  %5854 = vmatmul.bf16.gmra.mxu0 %v4279
  %v5855 = vpop.f32.mrf.mxu0
  %v5856 = vadd.f32 %v5837, %v5855
  %v5857 = vpop.f32.mrf.mxu0
  %v5858 = vadd.f32 %v5839, %v5857
  %5859 = vdwg.mxu0
  %5860 = vmatpush.bf16.msra.mxu0 %v5160
  %5861 = vmatpush.bf16.msra.mxu0 %v5153
  %5862 = vmatpush.bf16.msra.mxu0 %v5146
  %5863 = vmatpush.bf16.msra.mxu0 %v5139
  %5864 = vmatpush.bf16.msra.mxu0 %v5132
  %5865 = vmatpush.bf16.msra.mxu0 %v5125
  %5866 = vmatpush.bf16.msra.mxu0 %v5118
  %5867 = vmatpush.bf16.msra.mxu0 %v5111
  %5868 = vmatmul.bf16.gmra.mxu0 %v4276
  %v5869 = vpop.f32.mrf.mxu0
  %v5870 = vadd.f32 %v5851, %v5869
  %v5871 = vpop.f32.mrf.mxu0
  %v5872 = vadd.f32 %v5853, %v5871
  %5873 = vmatmul.bf16.gmra.mxu0 %v4280
  %v5874 = vpop.f32.mrf.mxu0
  %v5875 = vadd.f32 %v5856, %v5874
  %v5876 = vpop.f32.mrf.mxu0
  %v5877 = vadd.f32 %v5858, %v5876
  %5878 = vdwg.mxu0
  %5879 = vmatpush.bf16.msra.mxu0 %v5216
  %5880 = vmatpush.bf16.msra.mxu0 %v5209
  %5881 = vmatpush.bf16.msra.mxu0 %v5202
  %5882 = vmatpush.bf16.msra.mxu0 %v5195
  %5883 = vmatpush.bf16.msra.mxu0 %v5188
  %5884 = vmatpush.bf16.msra.mxu0 %v5181
  %5885 = vmatpush.bf16.msra.mxu0 %v5174
  %5886 = vmatpush.bf16.msra.mxu0 %v5167
  %5887 = vmatmul.bf16.gmra.mxu0 %v4277
  %v5888 = vpop.f32.mrf.mxu0
  %v5889 = vadd.f32 %v5870, %v5888
  %v5890 = vpop.f32.mrf.mxu0
  %v5891 = vadd.f32 %v5872, %v5890
  %5892 = vmatmul.bf16.gmra.mxu0 %v4281
  %v5893 = vpop.f32.mrf.mxu0
  %v5894 = vadd.f32 %v5875, %v5893
  %v5895 = vpop.f32.mrf.mxu0
  %v5896 = vadd.f32 %v5877, %v5895
  %5897 = vdwg.mxu0
  %5898 = vmatpush.bf16.msra.mxu0 %v5049
  %5899 = vmatpush.bf16.msra.mxu0 %v5042
  %5900 = vmatpush.bf16.msra.mxu0 %v5035
  %5901 = vmatpush.bf16.msra.mxu0 %v5028
  %5902 = vmatpush.bf16.msra.mxu0 %v5021
  %5903 = vmatpush.bf16.msra.mxu0 %v5014
  %5904 = vmatpush.bf16.msra.mxu0 %v5007
  %5905 = vmatpush.bf16.msra.mxu0 %v5000
  %5906 = vmatmul.bf16.gmra.mxu0 %v4274
  %v5907 = vpop.f32.mrf.mxu0
  %v5908 = vadd.f32 %v4242, %v5907
  %v5909 = vpop.f32.mrf.mxu0
  %v5910 = vadd.f32 %v4242, %v5909
  %5911 = vmatmul.bf16.gmra.mxu0 %v4278
  %v5912 = vpop.f32.mrf.mxu0
  %v5913 = vadd.f32 %v4242, %v5912
  %v5914 = vpop.f32.mrf.mxu0
  %v5915 = vadd.f32 %v4242, %v5914
  %5916 = vdwg.mxu0
  %5917 = vmatpush.bf16.msra.mxu0 %v5105
  %5918 = vmatpush.bf16.msra.mxu0 %v5098
  %5919 = vmatpush.bf16.msra.mxu0 %v5091
  %5920 = vmatpush.bf16.msra.mxu0 %v5084
  %5921 = vmatpush.bf16.msra.mxu0 %v5077
  %5922 = vmatpush.bf16.msra.mxu0 %v5070
  %5923 = vmatpush.bf16.msra.mxu0 %v5063
  %5924 = vmatpush.bf16.msra.mxu0 %v5056
  %5925 = vmatmul.bf16.gmra.mxu0 %v4275
  %v5926 = vpop.f32.mrf.mxu0
  %v5927 = vadd.f32 %v5908, %v5926
  %v5928 = vpop.f32.mrf.mxu0
  %v5929 = vadd.f32 %v5910, %v5928
  %5930 = vmatmul.bf16.gmra.mxu0 %v4279
  %v5931 = vpop.f32.mrf.mxu0
  %v5932 = vadd.f32 %v5913, %v5931
  %v5933 = vpop.f32.mrf.mxu0
  %v5934 = vadd.f32 %v5915, %v5933
  %5935 = vdwg.mxu0
  %5936 = vmatpush.bf16.msra.mxu0 %v5161
  %5937 = vmatpush.bf16.msra.mxu0 %v5154
  %5938 = vmatpush.bf16.msra.mxu0 %v5147
  %5939 = vmatpush.bf16.msra.mxu0 %v5140
  %5940 = vmatpush.bf16.msra.mxu0 %v5133
  %5941 = vmatpush.bf16.msra.mxu0 %v5126
  %5942 = vmatpush.bf16.msra.mxu0 %v5119
  %5943 = vmatpush.bf16.msra.mxu0 %v5112
  %5944 = vmatmul.bf16.gmra.mxu0 %v4276
  %v5945 = vpop.f32.mrf.mxu0
  %v5946 = vadd.f32 %v5927, %v5945
  %v5947 = vpop.f32.mrf.mxu0
  %v5948 = vadd.f32 %v5929, %v5947
  %5949 = vmatmul.bf16.gmra.mxu0 %v4280
  %v5950 = vpop.f32.mrf.mxu0
  %v5951 = vadd.f32 %v5932, %v5950
  %v5952 = vpop.f32.mrf.mxu0
  %v5953 = vadd.f32 %v5934, %v5952
  %5954 = vdwg.mxu0
  %5955 = vmatpush.bf16.msra.mxu0 %v5217
  %5956 = vmatpush.bf16.msra.mxu0 %v5210
  %5957 = vmatpush.bf16.msra.mxu0 %v5203
  %5958 = vmatpush.bf16.msra.mxu0 %v5196
  %5959 = vmatpush.bf16.msra.mxu0 %v5189
  %5960 = vmatpush.bf16.msra.mxu0 %v5182
  %5961 = vmatpush.bf16.msra.mxu0 %v5175
  %5962 = vmatpush.bf16.msra.mxu0 %v5168
  %5963 = vmatmul.bf16.gmra.mxu0 %v4277
  %v5964 = vpop.f32.mrf.mxu0
  %v5965 = vadd.f32 %v5946, %v5964
  %v5966 = vpop.f32.mrf.mxu0
  %v5967 = vadd.f32 %v5948, %v5966
  %5968 = vmatmul.bf16.gmra.mxu0 %v4281
  %v5969 = vpop.f32.mrf.mxu0
  %v5970 = vadd.f32 %v5951, %v5969
  %v5971 = vpop.f32.mrf.mxu0
  %v5972 = vadd.f32 %v5953, %v5971
  %5973 = vdwg.mxu0
  %v5974 = vld [vmem:[%s9] sm:$0xff]
  %v5975 = vld [vmem:[%s9 + $0x8] sm:$0xff]
  %v5976 = vld [vmem:[%s9 + $0x10] sm:$0xff]
  %v5977 = vld [vmem:[%s9 + $0x18] sm:$0xf]
  %v5978 = vld [vmem:[%s9 + $0x1c] sm:$0xff]
  %v5979 = vld [vmem:[%s9 + $0x24] sm:$0xff]
  %v5980 = vld [vmem:[%s9 + $0x2c] sm:$0xff]
  %v5981 = vld [vmem:[%s9 + $0x34] sm:$0xf]
  %v5982 = vld [vmem:[%s9 + $0x38] sm:$0xff]
  %v5983 = vld [vmem:[%s9 + $0x40] sm:$0xff]
  %v5984 = vld [vmem:[%s9 + $0x48] sm:$0xff]
  %v5985 = vld [vmem:[%s9 + $0x50] sm:$0xf]
  %v5986 = vld [vmem:[%s9 + $0x54] sm:$0xff]
  %v5987 = vld [vmem:[%s9 + $0x5c] sm:$0xff]
  %v5988 = vld [vmem:[%s9 + $0x64] sm:$0xff]
  %v5989 = vld [vmem:[%s9 + $0x6c] sm:$0xf]
  %v5990 = vld [vmem:[%s9 + $0x70] sm:$0xff]
  %v5991 = vld [vmem:[%s9 + $0x78] sm:$0xff]
  %v5992 = vld [vmem:[%s9 + $0x80] sm:$0xff]
  %v5993 = vld [vmem:[%s9 + $0x88] sm:$0xf]
  %v5994 = vld [vmem:[%s9 + $0x8c] sm:$0xff]
  %v5995 = vld [vmem:[%s9 + $0x94] sm:$0xff]
  %v5996 = vld [vmem:[%s9 + $0x9c] sm:$0xff]
  %v5997 = vld [vmem:[%s9 + $0xa4] sm:$0xf]
  %v5998 = vld [vmem:[%s9 + $0xa8] sm:$0xff]
  %v5999 = vld [vmem:[%s9 + $0xb0] sm:$0xff]
  %v6000 = vld [vmem:[%s9 + $0xb8] sm:$0xff]
  %v6001 = vld [vmem:[%s9 + $0xc0] sm:$0xf]
  %v6002 = vld [vmem:[%s9 + $0xc4] sm:$0xff]
  %v6003 = vld [vmem:[%s9 + $0xcc] sm:$0xff]
  %v6004 = vld [vmem:[%s9 + $0xd4] sm:$0xff]
  %v6005 = vld [vmem:[%s9 + $0xdc] sm:$0xf]
  %v6006 = vld [vmem:[%s9 + $0xe0] sm:$0xff]
  %v6007 = vld [vmem:[%s9 + $0xe8] sm:$0xff]
  %v6008 = vld [vmem:[%s9 + $0xf0] sm:$0xff]
  %v6009 = vld [vmem:[%s9 + $0xf8] sm:$0xf]
  %v6010 = vld [vmem:[%s9 + $0xfc] sm:$0xff]
  %v6011 = vld [vmem:[%s9 + $0x104] sm:$0xff]
  %v6012 = vld [vmem:[%s9 + $0x10c] sm:$0xff]
  %v6013 = vld [vmem:[%s9 + $0x114] sm:$0xf]
  %v6014 = vld [vmem:[%s9 + $0x118] sm:$0xff]
  %v6015 = vld [vmem:[%s9 + $0x120] sm:$0xff]
  %v6016 = vld [vmem:[%s9 + $0x128] sm:$0xff]
  %v6017 = vld [vmem:[%s9 + $0x130] sm:$0xf]
  %v6018 = vld [vmem:[%s9 + $0x134] sm:$0xff]
  %v6019 = vld [vmem:[%s9 + $0x13c] sm:$0xff]
  %v6020 = vld [vmem:[%s9 + $0x144] sm:$0xff]
  %v6021 = vld [vmem:[%s9 + $0x14c] sm:$0xf]
  %v6022 = vld [vmem:[%s9 + $0x150] sm:$0xff]
  %v6023 = vld [vmem:[%s9 + $0x158] sm:$0xff]
  %v6024 = vld [vmem:[%s9 + $0x160] sm:$0xff]
  %v6025 = vld [vmem:[%s9 + $0x168] sm:$0xf]
  %v6026 = vld [vmem:[%s9 + $0x16c] sm:$0xff]
  %v6027 = vld [vmem:[%s9 + $0x174] sm:$0xff]
  %v6028 = vld [vmem:[%s9 + $0x17c] sm:$0xff]
  %v6029 = vld [vmem:[%s9 + $0x184] sm:$0xf]
  %v6030 = vld [vmem:[%s9 + $0x188] sm:$0xff]
  %v6031 = vld [vmem:[%s9 + $0x190] sm:$0xff]
  %v6032 = vld [vmem:[%s9 + $0x198] sm:$0xff]
  %v6033 = vld [vmem:[%s9 + $0x1a0] sm:$0xf]
  %v6034 = vld [vmem:[%s9 + $0x1a4] sm:$0xff]
  %v6035 = vld [vmem:[%s9 + $0x1ac] sm:$0xff]
  %v6036 = vld [vmem:[%s9 + $0x1b4] sm:$0xff]
  %v6037 = vld [vmem:[%s9 + $0x1bc] sm:$0xf]
  %v6038 = vld [vmem:[%s9 + $0x1c0] sm:$0xff]
  %v6039 = vld [vmem:[%s9 + $0x1c8] sm:$0xff]
  %v6040 = vld [vmem:[%s9 + $0x1d0] sm:$0xff]
  %v6041 = vld [vmem:[%s9 + $0x1d8] sm:$0xf]
  %v6042 = vld [vmem:[%s9 + $0x1dc] sm:$0xff]
  %v6043 = vld [vmem:[%s9 + $0x1e4] sm:$0xff]
  %v6044 = vld [vmem:[%s9 + $0x1ec] sm:$0xff]
  %v6045 = vld [vmem:[%s9 + $0x1f4] sm:$0xf]
  %v6046 = vld [vmem:[%s9 + $0x1f8] sm:$0xff]
  %v6047 = vld [vmem:[%s9 + $0x200] sm:$0xff]
  %v6048 = vld [vmem:[%s9 + $0x208] sm:$0xff]
  %v6049 = vld [vmem:[%s9 + $0x210] sm:$0xf]
  %v6050 = vld [vmem:[%s9 + $0x214] sm:$0xff]
  %v6051 = vld [vmem:[%s9 + $0x21c] sm:$0xff]
  %v6052 = vld [vmem:[%s9 + $0x224] sm:$0xff]
  %v6053 = vld [vmem:[%s9 + $0x22c] sm:$0xf]
  %v6054 = vld [vmem:[%s9 + $0x230] sm:$0xff]
  %v6055 = vld [vmem:[%s9 + $0x238] sm:$0xff]
  %v6056 = vld [vmem:[%s9 + $0x240] sm:$0xff]
  %v6057 = vld [vmem:[%s9 + $0x248] sm:$0xf]
  %v6058 = vld [vmem:[%s9 + $0x24c] sm:$0xff]
  %v6059 = vld [vmem:[%s9 + $0x254] sm:$0xff]
  %v6060 = vld [vmem:[%s9 + $0x25c] sm:$0xff]
  %v6061 = vld [vmem:[%s9 + $0x264] sm:$0xf]
  %v6062 = vld [vmem:[%s9 + $0x268] sm:$0xff]
  %v6063 = vld [vmem:[%s9 + $0x270] sm:$0xff]
  %v6064 = vld [vmem:[%s9 + $0x278] sm:$0xff]
  %v6065 = vld [vmem:[%s9 + $0x280] sm:$0xf]
  %v6066 = vld [vmem:[%s9 + $0x284] sm:$0xff]
  %v6067 = vld [vmem:[%s9 + $0x28c] sm:$0xff]
  %v6068 = vld [vmem:[%s9 + $0x294] sm:$0xff]
  %v6069 = vld [vmem:[%s9 + $0x29c] sm:$0xf]
  %v6070 = vld [vmem:[%s9 + $0x2a0] sm:$0xff]
  %v6071 = vld [vmem:[%s9 + $0x2a8] sm:$0xff]
  %v6072 = vld [vmem:[%s9 + $0x2b0] sm:$0xff]
  %v6073 = vld [vmem:[%s9 + $0x2b8] sm:$0xf]
  %v6074 = vld [vmem:[%s9 + $0x2bc] sm:$0xff]
  %v6075 = vld [vmem:[%s9 + $0x2c4] sm:$0xff]
  %v6076 = vld [vmem:[%s9 + $0x2cc] sm:$0xff]
  %v6077 = vld [vmem:[%s9 + $0x2d4] sm:$0xf]
  %v6078 = vld [vmem:[%s9 + $0x2d8] sm:$0xff]
  %v6079 = vld [vmem:[%s9 + $0x2e0] sm:$0xff]
  %v6080 = vld [vmem:[%s9 + $0x2e8] sm:$0xff]
  %v6081 = vld [vmem:[%s9 + $0x2f0] sm:$0xf]
  %v6082 = vld [vmem:[%s9 + $0x2f4] sm:$0xff]
  %v6083 = vld [vmem:[%s9 + $0x2fc] sm:$0xff]
  %v6084 = vld [vmem:[%s9 + $0x304] sm:$0xff]
  %v6085 = vld [vmem:[%s9 + $0x30c] sm:$0xf]
  %v6086 = vld [vmem:[%s10] sm:$0xff]
  %v6088 = vperm.slane %v6086, 0
  %v6089 = vperm.slane %v6086, 1
  %v6090 = vperm.slane %v6086, 2
  %v6091 = vperm.slane %v6086, 3
  %v6092 = vperm.slane %v6086, 4
  %v6093 = vperm.slane %v6086, 5
  %v6094 = vperm.slane %v6086, 6
  %v6214 = vunpack.c.l.b16 %v5974
  %v6215 = vunpack.c.h.b16 %v5974
  %v6216 = vunpack.c.l.b16 %v5975
  %v6217 = vunpack.c.h.b16 %v5975
  %v6218 = vunpack.c.l.b16 %v5976
  %v6219 = vunpack.c.h.b16 %v5976
  %v6220 = vunpack.c.l.b16 %v5977
  %v6221 = vunpack.c.l.b16 %v5978
  %v6222 = vunpack.c.h.b16 %v5978
  %v6223 = vunpack.c.l.b16 %v5979
  %v6224 = vunpack.c.h.b16 %v5979
  %v6225 = vunpack.c.l.b16 %v5980
  %v6226 = vunpack.c.h.b16 %v5980
  %v6227 = vunpack.c.l.b16 %v5981
  %v6228 = vunpack.c.l.b16 %v5982
  %v6229 = vunpack.c.h.b16 %v5982
  %v6230 = vunpack.c.l.b16 %v5983
  %v6231 = vunpack.c.h.b16 %v5983
  %v6232 = vunpack.c.l.b16 %v5984
  %v6233 = vunpack.c.h.b16 %v5984
  %v6234 = vunpack.c.l.b16 %v5985
  %v6235 = vunpack.c.l.b16 %v5986
  %v6236 = vunpack.c.h.b16 %v5986
  %v6237 = vunpack.c.l.b16 %v5987
  %v6238 = vunpack.c.h.b16 %v5987
  %v6239 = vunpack.c.l.b16 %v5988
  %v6240 = vunpack.c.h.b16 %v5988
  %v6241 = vunpack.c.l.b16 %v5989
  %v6242 = vunpack.c.l.b16 %v5990
  %v6243 = vunpack.c.h.b16 %v5990
  %v6244 = vunpack.c.l.b16 %v5991
  %v6245 = vunpack.c.h.b16 %v5991
  %v6246 = vunpack.c.l.b16 %v5992
  %v6247 = vunpack.c.h.b16 %v5992
  %v6248 = vunpack.c.l.b16 %v5993
  %v6249 = vunpack.c.l.b16 %v5994
  %v6250 = vunpack.c.h.b16 %v5994
  %v6251 = vunpack.c.l.b16 %v5995
  %v6252 = vunpack.c.h.b16 %v5995
  %v6253 = vunpack.c.l.b16 %v5996
  %v6254 = vunpack.c.h.b16 %v5996
  %v6255 = vunpack.c.l.b16 %v5997
  %v6256 = vunpack.c.l.b16 %v5998
  %v6257 = vunpack.c.h.b16 %v5998
  %v6258 = vunpack.c.l.b16 %v5999
  %v6259 = vunpack.c.h.b16 %v5999
  %v6260 = vunpack.c.l.b16 %v6000
  %v6261 = vunpack.c.h.b16 %v6000
  %v6262 = vunpack.c.l.b16 %v6001
  %v6263 = vunpack.c.l.b16 %v6002
  %v6264 = vunpack.c.h.b16 %v6002
  %v6265 = vunpack.c.l.b16 %v6003
  %v6266 = vunpack.c.h.b16 %v6003
  %v6267 = vunpack.c.l.b16 %v6004
  %v6268 = vunpack.c.h.b16 %v6004
  %v6269 = vunpack.c.l.b16 %v6005
  %v6270 = vunpack.c.l.b16 %v6006
  %v6271 = vunpack.c.h.b16 %v6006
  %v6272 = vunpack.c.l.b16 %v6007
  %v6273 = vunpack.c.h.b16 %v6007
  %v6274 = vunpack.c.l.b16 %v6008
  %v6275 = vunpack.c.h.b16 %v6008
  %v6276 = vunpack.c.l.b16 %v6009
  %v6277 = vunpack.c.l.b16 %v6010
  %v6278 = vunpack.c.h.b16 %v6010
  %v6279 = vunpack.c.l.b16 %v6011
  %v6280 = vunpack.c.h.b16 %v6011
  %v6281 = vunpack.c.l.b16 %v6012
  %v6282 = vunpack.c.h.b16 %v6012
  %v6283 = vunpack.c.l.b16 %v6013
  %v6284 = vunpack.c.l.b16 %v6014
  %v6285 = vunpack.c.h.b16 %v6014
  %v6286 = vunpack.c.l.b16 %v6015
  %v6287 = vunpack.c.h.b16 %v6015
  %v6288 = vunpack.c.l.b16 %v6016
  %v6289 = vunpack.c.h.b16 %v6016
  %v6290 = vunpack.c.l.b16 %v6017
  %v6291 = vunpack.c.l.b16 %v6018
  %v6292 = vunpack.c.h.b16 %v6018
  %v6293 = vunpack.c.l.b16 %v6019
  %v6294 = vunpack.c.h.b16 %v6019
  %v6295 = vunpack.c.l.b16 %v6020
  %v6296 = vunpack.c.h.b16 %v6020
  %v6297 = vunpack.c.l.b16 %v6021
  %v6298 = vunpack.c.l.b16 %v6022
  %v6299 = vunpack.c.h.b16 %v6022
  %v6300 = vunpack.c.l.b16 %v6023
  %v6301 = vunpack.c.h.b16 %v6023
  %v6302 = vunpack.c.l.b16 %v6024
  %v6303 = vunpack.c.h.b16 %v6024
  %v6304 = vunpack.c.l.b16 %v6025
  %v6305 = vunpack.c.l.b16 %v6026
  %v6306 = vunpack.c.h.b16 %v6026
  %v6307 = vunpack.c.l.b16 %v6027
  %v6308 = vunpack.c.h.b16 %v6027
  %v6309 = vunpack.c.l.b16 %v6028
  %v6310 = vunpack.c.h.b16 %v6028
  %v6311 = vunpack.c.l.b16 %v6029
  %v6312 = vunpack.c.l.b16 %v6030
  %v6313 = vunpack.c.h.b16 %v6030
  %v6314 = vunpack.c.l.b16 %v6031
  %v6315 = vunpack.c.h.b16 %v6031
  %v6316 = vunpack.c.l.b16 %v6032
  %v6317 = vunpack.c.h.b16 %v6032
  %v6318 = vunpack.c.l.b16 %v6033
  %v6319 = vunpack.c.l.b16 %v6034
  %v6320 = vunpack.c.h.b16 %v6034
  %v6321 = vunpack.c.l.b16 %v6035
  %v6322 = vunpack.c.h.b16 %v6035
  %v6323 = vunpack.c.l.b16 %v6036
  %v6324 = vunpack.c.h.b16 %v6036
  %v6325 = vunpack.c.l.b16 %v6037
  %v6326 = vunpack.c.l.b16 %v6038
  %v6327 = vunpack.c.h.b16 %v6038
  %v6328 = vunpack.c.l.b16 %v6039
  %v6329 = vunpack.c.h.b16 %v6039
  %v6330 = vunpack.c.l.b16 %v6040
  %v6331 = vunpack.c.h.b16 %v6040
  %v6332 = vunpack.c.l.b16 %v6041
  %v6333 = vunpack.c.l.b16 %v6042
  %v6334 = vunpack.c.h.b16 %v6042
  %v6335 = vunpack.c.l.b16 %v6043
  %v6336 = vunpack.c.h.b16 %v6043
  %v6337 = vunpack.c.l.b16 %v6044
  %v6338 = vunpack.c.h.b16 %v6044
  %v6339 = vunpack.c.l.b16 %v6045
  %v6340 = vunpack.c.l.b16 %v6046
  %v6341 = vunpack.c.h.b16 %v6046
  %v6342 = vunpack.c.l.b16 %v6047
  %v6343 = vunpack.c.h.b16 %v6047
  %v6344 = vunpack.c.l.b16 %v6048
  %v6345 = vunpack.c.h.b16 %v6048
  %v6346 = vunpack.c.l.b16 %v6049
  %v6347 = vunpack.c.l.b16 %v6050
  %v6348 = vunpack.c.h.b16 %v6050
  %v6349 = vunpack.c.l.b16 %v6051
  %v6350 = vunpack.c.h.b16 %v6051
  %v6351 = vunpack.c.l.b16 %v6052
  %v6352 = vunpack.c.h.b16 %v6052
  %v6353 = vunpack.c.l.b16 %v6053
  %v6354 = vunpack.c.l.b16 %v6054
  %v6355 = vunpack.c.h.b16 %v6054
  %v6356 = vunpack.c.l.b16 %v6055
  %v6357 = vunpack.c.h.b16 %v6055
  %v6358 = vunpack.c.l.b16 %v6056
  %v6359 = vunpack.c.h.b16 %v6056
  %v6360 = vunpack.c.l.b16 %v6057
  %v6361 = vunpack.c.l.b16 %v6058
  %v6362 = vunpack.c.h.b16 %v6058
  %v6363 = vunpack.c.l.b16 %v6059
  %v6364 = vunpack.c.h.b16 %v6059
  %v6365 = vunpack.c.l.b16 %v6060
  %v6366 = vunpack.c.h.b16 %v6060
  %v6367 = vunpack.c.l.b16 %v6061
  %v6368 = vunpack.c.l.b16 %v6062
  %v6369 = vunpack.c.h.b16 %v6062
  %v6370 = vunpack.c.l.b16 %v6063
  %v6371 = vunpack.c.h.b16 %v6063
  %v6372 = vunpack.c.l.b16 %v6064
  %v6373 = vunpack.c.h.b16 %v6064
  %v6374 = vunpack.c.l.b16 %v6065
  %v6375 = vunpack.c.l.b16 %v6066
  %v6376 = vunpack.c.h.b16 %v6066
  %v6377 = vunpack.c.l.b16 %v6067
  %v6378 = vunpack.c.h.b16 %v6067
  %v6379 = vunpack.c.l.b16 %v6068
  %v6380 = vunpack.c.h.b16 %v6068
  %v6381 = vunpack.c.l.b16 %v6069
  %v6382 = vunpack.c.l.b16 %v6070
  %v6383 = vunpack.c.h.b16 %v6070
  %v6384 = vunpack.c.l.b16 %v6071
  %v6385 = vunpack.c.h.b16 %v6071
  %v6386 = vunpack.c.l.b16 %v6072
  %v6387 = vunpack.c.h.b16 %v6072
  %v6388 = vunpack.c.l.b16 %v6073
  %v6389 = vunpack.c.l.b16 %v6074
  %v6390 = vunpack.c.h.b16 %v6074
  %v6391 = vunpack.c.l.b16 %v6075
  %v6392 = vunpack.c.h.b16 %v6075
  %v6393 = vunpack.c.l.b16 %v6076
  %v6394 = vunpack.c.h.b16 %v6076
  %v6395 = vunpack.c.l.b16 %v6077
  %v6396 = vunpack.c.l.b16 %v6078
  %v6397 = vunpack.c.h.b16 %v6078
  %v6398 = vunpack.c.l.b16 %v6079
  %v6399 = vunpack.c.h.b16 %v6079
  %v6400 = vunpack.c.l.b16 %v6080
  %v6401 = vunpack.c.h.b16 %v6080
  %v6402 = vunpack.c.l.b16 %v6081
  %v6403 = vunpack.c.l.b16 %v6082
  %v6404 = vunpack.c.h.b16 %v6082
  %v6405 = vunpack.c.l.b16 %v6083
  %v6406 = vunpack.c.h.b16 %v6083
  %v6407 = vunpack.c.l.b16 %v6084
  %v6408 = vunpack.c.h.b16 %v6084
  %v6409 = vunpack.c.l.b16 %v6085
  %v6410 = vpack.c.b16 %v6221, %v6214
  %v6411 = vpack.c.b16 %v6222, %v6215
  %v6412 = vpack.c.b16 %v6223, %v6216
  %v6413 = vpack.c.b16 %v6224, %v6217
  %v6414 = vpack.c.b16 %v6225, %v6218
  %v6415 = vpack.c.b16 %v6226, %v6219
  %v6416 = vpack.c.b16 %v6227, %v6220
  %v6417 = vpack.c.b16 %v6235, %v6228
  %v6418 = vpack.c.b16 %v6236, %v6229
  %v6419 = vpack.c.b16 %v6237, %v6230
  %v6420 = vpack.c.b16 %v6238, %v6231
  %v6421 = vpack.c.b16 %v6239, %v6232
  %v6422 = vpack.c.b16 %v6240, %v6233
  %v6423 = vpack.c.b16 %v6241, %v6234
  %v6424 = vpack.c.b16 %v6249, %v6242
  %v6425 = vpack.c.b16 %v6250, %v6243
  %v6426 = vpack.c.b16 %v6251, %v6244
  %v6427 = vpack.c.b16 %v6252, %v6245
  %v6428 = vpack.c.b16 %v6253, %v6246
  %v6429 = vpack.c.b16 %v6254, %v6247
  %v6430 = vpack.c.b16 %v6255, %v6248
  %v6431 = vpack.c.b16 %v6263, %v6256
  %v6432 = vpack.c.b16 %v6264, %v6257
  %v6433 = vpack.c.b16 %v6265, %v6258
  %v6434 = vpack.c.b16 %v6266, %v6259
  %v6435 = vpack.c.b16 %v6267, %v6260
  %v6436 = vpack.c.b16 %v6268, %v6261
  %v6437 = vpack.c.b16 %v6269, %v6262
  %v6438 = vpack.c.b16 %v6277, %v6270
  %v6439 = vpack.c.b16 %v6278, %v6271
  %v6440 = vpack.c.b16 %v6279, %v6272
  %v6441 = vpack.c.b16 %v6280, %v6273
  %v6442 = vpack.c.b16 %v6281, %v6274
  %v6443 = vpack.c.b16 %v6282, %v6275
  %v6444 = vpack.c.b16 %v6283, %v6276
  %v6445 = vpack.c.b16 %v6291, %v6284
  %v6446 = vpack.c.b16 %v6292, %v6285
  %v6447 = vpack.c.b16 %v6293, %v6286
  %v6448 = vpack.c.b16 %v6294, %v6287
  %v6449 = vpack.c.b16 %v6295, %v6288
  %v6450 = vpack.c.b16 %v6296, %v6289
  %v6451 = vpack.c.b16 %v6297, %v6290
  %v6452 = vpack.c.b16 %v6305, %v6298
  %v6453 = vpack.c.b16 %v6306, %v6299
  %v6454 = vpack.c.b16 %v6307, %v6300
  %v6455 = vpack.c.b16 %v6308, %v6301
  %v6456 = vpack.c.b16 %v6309, %v6302
  %v6457 = vpack.c.b16 %v6310, %v6303
  %v6458 = vpack.c.b16 %v6311, %v6304
  %v6459 = vpack.c.b16 %v6319, %v6312
  %v6460 = vpack.c.b16 %v6320, %v6313
  %v6461 = vpack.c.b16 %v6321, %v6314
  %v6462 = vpack.c.b16 %v6322, %v6315
  %v6463 = vpack.c.b16 %v6323, %v6316
  %v6464 = vpack.c.b16 %v6324, %v6317
  %v6465 = vpack.c.b16 %v6325, %v6318
  %v6466 = vpack.c.b16 %v6333, %v6326
  %v6467 = vpack.c.b16 %v6334, %v6327
  %v6468 = vpack.c.b16 %v6335, %v6328
  %v6469 = vpack.c.b16 %v6336, %v6329
  %v6470 = vpack.c.b16 %v6337, %v6330
  %v6471 = vpack.c.b16 %v6338, %v6331
  %v6472 = vpack.c.b16 %v6339, %v6332
  %v6473 = vpack.c.b16 %v6347, %v6340
  %v6474 = vpack.c.b16 %v6348, %v6341
  %v6475 = vpack.c.b16 %v6349, %v6342
  %v6476 = vpack.c.b16 %v6350, %v6343
  %v6477 = vpack.c.b16 %v6351, %v6344
  %v6478 = vpack.c.b16 %v6352, %v6345
  %v6479 = vpack.c.b16 %v6353, %v6346
  %v6480 = vpack.c.b16 %v6361, %v6354
  %v6481 = vpack.c.b16 %v6362, %v6355
  %v6482 = vpack.c.b16 %v6363, %v6356
  %v6483 = vpack.c.b16 %v6364, %v6357
  %v6484 = vpack.c.b16 %v6365, %v6358
  %v6485 = vpack.c.b16 %v6366, %v6359
  %v6486 = vpack.c.b16 %v6367, %v6360
  %v6487 = vpack.c.b16 %v6375, %v6368
  %v6488 = vpack.c.b16 %v6376, %v6369
  %v6489 = vpack.c.b16 %v6377, %v6370
  %v6490 = vpack.c.b16 %v6378, %v6371
  %v6491 = vpack.c.b16 %v6379, %v6372
  %v6492 = vpack.c.b16 %v6380, %v6373
  %v6493 = vpack.c.b16 %v6381, %v6374
  %v6494 = vpack.c.b16 %v6389, %v6382
  %v6495 = vpack.c.b16 %v6390, %v6383
  %v6496 = vpack.c.b16 %v6391, %v6384
  %v6497 = vpack.c.b16 %v6392, %v6385
  %v6498 = vpack.c.b16 %v6393, %v6386
  %v6499 = vpack.c.b16 %v6394, %v6387
  %v6500 = vpack.c.b16 %v6395, %v6388
  %v6501 = vpack.c.b16 %v6403, %v6396
  %v6502 = vpack.c.b16 %v6404, %v6397
  %v6503 = vpack.c.b16 %v6405, %v6398
  %v6504 = vpack.c.b16 %v6406, %v6399
  %v6505 = vpack.c.b16 %v6407, %v6400
  %v6506 = vpack.c.b16 %v6408, %v6401
  %v6507 = vpack.c.b16 %v6409, %v6402
  %v6607 = vsel %vm1777, %v3967, 0
  %v6610 = vsel %vm1777, %v3969, 0
  %6612 = vmatpush.bf16.msra.mxu0 %v6459
  %6613 = vmatpush.bf16.msra.mxu0 %v6452
  %6614 = vmatpush.bf16.msra.mxu0 %v6445
  %6615 = vmatpush.bf16.msra.mxu0 %v6438
  %6616 = vmatpush.bf16.msra.mxu0 %v6431
  %6617 = vmatpush.bf16.msra.mxu0 %v6424
  %6618 = vmatpush.bf16.msra.mxu0 %v6417
  %6619 = vmatpush.bf16.msra.mxu0 %v6410
  %6620 = vmatmul.bf16.gmra.mxu0 %v3966
  %v6621 = vpop.f32.mrf.mxu0
  %v6622 = vadd.f32 %v6088, %v6621
  %v6623 = vpop.f32.mrf.mxu0
  %v6624 = vadd.f32 %v6088, %v6623
  %6625 = vmatmul.bf16.gmra.mxu0 %v3968
  %v6626 = vpop.f32.mrf.mxu0
  %v6627 = vadd.f32 %v6088, %v6626
  %v6628 = vpop.f32.mrf.mxu0
  %v6629 = vadd.f32 %v6088, %v6628
  %6630 = vdwg.mxu0
  %6631 = vmatpush.bf16.msra.mxu0 0
  %6632 = vmatpush.bf16.msra.mxu0 0
  %6633 = vmatpush.bf16.msra.mxu0 %v6501
  %6634 = vmatpush.bf16.msra.mxu0 %v6494
  %6635 = vmatpush.bf16.msra.mxu0 %v6487
  %6636 = vmatpush.bf16.msra.mxu0 %v6480
  %6637 = vmatpush.bf16.msra.mxu0 %v6473
  %6638 = vmatpush.bf16.msra.mxu0 %v6466
  %6639 = vmatmul.bf16.gmra.mxu0 %v6607
  %v6640 = vpop.f32.mrf.mxu0
  %v6641 = vadd.f32 %v6622, %v6640
  %v6642 = vpop.f32.mrf.mxu0
  %v6643 = vadd.f32 %v6624, %v6642
  %6644 = vmatmul.bf16.gmra.mxu0 %v6610
  %v6645 = vpop.f32.mrf.mxu0
  %v6646 = vadd.f32 %v6627, %v6645
  %v6647 = vpop.f32.mrf.mxu0
  %v6648 = vadd.f32 %v6629, %v6647
  %6649 = vdwg.mxu0
  %6650 = vmatpush.bf16.msra.mxu0 %v6460
  %6651 = vmatpush.bf16.msra.mxu0 %v6453
  %6652 = vmatpush.bf16.msra.mxu0 %v6446
  %6653 = vmatpush.bf16.msra.mxu0 %v6439
  %6654 = vmatpush.bf16.msra.mxu0 %v6432
  %6655 = vmatpush.bf16.msra.mxu0 %v6425
  %6656 = vmatpush.bf16.msra.mxu0 %v6418
  %6657 = vmatpush.bf16.msra.mxu0 %v6411
  %6658 = vmatmul.bf16.gmra.mxu0 %v3966
  %v6659 = vpop.f32.mrf.mxu0
  %v6660 = vadd.f32 %v6089, %v6659
  %v6661 = vpop.f32.mrf.mxu0
  %v6662 = vadd.f32 %v6089, %v6661
  %6663 = vmatmul.bf16.gmra.mxu0 %v3968
  %v6664 = vpop.f32.mrf.mxu0
  %v6665 = vadd.f32 %v6089, %v6664
  %v6666 = vpop.f32.mrf.mxu0
  %v6667 = vadd.f32 %v6089, %v6666
  %6668 = vdwg.mxu0
  %6669 = vmatpush.bf16.msra.mxu0 0
  %6670 = vmatpush.bf16.msra.mxu0 0
  %6671 = vmatpush.bf16.msra.mxu0 %v6502
  %6672 = vmatpush.bf16.msra.mxu0 %v6495
  %6673 = vmatpush.bf16.msra.mxu0 %v6488
  %6674 = vmatpush.bf16.msra.mxu0 %v6481
  %6675 = vmatpush.bf16.msra.mxu0 %v6474
  %6676 = vmatpush.bf16.msra.mxu0 %v6467
  %6677 = vmatmul.bf16.gmra.mxu0 %v6607
  %v6678 = vpop.f32.mrf.mxu0
  %v6679 = vadd.f32 %v6660, %v6678
  %v6680 = vpop.f32.mrf.mxu0
  %v6681 = vadd.f32 %v6662, %v6680
  %6682 = vmatmul.bf16.gmra.mxu0 %v6610
  %v6683 = vpop.f32.mrf.mxu0
  %v6684 = vadd.f32 %v6665, %v6683
  %v6685 = vpop.f32.mrf.mxu0
  %v6686 = vadd.f32 %v6667, %v6685
  %6687 = vdwg.mxu0
  %6688 = vmatpush.bf16.msra.mxu0 %v6461
  %6689 = vmatpush.bf16.msra.mxu0 %v6454
  %6690 = vmatpush.bf16.msra.mxu0 %v6447
  %6691 = vmatpush.bf16.msra.mxu0 %v6440
  %6692 = vmatpush.bf16.msra.mxu0 %v6433
  %6693 = vmatpush.bf16.msra.mxu0 %v6426
  %6694 = vmatpush.bf16.msra.mxu0 %v6419
  %6695 = vmatpush.bf16.msra.mxu0 %v6412
  %6696 = vmatmul.bf16.gmra.mxu0 %v3966
  %v6697 = vpop.f32.mrf.mxu0
  %v6698 = vadd.f32 %v6090, %v6697
  %v6699 = vpop.f32.mrf.mxu0
  %v6700 = vadd.f32 %v6090, %v6699
  %6701 = vmatmul.bf16.gmra.mxu0 %v3968
  %v6702 = vpop.f32.mrf.mxu0
  %v6703 = vadd.f32 %v6090, %v6702
  %v6704 = vpop.f32.mrf.mxu0
  %v6705 = vadd.f32 %v6090, %v6704
  %6706 = vdwg.mxu0
  %6707 = vmatpush.bf16.msra.mxu0 0
  %6708 = vmatpush.bf16.msra.mxu0 0
  %6709 = vmatpush.bf16.msra.mxu0 %v6503
  %6710 = vmatpush.bf16.msra.mxu0 %v6496
  %6711 = vmatpush.bf16.msra.mxu0 %v6489
  %6712 = vmatpush.bf16.msra.mxu0 %v6482
  %6713 = vmatpush.bf16.msra.mxu0 %v6475
  %6714 = vmatpush.bf16.msra.mxu0 %v6468
  %6715 = vmatmul.bf16.gmra.mxu0 %v6607
  %v6716 = vpop.f32.mrf.mxu0
  %v6717 = vadd.f32 %v6698, %v6716
  %v6718 = vpop.f32.mrf.mxu0
  %v6719 = vadd.f32 %v6700, %v6718
  %6720 = vmatmul.bf16.gmra.mxu0 %v6610
  %v6721 = vpop.f32.mrf.mxu0
  %v6722 = vadd.f32 %v6703, %v6721
  %v6723 = vpop.f32.mrf.mxu0
  %v6724 = vadd.f32 %v6705, %v6723
  %6725 = vdwg.mxu0
  %6726 = vmatpush.bf16.msra.mxu0 %v6462
  %6727 = vmatpush.bf16.msra.mxu0 %v6455
  %6728 = vmatpush.bf16.msra.mxu0 %v6448
  %6729 = vmatpush.bf16.msra.mxu0 %v6441
  %6730 = vmatpush.bf16.msra.mxu0 %v6434
  %6731 = vmatpush.bf16.msra.mxu0 %v6427
  %6732 = vmatpush.bf16.msra.mxu0 %v6420
  %6733 = vmatpush.bf16.msra.mxu0 %v6413
  %6734 = vmatmul.bf16.gmra.mxu0 %v3966
  %v6735 = vpop.f32.mrf.mxu0
  %v6736 = vadd.f32 %v6091, %v6735
  %v6737 = vpop.f32.mrf.mxu0
  %v6738 = vadd.f32 %v6091, %v6737
  %6739 = vmatmul.bf16.gmra.mxu0 %v3968
  %v6740 = vpop.f32.mrf.mxu0
  %v6741 = vadd.f32 %v6091, %v6740
  %v6742 = vpop.f32.mrf.mxu0
  %v6743 = vadd.f32 %v6091, %v6742
  %6744 = vdwg.mxu0
  %6745 = vmatpush.bf16.msra.mxu0 0
  %6746 = vmatpush.bf16.msra.mxu0 0
  %6747 = vmatpush.bf16.msra.mxu0 %v6504
  %6748 = vmatpush.bf16.msra.mxu0 %v6497
  %6749 = vmatpush.bf16.msra.mxu0 %v6490
  %6750 = vmatpush.bf16.msra.mxu0 %v6483
  %6751 = vmatpush.bf16.msra.mxu0 %v6476
  %6752 = vmatpush.bf16.msra.mxu0 %v6469
  %6753 = vmatmul.bf16.gmra.mxu0 %v6607
  %v6754 = vpop.f32.mrf.mxu0
  %v6755 = vadd.f32 %v6736, %v6754
  %v6756 = vpop.f32.mrf.mxu0
  %v6757 = vadd.f32 %v6738, %v6756
  %6758 = vmatmul.bf16.gmra.mxu0 %v6610
  %v6759 = vpop.f32.mrf.mxu0
  %v6760 = vadd.f32 %v6741, %v6759
  %v6761 = vpop.f32.mrf.mxu0
  %v6762 = vadd.f32 %v6743, %v6761
  %6763 = vdwg.mxu0
  %6764 = vmatpush.bf16.msra.mxu0 %v6463
  %6765 = vmatpush.bf16.msra.mxu0 %v6456
  %6766 = vmatpush.bf16.msra.mxu0 %v6449
  %6767 = vmatpush.bf16.msra.mxu0 %v6442
  %6768 = vmatpush.bf16.msra.mxu0 %v6435
  %6769 = vmatpush.bf16.msra.mxu0 %v6428
  %6770 = vmatpush.bf16.msra.mxu0 %v6421
  %6771 = vmatpush.bf16.msra.mxu0 %v6414
  %6772 = vmatmul.bf16.gmra.mxu0 %v3966
  %v6773 = vpop.f32.mrf.mxu0
  %v6774 = vadd.f32 %v6092, %v6773
  %v6775 = vpop.f32.mrf.mxu0
  %v6776 = vadd.f32 %v6092, %v6775
  %6777 = vmatmul.bf16.gmra.mxu0 %v3968
  %v6778 = vpop.f32.mrf.mxu0
  %v6779 = vadd.f32 %v6092, %v6778
  %v6780 = vpop.f32.mrf.mxu0
  %v6781 = vadd.f32 %v6092, %v6780
  %6782 = vdwg.mxu0
  %6783 = vmatpush.bf16.msra.mxu0 0
  %6784 = vmatpush.bf16.msra.mxu0 0
  %6785 = vmatpush.bf16.msra.mxu0 %v6505
  %6786 = vmatpush.bf16.msra.mxu0 %v6498
  %6787 = vmatpush.bf16.msra.mxu0 %v6491
  %6788 = vmatpush.bf16.msra.mxu0 %v6484
  %6789 = vmatpush.bf16.msra.mxu0 %v6477
  %6790 = vmatpush.bf16.msra.mxu0 %v6470
  %6791 = vmatmul.bf16.gmra.mxu0 %v6607
  %v6792 = vpop.f32.mrf.mxu0
  %v6793 = vadd.f32 %v6774, %v6792
  %v6794 = vpop.f32.mrf.mxu0
  %v6795 = vadd.f32 %v6776, %v6794
  %6796 = vmatmul.bf16.gmra.mxu0 %v6610
  %v6797 = vpop.f32.mrf.mxu0
  %v6798 = vadd.f32 %v6779, %v6797
  %v6799 = vpop.f32.mrf.mxu0
  %v6800 = vadd.f32 %v6781, %v6799
  %6801 = vdwg.mxu0
  %6802 = vmatpush.bf16.msra.mxu0 %v6464
  %6803 = vmatpush.bf16.msra.mxu0 %v6457
  %6804 = vmatpush.bf16.msra.mxu0 %v6450
  %6805 = vmatpush.bf16.msra.mxu0 %v6443
  %6806 = vmatpush.bf16.msra.mxu0 %v6436
  %6807 = vmatpush.bf16.msra.mxu0 %v6429
  %6808 = vmatpush.bf16.msra.mxu0 %v6422
  %6809 = vmatpush.bf16.msra.mxu0 %v6415
  %6810 = vmatmul.bf16.gmra.mxu0 %v3966
  %v6811 = vpop.f32.mrf.mxu0
  %v6812 = vadd.f32 %v6093, %v6811
  %v6813 = vpop.f32.mrf.mxu0
  %v6814 = vadd.f32 %v6093, %v6813
  %6815 = vmatmul.bf16.gmra.mxu0 %v3968
  %v6816 = vpop.f32.mrf.mxu0
  %v6817 = vadd.f32 %v6093, %v6816
  %v6818 = vpop.f32.mrf.mxu0
  %v6819 = vadd.f32 %v6093, %v6818
  %6820 = vdwg.mxu0
  %6821 = vmatpush.bf16.msra.mxu0 0
  %6822 = vmatpush.bf16.msra.mxu0 0
  %6823 = vmatpush.bf16.msra.mxu0 %v6506
  %6824 = vmatpush.bf16.msra.mxu0 %v6499
  %6825 = vmatpush.bf16.msra.mxu0 %v6492
  %6826 = vmatpush.bf16.msra.mxu0 %v6485
  %6827 = vmatpush.bf16.msra.mxu0 %v6478
  %6828 = vmatpush.bf16.msra.mxu0 %v6471
  %6829 = vmatmul.bf16.gmra.mxu0 %v6607
  %v6830 = vpop.f32.mrf.mxu0
  %v6831 = vadd.f32 %v6812, %v6830
  %v6832 = vpop.f32.mrf.mxu0
  %v6833 = vadd.f32 %v6814, %v6832
  %6834 = vmatmul.bf16.gmra.mxu0 %v6610
  %v6835 = vpop.f32.mrf.mxu0
  %v6836 = vadd.f32 %v6817, %v6835
  %v6837 = vpop.f32.mrf.mxu0
  %v6838 = vadd.f32 %v6819, %v6837
  %6839 = vdwg.mxu0
  %6840 = vmatpush.bf16.msra.mxu0 %v6465
  %6841 = vmatpush.bf16.msra.mxu0 %v6458
  %6842 = vmatpush.bf16.msra.mxu0 %v6451
  %6843 = vmatpush.bf16.msra.mxu0 %v6444
  %6844 = vmatpush.bf16.msra.mxu0 %v6437
  %6845 = vmatpush.bf16.msra.mxu0 %v6430
  %6846 = vmatpush.bf16.msra.mxu0 %v6423
  %6847 = vmatpush.bf16.msra.mxu0 %v6416
  %6848 = vmatmul.bf16.gmra.mxu0 %v3966
  %v6849 = vpop.f32.mrf.mxu0
  %v6850 = vadd.f32 %v6094, %v6849
  %v6851 = vpop.f32.mrf.mxu0
  %v6852 = vadd.f32 %v6094, %v6851
  %6853 = vmatmul.bf16.gmra.mxu0 %v3968
  %v6854 = vpop.f32.mrf.mxu0
  %v6855 = vadd.f32 %v6094, %v6854
  %v6856 = vpop.f32.mrf.mxu0
  %v6857 = vadd.f32 %v6094, %v6856
  %6858 = vdwg.mxu0
  %6859 = vmatpush.bf16.msra.mxu0 0
  %6860 = vmatpush.bf16.msra.mxu0 0
  %6861 = vmatpush.bf16.msra.mxu0 %v6507
  %6862 = vmatpush.bf16.msra.mxu0 %v6500
  %6863 = vmatpush.bf16.msra.mxu0 %v6493
  %6864 = vmatpush.bf16.msra.mxu0 %v6486
  %6865 = vmatpush.bf16.msra.mxu0 %v6479
  %6866 = vmatpush.bf16.msra.mxu0 %v6472
  %6867 = vmatmul.bf16.gmra.mxu0 %v6607
  %v6868 = vpop.f32.mrf.mxu0
  %v6869 = vadd.f32 %v6850, %v6868
  %v6870 = vpop.f32.mrf.mxu0
  %v6871 = vadd.f32 %v6852, %v6870
  %6872 = vmatmul.bf16.gmra.mxu0 %v6610
  %v6873 = vpop.f32.mrf.mxu0
  %v6874 = vadd.f32 %v6855, %v6873
  %v6875 = vpop.f32.mrf.mxu0
  %v6876 = vadd.f32 %v6857, %v6875
  %6877 = vdwg.mxu0
  %v6878 = vadd.f32 %v6641, %v5509
  %v6879 = vadd.f32 %v6679, %v5585
  %v6880 = vadd.f32 %v6717, %v5661
  %v6881 = vadd.f32 %v6755, %v5737
  %v6882 = vadd.f32 %v6793, %v5813
  %v6883 = vadd.f32 %v6831, %v5889
  %v6884 = vadd.f32 %v6869, %v5965
  %v6885 = vadd.f32 %v6643, %v5511
  %v6886 = vadd.f32 %v6681, %v5587
  %v6887 = vadd.f32 %v6719, %v5663
  %v6888 = vadd.f32 %v6757, %v5739
  %v6889 = vadd.f32 %v6795, %v5815
  %v6890 = vadd.f32 %v6833, %v5891
  %v6891 = vadd.f32 %v6871, %v5967
  %v6892 = vadd.f32 %v6646, %v5514
  %v6893 = vadd.f32 %v6684, %v5590
  %v6894 = vadd.f32 %v6722, %v5666
  %v6895 = vadd.f32 %v6760, %v5742
  %v6896 = vadd.f32 %v6798, %v5818
  %v6897 = vadd.f32 %v6836, %v5894
  %v6898 = vadd.f32 %v6874, %v5970
  %v6899 = vadd.f32 %v6648, %v5516
  %v6900 = vadd.f32 %v6686, %v5592
  %v6901 = vadd.f32 %v6724, %v5668
  %v6902 = vadd.f32 %v6762, %v5744
  %v6903 = vadd.f32 %v6800, %v5820
  %v6904 = vadd.f32 %v6838, %v5896
  %v6905 = vadd.f32 %v6876, %v5972
  %v6906 = vmax.f32 %v6878, 0.0
  %v6907 = vmax.f32 %v6879, 0.0
  %v6908 = vmax.f32 %v6880, 0.0
  %v6909 = vmax.f32 %v6881, 0.0
  %v6910 = vmax.f32 %v6882, 0.0
  %v6911 = vmax.f32 %v6883, 0.0
  %v6912 = vmax.f32 %v6884, 0.0
  %v6913 = vmax.f32 %v6885, 0.0
  %v6914 = vmax.f32 %v6886, 0.0
  %v6915 = vmax.f32 %v6887, 0.0
  %v6916 = vmax.f32 %v6888, 0.0
  %v6917 = vmax.f32 %v6889, 0.0
  %v6918 = vmax.f32 %v6890, 0.0
  %v6919 = vmax.f32 %v6891, 0.0
  %v6920 = vmax.f32 %v6892, 0.0
  %v6921 = vmax.f32 %v6893, 0.0
  %v6922 = vmax.f32 %v6894, 0.0
  %v6923 = vmax.f32 %v6895, 0.0
  %v6924 = vmax.f32 %v6896, 0.0
  %v6925 = vmax.f32 %v6897, 0.0
  %v6926 = vmax.f32 %v6898, 0.0
  %v6927 = vmax.f32 %v6899, 0.0
  %v6928 = vmax.f32 %v6900, 0.0
  %v6929 = vmax.f32 %v6901, 0.0
  %v6930 = vmax.f32 %v6902, 0.0
  %v6931 = vmax.f32 %v6903, 0.0
  %v6932 = vmax.f32 %v6904, 0.0
  %v6933 = vmax.f32 %v6905, 0.0
  %v6934 = vld [vmem:[%s1] sm:$0xff]
  %v6935 = vld [vmem:[%s1 + $0x8] sm:$0xff]
  %v6936 = vld [vmem:[%s1 + $0x10] sm:$0xff]
  %v6937 = vld [vmem:[%s1 + $0x18] sm:$0xff]
  %v6938 = vld [vmem:[%s1 + $0x20] sm:$0xff]
  %v6939 = vld [vmem:[%s1 + $0x28] sm:$0xff]
  %v6940 = vld [vmem:[%s1 + $0x30] sm:$0xff]
  %v6941 = vld [vmem:[%s1 + $0x38] sm:$0xff]
  %v6942 = vld [vmem:[%s13] sm:$0xf]
  %v6943 = vld [vmem:[%s13 + $0x4] sm:$0xf]
  %v6944 = vld [vmem:[%s13 + $0x8] sm:$0xf]
  %v6945 = vld [vmem:[%s13 + $0xc] sm:$0xf]
  %v6946 = vld [vmem:[%s13 + $0x10] sm:$0xf]
  %v6947 = vld [vmem:[%s13 + $0x14] sm:$0xf]
  %v6948 = vld [vmem:[%s13 + $0x18] sm:$0xf]
  %v6949 = vld [vmem:[%s13 + $0x1c] sm:$0xf]
  %v6950 = vld [vmem:[%s13 + $0x20] sm:$0xf]
  %v6951 = vld [vmem:[%s13 + $0x24] sm:$0xf]
  %v6952 = vld [vmem:[%s13 + $0x28] sm:$0xf]
  %v6953 = vld [vmem:[%s13 + $0x2c] sm:$0xf]
  %v6954 = vld [vmem:[%s13 + $0x30] sm:$0xf]
  %v6955 = vld [vmem:[%s13 + $0x34] sm:$0xf]
  %v6956 = vld [vmem:[%s13 + $0x38] sm:$0xf]
  %v6957 = vld [vmem:[%s13 + $0x3c] sm:$0xf]
  %v6958 = vld [vmem:[%s13 + $0x40] sm:$0xf]
  %v6959 = vld [vmem:[%s13 + $0x44] sm:$0xf]
  %v6960 = vld [vmem:[%s13 + $0x48] sm:$0xf]
  %v6961 = vld [vmem:[%s13 + $0x4c] sm:$0xf]
  %v6962 = vld [vmem:[%s13 + $0x50] sm:$0xf]
  %v6963 = vld [vmem:[%s13 + $0x54] sm:$0xf]
  %v6964 = vld [vmem:[%s13 + $0x58] sm:$0xf]
  %v6965 = vld [vmem:[%s13 + $0x5c] sm:$0xf]
  %v6966 = vld [vmem:[%s13 + $0x60] sm:$0xf]
  %v6967 = vld [vmem:[%s13 + $0x64] sm:$0xf]
  %v6968 = vld [vmem:[%s13 + $0x68] sm:$0xf]
  %v6969 = vld [vmem:[%s13 + $0x6c] sm:$0xf]
  %v6970 = vld [vmem:[%s13 + $0x70] sm:$0xf]
  %v6971 = vld [vmem:[%s13 + $0x74] sm:$0xf]
  %v6972 = vld [vmem:[%s13 + $0x78] sm:$0xf]
  %v6973 = vld [vmem:[%s13 + $0x7c] sm:$0xf]
  %v6974 = vld [vmem:[%s13 + $0x80] sm:$0xf]
  %v6975 = vld [vmem:[%s13 + $0x84] sm:$0xf]
  %v6976 = vld [vmem:[%s13 + $0x88] sm:$0xf]
  %v6977 = vld [vmem:[%s13 + $0x8c] sm:$0xf]
  %v6978 = vld [vmem:[%s13 + $0x90] sm:$0xf]
  %v6979 = vld [vmem:[%s13 + $0x94] sm:$0xf]
  %v6980 = vld [vmem:[%s13 + $0x98] sm:$0xf]
  %v6981 = vld [vmem:[%s13 + $0x9c] sm:$0xf]
  %v6982 = vld [vmem:[%s13 + $0xa0] sm:$0xf]
  %v6983 = vld [vmem:[%s13 + $0xa4] sm:$0xf]
  %v6984 = vld [vmem:[%s13 + $0xa8] sm:$0xf]
  %v6985 = vld [vmem:[%s13 + $0xac] sm:$0xf]
  %v6986 = vld [vmem:[%s13 + $0xb0] sm:$0xf]
  %v6987 = vld [vmem:[%s13 + $0xb4] sm:$0xf]
  %v6988 = vld [vmem:[%s13 + $0xb8] sm:$0xf]
  %v6989 = vld [vmem:[%s13 + $0xbc] sm:$0xf]
  %v6990 = vld [vmem:[%s13 + $0xc0] sm:$0xf]
  %v6991 = vld [vmem:[%s13 + $0xc4] sm:$0xf]
  %v6992 = vld [vmem:[%s13 + $0xc8] sm:$0xf]
  %v6993 = vld [vmem:[%s13 + $0xcc] sm:$0xf]
  %v6994 = vld [vmem:[%s13 + $0xd0] sm:$0xf]
  %v6995 = vld [vmem:[%s13 + $0xd4] sm:$0xf]
  %v6996 = vld [vmem:[%s13 + $0xd8] sm:$0xf]
  %v6997 = vld [vmem:[%s13 + $0xdc] sm:$0xf]
  %v6998 = vld [vmem:[%s13 + $0xe0] sm:$0xf]
  %v6999 = vld [vmem:[%s13 + $0xe4] sm:$0xf]
  %v7000 = vld [vmem:[%s13 + $0xe8] sm:$0xf]
  %v7001 = vld [vmem:[%s13 + $0xec] sm:$0xf]
  %v7002 = vld [vmem:[%s13 + $0xf0] sm:$0xf]
  %v7003 = vld [vmem:[%s13 + $0xf4] sm:$0xf]
  %v7004 = vld [vmem:[%s13 + $0xf8] sm:$0xf]
  %v7005 = vld [vmem:[%s13 + $0xfc] sm:$0xf]
  %v7006 = vld [vmem:[%s14] sm:$0x1]
  %v7008 = vperm.slane %v7006, 0
  %v7018 = vunpack.c.l.b16 %v6934
  %v7019 = vunpack.c.h.b16 %v6934
  %v7020 = vunpack.c.l.b16 %v6935
  %v7021 = vunpack.c.h.b16 %v6935
  %v7022 = vunpack.c.l.b16 %v6936
  %v7023 = vunpack.c.h.b16 %v6936
  %v7024 = vunpack.c.l.b16 %v6937
  %v7025 = vunpack.c.h.b16 %v6937
  %v7026 = vunpack.c.l.b16 %v6938
  %v7027 = vunpack.c.h.b16 %v6938
  %v7028 = vunpack.c.l.b16 %v6939
  %v7029 = vunpack.c.h.b16 %v6939
  %v7030 = vunpack.c.l.b16 %v6940
  %v7031 = vunpack.c.h.b16 %v6940
  %v7032 = vunpack.c.l.b16 %v6941
  %v7033 = vunpack.c.h.b16 %v6941
  %v7034 = vpack.c.b16 %v7022, %v7018
  %v7035 = vpack.c.b16 %v7023, %v7019
  %v7036 = vpack.c.b16 %v7024, %v7020
  %v7037 = vpack.c.b16 %v7025, %v7021
  %v7038 = vpack.c.b16 %v7030, %v7026
  %v7039 = vpack.c.b16 %v7031, %v7027
  %v7040 = vpack.c.b16 %v7032, %v7028
  %v7041 = vpack.c.b16 %v7033, %v7029
  %v7114 = vunpack.c.l.b16 %v6942
  %v7115 = vunpack.c.l.b16 %v6943
  %v7116 = vunpack.c.l.b16 %v6944
  %v7117 = vunpack.c.l.b16 %v6945
  %v7118 = vunpack.c.l.b16 %v6946
  %v7119 = vunpack.c.l.b16 %v6947
  %v7120 = vunpack.c.l.b16 %v6948
  %v7121 = vunpack.c.l.b16 %v6949
  %v7122 = vunpack.c.l.b16 %v6950
  %v7123 = vunpack.c.l.b16 %v6951
  %v7124 = vunpack.c.l.b16 %v6952
  %v7125 = vunpack.c.l.b16 %v6953
  %v7126 = vunpack.c.l.b16 %v6954
  %v7127 = vunpack.c.l.b16 %v6955
  %v7128 = vunpack.c.l.b16 %v6956
  %v7129 = vunpack.c.l.b16 %v6957
  %v7130 = vunpack.c.l.b16 %v6958
  %v7131 = vunpack.c.l.b16 %v6959
  %v7132 = vunpack.c.l.b16 %v6960
  %v7133 = vunpack.c.l.b16 %v6961
  %v7134 = vunpack.c.l.b16 %v6962
  %v7135 = vunpack.c.l.b16 %v6963
  %v7136 = vunpack.c.l.b16 %v6964
  %v7137 = vunpack.c.l.b16 %v6965
  %v7138 = vunpack.c.l.b16 %v6966
  %v7139 = vunpack.c.l.b16 %v6967
  %v7140 = vunpack.c.l.b16 %v6968
  %v7141 = vunpack.c.l.b16 %v6969
  %v7142 = vunpack.c.l.b16 %v6970
  %v7143 = vunpack.c.l.b16 %v6971
  %v7144 = vunpack.c.l.b16 %v6972
  %v7145 = vunpack.c.l.b16 %v6973
  %v7146 = vunpack.c.l.b16 %v6974
  %v7147 = vunpack.c.l.b16 %v6975
  %v7148 = vunpack.c.l.b16 %v6976
  %v7149 = vunpack.c.l.b16 %v6977
  %v7150 = vunpack.c.l.b16 %v6978
  %v7151 = vunpack.c.l.b16 %v6979
  %v7152 = vunpack.c.l.b16 %v6980
  %v7153 = vunpack.c.l.b16 %v6981
  %v7154 = vunpack.c.l.b16 %v6982
  %v7155 = vunpack.c.l.b16 %v6983
  %v7156 = vunpack.c.l.b16 %v6984
  %v7157 = vunpack.c.l.b16 %v6985
  %v7158 = vunpack.c.l.b16 %v6986
  %v7159 = vunpack.c.l.b16 %v6987
  %v7160 = vunpack.c.l.b16 %v6988
  %v7161 = vunpack.c.l.b16 %v6989
  %v7162 = vunpack.c.l.b16 %v6990
  %v7163 = vunpack.c.l.b16 %v6991
  %v7164 = vunpack.c.l.b16 %v6992
  %v7165 = vunpack.c.l.b16 %v6993
  %v7166 = vunpack.c.l.b16 %v6994
  %v7167 = vunpack.c.l.b16 %v6995
  %v7168 = vunpack.c.l.b16 %v6996
  %v7169 = vunpack.c.l.b16 %v6997
  %v7170 = vunpack.c.l.b16 %v6998
  %v7171 = vunpack.c.l.b16 %v6999
  %v7172 = vunpack.c.l.b16 %v7000
  %v7173 = vunpack.c.l.b16 %v7001
  %v7174 = vunpack.c.l.b16 %v7002
  %v7175 = vunpack.c.l.b16 %v7003
  %v7176 = vunpack.c.l.b16 %v7004
  %v7177 = vunpack.c.l.b16 %v7005
  %v7178 = vpack.c.b16 %v7115, %v7114
  %v7179 = vpack.c.b16 %v7117, %v7116
  %v7180 = vpack.c.b16 %v7119, %v7118
  %v7181 = vpack.c.b16 %v7121, %v7120
  %v7182 = vpack.c.b16 %v7123, %v7122
  %v7183 = vpack.c.b16 %v7125, %v7124
  %v7184 = vpack.c.b16 %v7127, %v7126
  %v7185 = vpack.c.b16 %v7129, %v7128
  %v7186 = vpack.c.b16 %v7131, %v7130
  %v7187 = vpack.c.b16 %v7133, %v7132
  %v7188 = vpack.c.b16 %v7135, %v7134
  %v7189 = vpack.c.b16 %v7137, %v7136
  %v7190 = vpack.c.b16 %v7139, %v7138
  %v7191 = vpack.c.b16 %v7141, %v7140
  %v7192 = vpack.c.b16 %v7143, %v7142
  %v7193 = vpack.c.b16 %v7145, %v7144
  %v7194 = vpack.c.b16 %v7147, %v7146
  %v7195 = vpack.c.b16 %v7149, %v7148
  %v7196 = vpack.c.b16 %v7151, %v7150
  %v7197 = vpack.c.b16 %v7153, %v7152
  %v7198 = vpack.c.b16 %v7155, %v7154
  %v7199 = vpack.c.b16 %v7157, %v7156
  %v7200 = vpack.c.b16 %v7159, %v7158
  %v7201 = vpack.c.b16 %v7161, %v7160
  %v7202 = vpack.c.b16 %v7163, %v7162
  %v7203 = vpack.c.b16 %v7165, %v7164
  %v7204 = vpack.c.b16 %v7167, %v7166
  %v7205 = vpack.c.b16 %v7169, %v7168
  %v7206 = vpack.c.b16 %v7171, %v7170
  %v7207 = vpack.c.b16 %v7173, %v7172
  %v7208 = vpack.c.b16 %v7175, %v7174
  %v7209 = vpack.c.b16 %v7177, %v7176
  %7242 = vmatpush.bf16.msra.mxu0 %v7185
  %7243 = vmatpush.bf16.msra.mxu0 %v7184
  %7244 = vmatpush.bf16.msra.mxu0 %v7183
  %7245 = vmatpush.bf16.msra.mxu0 %v7182
  %7246 = vmatpush.bf16.msra.mxu0 %v7181
  %7247 = vmatpush.bf16.msra.mxu0 %v7180
  %7248 = vmatpush.bf16.msra.mxu0 %v7179
  %7249 = vmatpush.bf16.msra.mxu0 %v7178
  %7250 = vmatmul.bf16.gmra.mxu0 %v7034
  %v7251 = vpop.f32.mrf.mxu0
  %v7252 = vadd.f32 %v7008, %v7251
  %v7253 = vpop.f32.mrf.mxu0
  %v7254 = vadd.f32 %v7008, %v7253
  %7255 = vmatmul.bf16.gmra.mxu0 %v7038
  %v7256 = vpop.f32.mrf.mxu0
  %v7257 = vadd.f32 %v7008, %v7256
  %v7258 = vpop.f32.mrf.mxu0
  %v7259 = vadd.f32 %v7008, %v7258
  %7260 = vdwg.mxu0
  %7261 = vmatpush.bf16.msra.mxu0 %v7193
  %7262 = vmatpush.bf16.msra.mxu0 %v7192
  %7263 = vmatpush.bf16.msra.mxu0 %v7191
  %7264 = vmatpush.bf16.msra.mxu0 %v7190
  %7265 = vmatpush.bf16.msra.mxu0 %v7189
  %7266 = vmatpush.bf16.msra.mxu0 %v7188
  %7267 = vmatpush.bf16.msra.mxu0 %v7187
  %7268 = vmatpush.bf16.msra.mxu0 %v7186
  %7269 = vmatmul.bf16.gmra.mxu0 %v7035
  %v7270 = vpop.f32.mrf.mxu0
  %v7271 = vadd.f32 %v7252, %v7270
  %v7272 = vpop.f32.mrf.mxu0
  %v7273 = vadd.f32 %v7254, %v7272
  %7274 = vmatmul.bf16.gmra.mxu0 %v7039
  %v7275 = vpop.f32.mrf.mxu0
  %v7276 = vadd.f32 %v7257, %v7275
  %v7277 = vpop.f32.mrf.mxu0
  %v7278 = vadd.f32 %v7259, %v7277
  %7279 = vdwg.mxu0
  %7280 = vmatpush.bf16.msra.mxu0 %v7201
  %7281 = vmatpush.bf16.msra.mxu0 %v7200
  %7282 = vmatpush.bf16.msra.mxu0 %v7199
  %7283 = vmatpush.bf16.msra.mxu0 %v7198
  %7284 = vmatpush.bf16.msra.mxu0 %v7197
  %7285 = vmatpush.bf16.msra.mxu0 %v7196
  %7286 = vmatpush.bf16.msra.mxu0 %v7195
  %7287 = vmatpush.bf16.msra.mxu0 %v7194
  %7288 = vmatmul.bf16.gmra.mxu0 %v7036
  %v7289 = vpop.f32.mrf.mxu0
  %v7290 = vadd.f32 %v7271, %v7289
  %v7291 = vpop.f32.mrf.mxu0
  %v7292 = vadd.f32 %v7273, %v7291
  %7293 = vmatmul.bf16.gmra.mxu0 %v7040
  %v7294 = vpop.f32.mrf.mxu0
  %v7295 = vadd.f32 %v7276, %v7294
  %v7296 = vpop.f32.mrf.mxu0
  %v7297 = vadd.f32 %v7278, %v7296
  %7298 = vdwg.mxu0
  %7299 = vmatpush.bf16.msra.mxu0 %v7209
  %7300 = vmatpush.bf16.msra.mxu0 %v7208
  %7301 = vmatpush.bf16.msra.mxu0 %v7207
  %7302 = vmatpush.bf16.msra.mxu0 %v7206
  %7303 = vmatpush.bf16.msra.mxu0 %v7205
  %7304 = vmatpush.bf16.msra.mxu0 %v7204
  %7305 = vmatpush.bf16.msra.mxu0 %v7203
  %7306 = vmatpush.bf16.msra.mxu0 %v7202
  %7307 = vmatmul.bf16.gmra.mxu0 %v7037
  %v7308 = vpop.f32.mrf.mxu0
  %v7309 = vadd.f32 %v7290, %v7308
  %v7310 = vpop.f32.mrf.mxu0
  %v7311 = vadd.f32 %v7292, %v7310
  %7312 = vmatmul.bf16.gmra.mxu0 %v7041
  %v7313 = vpop.f32.mrf.mxu0
  %v7314 = vadd.f32 %v7295, %v7313
  %v7315 = vpop.f32.mrf.mxu0
  %v7316 = vadd.f32 %v7297, %v7315
  %7317 = vdwg.mxu0
  %v7318 = vmax.f32 %v7309, 0.0
  %v7319 = vmax.f32 %v7311, 0.0
  %v7320 = vmax.f32 %v7314, 0.0
  %v7321 = vmax.f32 %v7316, 0.0
  %7322 = vst [vmem:[%s23] sm:$0xff] %v6906
  %7323 = vst [vmem:[%s23 + $0x8] sm:$0xff] %v6907
  %7324 = vst [vmem:[%s23 + $0x10] sm:$0xff] %v6908
  %7325 = vst [vmem:[%s23 + $0x18] sm:$0xff] %v6909
  %7326 = vst [vmem:[%s23 + $0x20] sm:$0xff] %v6910
  %7327 = vst [vmem:[%s23 + $0x28] sm:$0xff] %v6911
  %7328 = vst [vmem:[%s23 + $0x30] sm:$0xff] %v6912
  %7329 = vst.msk [vmem:[%s23 + $0x38] sm:$0xff] %vm1786, %v7318
  %7330 = vst [vmem:[%s23 + $0x40] sm:$0xff] %v6913
  %7331 = vst [vmem:[%s23 + $0x48] sm:$0xff] %v6914
  %7332 = vst [vmem:[%s23 + $0x50] sm:$0xff] %v6915
  %7333 = vst [vmem:[%s23 + $0x58] sm:$0xff] %v6916
  %7334 = vst [vmem:[%s23 + $0x60] sm:$0xff] %v6917
  %7335 = vst [vmem:[%s23 + $0x68] sm:$0xff] %v6918
  %7336 = vst [vmem:[%s23 + $0x70] sm:$0xff] %v6919
  %7337 = vst.msk [vmem:[%s23 + $0x78] sm:$0xff] %vm1786, %v7319
  %7338 = vst [vmem:[%s23 + $0x80] sm:$0xff] %v6920
  %7339 = vst [vmem:[%s23 + $0x88] sm:$0xff] %v6921
  %7340 = vst [vmem:[%s23 + $0x90] sm:$0xff] %v6922
  %7341 = vst [vmem:[%s23 + $0x98] sm:$0xff] %v6923
  %7342 = vst [vmem:[%s23 + $0xa0] sm:$0xff] %v6924
  %7343 = vst [vmem:[%s23 + $0xa8] sm:$0xff] %v6925
  %7344 = vst [vmem:[%s23 + $0xb0] sm:$0xff] %v6926
  %7345 = vst.msk [vmem:[%s23 + $0xb8] sm:$0xff] %vm1786, %v7320
  %7346 = vst [vmem:[%s23 + $0xc0] sm:$0xff] %v6927
  %7347 = vst [vmem:[%s23 + $0xc8] sm:$0xff] %v6928
  %7348 = vst [vmem:[%s23 + $0xd0] sm:$0xff] %v6929
  %7349 = vst [vmem:[%s23 + $0xd8] sm:$0xff] %v6930
  %7350 = vst [vmem:[%s23 + $0xe0] sm:$0xff] %v6931
  %7351 = vst [vmem:[%s23 + $0xe8] sm:$0xff] %v6932
  %7352 = vst [vmem:[%s23 + $0xf0] sm:$0xff] %v6933
  %7353 = vst.msk [vmem:[%s23 + $0xf8] sm:$0xff] %vm1786, %v7321
  %v7354 = vld [vmem:[%s23] sm:$0xff]
  %v7355 = vld [vmem:[%s23 + $0x8] sm:$0xff]
  %v7356 = vld [vmem:[%s23 + $0x10] sm:$0xff]
  %v7357 = vld [vmem:[%s23 + $0x18] sm:$0xff]
  %v7358 = vld [vmem:[%s23 + $0x20] sm:$0xff]
  %v7359 = vld [vmem:[%s23 + $0x28] sm:$0xff]
  %v7360 = vld [vmem:[%s23 + $0x30] sm:$0xff]
  %v7361 = vld [vmem:[%s23 + $0x38] sm:$0xff]
  %v7362 = vld [vmem:[%s23 + $0x40] sm:$0xff]
  %v7363 = vld [vmem:[%s23 + $0x48] sm:$0xff]
  %v7364 = vld [vmem:[%s23 + $0x50] sm:$0xff]
  %v7365 = vld [vmem:[%s23 + $0x58] sm:$0xff]
  %v7366 = vld [vmem:[%s23 + $0x60] sm:$0xff]
  %v7367 = vld [vmem:[%s23 + $0x68] sm:$0xff]
  %v7368 = vld [vmem:[%s23 + $0x70] sm:$0xff]
  %v7369 = vld [vmem:[%s23 + $0x78] sm:$0xff]
  %v7370 = vld [vmem:[%s23 + $0x80] sm:$0xff]
  %v7371 = vld [vmem:[%s23 + $0x88] sm:$0xff]
  %v7372 = vld [vmem:[%s23 + $0x90] sm:$0xff]
  %v7373 = vld [vmem:[%s23 + $0x98] sm:$0xff]
  %v7374 = vld [vmem:[%s23 + $0xa0] sm:$0xff]
  %v7375 = vld [vmem:[%s23 + $0xa8] sm:$0xff]
  %v7376 = vld [vmem:[%s23 + $0xb0] sm:$0xff]
  %v7377 = vld [vmem:[%s23 + $0xb8] sm:$0xff]
  %v7378 = vld [vmem:[%s23 + $0xc0] sm:$0xff]
  %v7379 = vld [vmem:[%s23 + $0xc8] sm:$0xff]
  %v7380 = vld [vmem:[%s23 + $0xd0] sm:$0xff]
  %v7381 = vld [vmem:[%s23 + $0xd8] sm:$0xff]
  %v7382 = vld [vmem:[%s23 + $0xe0] sm:$0xff]
  %v7383 = vld [vmem:[%s23 + $0xe8] sm:$0xff]
  %v7384 = vld [vmem:[%s23 + $0xf0] sm:$0xff]
  %v7385 = vld [vmem:[%s23 + $0xf8] sm:$0xff]
  %v7386 = vpack.c.bf16 %v7362, %v7354
  %v7387 = vpack.c.bf16 %v7363, %v7355
  %v7388 = vpack.c.bf16 %v7364, %v7356
  %v7389 = vpack.c.bf16 %v7365, %v7357
  %v7390 = vpack.c.bf16 %v7366, %v7358
  %v7391 = vpack.c.bf16 %v7367, %v7359
  %v7392 = vpack.c.bf16 %v7368, %v7360
  %v7393 = vpack.c.bf16 %v7369, %v7361
  %v7394 = vpack.c.bf16 %v7378, %v7370
  %v7395 = vpack.c.bf16 %v7379, %v7371
  %v7396 = vpack.c.bf16 %v7380, %v7372
  %v7397 = vpack.c.bf16 %v7381, %v7373
  %v7398 = vpack.c.bf16 %v7382, %v7374
  %v7399 = vpack.c.bf16 %v7383, %v7375
  %v7400 = vpack.c.bf16 %v7384, %v7376
  %v7401 = vpack.c.bf16 %v7385, %v7377
  %v7402 = vld [vmem:[%s15] sm:$0xff]
  %v7403 = vld [vmem:[%s15 + $0x8] sm:$0xff]
  %v7404 = vld [vmem:[%s15 + $0x10] sm:$0xff]
  %v7405 = vld [vmem:[%s15 + $0x18] sm:$0xff]
  %v7406 = vld [vmem:[%s15 + $0x20] sm:$0xff]
  %v7407 = vld [vmem:[%s15 + $0x28] sm:$0xff]
  %v7408 = vld [vmem:[%s15 + $0x30] sm:$0xff]
  %v7409 = vld [vmem:[%s15 + $0x38] sm:$0xff]
  %v7410 = vld [vmem:[%s15 + $0x40] sm:$0xff]
  %v7411 = vld [vmem:[%s15 + $0x48] sm:$0xff]
  %v7412 = vld [vmem:[%s15 + $0x50] sm:$0xff]
  %v7413 = vld [vmem:[%s15 + $0x58] sm:$0xff]
  %v7414 = vld [vmem:[%s15 + $0x60] sm:$0xff]
  %v7415 = vld [vmem:[%s15 + $0x68] sm:$0xff]
  %v7416 = vld [vmem:[%s15 + $0x70] sm:$0xff]
  %v7417 = vld [vmem:[%s15 + $0x78] sm:$0xff]
  %v7418 = vld [vmem:[%s15 + $0x80] sm:$0xff]
  %v7419 = vld [vmem:[%s15 + $0x88] sm:$0xff]
  %v7420 = vld [vmem:[%s15 + $0x90] sm:$0xff]
  %v7421 = vld [vmem:[%s15 + $0x98] sm:$0xff]
  %v7422 = vld [vmem:[%s15 + $0xa0] sm:$0xff]
  %v7423 = vld [vmem:[%s15 + $0xa8] sm:$0xff]
  %v7424 = vld [vmem:[%s15 + $0xb0] sm:$0xff]
  %v7425 = vld [vmem:[%s15 + $0xb8] sm:$0xff]
  %v7426 = vld [vmem:[%s15 + $0xc0] sm:$0xff]
  %v7427 = vld [vmem:[%s15 + $0xc8] sm:$0xff]
  %v7428 = vld [vmem:[%s15 + $0xd0] sm:$0xff]
  %v7429 = vld [vmem:[%s15 + $0xd8] sm:$0xff]
  %v7430 = vld [vmem:[%s15 + $0xe0] sm:$0xff]
  %v7431 = vld [vmem:[%s15 + $0xe8] sm:$0xff]
  %v7432 = vld [vmem:[%s15 + $0xf0] sm:$0xff]
  %v7433 = vld [vmem:[%s15 + $0xf8] sm:$0xff]
  %v7434 = vld [vmem:[%s15 + $0x100] sm:$0xff]
  %v7435 = vld [vmem:[%s15 + $0x108] sm:$0xff]
  %v7436 = vld [vmem:[%s15 + $0x110] sm:$0xff]
  %v7437 = vld [vmem:[%s15 + $0x118] sm:$0xff]
  %v7438 = vld [vmem:[%s15 + $0x120] sm:$0xff]
  %v7439 = vld [vmem:[%s15 + $0x128] sm:$0xff]
  %v7440 = vld [vmem:[%s15 + $0x130] sm:$0xff]
  %v7441 = vld [vmem:[%s15 + $0x138] sm:$0xff]
  %v7442 = vld [vmem:[%s15 + $0x140] sm:$0xff]
  %v7443 = vld [vmem:[%s15 + $0x148] sm:$0xff]
  %v7444 = vld [vmem:[%s15 + $0x150] sm:$0xff]
  %v7445 = vld [vmem:[%s15 + $0x158] sm:$0xff]
  %v7446 = vld [vmem:[%s15 + $0x160] sm:$0xff]
  %v7447 = vld [vmem:[%s15 + $0x168] sm:$0xff]
  %v7448 = vld [vmem:[%s15 + $0x170] sm:$0xff]
  %v7449 = vld [vmem:[%s15 + $0x178] sm:$0xff]
  %v7450 = vld [vmem:[%s15 + $0x180] sm:$0xff]
  %v7451 = vld [vmem:[%s15 + $0x188] sm:$0xff]
  %v7452 = vld [vmem:[%s15 + $0x190] sm:$0xff]
  %v7453 = vld [vmem:[%s15 + $0x198] sm:$0xff]
  %v7454 = vld [vmem:[%s15 + $0x1a0] sm:$0xff]
  %v7455 = vld [vmem:[%s15 + $0x1a8] sm:$0xff]
  %v7456 = vld [vmem:[%s15 + $0x1b0] sm:$0xff]
  %v7457 = vld [vmem:[%s15 + $0x1b8] sm:$0xff]
  %v7458 = vld [vmem:[%s15 + $0x1c0] sm:$0xff]
  %v7459 = vld [vmem:[%s15 + $0x1c8] sm:$0xff]
  %v7460 = vld [vmem:[%s15 + $0x1d0] sm:$0xff]
  %v7461 = vld [vmem:[%s15 + $0x1d8] sm:$0xff]
  %v7462 = vld [vmem:[%s15 + $0x1e0] sm:$0xff]
  %v7463 = vld [vmem:[%s15 + $0x1e8] sm:$0xff]
  %v7464 = vld [vmem:[%s15 + $0x1f0] sm:$0xff]
  %v7465 = vld [vmem:[%s15 + $0x1f8] sm:$0xff]
  %v7466 = vld [vmem:[%s15 + $0x200] sm:$0xff]
  %v7467 = vld [vmem:[%s15 + $0x208] sm:$0xff]
  %v7468 = vld [vmem:[%s15 + $0x210] sm:$0xff]
  %v7469 = vld [vmem:[%s15 + $0x218] sm:$0xff]
  %v7470 = vld [vmem:[%s15 + $0x220] sm:$0xff]
  %v7471 = vld [vmem:[%s15 + $0x228] sm:$0xff]
  %v7472 = vld [vmem:[%s15 + $0x230] sm:$0xff]
  %v7473 = vld [vmem:[%s15 + $0x238] sm:$0xff]
  %v7474 = vld [vmem:[%s15 + $0x240] sm:$0xff]
  %v7475 = vld [vmem:[%s15 + $0x248] sm:$0xff]
  %v7476 = vld [vmem:[%s15 + $0x250] sm:$0xff]
  %v7477 = vld [vmem:[%s15 + $0x258] sm:$0xff]
  %v7478 = vld [vmem:[%s15 + $0x260] sm:$0xff]
  %v7479 = vld [vmem:[%s15 + $0x268] sm:$0xff]
  %v7480 = vld [vmem:[%s15 + $0x270] sm:$0xff]
  %v7481 = vld [vmem:[%s15 + $0x278] sm:$0xff]
  %v7482 = vld [vmem:[%s15 + $0x280] sm:$0xff]
  %v7483 = vld [vmem:[%s15 + $0x288] sm:$0xff]
  %v7484 = vld [vmem:[%s15 + $0x290] sm:$0xff]
  %v7485 = vld [vmem:[%s15 + $0x298] sm:$0xff]
  %v7486 = vld [vmem:[%s15 + $0x2a0] sm:$0xff]
  %v7487 = vld [vmem:[%s15 + $0x2a8] sm:$0xff]
  %v7488 = vld [vmem:[%s15 + $0x2b0] sm:$0xff]
  %v7489 = vld [vmem:[%s15 + $0x2b8] sm:$0xff]
  %v7490 = vld [vmem:[%s15 + $0x2c0] sm:$0xff]
  %v7491 = vld [vmem:[%s15 + $0x2c8] sm:$0xff]
  %v7492 = vld [vmem:[%s15 + $0x2d0] sm:$0xff]
  %v7493 = vld [vmem:[%s15 + $0x2d8] sm:$0xff]
  %v7494 = vld [vmem:[%s15 + $0x2e0] sm:$0xff]
  %v7495 = vld [vmem:[%s15 + $0x2e8] sm:$0xff]
  %v7496 = vld [vmem:[%s15 + $0x2f0] sm:$0xff]
  %v7497 = vld [vmem:[%s15 + $0x2f8] sm:$0xff]
  %v7498 = vld [vmem:[%s15 + $0x300] sm:$0xff]
  %v7499 = vld [vmem:[%s15 + $0x308] sm:$0xff]
  %v7500 = vld [vmem:[%s15 + $0x310] sm:$0xff]
  %v7501 = vld [vmem:[%s15 + $0x318] sm:$0xff]
  %v7502 = vld [vmem:[%s15 + $0x320] sm:$0xff]
  %v7503 = vld [vmem:[%s15 + $0x328] sm:$0xff]
  %v7504 = vld [vmem:[%s15 + $0x330] sm:$0xff]
  %v7505 = vld [vmem:[%s15 + $0x338] sm:$0xff]
  %v7506 = vld [vmem:[%s15 + $0x340] sm:$0xff]
  %v7507 = vld [vmem:[%s15 + $0x348] sm:$0xff]
  %v7508 = vld [vmem:[%s15 + $0x350] sm:$0xff]
  %v7509 = vld [vmem:[%s15 + $0x358] sm:$0xff]
  %v7510 = vld [vmem:[%s15 + $0x360] sm:$0xff]
  %v7511 = vld [vmem:[%s15 + $0x368] sm:$0xff]
  %v7512 = vld [vmem:[%s15 + $0x370] sm:$0xff]
  %v7513 = vld [vmem:[%s15 + $0x378] sm:$0xff]
  %v7514 = vld [vmem:[%s15 + $0x380] sm:$0xff]
  %v7515 = vld [vmem:[%s15 + $0x388] sm:$0xff]
  %v7516 = vld [vmem:[%s15 + $0x390] sm:$0xff]
  %v7517 = vld [vmem:[%s15 + $0x398] sm:$0xff]
  %v7518 = vld [vmem:[%s15 + $0x3a0] sm:$0xff]
  %v7519 = vld [vmem:[%s15 + $0x3a8] sm:$0xff]
  %v7520 = vld [vmem:[%s15 + $0x3b0] sm:$0xff]
  %v7521 = vld [vmem:[%s15 + $0x3b8] sm:$0xff]
  %v7522 = vld [vmem:[%s16] sm:$0x3]
  %v7524 = vperm.slane %v7522, 0
  %v7525 = vperm.slane %v7522, 1
  %v7648 = vunpack.c.l.b16 %v7402
  %v7649 = vunpack.c.h.b16 %v7402
  %v7650 = vunpack.c.l.b16 %v7403
  %v7651 = vunpack.c.h.b16 %v7403
  %v7652 = vunpack.c.l.b16 %v7404
  %v7653 = vunpack.c.h.b16 %v7404
  %v7654 = vunpack.c.l.b16 %v7405
  %v7655 = vunpack.c.h.b16 %v7405
  %v7656 = vunpack.c.l.b16 %v7406
  %v7657 = vunpack.c.h.b16 %v7406
  %v7658 = vunpack.c.l.b16 %v7407
  %v7659 = vunpack.c.h.b16 %v7407
  %v7660 = vunpack.c.l.b16 %v7408
  %v7661 = vunpack.c.h.b16 %v7408
  %v7662 = vunpack.c.l.b16 %v7409
  %v7663 = vunpack.c.h.b16 %v7409
  %v7664 = vunpack.c.l.b16 %v7410
  %v7665 = vunpack.c.h.b16 %v7410
  %v7666 = vunpack.c.l.b16 %v7411
  %v7667 = vunpack.c.h.b16 %v7411
  %v7668 = vunpack.c.l.b16 %v7412
  %v7669 = vunpack.c.h.b16 %v7412
  %v7670 = vunpack.c.l.b16 %v7413
  %v7671 = vunpack.c.h.b16 %v7413
  %v7672 = vunpack.c.l.b16 %v7414
  %v7673 = vunpack.c.h.b16 %v7414
  %v7674 = vunpack.c.l.b16 %v7415
  %v7675 = vunpack.c.h.b16 %v7415
  %v7676 = vunpack.c.l.b16 %v7416
  %v7677 = vunpack.c.h.b16 %v7416
  %v7678 = vunpack.c.l.b16 %v7417
  %v7679 = vunpack.c.h.b16 %v7417
  %v7680 = vunpack.c.l.b16 %v7418
  %v7681 = vunpack.c.h.b16 %v7418
  %v7682 = vunpack.c.l.b16 %v7419
  %v7683 = vunpack.c.h.b16 %v7419
  %v7684 = vunpack.c.l.b16 %v7420
  %v7685 = vunpack.c.h.b16 %v7420
  %v7686 = vunpack.c.l.b16 %v7421
  %v7687 = vunpack.c.h.b16 %v7421
  %v7688 = vunpack.c.l.b16 %v7422
  %v7689 = vunpack.c.h.b16 %v7422
  %v7690 = vunpack.c.l.b16 %v7423
  %v7691 = vunpack.c.h.b16 %v7423
  %v7692 = vunpack.c.l.b16 %v7424
  %v7693 = vunpack.c.h.b16 %v7424
  %v7694 = vunpack.c.l.b16 %v7425
  %v7695 = vunpack.c.h.b16 %v7425
  %v7696 = vunpack.c.l.b16 %v7426
  %v7697 = vunpack.c.h.b16 %v7426
  %v7698 = vunpack.c.l.b16 %v7427
  %v7699 = vunpack.c.h.b16 %v7427
  %v7700 = vunpack.c.l.b16 %v7428
  %v7701 = vunpack.c.h.b16 %v7428
  %v7702 = vunpack.c.l.b16 %v7429
  %v7703 = vunpack.c.h.b16 %v7429
  %v7704 = vunpack.c.l.b16 %v7430
  %v7705 = vunpack.c.h.b16 %v7430
  %v7706 = vunpack.c.l.b16 %v7431
  %v7707 = vunpack.c.h.b16 %v7431
  %v7708 = vunpack.c.l.b16 %v7432
  %v7709 = vunpack.c.h.b16 %v7432
  %v7710 = vunpack.c.l.b16 %v7433
  %v7711 = vunpack.c.h.b16 %v7433
  %v7712 = vunpack.c.l.b16 %v7434
  %v7713 = vunpack.c.h.b16 %v7434
  %v7714 = vunpack.c.l.b16 %v7435
  %v7715 = vunpack.c.h.b16 %v7435
  %v7716 = vunpack.c.l.b16 %v7436
  %v7717 = vunpack.c.h.b16 %v7436
  %v7718 = vunpack.c.l.b16 %v7437
  %v7719 = vunpack.c.h.b16 %v7437
  %v7720 = vunpack.c.l.b16 %v7438
  %v7721 = vunpack.c.h.b16 %v7438
  %v7722 = vunpack.c.l.b16 %v7439
  %v7723 = vunpack.c.h.b16 %v7439
  %v7724 = vunpack.c.l.b16 %v7440
  %v7725 = vunpack.c.h.b16 %v7440
  %v7726 = vunpack.c.l.b16 %v7441
  %v7727 = vunpack.c.h.b16 %v7441
  %v7728 = vunpack.c.l.b16 %v7442
  %v7729 = vunpack.c.h.b16 %v7442
  %v7730 = vunpack.c.l.b16 %v7443
  %v7731 = vunpack.c.h.b16 %v7443
  %v7732 = vunpack.c.l.b16 %v7444
  %v7733 = vunpack.c.h.b16 %v7444
  %v7734 = vunpack.c.l.b16 %v7445
  %v7735 = vunpack.c.h.b16 %v7445
  %v7736 = vunpack.c.l.b16 %v7446
  %v7737 = vunpack.c.h.b16 %v7446
  %v7738 = vunpack.c.l.b16 %v7447
  %v7739 = vunpack.c.h.b16 %v7447
  %v7740 = vunpack.c.l.b16 %v7448
  %v7741 = vunpack.c.h.b16 %v7448
  %v7742 = vunpack.c.l.b16 %v7449
  %v7743 = vunpack.c.h.b16 %v7449
  %v7744 = vunpack.c.l.b16 %v7450
  %v7745 = vunpack.c.h.b16 %v7450
  %v7746 = vunpack.c.l.b16 %v7451
  %v7747 = vunpack.c.h.b16 %v7451
  %v7748 = vunpack.c.l.b16 %v7452
  %v7749 = vunpack.c.h.b16 %v7452
  %v7750 = vunpack.c.l.b16 %v7453
  %v7751 = vunpack.c.h.b16 %v7453
  %v7752 = vunpack.c.l.b16 %v7454
  %v7753 = vunpack.c.h.b16 %v7454
  %v7754 = vunpack.c.l.b16 %v7455
  %v7755 = vunpack.c.h.b16 %v7455
  %v7756 = vunpack.c.l.b16 %v7456
  %v7757 = vunpack.c.h.b16 %v7456
  %v7758 = vunpack.c.l.b16 %v7457
  %v7759 = vunpack.c.h.b16 %v7457
  %v7760 = vunpack.c.l.b16 %v7458
  %v7761 = vunpack.c.h.b16 %v7458
  %v7762 = vunpack.c.l.b16 %v7459
  %v7763 = vunpack.c.h.b16 %v7459
  %v7764 = vunpack.c.l.b16 %v7460
  %v7765 = vunpack.c.h.b16 %v7460
  %v7766 = vunpack.c.l.b16 %v7461
  %v7767 = vunpack.c.h.b16 %v7461
  %v7768 = vunpack.c.l.b16 %v7462
  %v7769 = vunpack.c.h.b16 %v7462
  %v7770 = vunpack.c.l.b16 %v7463
  %v7771 = vunpack.c.h.b16 %v7463
  %v7772 = vunpack.c.l.b16 %v7464
  %v7773 = vunpack.c.h.b16 %v7464
  %v7774 = vunpack.c.l.b16 %v7465
  %v7775 = vunpack.c.h.b16 %v7465
  %v7776 = vunpack.c.l.b16 %v7466
  %v7777 = vunpack.c.h.b16 %v7466
  %v7778 = vunpack.c.l.b16 %v7467
  %v7779 = vunpack.c.h.b16 %v7467
  %v7780 = vunpack.c.l.b16 %v7468
  %v7781 = vunpack.c.h.b16 %v7468
  %v7782 = vunpack.c.l.b16 %v7469
  %v7783 = vunpack.c.h.b16 %v7469
  %v7784 = vunpack.c.l.b16 %v7470
  %v7785 = vunpack.c.h.b16 %v7470
  %v7786 = vunpack.c.l.b16 %v7471
  %v7787 = vunpack.c.h.b16 %v7471
  %v7788 = vunpack.c.l.b16 %v7472
  %v7789 = vunpack.c.h.b16 %v7472
  %v7790 = vunpack.c.l.b16 %v7473
  %v7791 = vunpack.c.h.b16 %v7473
  %v7792 = vunpack.c.l.b16 %v7474
  %v7793 = vunpack.c.h.b16 %v7474
  %v7794 = vunpack.c.l.b16 %v7475
  %v7795 = vunpack.c.h.b16 %v7475
  %v7796 = vunpack.c.l.b16 %v7476
  %v7797 = vunpack.c.h.b16 %v7476
  %v7798 = vunpack.c.l.b16 %v7477
  %v7799 = vunpack.c.h.b16 %v7477
  %v7800 = vunpack.c.l.b16 %v7478
  %v7801 = vunpack.c.h.b16 %v7478
  %v7802 = vunpack.c.l.b16 %v7479
  %v7803 = vunpack.c.h.b16 %v7479
  %v7804 = vunpack.c.l.b16 %v7480
  %v7805 = vunpack.c.h.b16 %v7480
  %v7806 = vunpack.c.l.b16 %v7481
  %v7807 = vunpack.c.h.b16 %v7481
  %v7808 = vunpack.c.l.b16 %v7482
  %v7809 = vunpack.c.h.b16 %v7482
  %v7810 = vunpack.c.l.b16 %v7483
  %v7811 = vunpack.c.h.b16 %v7483
  %v7812 = vunpack.c.l.b16 %v7484
  %v7813 = vunpack.c.h.b16 %v7484
  %v7814 = vunpack.c.l.b16 %v7485
  %v7815 = vunpack.c.h.b16 %v7485
  %v7816 = vunpack.c.l.b16 %v7486
  %v7817 = vunpack.c.h.b16 %v7486
  %v7818 = vunpack.c.l.b16 %v7487
  %v7819 = vunpack.c.h.b16 %v7487
  %v7820 = vunpack.c.l.b16 %v7488
  %v7821 = vunpack.c.h.b16 %v7488
  %v7822 = vunpack.c.l.b16 %v7489
  %v7823 = vunpack.c.h.b16 %v7489
  %v7824 = vunpack.c.l.b16 %v7490
  %v7825 = vunpack.c.h.b16 %v7490
  %v7826 = vunpack.c.l.b16 %v7491
  %v7827 = vunpack.c.h.b16 %v7491
  %v7828 = vunpack.c.l.b16 %v7492
  %v7829 = vunpack.c.h.b16 %v7492
  %v7830 = vunpack.c.l.b16 %v7493
  %v7831 = vunpack.c.h.b16 %v7493
  %v7832 = vunpack.c.l.b16 %v7494
  %v7833 = vunpack.c.h.b16 %v7494
  %v7834 = vunpack.c.l.b16 %v7495
  %v7835 = vunpack.c.h.b16 %v7495
  %v7836 = vunpack.c.l.b16 %v7496
  %v7837 = vunpack.c.h.b16 %v7496
  %v7838 = vunpack.c.l.b16 %v7497
  %v7839 = vunpack.c.h.b16 %v7497
  %v7840 = vunpack.c.l.b16 %v7498
  %v7841 = vunpack.c.h.b16 %v7498
  %v7842 = vunpack.c.l.b16 %v7499
  %v7843 = vunpack.c.h.b16 %v7499
  %v7844 = vunpack.c.l.b16 %v7500
  %v7845 = vunpack.c.h.b16 %v7500
  %v7846 = vunpack.c.l.b16 %v7501
  %v7847 = vunpack.c.h.b16 %v7501
  %v7848 = vunpack.c.l.b16 %v7502
  %v7849 = vunpack.c.h.b16 %v7502
  %v7850 = vunpack.c.l.b16 %v7503
  %v7851 = vunpack.c.h.b16 %v7503
  %v7852 = vunpack.c.l.b16 %v7504
  %v7853 = vunpack.c.h.b16 %v7504
  %v7854 = vunpack.c.l.b16 %v7505
  %v7855 = vunpack.c.h.b16 %v7505
  %v7856 = vunpack.c.l.b16 %v7506
  %v7857 = vunpack.c.h.b16 %v7506
  %v7858 = vunpack.c.l.b16 %v7507
  %v7859 = vunpack.c.h.b16 %v7507
  %v7860 = vunpack.c.l.b16 %v7508
  %v7861 = vunpack.c.h.b16 %v7508
  %v7862 = vunpack.c.l.b16 %v7509
  %v7863 = vunpack.c.h.b16 %v7509
  %v7864 = vunpack.c.l.b16 %v7510
  %v7865 = vunpack.c.h.b16 %v7510
  %v7866 = vunpack.c.l.b16 %v7511
  %v7867 = vunpack.c.h.b16 %v7511
  %v7868 = vunpack.c.l.b16 %v7512
  %v7869 = vunpack.c.h.b16 %v7512
  %v7870 = vunpack.c.l.b16 %v7513
  %v7871 = vunpack.c.h.b16 %v7513
  %v7872 = vunpack.c.l.b16 %v7514
  %v7873 = vunpack.c.h.b16 %v7514
  %v7874 = vunpack.c.l.b16 %v7515
  %v7875 = vunpack.c.h.b16 %v7515
  %v7876 = vunpack.c.l.b16 %v7516
  %v7877 = vunpack.c.h.b16 %v7516
  %v7878 = vunpack.c.l.b16 %v7517
  %v7879 = vunpack.c.h.b16 %v7517
  %v7880 = vunpack.c.l.b16 %v7518
  %v7881 = vunpack.c.h.b16 %v7518
  %v7882 = vunpack.c.l.b16 %v7519
  %v7883 = vunpack.c.h.b16 %v7519
  %v7884 = vunpack.c.l.b16 %v7520
  %v7885 = vunpack.c.h.b16 %v7520
  %v7886 = vunpack.c.l.b16 %v7521
  %v7887 = vunpack.c.h.b16 %v7521
  %v7888 = vpack.c.b16 %v7650, %v7648
  %v7889 = vpack.c.b16 %v7651, %v7649
  %v7890 = vpack.c.b16 %v7654, %v7652
  %v7891 = vpack.c.b16 %v7655, %v7653
  %v7892 = vpack.c.b16 %v7658, %v7656
  %v7893 = vpack.c.b16 %v7659, %v7657
  %v7894 = vpack.c.b16 %v7662, %v7660
  %v7895 = vpack.c.b16 %v7663, %v7661
  %v7896 = vpack.c.b16 %v7666, %v7664
  %v7897 = vpack.c.b16 %v7667, %v7665
  %v7898 = vpack.c.b16 %v7670, %v7668
  %v7899 = vpack.c.b16 %v7671, %v7669
  %v7900 = vpack.c.b16 %v7674, %v7672
  %v7901 = vpack.c.b16 %v7675, %v7673
  %v7902 = vpack.c.b16 %v7678, %v7676
  %v7903 = vpack.c.b16 %v7679, %v7677
  %v7904 = vpack.c.b16 %v7682, %v7680
  %v7905 = vpack.c.b16 %v7683, %v7681
  %v7906 = vpack.c.b16 %v7686, %v7684
  %v7907 = vpack.c.b16 %v7687, %v7685
  %v7908 = vpack.c.b16 %v7690, %v7688
  %v7909 = vpack.c.b16 %v7691, %v7689
  %v7910 = vpack.c.b16 %v7694, %v7692
  %v7911 = vpack.c.b16 %v7695, %v7693
  %v7912 = vpack.c.b16 %v7698, %v7696
  %v7913 = vpack.c.b16 %v7699, %v7697
  %v7914 = vpack.c.b16 %v7702, %v7700
  %v7915 = vpack.c.b16 %v7703, %v7701
  %v7916 = vpack.c.b16 %v7706, %v7704
  %v7917 = vpack.c.b16 %v7707, %v7705
  %v7918 = vpack.c.b16 %v7710, %v7708
  %v7919 = vpack.c.b16 %v7711, %v7709
  %v7920 = vpack.c.b16 %v7714, %v7712
  %v7921 = vpack.c.b16 %v7715, %v7713
  %v7922 = vpack.c.b16 %v7718, %v7716
  %v7923 = vpack.c.b16 %v7719, %v7717
  %v7924 = vpack.c.b16 %v7722, %v7720
  %v7925 = vpack.c.b16 %v7723, %v7721
  %v7926 = vpack.c.b16 %v7726, %v7724
  %v7927 = vpack.c.b16 %v7727, %v7725
  %v7928 = vpack.c.b16 %v7730, %v7728
  %v7929 = vpack.c.b16 %v7731, %v7729
  %v7930 = vpack.c.b16 %v7734, %v7732
  %v7931 = vpack.c.b16 %v7735, %v7733
  %v7932 = vpack.c.b16 %v7738, %v7736
  %v7933 = vpack.c.b16 %v7739, %v7737
  %v7934 = vpack.c.b16 %v7742, %v7740
  %v7935 = vpack.c.b16 %v7743, %v7741
  %v7936 = vpack.c.b16 %v7746, %v7744
  %v7937 = vpack.c.b16 %v7747, %v7745
  %v7938 = vpack.c.b16 %v7750, %v7748
  %v7939 = vpack.c.b16 %v7751, %v7749
  %v7940 = vpack.c.b16 %v7754, %v7752
  %v7941 = vpack.c.b16 %v7755, %v7753
  %v7942 = vpack.c.b16 %v7758, %v7756
  %v7943 = vpack.c.b16 %v7759, %v7757
  %v7944 = vpack.c.b16 %v7762, %v7760
  %v7945 = vpack.c.b16 %v7763, %v7761
  %v7946 = vpack.c.b16 %v7766, %v7764
  %v7947 = vpack.c.b16 %v7767, %v7765
  %v7948 = vpack.c.b16 %v7770, %v7768
  %v7949 = vpack.c.b16 %v7771, %v7769
  %v7950 = vpack.c.b16 %v7774, %v7772
  %v7951 = vpack.c.b16 %v7775, %v7773
  %v7952 = vpack.c.b16 %v7778, %v7776
  %v7953 = vpack.c.b16 %v7779, %v7777
  %v7954 = vpack.c.b16 %v7782, %v7780
  %v7955 = vpack.c.b16 %v7783, %v7781
  %v7956 = vpack.c.b16 %v7786, %v7784
  %v7957 = vpack.c.b16 %v7787, %v7785
  %v7958 = vpack.c.b16 %v7790, %v7788
  %v7959 = vpack.c.b16 %v7791, %v7789
  %v7960 = vpack.c.b16 %v7794, %v7792
  %v7961 = vpack.c.b16 %v7795, %v7793
  %v7962 = vpack.c.b16 %v7798, %v7796
  %v7963 = vpack.c.b16 %v7799, %v7797
  %v7964 = vpack.c.b16 %v7802, %v7800
  %v7965 = vpack.c.b16 %v7803, %v7801
  %v7966 = vpack.c.b16 %v7806, %v7804
  %v7967 = vpack.c.b16 %v7807, %v7805
  %v7968 = vpack.c.b16 %v7810, %v7808
  %v7969 = vpack.c.b16 %v7811, %v7809
  %v7970 = vpack.c.b16 %v7814, %v7812
  %v7971 = vpack.c.b16 %v7815, %v7813
  %v7972 = vpack.c.b16 %v7818, %v7816
  %v7973 = vpack.c.b16 %v7819, %v7817
  %v7974 = vpack.c.b16 %v7822, %v7820
  %v7975 = vpack.c.b16 %v7823, %v7821
  %v7976 = vpack.c.b16 %v7826, %v7824
  %v7977 = vpack.c.b16 %v7827, %v7825
  %v7978 = vpack.c.b16 %v7830, %v7828
  %v7979 = vpack.c.b16 %v7831, %v7829
  %v7980 = vpack.c.b16 %v7834, %v7832
  %v7981 = vpack.c.b16 %v7835, %v7833
  %v7982 = vpack.c.b16 %v7838, %v7836
  %v7983 = vpack.c.b16 %v7839, %v7837
  %v7984 = vpack.c.b16 %v7842, %v7840
  %v7985 = vpack.c.b16 %v7843, %v7841
  %v7986 = vpack.c.b16 %v7846, %v7844
  %v7987 = vpack.c.b16 %v7847, %v7845
  %v7988 = vpack.c.b16 %v7850, %v7848
  %v7989 = vpack.c.b16 %v7851, %v7849
  %v7990 = vpack.c.b16 %v7854, %v7852
  %v7991 = vpack.c.b16 %v7855, %v7853
  %v7992 = vpack.c.b16 %v7858, %v7856
  %v7993 = vpack.c.b16 %v7859, %v7857
  %v7994 = vpack.c.b16 %v7862, %v7860
  %v7995 = vpack.c.b16 %v7863, %v7861
  %v7996 = vpack.c.b16 %v7866, %v7864
  %v7997 = vpack.c.b16 %v7867, %v7865
  %v7998 = vpack.c.b16 %v7870, %v7868
  %v7999 = vpack.c.b16 %v7871, %v7869
  %v8000 = vpack.c.b16 %v7874, %v7872
  %v8001 = vpack.c.b16 %v7875, %v7873
  %v8002 = vpack.c.b16 %v7878, %v7876
  %v8003 = vpack.c.b16 %v7879, %v7877
  %v8004 = vpack.c.b16 %v7882, %v7880
  %v8005 = vpack.c.b16 %v7883, %v7881
  %v8006 = vpack.c.b16 %v7886, %v7884
  %v8007 = vpack.c.b16 %v7887, %v7885
  %v8129 = vsel %vm1786, %v7393, 0
  %v8132 = vsel %vm1786, %v7401, 0
  %8134 = vmatpush.bf16.msra.mxu0 %v7902
  %8135 = vmatpush.bf16.msra.mxu0 %v7900
  %8136 = vmatpush.bf16.msra.mxu0 %v7898
  %8137 = vmatpush.bf16.msra.mxu0 %v7896
  %8138 = vmatpush.bf16.msra.mxu0 %v7894
  %8139 = vmatpush.bf16.msra.mxu0 %v7892
  %8140 = vmatpush.bf16.msra.mxu0 %v7890
  %8141 = vmatpush.bf16.msra.mxu0 %v7888
  %8142 = vmatmul.bf16.gmra.mxu0 %v7386
  %v8143 = vpop.f32.mrf.mxu0
  %v8144 = vadd.f32 %v7524, %v8143
  %v8145 = vpop.f32.mrf.mxu0
  %v8146 = vadd.f32 %v7524, %v8145
  %8147 = vmatmul.bf16.gmra.mxu0 %v7394
  %v8148 = vpop.f32.mrf.mxu0
  %v8149 = vadd.f32 %v7524, %v8148
  %v8150 = vpop.f32.mrf.mxu0
  %v8151 = vadd.f32 %v7524, %v8150
  %8152 = vdwg.mxu0
  %8153 = vmatpush.bf16.msra.mxu0 %v7918
  %8154 = vmatpush.bf16.msra.mxu0 %v7916
  %8155 = vmatpush.bf16.msra.mxu0 %v7914
  %8156 = vmatpush.bf16.msra.mxu0 %v7912
  %8157 = vmatpush.bf16.msra.mxu0 %v7910
  %8158 = vmatpush.bf16.msra.mxu0 %v7908
  %8159 = vmatpush.bf16.msra.mxu0 %v7906
  %8160 = vmatpush.bf16.msra.mxu0 %v7904
  %8161 = vmatmul.bf16.gmra.mxu0 %v7387
  %v8162 = vpop.f32.mrf.mxu0
  %v8163 = vadd.f32 %v8144, %v8162
  %v8164 = vpop.f32.mrf.mxu0
  %v8165 = vadd.f32 %v8146, %v8164
  %8166 = vmatmul.bf16.gmra.mxu0 %v7395
  %v8167 = vpop.f32.mrf.mxu0
  %v8168 = vadd.f32 %v8149, %v8167
  %v8169 = vpop.f32.mrf.mxu0
  %v8170 = vadd.f32 %v8151, %v8169
  %8171 = vdwg.mxu0
  %8172 = vmatpush.bf16.msra.mxu0 %v7934
  %8173 = vmatpush.bf16.msra.mxu0 %v7932
  %8174 = vmatpush.bf16.msra.mxu0 %v7930
  %8175 = vmatpush.bf16.msra.mxu0 %v7928
  %8176 = vmatpush.bf16.msra.mxu0 %v7926
  %8177 = vmatpush.bf16.msra.mxu0 %v7924
  %8178 = vmatpush.bf16.msra.mxu0 %v7922
  %8179 = vmatpush.bf16.msra.mxu0 %v7920
  %8180 = vmatmul.bf16.gmra.mxu0 %v7388
  %v8181 = vpop.f32.mrf.mxu0
  %v8182 = vadd.f32 %v8163, %v8181
  %v8183 = vpop.f32.mrf.mxu0
  %v8184 = vadd.f32 %v8165, %v8183
  %8185 = vmatmul.bf16.gmra.mxu0 %v7396
  %v8186 = vpop.f32.mrf.mxu0
  %v8187 = vadd.f32 %v8168, %v8186
  %v8188 = vpop.f32.mrf.mxu0
  %v8189 = vadd.f32 %v8170, %v8188
  %8190 = vdwg.mxu0
  %8191 = vmatpush.bf16.msra.mxu0 %v7950
  %8192 = vmatpush.bf16.msra.mxu0 %v7948
  %8193 = vmatpush.bf16.msra.mxu0 %v7946
  %8194 = vmatpush.bf16.msra.mxu0 %v7944
  %8195 = vmatpush.bf16.msra.mxu0 %v7942
  %8196 = vmatpush.bf16.msra.mxu0 %v7940
  %8197 = vmatpush.bf16.msra.mxu0 %v7938
  %8198 = vmatpush.bf16.msra.mxu0 %v7936
  %8199 = vmatmul.bf16.gmra.mxu0 %v7389
  %v8200 = vpop.f32.mrf.mxu0
  %v8201 = vadd.f32 %v8182, %v8200
  %v8202 = vpop.f32.mrf.mxu0
  %v8203 = vadd.f32 %v8184, %v8202
  %8204 = vmatmul.bf16.gmra.mxu0 %v7397
  %v8205 = vpop.f32.mrf.mxu0
  %v8206 = vadd.f32 %v8187, %v8205
  %v8207 = vpop.f32.mrf.mxu0
  %v8208 = vadd.f32 %v8189, %v8207
  %8209 = vdwg.mxu0
  %8210 = vmatpush.bf16.msra.mxu0 %v7966
  %8211 = vmatpush.bf16.msra.mxu0 %v7964
  %8212 = vmatpush.bf16.msra.mxu0 %v7962
  %8213 = vmatpush.bf16.msra.mxu0 %v7960
  %8214 = vmatpush.bf16.msra.mxu0 %v7958
  %8215 = vmatpush.bf16.msra.mxu0 %v7956
  %8216 = vmatpush.bf16.msra.mxu0 %v7954
  %8217 = vmatpush.bf16.msra.mxu0 %v7952
  %8218 = vmatmul.bf16.gmra.mxu0 %v7390
  %v8219 = vpop.f32.mrf.mxu0
  %v8220 = vadd.f32 %v8201, %v8219
  %v8221 = vpop.f32.mrf.mxu0
  %v8222 = vadd.f32 %v8203, %v8221
  %8223 = vmatmul.bf16.gmra.mxu0 %v7398
  %v8224 = vpop.f32.mrf.mxu0
  %v8225 = vadd.f32 %v8206, %v8224
  %v8226 = vpop.f32.mrf.mxu0
  %v8227 = vadd.f32 %v8208, %v8226
  %8228 = vdwg.mxu0
  %8229 = vmatpush.bf16.msra.mxu0 %v7982
  %8230 = vmatpush.bf16.msra.mxu0 %v7980
  %8231 = vmatpush.bf16.msra.mxu0 %v7978
  %8232 = vmatpush.bf16.msra.mxu0 %v7976
  %8233 = vmatpush.bf16.msra.mxu0 %v7974
  %8234 = vmatpush.bf16.msra.mxu0 %v7972
  %8235 = vmatpush.bf16.msra.mxu0 %v7970
  %8236 = vmatpush.bf16.msra.mxu0 %v7968
  %8237 = vmatmul.bf16.gmra.mxu0 %v7391
  %v8238 = vpop.f32.mrf.mxu0
  %v8239 = vadd.f32 %v8220, %v8238
  %v8240 = vpop.f32.mrf.mxu0
  %v8241 = vadd.f32 %v8222, %v8240
  %8242 = vmatmul.bf16.gmra.mxu0 %v7399
  %v8243 = vpop.f32.mrf.mxu0
  %v8244 = vadd.f32 %v8225, %v8243
  %v8245 = vpop.f32.mrf.mxu0
  %v8246 = vadd.f32 %v8227, %v8245
  %8247 = vdwg.mxu0
  %8248 = vmatpush.bf16.msra.mxu0 %v7998
  %8249 = vmatpush.bf16.msra.mxu0 %v7996
  %8250 = vmatpush.bf16.msra.mxu0 %v7994
  %8251 = vmatpush.bf16.msra.mxu0 %v7992
  %8252 = vmatpush.bf16.msra.mxu0 %v7990
  %8253 = vmatpush.bf16.msra.mxu0 %v7988
  %8254 = vmatpush.bf16.msra.mxu0 %v7986
  %8255 = vmatpush.bf16.msra.mxu0 %v7984
  %8256 = vmatmul.bf16.gmra.mxu0 %v7392
  %v8257 = vpop.f32.mrf.mxu0
  %v8258 = vadd.f32 %v8239, %v8257
  %v8259 = vpop.f32.mrf.mxu0
  %v8260 = vadd.f32 %v8241, %v8259
  %8261 = vmatmul.bf16.gmra.mxu0 %v7400
  %v8262 = vpop.f32.mrf.mxu0
  %v8263 = vadd.f32 %v8244, %v8262
  %v8264 = vpop.f32.mrf.mxu0
  %v8265 = vadd.f32 %v8246, %v8264
  %8266 = vdwg.mxu0
  %8267 = vmatpush.bf16.msra.mxu0 0
  %8268 = vmatpush.bf16.msra.mxu0 0
  %8269 = vmatpush.bf16.msra.mxu0 0
  %8270 = vmatpush.bf16.msra.mxu0 0
  %8271 = vmatpush.bf16.msra.mxu0 %v8006
  %8272 = vmatpush.bf16.msra.mxu0 %v8004
  %8273 = vmatpush.bf16.msra.mxu0 %v8002
  %8274 = vmatpush.bf16.msra.mxu0 %v8000
  %8275 = vmatmul.bf16.gmra.mxu0 %v8129
  %v8276 = vpop.f32.mrf.mxu0
  %v8277 = vadd.f32 %v8258, %v8276
  %v8278 = vpop.f32.mrf.mxu0
  %v8279 = vadd.f32 %v8260, %v8278
  %8280 = vmatmul.bf16.gmra.mxu0 %v8132
  %v8281 = vpop.f32.mrf.mxu0
  %v8282 = vadd.f32 %v8263, %v8281
  %v8283 = vpop.f32.mrf.mxu0
  %v8284 = vadd.f32 %v8265, %v8283
  %8285 = vdwg.mxu0
  %8286 = vmatpush.bf16.msra.mxu0 %v7903
  %8287 = vmatpush.bf16.msra.mxu0 %v7901
  %8288 = vmatpush.bf16.msra.mxu0 %v7899
  %8289 = vmatpush.bf16.msra.mxu0 %v7897
  %8290 = vmatpush.bf16.msra.mxu0 %v7895
  %8291 = vmatpush.bf16.msra.mxu0 %v7893
  %8292 = vmatpush.bf16.msra.mxu0 %v7891
  %8293 = vmatpush.bf16.msra.mxu0 %v7889
  %8294 = vmatmul.bf16.gmra.mxu0 %v7386
  %v8295 = vpop.f32.mrf.mxu0
  %v8296 = vadd.f32 %v7525, %v8295
  %v8297 = vpop.f32.mrf.mxu0
  %v8298 = vadd.f32 %v7525, %v8297
  %8299 = vmatmul.bf16.gmra.mxu0 %v7394
  %v8300 = vpop.f32.mrf.mxu0
  %v8301 = vadd.f32 %v7525, %v8300
  %v8302 = vpop.f32.mrf.mxu0
  %v8303 = vadd.f32 %v7525, %v8302
  %8304 = vdwg.mxu0
  %8305 = vmatpush.bf16.msra.mxu0 %v7919
  %8306 = vmatpush.bf16.msra.mxu0 %v7917
  %8307 = vmatpush.bf16.msra.mxu0 %v7915
  %8308 = vmatpush.bf16.msra.mxu0 %v7913
  %8309 = vmatpush.bf16.msra.mxu0 %v7911
  %8310 = vmatpush.bf16.msra.mxu0 %v7909
  %8311 = vmatpush.bf16.msra.mxu0 %v7907
  %8312 = vmatpush.bf16.msra.mxu0 %v7905
  %8313 = vmatmul.bf16.gmra.mxu0 %v7387
  %v8314 = vpop.f32.mrf.mxu0
  %v8315 = vadd.f32 %v8296, %v8314
  %v8316 = vpop.f32.mrf.mxu0
  %v8317 = vadd.f32 %v8298, %v8316
  %8318 = vmatmul.bf16.gmra.mxu0 %v7395
  %v8319 = vpop.f32.mrf.mxu0
  %v8320 = vadd.f32 %v8301, %v8319
  %v8321 = vpop.f32.mrf.mxu0
  %v8322 = vadd.f32 %v8303, %v8321
  %8323 = vdwg.mxu0
  %8324 = vmatpush.bf16.msra.mxu0 %v7935
  %8325 = vmatpush.bf16.msra.mxu0 %v7933
  %8326 = vmatpush.bf16.msra.mxu0 %v7931
  %8327 = vmatpush.bf16.msra.mxu0 %v7929
  %8328 = vmatpush.bf16.msra.mxu0 %v7927
  %8329 = vmatpush.bf16.msra.mxu0 %v7925
  %8330 = vmatpush.bf16.msra.mxu0 %v7923
  %8331 = vmatpush.bf16.msra.mxu0 %v7921
  %8332 = vmatmul.bf16.gmra.mxu0 %v7388
  %v8333 = vpop.f32.mrf.mxu0
  %v8334 = vadd.f32 %v8315, %v8333
  %v8335 = vpop.f32.mrf.mxu0
  %v8336 = vadd.f32 %v8317, %v8335
  %8337 = vmatmul.bf16.gmra.mxu0 %v7396
  %v8338 = vpop.f32.mrf.mxu0
  %v8339 = vadd.f32 %v8320, %v8338
  %v8340 = vpop.f32.mrf.mxu0
  %v8341 = vadd.f32 %v8322, %v8340
  %8342 = vdwg.mxu0
  %8343 = vmatpush.bf16.msra.mxu0 %v7951
  %8344 = vmatpush.bf16.msra.mxu0 %v7949
  %8345 = vmatpush.bf16.msra.mxu0 %v7947
  %8346 = vmatpush.bf16.msra.mxu0 %v7945
  %8347 = vmatpush.bf16.msra.mxu0 %v7943
  %8348 = vmatpush.bf16.msra.mxu0 %v7941
  %8349 = vmatpush.bf16.msra.mxu0 %v7939
  %8350 = vmatpush.bf16.msra.mxu0 %v7937
  %8351 = vmatmul.bf16.gmra.mxu0 %v7389
  %v8352 = vpop.f32.mrf.mxu0
  %v8353 = vadd.f32 %v8334, %v8352
  %v8354 = vpop.f32.mrf.mxu0
  %v8355 = vadd.f32 %v8336, %v8354
  %8356 = vmatmul.bf16.gmra.mxu0 %v7397
  %v8357 = vpop.f32.mrf.mxu0
  %v8358 = vadd.f32 %v8339, %v8357
  %v8359 = vpop.f32.mrf.mxu0
  %v8360 = vadd.f32 %v8341, %v8359
  %8361 = vdwg.mxu0
  %8362 = vmatpush.bf16.msra.mxu0 %v7967
  %8363 = vmatpush.bf16.msra.mxu0 %v7965
  %8364 = vmatpush.bf16.msra.mxu0 %v7963
  %8365 = vmatpush.bf16.msra.mxu0 %v7961
  %8366 = vmatpush.bf16.msra.mxu0 %v7959
  %8367 = vmatpush.bf16.msra.mxu0 %v7957
  %8368 = vmatpush.bf16.msra.mxu0 %v7955
  %8369 = vmatpush.bf16.msra.mxu0 %v7953
  %8370 = vmatmul.bf16.gmra.mxu0 %v7390
  %v8371 = vpop.f32.mrf.mxu0
  %v8372 = vadd.f32 %v8353, %v8371
  %v8373 = vpop.f32.mrf.mxu0
  %v8374 = vadd.f32 %v8355, %v8373
  %8375 = vmatmul.bf16.gmra.mxu0 %v7398
  %v8376 = vpop.f32.mrf.mxu0
  %v8377 = vadd.f32 %v8358, %v8376
  %v8378 = vpop.f32.mrf.mxu0
  %v8379 = vadd.f32 %v8360, %v8378
  %8380 = vdwg.mxu0
  %8381 = vmatpush.bf16.msra.mxu0 %v7983
  %8382 = vmatpush.bf16.msra.mxu0 %v7981
  %8383 = vmatpush.bf16.msra.mxu0 %v7979
  %8384 = vmatpush.bf16.msra.mxu0 %v7977
  %8385 = vmatpush.bf16.msra.mxu0 %v7975
  %8386 = vmatpush.bf16.msra.mxu0 %v7973
  %8387 = vmatpush.bf16.msra.mxu0 %v7971
  %8388 = vmatpush.bf16.msra.mxu0 %v7969
  %8389 = vmatmul.bf16.gmra.mxu0 %v7391
  %v8390 = vpop.f32.mrf.mxu0
  %v8391 = vadd.f32 %v8372, %v8390
  %v8392 = vpop.f32.mrf.mxu0
  %v8393 = vadd.f32 %v8374, %v8392
  %8394 = vmatmul.bf16.gmra.mxu0 %v7399
  %v8395 = vpop.f32.mrf.mxu0
  %v8396 = vadd.f32 %v8377, %v8395
  %v8397 = vpop.f32.mrf.mxu0
  %v8398 = vadd.f32 %v8379, %v8397
  %8399 = vdwg.mxu0
  %8400 = vmatpush.bf16.msra.mxu0 %v7999
  %8401 = vmatpush.bf16.msra.mxu0 %v7997
  %8402 = vmatpush.bf16.msra.mxu0 %v7995
  %8403 = vmatpush.bf16.msra.mxu0 %v7993
  %8404 = vmatpush.bf16.msra.mxu0 %v7991
  %8405 = vmatpush.bf16.msra.mxu0 %v7989
  %8406 = vmatpush.bf16.msra.mxu0 %v7987
  %8407 = vmatpush.bf16.msra.mxu0 %v7985
  %8408 = vmatmul.bf16.gmra.mxu0 %v7392
  %v8409 = vpop.f32.mrf.mxu0
  %v8410 = vadd.f32 %v8391, %v8409
  %v8411 = vpop.f32.mrf.mxu0
  %v8412 = vadd.f32 %v8393, %v8411
  %8413 = vmatmul.bf16.gmra.mxu0 %v7400
  %v8414 = vpop.f32.mrf.mxu0
  %v8415 = vadd.f32 %v8396, %v8414
  %v8416 = vpop.f32.mrf.mxu0
  %v8417 = vadd.f32 %v8398, %v8416
  %8418 = vdwg.mxu0
  %8419 = vmatpush.bf16.msra.mxu0 0
  %8420 = vmatpush.bf16.msra.mxu0 0
  %8421 = vmatpush.bf16.msra.mxu0 0
  %8422 = vmatpush.bf16.msra.mxu0 0
  %8423 = vmatpush.bf16.msra.mxu0 %v8007
  %8424 = vmatpush.bf16.msra.mxu0 %v8005
  %8425 = vmatpush.bf16.msra.mxu0 %v8003
  %8426 = vmatpush.bf16.msra.mxu0 %v8001
  %8427 = vmatmul.bf16.gmra.mxu0 %v8129
  %v8428 = vpop.f32.mrf.mxu0
  %v8429 = vadd.f32 %v8410, %v8428
  %v8430 = vpop.f32.mrf.mxu0
  %v8431 = vadd.f32 %v8412, %v8430
  %8432 = vmatmul.bf16.gmra.mxu0 %v8132
  %v8433 = vpop.f32.mrf.mxu0
  %v8434 = vadd.f32 %v8415, %v8433
  %v8435 = vpop.f32.mrf.mxu0
  %v8436 = vadd.f32 %v8417, %v8435
  %8437 = vdwg.mxu0
  %v8438 = vmax.f32 %v8277, 0.0
  %v8439 = vmax.f32 %v8429, 0.0
  %v8440 = vmax.f32 %v8279, 0.0
  %v8441 = vmax.f32 %v8431, 0.0
  %v8442 = vmax.f32 %v8282, 0.0
  %v8443 = vmax.f32 %v8434, 0.0
  %v8444 = vmax.f32 %v8284, 0.0
  %v8445 = vmax.f32 %v8436, 0.0
  %v8446 = vpack.c.bf16 %v8439, %v8438
  %v8447 = vpack.c.bf16 %v8441, %v8440
  %v8448 = vpack.c.bf16 %v8443, %v8442
  %v8449 = vpack.c.bf16 %v8445, %v8444
  %v8454 = vunpack.c.l.b16 %v8446
  %v8455 = vunpack.c.h.b16 %v8446
  %v8456 = vunpack.c.l.b16 %v8447
  %v8457 = vunpack.c.h.b16 %v8447
  %v8458 = vunpack.c.l.b16 %v8448
  %v8459 = vunpack.c.h.b16 %v8448
  %v8460 = vunpack.c.l.b16 %v8449
  %v8461 = vunpack.c.h.b16 %v8449
  %v8462 = vpack.c.b16 %v8456, %v8454
  %v8463 = vpack.c.b16 %v8457, %v8455
  %v8464 = vpack.c.b16 %v8460, %v8458
  %v8465 = vpack.c.b16 %v8461, %v8459
  %v8467 = vshrl.u32 %v8462, 16
  %v8469 = vrot.slane %v8467, 5
  %v8470 = vshll.u32 %v8462, 16
  %v8472 = vrot.slane %v8470, 6
  %v8473 = vor.u32 %v8469, %v8472
  %v8475 = vshrl.u32 %v8463, 16
  %v8477 = vrot.slane %v8475, 5
  %v8478 = vshll.u32 %v8463, 16
  %v8480 = vrot.slane %v8478, 6
  %v8481 = vor.u32 %v8477, %v8480
  %v8483 = vshrl.u32 %v8464, 16
  %v8485 = vrot.slane %v8483, 5
  %v8486 = vshll.u32 %v8464, 16
  %v8488 = vrot.slane %v8486, 6
  %v8489 = vor.u32 %v8485, %v8488
  %v8490 = vsel %vm1115, %v8473, %v8489
  %v8492 = vshrl.u32 %v8465, 16
  %v8494 = vrot.slane %v8492, 5
  %v8495 = vshll.u32 %v8465, 16
  %v8497 = vrot.slane %v8495, 6
  %v8498 = vor.u32 %v8494, %v8497
  %v8499 = vsel %vm1115, %v8481, %v8498
  %v8504 = vsel %vm1155, 0, %v8473
  %v8505 = vsel %vm1155, 0, %v8481
  %v8506 = vld [vmem:[%s4] sm:$0xf]
  %v8507 = vld [vmem:[%s4 + $0x4] sm:$0xf]
  %v8508 = vld [vmem:[%s4 + $0x8] sm:$0xf]
  %v8509 = vld [vmem:[%s4 + $0xc] sm:$0xf]
  %8511 = vset.pattern.permute.xlu0 0
  %8512 = vperm.xlu0 %8511, %v8506
  %v8513 = vpop.permute.xlu0 %8512
  %v8516 = vunpack.c.l.s4 839922192
  %v8517 = vunpack.c.0.s8 %v8516
  %v8518 = vperm.slane %v8513, %v8517
  %8520 = vset.pattern.permute.xlu0 0
  %8521 = vperm.xlu0 %8520, %v8507
  %v8522 = vpop.permute.xlu0 %8521
  %v8525 = vunpack.c.l.s4 839922192
  %v8526 = vunpack.c.0.s8 %v8525
  %v8527 = vperm.slane %v8522, %v8526
  %8529 = vset.pattern.permute.xlu0 0
  %8530 = vperm.xlu0 %8529, %v8508
  %v8531 = vpop.permute.xlu0 %8530
  %v8534 = vunpack.c.l.s4 839922192
  %v8535 = vunpack.c.0.s8 %v8534
  %v8536 = vperm.slane %v8531, %v8535
  %8538 = vset.pattern.permute.xlu0 0
  %8539 = vperm.xlu0 %8538, %v8509
  %v8540 = vpop.permute.xlu0 %8539
  %v8543 = vunpack.c.l.s4 839922192
  %v8544 = vunpack.c.0.s8 %v8543
  %v8545 = vperm.slane %v8540, %v8544
  %v8546 = vunpack.c.l.bf16 %v8504
  %v8547 = vunpack.c.l.bf16 %v8505
  %v8548 = vunpack.c.h.bf16 %v8504
  %v8549 = vunpack.c.h.bf16 %v8505
  %v8550 = vunpack.c.l.bf16 %v8490
  %v8551 = vunpack.c.l.bf16 %v8499
  %v8552 = vunpack.c.h.bf16 %v8490
  %v8553 = vunpack.c.h.bf16 %v8499
  %v8554 = vunpack.c.l.bf16 %v8518
  %v8555 = vunpack.c.l.bf16 %v8527
  %v8556 = vunpack.c.l.bf16 %v8536
  %v8557 = vunpack.c.l.bf16 %v8545
  %v8558 = vmul.f32 %v8546, %v8554
  %v8559 = vmul.f32 %v8547, %v8554
  %v8560 = vmul.f32 %v8548, %v8555
  %v8561 = vmul.f32 %v8549, %v8555
  %v8562 = vmul.f32 %v8550, %v8556
  %v8563 = vmul.f32 %v8551, %v8556
  %v8564 = vmul.f32 %v8552, %v8557
  %v8565 = vmul.f32 %v8553, %v8557
  %v8566 = vpack.c.bf16 %v8559, %v8558
  %v8567 = vpack.c.bf16 %v8561, %v8560
  %v8568 = vpack.c.bf16 %v8563, %v8562
  %v8569 = vpack.c.bf16 %v8565, %v8564
  %v8570 = vrot.slane %v8462, 6
  %v8571 = vrot.slane %v8463, 6
  %v8572 = vrot.slane %v8464, 6
  %v8573 = vsel %vm1238, %v8570, %v8572
  %v8574 = vrot.slane %v8465, 6
  %v8575 = vsel %vm1238, %v8571, %v8574
  %v8579 = vsel %vm1247, 0, %v8570
  %v8582 = vsel %vm1247, 0, %v8571
  %s8584 = scalar_lea.vmem %s4, 16
  %v8585 = vld [vmem:[%s8584] sm:$0xf]
  %v8586 = vld [vmem:[%s8584 + $0x4] sm:$0xf]
  %v8587 = vld [vmem:[%s8584 + $0x8] sm:$0xf]
  %v8588 = vld [vmem:[%s8584 + $0xc] sm:$0xf]
  %8590 = vset.pattern.permute.xlu0 0
  %8591 = vperm.xlu0 %8590, %v8585
  %v8592 = vpop.permute.xlu0 %8591
  %v8595 = vunpack.c.l.s4 839922192
  %v8596 = vunpack.c.0.s8 %v8595
  %v8597 = vperm.slane %v8592, %v8596
  %8599 = vset.pattern.permute.xlu0 0
  %8600 = vperm.xlu0 %8599, %v8586
  %v8601 = vpop.permute.xlu0 %8600
  %v8604 = vunpack.c.l.s4 839922192
  %v8605 = vunpack.c.0.s8 %v8604
  %v8606 = vperm.slane %v8601, %v8605
  %8608 = vset.pattern.permute.xlu0 0
  %8609 = vperm.xlu0 %8608, %v8587
  %v8610 = vpop.permute.xlu0 %8609
  %v8613 = vunpack.c.l.s4 839922192
  %v8614 = vunpack.c.0.s8 %v8613
  %v8615 = vperm.slane %v8610, %v8614
  %8617 = vset.pattern.permute.xlu0 0
  %8618 = vperm.xlu0 %8617, %v8588
  %v8619 = vpop.permute.xlu0 %8618
  %v8622 = vunpack.c.l.s4 839922192
  %v8623 = vunpack.c.0.s8 %v8622
  %v8624 = vperm.slane %v8619, %v8623
  %v8625 = vunpack.c.l.bf16 %v8579
  %v8626 = vunpack.c.l.bf16 %v8582
  %v8627 = vunpack.c.h.bf16 %v8579
  %v8628 = vunpack.c.h.bf16 %v8582
  %v8629 = vunpack.c.l.bf16 %v8573
  %v8630 = vunpack.c.l.bf16 %v8575
  %v8631 = vunpack.c.h.bf16 %v8573
  %v8632 = vunpack.c.h.bf16 %v8575
  %v8633 = vunpack.c.l.bf16 %v8597
  %v8634 = vunpack.c.l.bf16 %v8606
  %v8635 = vunpack.c.l.bf16 %v8615
  %v8636 = vunpack.c.l.bf16 %v8624
  %v8637 = vmul.f32 %v8625, %v8633
  %v8638 = vmul.f32 %v8626, %v8633
  %v8639 = vmul.f32 %v8627, %v8634
  %v8640 = vmul.f32 %v8628, %v8634
  %v8641 = vmul.f32 %v8629, %v8635
  %v8642 = vmul.f32 %v8630, %v8635
  %v8643 = vmul.f32 %v8631, %v8636
  %v8644 = vmul.f32 %v8632, %v8636
  %v8645 = vpack.c.bf16 %v8638, %v8637
  %v8646 = vpack.c.bf16 %v8640, %v8639
  %v8647 = vpack.c.bf16 %v8642, %v8641
  %v8648 = vpack.c.bf16 %v8644, %v8643
  %vm8649 = vsmask.f32 1280
  %v8650 = vrot.slane %v8467, 6
  %v8651 = vrot.slane %v8470, 7
  %v8652 = vor.u32 %v8650, %v8651
  %v8653 = vrot.slane %v8475, 6
  %v8654 = vrot.slane %v8478, 7
  %v8655 = vor.u32 %v8653, %v8654
  %v8656 = vrot.slane %v8483, 6
  %v8657 = vrot.slane %v8486, 7
  %v8658 = vor.u32 %v8656, %v8657
  %v8659 = vsel %vm8649, %v8652, %v8658
  %v8660 = vrot.slane %v8492, 6
  %v8661 = vrot.slane %v8495, 7
  %v8662 = vor.u32 %v8660, %v8661
  %v8663 = vsel %vm8649, %v8655, %v8662
  %vm8668 = vmand %vm1238, %vm8649
  %v8669 = vsel %vm8668, 0, %v8652
  %v8670 = vsel %vm8668, 0, %v8655
  %s8671 = scalar_lea.vmem %s4, 32
  %v8672 = vld [vmem:[%s8671] sm:$0xf]
  %v8673 = vld [vmem:[%s8671 + $0x4] sm:$0xf]
  %v8674 = vld [vmem:[%s8671 + $0x8] sm:$0xf]
  %v8675 = vld [vmem:[%s8671 + $0xc] sm:$0xf]
  %8677 = vset.pattern.permute.xlu0 0
  %8678 = vperm.xlu0 %8677, %v8672
  %v8679 = vpop.permute.xlu0 %8678
  %v8682 = vunpack.c.l.s4 839922192
  %v8683 = vunpack.c.0.s8 %v8682
  %v8684 = vperm.slane %v8679, %v8683
  %8686 = vset.pattern.permute.xlu0 0
  %8687 = vperm.xlu0 %8686, %v8673
  %v8688 = vpop.permute.xlu0 %8687
  %v8691 = vunpack.c.l.s4 839922192
  %v8692 = vunpack.c.0.s8 %v8691
  %v8693 = vperm.slane %v8688, %v8692
  %8695 = vset.pattern.permute.xlu0 0
  %8696 = vperm.xlu0 %8695, %v8674
  %v8697 = vpop.permute.xlu0 %8696
  %v8700 = vunpack.c.l.s4 839922192
  %v8701 = vunpack.c.0.s8 %v8700
  %v8702 = vperm.slane %v8697, %v8701
  %8704 = vset.pattern.permute.xlu0 0
  %8705 = vperm.xlu0 %8704, %v8675
  %v8706 = vpop.permute.xlu0 %8705
  %v8709 = vunpack.c.l.s4 839922192
  %v8710 = vunpack.c.0.s8 %v8709
  %v8711 = vperm.slane %v8706, %v8710
  %v8712 = vunpack.c.l.bf16 %v8669
  %v8713 = vunpack.c.l.bf16 %v8670
  %v8714 = vunpack.c.h.bf16 %v8669
  %v8715 = vunpack.c.h.bf16 %v8670
  %v8716 = vunpack.c.l.bf16 %v8659
  %v8717 = vunpack.c.l.bf16 %v8663
  %v8718 = vunpack.c.h.bf16 %v8659
  %v8719 = vunpack.c.h.bf16 %v8663
  %v8720 = vunpack.c.l.bf16 %v8684
  %v8721 = vunpack.c.l.bf16 %v8693
  %v8722 = vunpack.c.l.bf16 %v8702
  %v8723 = vunpack.c.l.bf16 %v8711
  %v8724 = vmul.f32 %v8712, %v8720
  %v8725 = vmul.f32 %v8713, %v8720
  %v8726 = vmul.f32 %v8714, %v8721
  %v8727 = vmul.f32 %v8715, %v8721
  %v8728 = vmul.f32 %v8716, %v8722
  %v8729 = vmul.f32 %v8717, %v8722
  %v8730 = vmul.f32 %v8718, %v8723
  %v8731 = vmul.f32 %v8719, %v8723
  %v8732 = vpack.c.bf16 %v8725, %v8724
  %v8733 = vpack.c.bf16 %v8727, %v8726
  %v8734 = vpack.c.bf16 %v8729, %v8728
  %v8735 = vpack.c.bf16 %v8731, %v8730
  %v8736 = vrot.slane %v8467, 7
  %v8737 = vor.u32 %v8736, %v8470
  %v8738 = vrot.slane %v8475, 7
  %v8739 = vor.u32 %v8738, %v8478
  %v8740 = vrot.slane %v8483, 7
  %v8741 = vor.u32 %v8740, %v8486
  %v8742 = vsel %vm1415, %v8736, %v8741
  %v8743 = vrot.slane %v8492, 7
  %v8744 = vor.u32 %v8743, %v8495
  %v8745 = vsel %vm1415, %v8738, %v8744
  %v8750 = vsel %vm1451, 0, %v8737
  %v8751 = vsel %vm1451, 0, %v8739
  %s8752 = scalar_lea.vmem %s4, 48
  %v8753 = vld [vmem:[%s8752] sm:$0xf]
  %v8754 = vld [vmem:[%s8752 + $0x4] sm:$0xf]
  %v8755 = vld [vmem:[%s8752 + $0x8] sm:$0xf]
  %v8756 = vld [vmem:[%s8752 + $0xc] sm:$0xf]
  %8758 = vset.pattern.permute.xlu0 0
  %8759 = vperm.xlu0 %8758, %v8753
  %v8760 = vpop.permute.xlu0 %8759
  %v8763 = vunpack.c.l.s4 839922192
  %v8764 = vunpack.c.0.s8 %v8763
  %v8765 = vperm.slane %v8760, %v8764
  %8767 = vset.pattern.permute.xlu0 0
  %8768 = vperm.xlu0 %8767, %v8754
  %v8769 = vpop.permute.xlu0 %8768
  %v8772 = vunpack.c.l.s4 839922192
  %v8773 = vunpack.c.0.s8 %v8772
  %v8774 = vperm.slane %v8769, %v8773
  %8776 = vset.pattern.permute.xlu0 0
  %8777 = vperm.xlu0 %8776, %v8755
  %v8778 = vpop.permute.xlu0 %8777
  %v8781 = vunpack.c.l.s4 839922192
  %v8782 = vunpack.c.0.s8 %v8781
  %v8783 = vperm.slane %v8778, %v8782
  %8785 = vset.pattern.permute.xlu0 0
  %8786 = vperm.xlu0 %8785, %v8756
  %v8787 = vpop.permute.xlu0 %8786
  %v8790 = vunpack.c.l.s4 839922192
  %v8791 = vunpack.c.0.s8 %v8790
  %v8792 = vperm.slane %v8787, %v8791
  %v8793 = vunpack.c.l.bf16 %v8750
  %v8794 = vunpack.c.l.bf16 %v8751
  %v8795 = vunpack.c.h.bf16 %v8750
  %v8796 = vunpack.c.h.bf16 %v8751
  %v8797 = vunpack.c.l.bf16 %v8742
  %v8798 = vunpack.c.l.bf16 %v8745
  %v8799 = vunpack.c.h.bf16 %v8742
  %v8800 = vunpack.c.h.bf16 %v8745
  %v8801 = vunpack.c.l.bf16 %v8765
  %v8802 = vunpack.c.l.bf16 %v8774
  %v8803 = vunpack.c.l.bf16 %v8783
  %v8804 = vunpack.c.l.bf16 %v8792
  %v8805 = vmul.f32 %v8793, %v8801
  %v8806 = vmul.f32 %v8794, %v8801
  %v8807 = vmul.f32 %v8795, %v8802
  %v8808 = vmul.f32 %v8796, %v8802
  %v8809 = vmul.f32 %v8797, %v8803
  %v8810 = vmul.f32 %v8798, %v8803
  %v8811 = vmul.f32 %v8799, %v8804
  %v8812 = vmul.f32 %v8800, %v8804
  %v8813 = vpack.c.bf16 %v8806, %v8805
  %v8814 = vpack.c.bf16 %v8808, %v8807
  %v8815 = vpack.c.bf16 %v8810, %v8809
  %v8816 = vpack.c.bf16 %v8812, %v8811
  %vm8817 = vsmask.f32 7424
  %v8818 = vrot.slane %v8470, 1
  %v8819 = vor.u32 %v8467, %v8818
  %v8820 = vrot.slane %v8486, 1
  %v8821 = vsel %vm8817, %v8819, %v8820
  %v8822 = vrot.slane %v8478, 1
  %v8823 = vor.u32 %v8475, %v8822
  %v8824 = vrot.slane %v8495, 1
  %v8825 = vsel %vm8817, %v8823, %v8824
  %v8826 = vor.u32 %v8483, %v8820
  %v8827 = vor.u32 %v8492, %v8824
  %vm8832 = vcmask 1047552
  %vm8833 = vmand %vm8832, %vm8817
  %v8834 = vsel %vm8833, %v8826, 0
  %v8835 = vsel %vm8833, %v8827, 0
  %s8836 = scalar_lea.vmem %s4, 80
  %v8837 = vld [vmem:[%s8836] sm:$0xf]
  %v8838 = vld [vmem:[%s8836 + $0x4] sm:$0xf]
  %v8839 = vld [vmem:[%s8836 + $0x8] sm:$0xf]
  %v8840 = vld [vmem:[%s8836 + $0xc] sm:$0xf]
  %8842 = vset.pattern.permute.xlu0 0
  %8843 = vperm.xlu0 %8842, %v8837
  %v8844 = vpop.permute.xlu0 %8843
  %v8847 = vunpack.c.l.s4 839922192
  %v8848 = vunpack.c.0.s8 %v8847
  %v8849 = vperm.slane %v8844, %v8848
  %8851 = vset.pattern.permute.xlu0 0
  %8852 = vperm.xlu0 %8851, %v8838
  %v8853 = vpop.permute.xlu0 %8852
  %v8856 = vunpack.c.l.s4 839922192
  %v8857 = vunpack.c.0.s8 %v8856
  %v8858 = vperm.slane %v8853, %v8857
  %8860 = vset.pattern.permute.xlu0 0
  %8861 = vperm.xlu0 %8860, %v8839
  %v8862 = vpop.permute.xlu0 %8861
  %v8865 = vunpack.c.l.s4 839922192
  %v8866 = vunpack.c.0.s8 %v8865
  %v8867 = vperm.slane %v8862, %v8866
  %8869 = vset.pattern.permute.xlu0 0
  %8870 = vperm.xlu0 %8869, %v8840
  %v8871 = vpop.permute.xlu0 %8870
  %v8874 = vunpack.c.l.s4 839922192
  %v8875 = vunpack.c.0.s8 %v8874
  %v8876 = vperm.slane %v8871, %v8875
  %v8877 = vunpack.c.l.bf16 %v8821
  %v8878 = vunpack.c.l.bf16 %v8825
  %v8879 = vunpack.c.h.bf16 %v8821
  %v8880 = vunpack.c.h.bf16 %v8825
  %v8881 = vunpack.c.l.bf16 %v8834
  %v8882 = vunpack.c.l.bf16 %v8835
  %v8883 = vunpack.c.h.bf16 %v8834
  %v8884 = vunpack.c.h.bf16 %v8835
  %v8885 = vunpack.c.l.bf16 %v8849
  %v8886 = vunpack.c.l.bf16 %v8858
  %v8887 = vunpack.c.l.bf16 %v8867
  %v8888 = vunpack.c.l.bf16 %v8876
  %v8889 = vmul.f32 %v8877, %v8885
  %v8890 = vmul.f32 %v8878, %v8885
  %v8891 = vmul.f32 %v8879, %v8886
  %v8892 = vmul.f32 %v8880, %v8886
  %v8893 = vmul.f32 %v8881, %v8887
  %v8894 = vmul.f32 %v8882, %v8887
  %v8895 = vmul.f32 %v8883, %v8888
  %v8896 = vmul.f32 %v8884, %v8888
  %v8897 = vpack.c.bf16 %v8890, %v8889
  %v8898 = vpack.c.bf16 %v8892, %v8891
  %v8899 = vpack.c.bf16 %v8894, %v8893
  %v8900 = vpack.c.bf16 %v8896, %v8895
  %vm8901 = vsmask.f32 6400
  %v8902 = vrot.slane %v8467, 1
  %v8903 = vrot.slane %v8470, 2
  %v8904 = vor.u32 %v8902, %v8903
  %v8905 = vrot.slane %v8483, 1
  %v8906 = vrot.slane %v8486, 2
  %v8907 = vor.u32 %v8905, %v8906
  %v8908 = vsel %vm8901, %v8904, %v8907
  %v8909 = vrot.slane %v8475, 1
  %v8910 = vrot.slane %v8478, 2
  %v8911 = vor.u32 %v8909, %v8910
  %v8912 = vrot.slane %v8492, 1
  %v8913 = vrot.slane %v8495, 2
  %v8914 = vor.u32 %v8912, %v8913
  %v8915 = vsel %vm8901, %v8911, %v8914
  %vm8920 = vcmask 1046528
  %vm8921 = vmand %vm8920, %vm8901
  %v8922 = vsel %vm8921, %v8907, 0
  %v8923 = vsel %vm8921, %v8914, 0
  %s8924 = scalar_lea.vmem %s4, 96
  %v8925 = vld [vmem:[%s8924] sm:$0xf]
  %v8926 = vld [vmem:[%s8924 + $0x4] sm:$0xf]
  %v8927 = vld [vmem:[%s8924 + $0x8] sm:$0xf]
  %v8928 = vld [vmem:[%s8924 + $0xc] sm:$0xf]
  %8930 = vset.pattern.permute.xlu0 0
  %8931 = vperm.xlu0 %8930, %v8925
  %v8932 = vpop.permute.xlu0 %8931
  %v8935 = vunpack.c.l.s4 839922192
  %v8936 = vunpack.c.0.s8 %v8935
  %v8937 = vperm.slane %v8932, %v8936
  %8939 = vset.pattern.permute.xlu0 0
  %8940 = vperm.xlu0 %8939, %v8926
  %v8941 = vpop.permute.xlu0 %8940
  %v8944 = vunpack.c.l.s4 839922192
  %v8945 = vunpack.c.0.s8 %v8944
  %v8946 = vperm.slane %v8941, %v8945
  %8948 = vset.pattern.permute.xlu0 0
  %8949 = vperm.xlu0 %8948, %v8927
  %v8950 = vpop.permute.xlu0 %8949
  %v8953 = vunpack.c.l.s4 839922192
  %v8954 = vunpack.c.0.s8 %v8953
  %v8955 = vperm.slane %v8950, %v8954
  %8957 = vset.pattern.permute.xlu0 0
  %8958 = vperm.xlu0 %8957, %v8928
  %v8959 = vpop.permute.xlu0 %8958
  %v8962 = vunpack.c.l.s4 839922192
  %v8963 = vunpack.c.0.s8 %v8962
  %v8964 = vperm.slane %v8959, %v8963
  %v8965 = vunpack.c.l.bf16 %v8908
  %v8966 = vunpack.c.l.bf16 %v8915
  %v8967 = vunpack.c.h.bf16 %v8908
  %v8968 = vunpack.c.h.bf16 %v8915
  %v8969 = vunpack.c.l.bf16 %v8922
  %v8970 = vunpack.c.l.bf16 %v8923
  %v8971 = vunpack.c.h.bf16 %v8922
  %v8972 = vunpack.c.h.bf16 %v8923
  %v8973 = vunpack.c.l.bf16 %v8937
  %v8974 = vunpack.c.l.bf16 %v8946
  %v8975 = vunpack.c.l.bf16 %v8955
  %v8976 = vunpack.c.l.bf16 %v8964
  %v8977 = vmul.f32 %v8965, %v8973
  %v8978 = vmul.f32 %v8966, %v8973
  %v8979 = vmul.f32 %v8967, %v8974
  %v8980 = vmul.f32 %v8968, %v8974
  %v8981 = vmul.f32 %v8969, %v8975
  %v8982 = vmul.f32 %v8970, %v8975
  %v8983 = vmul.f32 %v8971, %v8976
  %v8984 = vmul.f32 %v8972, %v8976
  %v8985 = vpack.c.bf16 %v8978, %v8977
  %v8986 = vpack.c.bf16 %v8980, %v8979
  %v8987 = vpack.c.bf16 %v8982, %v8981
  %v8988 = vpack.c.bf16 %v8984, %v8983
  %vm8989 = vcmask 1045504
  %v8990 = vrot.slane %v8462, 2
  %v8991 = vrot.slane %v8464, 2
  %v8992 = vsel %vm8989, %v8990, %v8991
  %v8993 = vrot.slane %v8463, 2
  %v8994 = vrot.slane %v8465, 2
  %v8995 = vsel %vm8989, %v8993, %v8994
  %vm8998 = vcmask 1045504
  %v9000 = vsel %vm8998, %v8991, 0
  %v9003 = vsel %vm8998, %v8994, 0
  %s9005 = scalar_lea.vmem %s4, 112
  %v9006 = vld [vmem:[%s9005] sm:$0xf]
  %v9007 = vld [vmem:[%s9005 + $0x4] sm:$0xf]
  %v9008 = vld [vmem:[%s9005 + $0x8] sm:$0xf]
  %v9009 = vld [vmem:[%s9005 + $0xc] sm:$0xf]
  %9011 = vset.pattern.permute.xlu0 0
  %9012 = vperm.xlu0 %9011, %v9006
  %v9013 = vpop.permute.xlu0 %9012
  %v9016 = vunpack.c.l.s4 839922192
  %v9017 = vunpack.c.0.s8 %v9016
  %v9018 = vperm.slane %v9013, %v9017
  %9020 = vset.pattern.permute.xlu0 0
  %9021 = vperm.xlu0 %9020, %v9007
  %v9022 = vpop.permute.xlu0 %9021
  %v9025 = vunpack.c.l.s4 839922192
  %v9026 = vunpack.c.0.s8 %v9025
  %v9027 = vperm.slane %v9022, %v9026
  %9029 = vset.pattern.permute.xlu0 0
  %9030 = vperm.xlu0 %9029, %v9008
  %v9031 = vpop.permute.xlu0 %9030
  %v9034 = vunpack.c.l.s4 839922192
  %v9035 = vunpack.c.0.s8 %v9034
  %v9036 = vperm.slane %v9031, %v9035
  %9038 = vset.pattern.permute.xlu0 0
  %9039 = vperm.xlu0 %9038, %v9009
  %v9040 = vpop.permute.xlu0 %9039
  %v9043 = vunpack.c.l.s4 839922192
  %v9044 = vunpack.c.0.s8 %v9043
  %v9045 = vperm.slane %v9040, %v9044
  %v9046 = vunpack.c.l.bf16 %v8992
  %v9047 = vunpack.c.l.bf16 %v8995
  %v9048 = vunpack.c.h.bf16 %v8992
  %v9049 = vunpack.c.h.bf16 %v8995
  %v9050 = vunpack.c.l.bf16 %v9000
  %v9051 = vunpack.c.l.bf16 %v9003
  %v9052 = vunpack.c.h.bf16 %v9000
  %v9053 = vunpack.c.h.bf16 %v9003
  %v9054 = vunpack.c.l.bf16 %v9018
  %v9055 = vunpack.c.l.bf16 %v9027
  %v9056 = vunpack.c.l.bf16 %v9036
  %v9057 = vunpack.c.l.bf16 %v9045
  %v9058 = vmul.f32 %v9046, %v9054
  %v9059 = vmul.f32 %v9047, %v9054
  %v9060 = vmul.f32 %v9048, %v9055
  %v9061 = vmul.f32 %v9049, %v9055
  %v9062 = vmul.f32 %v9050, %v9056
  %v9063 = vmul.f32 %v9051, %v9056
  %v9064 = vmul.f32 %v9052, %v9057
  %v9065 = vmul.f32 %v9053, %v9057
  %v9066 = vpack.c.bf16 %v9059, %v9058
  %v9067 = vpack.c.bf16 %v9061, %v9060
  %v9068 = vpack.c.bf16 %v9063, %v9062
  %v9069 = vpack.c.bf16 %v9065, %v9064
  %vm9070 = vsmask.f32 5376
  %v9071 = vrot.slane %v8467, 2
  %v9072 = vrot.slane %v8470, 3
  %v9073 = vor.u32 %v9071, %v9072
  %v9074 = vrot.slane %v8483, 2
  %v9075 = vrot.slane %v8486, 3
  %v9076 = vor.u32 %v9074, %v9075
  %v9077 = vsel %vm9070, %v9073, %v9076
  %v9078 = vrot.slane %v8475, 2
  %v9079 = vrot.slane %v8478, 3
  %v9080 = vor.u32 %v9078, %v9079
  %v9081 = vrot.slane %v8492, 2
  %v9082 = vrot.slane %v8495, 3
  %v9083 = vor.u32 %v9081, %v9082
  %v9084 = vsel %vm9070, %v9080, %v9083
  %vm9089 = vmand %vm8989, %vm9070
  %v9090 = vsel %vm9089, %v9076, 0
  %v9091 = vsel %vm9089, %v9083, 0
  %s9092 = scalar_lea.vmem %s4, 128
  %v9093 = vld [vmem:[%s9092] sm:$0xf]
  %v9094 = vld [vmem:[%s9092 + $0x4] sm:$0xf]
  %v9095 = vld [vmem:[%s9092 + $0x8] sm:$0xf]
  %v9096 = vld [vmem:[%s9092 + $0xc] sm:$0xf]
  %9098 = vset.pattern.permute.xlu0 0
  %9099 = vperm.xlu0 %9098, %v9093
  %v9100 = vpop.permute.xlu0 %9099
  %v9103 = vunpack.c.l.s4 839922192
  %v9104 = vunpack.c.0.s8 %v9103
  %v9105 = vperm.slane %v9100, %v9104
  %9107 = vset.pattern.permute.xlu0 0
  %9108 = vperm.xlu0 %9107, %v9094
  %v9109 = vpop.permute.xlu0 %9108
  %v9112 = vunpack.c.l.s4 839922192
  %v9113 = vunpack.c.0.s8 %v9112
  %v9114 = vperm.slane %v9109, %v9113
  %9116 = vset.pattern.permute.xlu0 0
  %9117 = vperm.xlu0 %9116, %v9095
  %v9118 = vpop.permute.xlu0 %9117
  %v9121 = vunpack.c.l.s4 839922192
  %v9122 = vunpack.c.0.s8 %v9121
  %v9123 = vperm.slane %v9118, %v9122
  %9125 = vset.pattern.permute.xlu0 0
  %9126 = vperm.xlu0 %9125, %v9096
  %v9127 = vpop.permute.xlu0 %9126
  %v9130 = vunpack.c.l.s4 839922192
  %v9131 = vunpack.c.0.s8 %v9130
  %v9132 = vperm.slane %v9127, %v9131
  %v9133 = vunpack.c.l.bf16 %v9077
  %v9134 = vunpack.c.l.bf16 %v9084
  %v9135 = vunpack.c.h.bf16 %v9077
  %v9136 = vunpack.c.h.bf16 %v9084
  %v9137 = vunpack.c.l.bf16 %v9090
  %v9138 = vunpack.c.l.bf16 %v9091
  %v9139 = vunpack.c.h.bf16 %v9090
  %v9140 = vunpack.c.h.bf16 %v9091
  %v9141 = vunpack.c.l.bf16 %v9105
  %v9142 = vunpack.c.l.bf16 %v9114
  %v9143 = vunpack.c.l.bf16 %v9123
  %v9144 = vunpack.c.l.bf16 %v9132
  %v9145 = vmul.f32 %v9133, %v9141
  %v9146 = vmul.f32 %v9134, %v9141
  %v9147 = vmul.f32 %v9135, %v9142
  %v9148 = vmul.f32 %v9136, %v9142
  %v9149 = vmul.f32 %v9137, %v9143
  %v9150 = vmul.f32 %v9138, %v9143
  %v9151 = vmul.f32 %v9139, %v9144
  %v9152 = vmul.f32 %v9140, %v9144
  %v9153 = vpack.c.bf16 %v9146, %v9145
  %v9154 = vpack.c.bf16 %v9148, %v9147
  %v9155 = vpack.c.bf16 %v9150, %v9149
  %v9156 = vpack.c.bf16 %v9152, %v9151
  %v9161 = vunpack.c.l.b16 %v8566
  %v9162 = vunpack.c.h.b16 %v8566
  %v9163 = vunpack.c.l.b16 %v8567
  %v9164 = vunpack.c.h.b16 %v8567
  %v9165 = vunpack.c.l.b16 %v8568
  %v9166 = vunpack.c.h.b16 %v8568
  %v9167 = vunpack.c.l.b16 %v8569
  %v9168 = vunpack.c.h.b16 %v8569
  %v9169 = vpack.c.b16 %v9163, %v9161
  %v9170 = vpack.c.b16 %v9164, %v9162
  %v9171 = vpack.c.b16 %v9167, %v9165
  %v9172 = vpack.c.b16 %v9168, %v9166
  %v9179 = vunpack.c.l.b16 %v8645
  %v9180 = vunpack.c.h.b16 %v8645
  %v9181 = vunpack.c.l.b16 %v8646
  %v9182 = vunpack.c.h.b16 %v8646
  %v9183 = vunpack.c.l.b16 %v8647
  %v9184 = vunpack.c.h.b16 %v8647
  %v9185 = vunpack.c.l.b16 %v8648
  %v9186 = vunpack.c.h.b16 %v8648
  %v9187 = vpack.c.b16 %v9181, %v9179
  %v9188 = vpack.c.b16 %v9182, %v9180
  %v9189 = vpack.c.b16 %v9185, %v9183
  %v9190 = vpack.c.b16 %v9186, %v9184
  %9191 = vrot.lane.b32.xlu0 %v9187, 112
  %v9192 = vpop.permute.xlu0 %9191
  %9193 = vrot.lane.b32.xlu0 %v9188, 112
  %v9194 = vpop.permute.xlu0 %9193
  %9195 = vrot.lane.b32.xlu0 %v9189, 112
  %v9196 = vpop.permute.xlu0 %9195
  %9197 = vrot.lane.b32.xlu0 %v9190, 112
  %v9198 = vpop.permute.xlu0 %9197
  %vm9199 = vcmask 916480
  %v9200 = vsel %vm9199, %v9192, %v9194
  %v9201 = vsel %vm9199, %v9196, %v9198
  %v9208 = vunpack.c.l.b16 %v8732
  %v9209 = vunpack.c.h.b16 %v8732
  %v9210 = vunpack.c.l.b16 %v8733
  %v9211 = vunpack.c.h.b16 %v8733
  %v9212 = vunpack.c.l.b16 %v8734
  %v9213 = vunpack.c.h.b16 %v8734
  %v9214 = vunpack.c.l.b16 %v8735
  %v9215 = vunpack.c.h.b16 %v8735
  %v9216 = vpack.c.b16 %v9210, %v9208
  %v9217 = vpack.c.b16 %v9211, %v9209
  %v9218 = vpack.c.b16 %v9214, %v9212
  %v9219 = vpack.c.b16 %v9215, %v9213
  %9220 = vrot.lane.b32.xlu0 %v9216, 96
  %v9221 = vpop.permute.xlu0 %9220
  %9222 = vrot.lane.b32.xlu0 %v9217, 96
  %v9223 = vpop.permute.xlu0 %9222
  %9224 = vrot.lane.b32.xlu0 %v9218, 96
  %v9225 = vpop.permute.xlu0 %9224
  %9226 = vrot.lane.b32.xlu0 %v9219, 96
  %v9227 = vpop.permute.xlu0 %9226
  %v9228 = vsel %vm1642, %v9221, %v9223
  %v9229 = vsel %vm1642, %v9225, %v9227
  %v9236 = vunpack.c.l.b16 %v8813
  %v9237 = vunpack.c.h.b16 %v8813
  %v9238 = vunpack.c.l.b16 %v8814
  %v9239 = vunpack.c.h.b16 %v8814
  %v9240 = vunpack.c.l.b16 %v8815
  %v9241 = vunpack.c.h.b16 %v8815
  %v9242 = vunpack.c.l.b16 %v8816
  %v9243 = vunpack.c.h.b16 %v8816
  %v9244 = vpack.c.b16 %v9238, %v9236
  %v9245 = vpack.c.b16 %v9239, %v9237
  %v9246 = vpack.c.b16 %v9242, %v9240
  %v9247 = vpack.c.b16 %v9243, %v9241
  %9248 = vrot.lane.b32.xlu0 %v9244, 80
  %v9249 = vpop.permute.xlu0 %9248
  %9250 = vrot.lane.b32.xlu0 %v9245, 80
  %v9251 = vpop.permute.xlu0 %9250
  %9252 = vrot.lane.b32.xlu0 %v9246, 80
  %v9253 = vpop.permute.xlu0 %9252
  %9254 = vrot.lane.b32.xlu0 %v9247, 80
  %v9255 = vpop.permute.xlu0 %9254
  %vm9256 = vcmask 654336
  %v9257 = vsel %vm9256, %v9249, %v9251
  %v9258 = vsel %vm9256, %v9253, %v9255
  %9261 = vrot.lane.b32.xlu0 %v8462, 64
  %v9262 = vpop.permute.xlu0 %9261
  %9263 = vrot.lane.b32.xlu0 %v8463, 64
  %v9264 = vpop.permute.xlu0 %9263
  %9265 = vrot.lane.b32.xlu0 %v8464, 64
  %v9266 = vpop.permute.xlu0 %9265
  %9267 = vrot.lane.b32.xlu0 %v8465, 64
  %v9268 = vpop.permute.xlu0 %9267
  %v9269 = vsel %vm1671, %v9262, %v9264
  %v9270 = vsel %vm1671, %v9266, %v9268
  %v9277 = vunpack.c.l.b16 %v8897
  %v9278 = vunpack.c.h.b16 %v8897
  %v9279 = vunpack.c.l.b16 %v8898
  %v9280 = vunpack.c.h.b16 %v8898
  %v9281 = vunpack.c.l.b16 %v8899
  %v9282 = vunpack.c.h.b16 %v8899
  %v9283 = vunpack.c.l.b16 %v8900
  %v9284 = vunpack.c.h.b16 %v8900
  %v9285 = vpack.c.b16 %v9279, %v9277
  %v9286 = vpack.c.b16 %v9280, %v9278
  %v9287 = vpack.c.b16 %v9283, %v9281
  %v9288 = vpack.c.b16 %v9284, %v9282
  %9289 = vrot.lane.b32.xlu0 %v9285, 48
  %v9290 = vpop.permute.xlu0 %9289
  %9291 = vrot.lane.b32.xlu0 %v9286, 48
  %v9292 = vpop.permute.xlu0 %9291
  %9293 = vrot.lane.b32.xlu0 %v9287, 48
  %v9294 = vpop.permute.xlu0 %9293
  %9295 = vrot.lane.b32.xlu0 %v9288, 48
  %v9296 = vpop.permute.xlu0 %9295
  %vm9297 = vcmask 392192
  %v9298 = vsel %vm9297, %v9290, %v9292
  %v9299 = vsel %vm9297, %v9294, %v9296
  %v9306 = vunpack.c.l.b16 %v8985
  %v9307 = vunpack.c.h.b16 %v8985
  %v9308 = vunpack.c.l.b16 %v8986
  %v9309 = vunpack.c.h.b16 %v8986
  %v9310 = vunpack.c.l.b16 %v8987
  %v9311 = vunpack.c.h.b16 %v8987
  %v9312 = vunpack.c.l.b16 %v8988
  %v9313 = vunpack.c.h.b16 %v8988
  %v9314 = vpack.c.b16 %v9308, %v9306
  %v9315 = vpack.c.b16 %v9309, %v9307
  %v9316 = vpack.c.b16 %v9312, %v9310
  %v9317 = vpack.c.b16 %v9313, %v9311
  %9318 = vrot.lane.b32.xlu0 %v9314, 32
  %v9319 = vpop.permute.xlu0 %9318
  %9320 = vrot.lane.b32.xlu0 %v9315, 32
  %v9321 = vpop.permute.xlu0 %9320
  %9322 = vrot.lane.b32.xlu0 %v9316, 32
  %v9323 = vpop.permute.xlu0 %9322
  %9324 = vrot.lane.b32.xlu0 %v9317, 32
  %v9325 = vpop.permute.xlu0 %9324
  %v9326 = vsel %vm1700, %v9319, %v9321
  %v9327 = vsel %vm1700, %v9323, %v9325
  %v9334 = vunpack.c.l.b16 %v9066
  %v9335 = vunpack.c.h.b16 %v9066
  %v9336 = vunpack.c.l.b16 %v9067
  %v9337 = vunpack.c.h.b16 %v9067
  %v9338 = vunpack.c.l.b16 %v9068
  %v9339 = vunpack.c.h.b16 %v9068
  %v9340 = vunpack.c.l.b16 %v9069
  %v9341 = vunpack.c.h.b16 %v9069
  %v9342 = vpack.c.b16 %v9336, %v9334
  %v9343 = vpack.c.b16 %v9337, %v9335
  %v9344 = vpack.c.b16 %v9340, %v9338
  %v9345 = vpack.c.b16 %v9341, %v9339
  %9346 = vrot.lane.b32.xlu0 %v9342, 16
  %v9347 = vpop.permute.xlu0 %9346
  %9348 = vrot.lane.b32.xlu0 %v9343, 16
  %v9349 = vpop.permute.xlu0 %9348
  %9350 = vrot.lane.b32.xlu0 %v9344, 16
  %v9351 = vpop.permute.xlu0 %9350
  %9352 = vrot.lane.b32.xlu0 %v9345, 16
  %v9353 = vpop.permute.xlu0 %9352
  %vm9354 = vcmask 130048
  %v9355 = vsel %vm9354, %v9347, %v9349
  %v9356 = vsel %vm9354, %v9351, %v9353
  %v9363 = vunpack.c.l.b16 %v9153
  %v9364 = vunpack.c.h.b16 %v9153
  %v9365 = vunpack.c.l.b16 %v9154
  %v9366 = vunpack.c.h.b16 %v9154
  %v9367 = vunpack.c.l.b16 %v9155
  %v9368 = vunpack.c.h.b16 %v9155
  %v9369 = vunpack.c.l.b16 %v9156
  %v9370 = vunpack.c.h.b16 %v9156
  %v9371 = vpack.c.b16 %v9365, %v9363
  %v9372 = vpack.c.b16 %v9366, %v9364
  %v9373 = vpack.c.b16 %v9369, %v9367
  %v9374 = vpack.c.b16 %v9370, %v9368
  %vm9377 = vcmask 916480
  %v9380 = vsel %vm9377, %v9170, %v9192
  %v9384 = vsel %vm9377, %v9172, %v9196
  %v9388 = vsel %vm1777, %v9194, %v9221
  %v9392 = vsel %vm1777, %v9198, %v9225
  %vm9394 = vcmask 654336
  %v9397 = vsel %vm9394, %v9223, %v9249
  %v9401 = vsel %vm9394, %v9227, %v9253
  %v9405 = vsel %vm1786, %v9251, %v9262
  %v9409 = vsel %vm1786, %v9255, %v9266
  %vm9411 = vcmask 392192
  %v9414 = vsel %vm9411, %v9264, %v9290
  %v9418 = vsel %vm9411, %v9268, %v9294
  %v9422 = vsel %vm1795, %v9292, %v9319
  %v9426 = vsel %vm1795, %v9296, %v9323
  %vm9428 = vcmask 130048
  %v9431 = vsel %vm9428, %v9321, %v9347
  %v9435 = vsel %vm9428, %v9325, %v9351
  %v9437 = vld [vmem:[%s17] sm:$0xff]
  %v9438 = vld [vmem:[%s17 + $0x8] sm:$0xff]
  %v9439 = vld [vmem:[%s17 + $0x10] sm:$0xff]
  %v9440 = vld [vmem:[%s17 + $0x18] sm:$0xff]
  %v9441 = vld [vmem:[%s17 + $0x20] sm:$0xff]
  %v9442 = vld [vmem:[%s17 + $0x28] sm:$0xff]
  %v9443 = vld [vmem:[%s17 + $0x30] sm:$0xff]
  %v9444 = vld [vmem:[%s17 + $0x38] sm:$0xff]
  %v9445 = vld [vmem:[%s17 + $0x40] sm:$0xff]
  %v9446 = vld [vmem:[%s17 + $0x48] sm:$0xff]
  %v9447 = vld [vmem:[%s17 + $0x50] sm:$0xff]
  %v9448 = vld [vmem:[%s17 + $0x58] sm:$0xff]
  %v9449 = vld [vmem:[%s17 + $0x60] sm:$0xff]
  %v9450 = vld [vmem:[%s17 + $0x68] sm:$0xff]
  %v9451 = vld [vmem:[%s17 + $0x70] sm:$0xff]
  %v9452 = vld [vmem:[%s17 + $0x78] sm:$0xff]
  %v9453 = vld [vmem:[%s17 + $0x80] sm:$0xff]
  %v9454 = vld [vmem:[%s17 + $0x88] sm:$0xff]
  %v9455 = vld [vmem:[%s17 + $0x90] sm:$0xff]
  %v9456 = vld [vmem:[%s17 + $0x98] sm:$0xff]
  %v9457 = vld [vmem:[%s17 + $0xa0] sm:$0xff]
  %v9458 = vld [vmem:[%s17 + $0xa8] sm:$0xff]
  %v9459 = vld [vmem:[%s17 + $0xb0] sm:$0xff]
  %v9460 = vld [vmem:[%s17 + $0xb8] sm:$0xff]
  %v9461 = vld [vmem:[%s17 + $0xc0] sm:$0xff]
  %v9462 = vld [vmem:[%s17 + $0xc8] sm:$0xff]
  %v9463 = vld [vmem:[%s17 + $0xd0] sm:$0xff]
  %v9464 = vld [vmem:[%s17 + $0xd8] sm:$0xff]
  %v9465 = vld [vmem:[%s17 + $0xe0] sm:$0xff]
  %v9466 = vld [vmem:[%s17 + $0xe8] sm:$0xff]
  %v9467 = vld [vmem:[%s17 + $0xf0] sm:$0xff]
  %v9468 = vld [vmem:[%s17 + $0xf8] sm:$0xff]
  %v9469 = vld [vmem:[%s17 + $0x100] sm:$0xff]
  %v9470 = vld [vmem:[%s17 + $0x108] sm:$0xff]
  %v9471 = vld [vmem:[%s17 + $0x110] sm:$0xff]
  %v9472 = vld [vmem:[%s17 + $0x118] sm:$0xff]
  %v9473 = vld [vmem:[%s17 + $0x120] sm:$0xff]
  %v9474 = vld [vmem:[%s17 + $0x128] sm:$0xff]
  %v9475 = vld [vmem:[%s17 + $0x130] sm:$0xff]
  %v9476 = vld [vmem:[%s17 + $0x138] sm:$0xff]
  %v9477 = vld [vmem:[%s17 + $0x140] sm:$0xff]
  %v9478 = vld [vmem:[%s17 + $0x148] sm:$0xff]
  %v9479 = vld [vmem:[%s17 + $0x150] sm:$0xff]
  %v9480 = vld [vmem:[%s17 + $0x158] sm:$0xff]
  %v9481 = vld [vmem:[%s17 + $0x160] sm:$0xff]
  %v9482 = vld [vmem:[%s17 + $0x168] sm:$0xff]
  %v9483 = vld [vmem:[%s17 + $0x170] sm:$0xff]
  %v9484 = vld [vmem:[%s17 + $0x178] sm:$0xff]
  %v9485 = vld [vmem:[%s17 + $0x180] sm:$0xff]
  %v9486 = vld [vmem:[%s17 + $0x188] sm:$0xff]
  %v9487 = vld [vmem:[%s17 + $0x190] sm:$0xff]
  %v9488 = vld [vmem:[%s17 + $0x198] sm:$0xff]
  %v9489 = vld [vmem:[%s17 + $0x1a0] sm:$0xff]
  %v9490 = vld [vmem:[%s17 + $0x1a8] sm:$0xff]
  %v9491 = vld [vmem:[%s17 + $0x1b0] sm:$0xff]
  %v9492 = vld [vmem:[%s17 + $0x1b8] sm:$0xff]
  %v9493 = vld [vmem:[%s17 + $0x1c0] sm:$0xff]
  %v9494 = vld [vmem:[%s17 + $0x1c8] sm:$0xff]
  %v9495 = vld [vmem:[%s17 + $0x1d0] sm:$0xff]
  %v9496 = vld [vmem:[%s17 + $0x1d8] sm:$0xff]
  %v9497 = vld [vmem:[%s17 + $0x1e0] sm:$0xff]
  %v9498 = vld [vmem:[%s17 + $0x1e8] sm:$0xff]
  %v9499 = vld [vmem:[%s17 + $0x1f0] sm:$0xff]
  %v9500 = vld [vmem:[%s17 + $0x1f8] sm:$0xff]
  %v9501 = vld [vmem:[%s17 + $0x200] sm:$0xff]
  %v9502 = vld [vmem:[%s17 + $0x208] sm:$0xff]
  %v9503 = vld [vmem:[%s17 + $0x210] sm:$0xff]
  %v9504 = vld [vmem:[%s17 + $0x218] sm:$0xff]
  %v9505 = vld [vmem:[%s17 + $0x220] sm:$0xff]
  %v9506 = vld [vmem:[%s17 + $0x228] sm:$0xff]
  %v9507 = vld [vmem:[%s17 + $0x230] sm:$0xff]
  %v9508 = vld [vmem:[%s17 + $0x238] sm:$0xff]
  %v9509 = vld [vmem:[%s17 + $0x240] sm:$0xff]
  %v9510 = vld [vmem:[%s17 + $0x248] sm:$0xff]
  %v9511 = vld [vmem:[%s17 + $0x250] sm:$0xff]
  %v9512 = vld [vmem:[%s17 + $0x258] sm:$0xff]
  %v9513 = vld [vmem:[%s17 + $0x260] sm:$0xff]
  %v9514 = vld [vmem:[%s17 + $0x268] sm:$0xff]
  %v9515 = vld [vmem:[%s17 + $0x270] sm:$0xff]
  %v9516 = vld [vmem:[%s17 + $0x278] sm:$0xff]
  %v9517 = vld [vmem:[%s17 + $0x280] sm:$0xff]
  %v9518 = vld [vmem:[%s17 + $0x288] sm:$0xff]
  %v9519 = vld [vmem:[%s17 + $0x290] sm:$0xff]
  %v9520 = vld [vmem:[%s17 + $0x298] sm:$0xff]
  %v9521 = vld [vmem:[%s17 + $0x2a0] sm:$0xff]
  %v9522 = vld [vmem:[%s17 + $0x2a8] sm:$0xff]
  %v9523 = vld [vmem:[%s17 + $0x2b0] sm:$0xff]
  %v9524 = vld [vmem:[%s17 + $0x2b8] sm:$0xff]
  %v9525 = vld [vmem:[%s17 + $0x2c0] sm:$0xff]
  %v9526 = vld [vmem:[%s17 + $0x2c8] sm:$0xff]
  %v9527 = vld [vmem:[%s17 + $0x2d0] sm:$0xff]
  %v9528 = vld [vmem:[%s17 + $0x2d8] sm:$0xff]
  %v9529 = vld [vmem:[%s17 + $0x2e0] sm:$0xff]
  %v9530 = vld [vmem:[%s17 + $0x2e8] sm:$0xff]
  %v9531 = vld [vmem:[%s17 + $0x2f0] sm:$0xff]
  %v9532 = vld [vmem:[%s17 + $0x2f8] sm:$0xff]
  %v9533 = vld [vmem:[%s17 + $0x300] sm:$0xff]
  %v9534 = vld [vmem:[%s17 + $0x308] sm:$0xff]
  %v9535 = vld [vmem:[%s17 + $0x310] sm:$0xff]
  %v9536 = vld [vmem:[%s17 + $0x318] sm:$0xff]
  %v9537 = vld [vmem:[%s17 + $0x320] sm:$0xff]
  %v9538 = vld [vmem:[%s17 + $0x328] sm:$0xff]
  %v9539 = vld [vmem:[%s17 + $0x330] sm:$0xff]
  %v9540 = vld [vmem:[%s17 + $0x338] sm:$0xff]
  %v9541 = vld [vmem:[%s17 + $0x340] sm:$0xff]
  %v9542 = vld [vmem:[%s17 + $0x348] sm:$0xff]
  %v9543 = vld [vmem:[%s17 + $0x350] sm:$0xff]
  %v9544 = vld [vmem:[%s17 + $0x358] sm:$0xff]
  %v9545 = vld [vmem:[%s17 + $0x360] sm:$0xff]
  %v9546 = vld [vmem:[%s17 + $0x368] sm:$0xff]
  %v9547 = vld [vmem:[%s17 + $0x370] sm:$0xff]
  %v9548 = vld [vmem:[%s17 + $0x378] sm:$0xff]
  %v9549 = vld [vmem:[%s17 + $0x380] sm:$0xff]
  %v9550 = vld [vmem:[%s17 + $0x388] sm:$0xff]
  %v9551 = vld [vmem:[%s17 + $0x390] sm:$0xff]
  %v9552 = vld [vmem:[%s17 + $0x398] sm:$0xff]
  %v9553 = vld [vmem:[%s17 + $0x3a0] sm:$0xff]
  %v9554 = vld [vmem:[%s17 + $0x3a8] sm:$0xff]
  %v9555 = vld [vmem:[%s17 + $0x3b0] sm:$0xff]
  %v9556 = vld [vmem:[%s17 + $0x3b8] sm:$0xff]
  %v9557 = vld [vmem:[%s17 + $0x3c0] sm:$0xff]
  %v9558 = vld [vmem:[%s17 + $0x3c8] sm:$0xff]
  %v9559 = vld [vmem:[%s17 + $0x3d0] sm:$0xff]
  %v9560 = vld [vmem:[%s17 + $0x3d8] sm:$0xff]
  %v9561 = vld [vmem:[%s17 + $0x3e0] sm:$0xff]
  %v9562 = vld [vmem:[%s17 + $0x3e8] sm:$0xff]
  %v9563 = vld [vmem:[%s17 + $0x3f0] sm:$0xff]
  %v9564 = vld [vmem:[%s17 + $0x3f8] sm:$0xff]
  %v9565 = vld [vmem:[%s17 + $0x400] sm:$0xff]
  %v9566 = vld [vmem:[%s17 + $0x408] sm:$0xff]
  %v9567 = vld [vmem:[%s17 + $0x410] sm:$0xff]
  %v9568 = vld [vmem:[%s17 + $0x418] sm:$0xff]
  %v9569 = vld [vmem:[%s17 + $0x420] sm:$0xff]
  %v9570 = vld [vmem:[%s17 + $0x428] sm:$0xff]
  %v9571 = vld [vmem:[%s17 + $0x430] sm:$0xff]
  %v9572 = vld [vmem:[%s17 + $0x438] sm:$0xff]
  %v9573 = vld [vmem:[%s17 + $0x440] sm:$0xff]
  %v9574 = vld [vmem:[%s17 + $0x448] sm:$0xff]
  %v9575 = vld [vmem:[%s17 + $0x450] sm:$0xff]
  %v9576 = vld [vmem:[%s17 + $0x458] sm:$0xff]
  %v9577 = vld [vmem:[%s17 + $0x460] sm:$0xff]
  %v9578 = vld [vmem:[%s17 + $0x468] sm:$0xff]
  %v9579 = vld [vmem:[%s17 + $0x470] sm:$0xff]
  %v9580 = vld [vmem:[%s17 + $0x478] sm:$0xff]
  %v9581 = vld [vmem:[%s17 + $0x480] sm:$0xff]
  %v9582 = vld [vmem:[%s17 + $0x488] sm:$0xff]
  %v9583 = vld [vmem:[%s17 + $0x490] sm:$0xff]
  %v9584 = vld [vmem:[%s17 + $0x498] sm:$0xff]
  %v9585 = vld [vmem:[%s17 + $0x4a0] sm:$0xff]
  %v9586 = vld [vmem:[%s17 + $0x4a8] sm:$0xff]
  %v9587 = vld [vmem:[%s17 + $0x4b0] sm:$0xff]
  %v9588 = vld [vmem:[%s17 + $0x4b8] sm:$0xff]
  %v9589 = vld [vmem:[%s17 + $0x4c0] sm:$0xff]
  %v9590 = vld [vmem:[%s17 + $0x4c8] sm:$0xff]
  %v9591 = vld [vmem:[%s17 + $0x4d0] sm:$0xff]
  %v9592 = vld [vmem:[%s17 + $0x4d8] sm:$0xff]
  %v9593 = vld [vmem:[%s17 + $0x4e0] sm:$0xff]
  %v9594 = vld [vmem:[%s17 + $0x4e8] sm:$0xff]
  %v9595 = vld [vmem:[%s17 + $0x4f0] sm:$0xff]
  %v9596 = vld [vmem:[%s17 + $0x4f8] sm:$0xff]
  %v9597 = vld [vmem:[%s17 + $0x500] sm:$0xff]
  %v9598 = vld [vmem:[%s17 + $0x508] sm:$0xff]
  %v9599 = vld [vmem:[%s17 + $0x510] sm:$0xff]
  %v9600 = vld [vmem:[%s17 + $0x518] sm:$0xff]
  %v9601 = vld [vmem:[%s17 + $0x520] sm:$0xff]
  %v9602 = vld [vmem:[%s17 + $0x528] sm:$0xff]
  %v9603 = vld [vmem:[%s17 + $0x530] sm:$0xff]
  %v9604 = vld [vmem:[%s17 + $0x538] sm:$0xff]
  %v9605 = vld [vmem:[%s17 + $0x540] sm:$0xff]
  %v9606 = vld [vmem:[%s17 + $0x548] sm:$0xff]
  %v9607 = vld [vmem:[%s17 + $0x550] sm:$0xff]
  %v9608 = vld [vmem:[%s17 + $0x558] sm:$0xff]
  %v9609 = vld [vmem:[%s17 + $0x560] sm:$0xff]
  %v9610 = vld [vmem:[%s17 + $0x568] sm:$0xff]
  %v9611 = vld [vmem:[%s17 + $0x570] sm:$0xff]
  %v9612 = vld [vmem:[%s17 + $0x578] sm:$0xff]
  %v9613 = vld [vmem:[%s17 + $0x580] sm:$0xff]
  %v9614 = vld [vmem:[%s17 + $0x588] sm:$0xff]
  %v9615 = vld [vmem:[%s17 + $0x590] sm:$0xff]
  %v9616 = vld [vmem:[%s17 + $0x598] sm:$0xff]
  %v9617 = vld [vmem:[%s17 + $0x5a0] sm:$0xff]
  %v9618 = vld [vmem:[%s17 + $0x5a8] sm:$0xff]
  %v9619 = vld [vmem:[%s17 + $0x5b0] sm:$0xff]
  %v9620 = vld [vmem:[%s17 + $0x5b8] sm:$0xff]
  %v9621 = vld [vmem:[%s17 + $0x5c0] sm:$0xff]
  %v9622 = vld [vmem:[%s17 + $0x5c8] sm:$0xff]
  %v9623 = vld [vmem:[%s17 + $0x5d0] sm:$0xff]
  %v9624 = vld [vmem:[%s17 + $0x5d8] sm:$0xff]
  %v9625 = vld [vmem:[%s17 + $0x5e0] sm:$0xff]
  %v9626 = vld [vmem:[%s17 + $0x5e8] sm:$0xff]
  %v9627 = vld [vmem:[%s17 + $0x5f0] sm:$0xff]
  %v9628 = vld [vmem:[%s17 + $0x5f8] sm:$0xff]
  %v9629 = vld [vmem:[%s17 + $0x600] sm:$0xff]
  %v9630 = vld [vmem:[%s17 + $0x608] sm:$0xff]
  %v9631 = vld [vmem:[%s17 + $0x610] sm:$0xff]
  %v9632 = vld [vmem:[%s17 + $0x618] sm:$0xff]
  %v9633 = vld [vmem:[%s17 + $0x620] sm:$0xff]
  %v9634 = vld [vmem:[%s17 + $0x628] sm:$0xff]
  %v9635 = vld [vmem:[%s17 + $0x630] sm:$0xff]
  %v9636 = vld [vmem:[%s17 + $0x638] sm:$0xff]
  %v9637 = vld [vmem:[%s17 + $0x640] sm:$0xff]
  %v9638 = vld [vmem:[%s17 + $0x648] sm:$0xff]
  %v9639 = vld [vmem:[%s17 + $0x650] sm:$0xff]
  %v9640 = vld [vmem:[%s17 + $0x658] sm:$0xff]
  %v9641 = vld [vmem:[%s17 + $0x660] sm:$0xff]
  %v9642 = vld [vmem:[%s17 + $0x668] sm:$0xff]
  %v9643 = vld [vmem:[%s17 + $0x670] sm:$0xff]
  %v9644 = vld [vmem:[%s17 + $0x678] sm:$0xff]
  %v9645 = vld [vmem:[%s17 + $0x680] sm:$0xff]
  %v9646 = vld [vmem:[%s17 + $0x688] sm:$0xff]
  %v9647 = vld [vmem:[%s17 + $0x690] sm:$0xff]
  %v9648 = vld [vmem:[%s17 + $0x698] sm:$0xff]
  %v9649 = vld [vmem:[%s17 + $0x6a0] sm:$0xff]
  %v9650 = vld [vmem:[%s17 + $0x6a8] sm:$0xff]
  %v9651 = vld [vmem:[%s17 + $0x6b0] sm:$0xff]
  %v9652 = vld [vmem:[%s17 + $0x6b8] sm:$0xff]
  %v9653 = vld [vmem:[%s17 + $0x6c0] sm:$0xff]
  %v9654 = vld [vmem:[%s17 + $0x6c8] sm:$0xff]
  %v9655 = vld [vmem:[%s17 + $0x6d0] sm:$0xff]
  %v9656 = vld [vmem:[%s17 + $0x6d8] sm:$0xff]
  %v9657 = vld [vmem:[%s17 + $0x6e0] sm:$0xff]
  %v9658 = vld [vmem:[%s17 + $0x6e8] sm:$0xff]
  %v9659 = vld [vmem:[%s17 + $0x6f0] sm:$0xff]
  %v9660 = vld [vmem:[%s17 + $0x6f8] sm:$0xff]
  %v9661 = vld [vmem:[%s17 + $0x700] sm:$0xff]
  %v9662 = vld [vmem:[%s17 + $0x708] sm:$0xff]
  %v9663 = vld [vmem:[%s17 + $0x710] sm:$0xff]
  %v9664 = vld [vmem:[%s17 + $0x718] sm:$0xff]
  %v9665 = vld [vmem:[%s17 + $0x720] sm:$0xff]
  %v9666 = vld [vmem:[%s17 + $0x728] sm:$0xff]
  %v9667 = vld [vmem:[%s17 + $0x730] sm:$0xff]
  %v9668 = vld [vmem:[%s17 + $0x738] sm:$0xff]
  %v9669 = vld [vmem:[%s17 + $0x740] sm:$0xff]
  %v9670 = vld [vmem:[%s17 + $0x748] sm:$0xff]
  %v9671 = vld [vmem:[%s17 + $0x750] sm:$0xff]
  %v9672 = vld [vmem:[%s17 + $0x758] sm:$0xff]
  %v9673 = vld [vmem:[%s17 + $0x760] sm:$0xff]
  %v9674 = vld [vmem:[%s17 + $0x768] sm:$0xff]
  %v9675 = vld [vmem:[%s17 + $0x770] sm:$0xff]
  %v9676 = vld [vmem:[%s17 + $0x778] sm:$0xff]
  %v9677 = vld [vmem:[%s17 + $0x780] sm:$0xff]
  %v9678 = vld [vmem:[%s17 + $0x788] sm:$0xff]
  %v9679 = vld [vmem:[%s17 + $0x790] sm:$0xff]
  %v9680 = vld [vmem:[%s17 + $0x798] sm:$0xff]
  %v9681 = vld [vmem:[%s17 + $0x7a0] sm:$0xff]
  %v9682 = vld [vmem:[%s17 + $0x7a8] sm:$0xff]
  %v9683 = vld [vmem:[%s17 + $0x7b0] sm:$0xff]
  %v9684 = vld [vmem:[%s17 + $0x7b8] sm:$0xff]
  %v9685 = vld [vmem:[%s17 + $0x7c0] sm:$0xff]
  %v9686 = vld [vmem:[%s17 + $0x7c8] sm:$0xff]
  %v9687 = vld [vmem:[%s17 + $0x7d0] sm:$0xff]
  %v9688 = vld [vmem:[%s17 + $0x7d8] sm:$0xff]
  %v9689 = vld [vmem:[%s17 + $0x7e0] sm:$0xff]
  %v9690 = vld [vmem:[%s17 + $0x7e8] sm:$0xff]
  %v9691 = vld [vmem:[%s17 + $0x7f0] sm:$0xff]
  %v9692 = vld [vmem:[%s17 + $0x7f8] sm:$0xff]
  %v9693 = vld [vmem:[%s17 + $0x800] sm:$0xff]
  %v9694 = vld [vmem:[%s17 + $0x808] sm:$0xff]
  %v9695 = vld [vmem:[%s17 + $0x810] sm:$0xff]
  %v9696 = vld [vmem:[%s17 + $0x818] sm:$0xff]
  %v9697 = vld [vmem:[%s17 + $0x820] sm:$0xff]
  %v9698 = vld [vmem:[%s17 + $0x828] sm:$0xff]
  %v9699 = vld [vmem:[%s17 + $0x830] sm:$0xff]
  %v9700 = vld [vmem:[%s17 + $0x838] sm:$0xff]
  %v9701 = vld [vmem:[%s17 + $0x840] sm:$0xff]
  %v9702 = vld [vmem:[%s17 + $0x848] sm:$0xff]
  %v9703 = vld [vmem:[%s17 + $0x850] sm:$0xff]
  %v9704 = vld [vmem:[%s17 + $0x858] sm:$0xff]
  %v9705 = vld [vmem:[%s17 + $0x860] sm:$0xff]
  %v9706 = vld [vmem:[%s17 + $0x868] sm:$0xff]
  %v9707 = vld [vmem:[%s18] sm:$0x3]
  %v9709 = vperm.slane %v9707, 0
  %v9710 = vperm.slane %v9707, 1
  %v9983 = vunpack.c.l.b16 %v9437
  %v9984 = vunpack.c.h.b16 %v9437
  %v9985 = vunpack.c.l.b16 %v9438
  %v9986 = vunpack.c.h.b16 %v9438
  %v9987 = vunpack.c.l.b16 %v9439
  %v9988 = vunpack.c.h.b16 %v9439
  %v9989 = vunpack.c.l.b16 %v9440
  %v9990 = vunpack.c.h.b16 %v9440
  %v9991 = vunpack.c.l.b16 %v9441
  %v9992 = vunpack.c.h.b16 %v9441
  %v9993 = vunpack.c.l.b16 %v9442
  %v9994 = vunpack.c.h.b16 %v9442
  %v9995 = vunpack.c.l.b16 %v9443
  %v9996 = vunpack.c.h.b16 %v9443
  %v9997 = vunpack.c.l.b16 %v9444
  %v9998 = vunpack.c.h.b16 %v9444
  %v9999 = vunpack.c.l.b16 %v9445
  %v10000 = vunpack.c.h.b16 %v9445
  %v10001 = vunpack.c.l.b16 %v9446
  %v10002 = vunpack.c.h.b16 %v9446
  %v10003 = vunpack.c.l.b16 %v9447
  %v10004 = vunpack.c.h.b16 %v9447
  %v10005 = vunpack.c.l.b16 %v9448
  %v10006 = vunpack.c.h.b16 %v9448
  %v10007 = vunpack.c.l.b16 %v9449
  %v10008 = vunpack.c.h.b16 %v9449
  %v10009 = vunpack.c.l.b16 %v9450
  %v10010 = vunpack.c.h.b16 %v9450
  %v10011 = vunpack.c.l.b16 %v9451
  %v10012 = vunpack.c.h.b16 %v9451
  %v10013 = vunpack.c.l.b16 %v9452
  %v10014 = vunpack.c.h.b16 %v9452
  %v10015 = vunpack.c.l.b16 %v9453
  %v10016 = vunpack.c.h.b16 %v9453
  %v10017 = vunpack.c.l.b16 %v9454
  %v10018 = vunpack.c.h.b16 %v9454
  %v10019 = vunpack.c.l.b16 %v9455
  %v10020 = vunpack.c.h.b16 %v9455
  %v10021 = vunpack.c.l.b16 %v9456
  %v10022 = vunpack.c.h.b16 %v9456
  %v10023 = vunpack.c.l.b16 %v9457
  %v10024 = vunpack.c.h.b16 %v9457
  %v10025 = vunpack.c.l.b16 %v9458
  %v10026 = vunpack.c.h.b16 %v9458
  %v10027 = vunpack.c.l.b16 %v9459
  %v10028 = vunpack.c.h.b16 %v9459
  %v10029 = vunpack.c.l.b16 %v9460
  %v10030 = vunpack.c.h.b16 %v9460
  %v10031 = vunpack.c.l.b16 %v9461
  %v10032 = vunpack.c.h.b16 %v9461
  %v10033 = vunpack.c.l.b16 %v9462
  %v10034 = vunpack.c.h.b16 %v9462
  %v10035 = vunpack.c.l.b16 %v9463
  %v10036 = vunpack.c.h.b16 %v9463
  %v10037 = vunpack.c.l.b16 %v9464
  %v10038 = vunpack.c.h.b16 %v9464
  %v10039 = vunpack.c.l.b16 %v9465
  %v10040 = vunpack.c.h.b16 %v9465
  %v10041 = vunpack.c.l.b16 %v9466
  %v10042 = vunpack.c.h.b16 %v9466
  %v10043 = vunpack.c.l.b16 %v9467
  %v10044 = vunpack.c.h.b16 %v9467
  %v10045 = vunpack.c.l.b16 %v9468
  %v10046 = vunpack.c.h.b16 %v9468
  %v10047 = vunpack.c.l.b16 %v9469
  %v10048 = vunpack.c.h.b16 %v9469
  %v10049 = vunpack.c.l.b16 %v9470
  %v10050 = vunpack.c.h.b16 %v9470
  %v10051 = vunpack.c.l.b16 %v9471
  %v10052 = vunpack.c.h.b16 %v9471
  %v10053 = vunpack.c.l.b16 %v9472
  %v10054 = vunpack.c.h.b16 %v9472
  %v10055 = vunpack.c.l.b16 %v9473
  %v10056 = vunpack.c.h.b16 %v9473
  %v10057 = vunpack.c.l.b16 %v9474
  %v10058 = vunpack.c.h.b16 %v9474
  %v10059 = vunpack.c.l.b16 %v9475
  %v10060 = vunpack.c.h.b16 %v9475
  %v10061 = vunpack.c.l.b16 %v9476
  %v10062 = vunpack.c.h.b16 %v9476
  %v10063 = vunpack.c.l.b16 %v9477
  %v10064 = vunpack.c.h.b16 %v9477
  %v10065 = vunpack.c.l.b16 %v9478
  %v10066 = vunpack.c.h.b16 %v9478
  %v10067 = vunpack.c.l.b16 %v9479
  %v10068 = vunpack.c.h.b16 %v9479
  %v10069 = vunpack.c.l.b16 %v9480
  %v10070 = vunpack.c.h.b16 %v9480
  %v10071 = vunpack.c.l.b16 %v9481
  %v10072 = vunpack.c.h.b16 %v9481
  %v10073 = vunpack.c.l.b16 %v9482
  %v10074 = vunpack.c.h.b16 %v9482
  %v10075 = vunpack.c.l.b16 %v9483
  %v10076 = vunpack.c.h.b16 %v9483
  %v10077 = vunpack.c.l.b16 %v9484
  %v10078 = vunpack.c.h.b16 %v9484
  %v10079 = vunpack.c.l.b16 %v9485
  %v10080 = vunpack.c.h.b16 %v9485
  %v10081 = vunpack.c.l.b16 %v9486
  %v10082 = vunpack.c.h.b16 %v9486
  %v10083 = vunpack.c.l.b16 %v9487
  %v10084 = vunpack.c.h.b16 %v9487
  %v10085 = vunpack.c.l.b16 %v9488
  %v10086 = vunpack.c.h.b16 %v9488
  %v10087 = vunpack.c.l.b16 %v9489
  %v10088 = vunpack.c.h.b16 %v9489
  %v10089 = vunpack.c.l.b16 %v9490
  %v10090 = vunpack.c.h.b16 %v9490
  %v10091 = vunpack.c.l.b16 %v9491
  %v10092 = vunpack.c.h.b16 %v9491
  %v10093 = vunpack.c.l.b16 %v9492
  %v10094 = vunpack.c.h.b16 %v9492
  %v10095 = vunpack.c.l.b16 %v9493
  %v10096 = vunpack.c.h.b16 %v9493
  %v10097 = vunpack.c.l.b16 %v9494
  %v10098 = vunpack.c.h.b16 %v9494
  %v10099 = vunpack.c.l.b16 %v9495
  %v10100 = vunpack.c.h.b16 %v9495
  %v10101 = vunpack.c.l.b16 %v9496
  %v10102 = vunpack.c.h.b16 %v9496
  %v10103 = vunpack.c.l.b16 %v9497
  %v10104 = vunpack.c.h.b16 %v9497
  %v10105 = vunpack.c.l.b16 %v9498
  %v10106 = vunpack.c.h.b16 %v9498
  %v10107 = vunpack.c.l.b16 %v9499
  %v10108 = vunpack.c.h.b16 %v9499
  %v10109 = vunpack.c.l.b16 %v9500
  %v10110 = vunpack.c.h.b16 %v9500
  %v10111 = vunpack.c.l.b16 %v9501
  %v10112 = vunpack.c.h.b16 %v9501
  %v10113 = vunpack.c.l.b16 %v9502
  %v10114 = vunpack.c.h.b16 %v9502
  %v10115 = vunpack.c.l.b16 %v9503
  %v10116 = vunpack.c.h.b16 %v9503
  %v10117 = vunpack.c.l.b16 %v9504
  %v10118 = vunpack.c.h.b16 %v9504
  %v10119 = vunpack.c.l.b16 %v9505
  %v10120 = vunpack.c.h.b16 %v9505
  %v10121 = vunpack.c.l.b16 %v9506
  %v10122 = vunpack.c.h.b16 %v9506
  %v10123 = vunpack.c.l.b16 %v9507
  %v10124 = vunpack.c.h.b16 %v9507
  %v10125 = vunpack.c.l.b16 %v9508
  %v10126 = vunpack.c.h.b16 %v9508
  %v10127 = vunpack.c.l.b16 %v9509
  %v10128 = vunpack.c.h.b16 %v9509
  %v10129 = vunpack.c.l.b16 %v9510
  %v10130 = vunpack.c.h.b16 %v9510
  %v10131 = vunpack.c.l.b16 %v9511
  %v10132 = vunpack.c.h.b16 %v9511
  %v10133 = vunpack.c.l.b16 %v9512
  %v10134 = vunpack.c.h.b16 %v9512
  %v10135 = vunpack.c.l.b16 %v9513
  %v10136 = vunpack.c.h.b16 %v9513
  %v10137 = vunpack.c.l.b16 %v9514
  %v10138 = vunpack.c.h.b16 %v9514
  %v10139 = vunpack.c.l.b16 %v9515
  %v10140 = vunpack.c.h.b16 %v9515
  %v10141 = vunpack.c.l.b16 %v9516
  %v10142 = vunpack.c.h.b16 %v9516
  %v10143 = vunpack.c.l.b16 %v9517
  %v10144 = vunpack.c.h.b16 %v9517
  %v10145 = vunpack.c.l.b16 %v9518
  %v10146 = vunpack.c.h.b16 %v9518
  %v10147 = vunpack.c.l.b16 %v9519
  %v10148 = vunpack.c.h.b16 %v9519
  %v10149 = vunpack.c.l.b16 %v9520
  %v10150 = vunpack.c.h.b16 %v9520
  %v10151 = vunpack.c.l.b16 %v9521
  %v10152 = vunpack.c.h.b16 %v9521
  %v10153 = vunpack.c.l.b16 %v9522
  %v10154 = vunpack.c.h.b16 %v9522
  %v10155 = vunpack.c.l.b16 %v9523
  %v10156 = vunpack.c.h.b16 %v9523
  %v10157 = vunpack.c.l.b16 %v9524
  %v10158 = vunpack.c.h.b16 %v9524
  %v10159 = vunpack.c.l.b16 %v9525
  %v10160 = vunpack.c.h.b16 %v9525
  %v10161 = vunpack.c.l.b16 %v9526
  %v10162 = vunpack.c.h.b16 %v9526
  %v10163 = vunpack.c.l.b16 %v9527
  %v10164 = vunpack.c.h.b16 %v9527
  %v10165 = vunpack.c.l.b16 %v9528
  %v10166 = vunpack.c.h.b16 %v9528
  %v10167 = vunpack.c.l.b16 %v9529
  %v10168 = vunpack.c.h.b16 %v9529
  %v10169 = vunpack.c.l.b16 %v9530
  %v10170 = vunpack.c.h.b16 %v9530
  %v10171 = vunpack.c.l.b16 %v9531
  %v10172 = vunpack.c.h.b16 %v9531
  %v10173 = vunpack.c.l.b16 %v9532
  %v10174 = vunpack.c.h.b16 %v9532
  %v10175 = vunpack.c.l.b16 %v9533
  %v10176 = vunpack.c.h.b16 %v9533
  %v10177 = vunpack.c.l.b16 %v9534
  %v10178 = vunpack.c.h.b16 %v9534
  %v10179 = vunpack.c.l.b16 %v9535
  %v10180 = vunpack.c.h.b16 %v9535
  %v10181 = vunpack.c.l.b16 %v9536
  %v10182 = vunpack.c.h.b16 %v9536
  %v10183 = vunpack.c.l.b16 %v9537
  %v10184 = vunpack.c.h.b16 %v9537
  %v10185 = vunpack.c.l.b16 %v9538
  %v10186 = vunpack.c.h.b16 %v9538
  %v10187 = vunpack.c.l.b16 %v9539
  %v10188 = vunpack.c.h.b16 %v9539
  %v10189 = vunpack.c.l.b16 %v9540
  %v10190 = vunpack.c.h.b16 %v9540
  %v10191 = vunpack.c.l.b16 %v9541
  %v10192 = vunpack.c.h.b16 %v9541
  %v10193 = vunpack.c.l.b16 %v9542
  %v10194 = vunpack.c.h.b16 %v9542
  %v10195 = vunpack.c.l.b16 %v9543
  %v10196 = vunpack.c.h.b16 %v9543
  %v10197 = vunpack.c.l.b16 %v9544
  %v10198 = vunpack.c.h.b16 %v9544
  %v10199 = vunpack.c.l.b16 %v9545
  %v10200 = vunpack.c.h.b16 %v9545
  %v10201 = vunpack.c.l.b16 %v9546
  %v10202 = vunpack.c.h.b16 %v9546
  %v10203 = vunpack.c.l.b16 %v9547
  %v10204 = vunpack.c.h.b16 %v9547
  %v10205 = vunpack.c.l.b16 %v9548
  %v10206 = vunpack.c.h.b16 %v9548
  %v10207 = vunpack.c.l.b16 %v9549
  %v10208 = vunpack.c.h.b16 %v9549
  %v10209 = vunpack.c.l.b16 %v9550
  %v10210 = vunpack.c.h.b16 %v9550
  %v10211 = vunpack.c.l.b16 %v9551
  %v10212 = vunpack.c.h.b16 %v9551
  %v10213 = vunpack.c.l.b16 %v9552
  %v10214 = vunpack.c.h.b16 %v9552
  %v10215 = vunpack.c.l.b16 %v9553
  %v10216 = vunpack.c.h.b16 %v9553
  %v10217 = vunpack.c.l.b16 %v9554
  %v10218 = vunpack.c.h.b16 %v9554
  %v10219 = vunpack.c.l.b16 %v9555
  %v10220 = vunpack.c.h.b16 %v9555
  %v10221 = vunpack.c.l.b16 %v9556
  %v10222 = vunpack.c.h.b16 %v9556
  %v10223 = vunpack.c.l.b16 %v9557
  %v10224 = vunpack.c.h.b16 %v9557
  %v10225 = vunpack.c.l.b16 %v9558
  %v10226 = vunpack.c.h.b16 %v9558
  %v10227 = vunpack.c.l.b16 %v9559
  %v10228 = vunpack.c.h.b16 %v9559
  %v10229 = vunpack.c.l.b16 %v9560
  %v10230 = vunpack.c.h.b16 %v9560
  %v10231 = vunpack.c.l.b16 %v9561
  %v10232 = vunpack.c.h.b16 %v9561
  %v10233 = vunpack.c.l.b16 %v9562
  %v10234 = vunpack.c.h.b16 %v9562
  %v10235 = vunpack.c.l.b16 %v9563
  %v10236 = vunpack.c.h.b16 %v9563
  %v10237 = vunpack.c.l.b16 %v9564
  %v10238 = vunpack.c.h.b16 %v9564
  %v10239 = vunpack.c.l.b16 %v9565
  %v10240 = vunpack.c.h.b16 %v9565
  %v10241 = vunpack.c.l.b16 %v9566
  %v10242 = vunpack.c.h.b16 %v9566
  %v10243 = vunpack.c.l.b16 %v9567
  %v10244 = vunpack.c.h.b16 %v9567
  %v10245 = vunpack.c.l.b16 %v9568
  %v10246 = vunpack.c.h.b16 %v9568
  %v10247 = vunpack.c.l.b16 %v9569
  %v10248 = vunpack.c.h.b16 %v9569
  %v10249 = vunpack.c.l.b16 %v9570
  %v10250 = vunpack.c.h.b16 %v9570
  %v10251 = vunpack.c.l.b16 %v9571
  %v10252 = vunpack.c.h.b16 %v9571
  %v10253 = vunpack.c.l.b16 %v9572
  %v10254 = vunpack.c.h.b16 %v9572
  %v10255 = vunpack.c.l.b16 %v9573
  %v10256 = vunpack.c.h.b16 %v9573
  %v10257 = vunpack.c.l.b16 %v9574
  %v10258 = vunpack.c.h.b16 %v9574
  %v10259 = vunpack.c.l.b16 %v9575
  %v10260 = vunpack.c.h.b16 %v9575
  %v10261 = vunpack.c.l.b16 %v9576
  %v10262 = vunpack.c.h.b16 %v9576
  %v10263 = vunpack.c.l.b16 %v9577
  %v10264 = vunpack.c.h.b16 %v9577
  %v10265 = vunpack.c.l.b16 %v9578
  %v10266 = vunpack.c.h.b16 %v9578
  %v10267 = vunpack.c.l.b16 %v9579
  %v10268 = vunpack.c.h.b16 %v9579
  %v10269 = vunpack.c.l.b16 %v9580
  %v10270 = vunpack.c.h.b16 %v9580
  %v10271 = vunpack.c.l.b16 %v9581
  %v10272 = vunpack.c.h.b16 %v9581
  %v10273 = vunpack.c.l.b16 %v9582
  %v10274 = vunpack.c.h.b16 %v9582
  %v10275 = vunpack.c.l.b16 %v9583
  %v10276 = vunpack.c.h.b16 %v9583
  %v10277 = vunpack.c.l.b16 %v9584
  %v10278 = vunpack.c.h.b16 %v9584
  %v10279 = vunpack.c.l.b16 %v9585
  %v10280 = vunpack.c.h.b16 %v9585
  %v10281 = vunpack.c.l.b16 %v9586
  %v10282 = vunpack.c.h.b16 %v9586
  %v10283 = vunpack.c.l.b16 %v9587
  %v10284 = vunpack.c.h.b16 %v9587
  %v10285 = vunpack.c.l.b16 %v9588
  %v10286 = vunpack.c.h.b16 %v9588
  %v10287 = vunpack.c.l.b16 %v9589
  %v10288 = vunpack.c.h.b16 %v9589
  %v10289 = vunpack.c.l.b16 %v9590
  %v10290 = vunpack.c.h.b16 %v9590
  %v10291 = vunpack.c.l.b16 %v9591
  %v10292 = vunpack.c.h.b16 %v9591
  %v10293 = vunpack.c.l.b16 %v9592
  %v10294 = vunpack.c.h.b16 %v9592
  %v10295 = vunpack.c.l.b16 %v9593
  %v10296 = vunpack.c.h.b16 %v9593
  %v10297 = vunpack.c.l.b16 %v9594
  %v10298 = vunpack.c.h.b16 %v9594
  %v10299 = vunpack.c.l.b16 %v9595
  %v10300 = vunpack.c.h.b16 %v9595
  %v10301 = vunpack.c.l.b16 %v9596
  %v10302 = vunpack.c.h.b16 %v9596
  %v10303 = vunpack.c.l.b16 %v9597
  %v10304 = vunpack.c.h.b16 %v9597
  %v10305 = vunpack.c.l.b16 %v9598
  %v10306 = vunpack.c.h.b16 %v9598
  %v10307 = vunpack.c.l.b16 %v9599
  %v10308 = vunpack.c.h.b16 %v9599
  %v10309 = vunpack.c.l.b16 %v9600
  %v10310 = vunpack.c.h.b16 %v9600
  %v10311 = vunpack.c.l.b16 %v9601
  %v10312 = vunpack.c.h.b16 %v9601
  %v10313 = vunpack.c.l.b16 %v9602
  %v10314 = vunpack.c.h.b16 %v9602
  %v10315 = vunpack.c.l.b16 %v9603
  %v10316 = vunpack.c.h.b16 %v9603
  %v10317 = vunpack.c.l.b16 %v9604
  %v10318 = vunpack.c.h.b16 %v9604
  %v10319 = vunpack.c.l.b16 %v9605
  %v10320 = vunpack.c.h.b16 %v9605
  %v10321 = vunpack.c.l.b16 %v9606
  %v10322 = vunpack.c.h.b16 %v9606
  %v10323 = vunpack.c.l.b16 %v9607
  %v10324 = vunpack.c.h.b16 %v9607
  %v10325 = vunpack.c.l.b16 %v9608
  %v10326 = vunpack.c.h.b16 %v9608
  %v10327 = vunpack.c.l.b16 %v9609
  %v10328 = vunpack.c.h.b16 %v9609
  %v10329 = vunpack.c.l.b16 %v9610
  %v10330 = vunpack.c.h.b16 %v9610
  %v10331 = vunpack.c.l.b16 %v9611
  %v10332 = vunpack.c.h.b16 %v9611
  %v10333 = vunpack.c.l.b16 %v9612
  %v10334 = vunpack.c.h.b16 %v9612
  %v10335 = vunpack.c.l.b16 %v9613
  %v10336 = vunpack.c.h.b16 %v9613
  %v10337 = vunpack.c.l.b16 %v9614
  %v10338 = vunpack.c.h.b16 %v9614
  %v10339 = vunpack.c.l.b16 %v9615
  %v10340 = vunpack.c.h.b16 %v9615
  %v10341 = vunpack.c.l.b16 %v9616
  %v10342 = vunpack.c.h.b16 %v9616
  %v10343 = vunpack.c.l.b16 %v9617
  %v10344 = vunpack.c.h.b16 %v9617
  %v10345 = vunpack.c.l.b16 %v9618
  %v10346 = vunpack.c.h.b16 %v9618
  %v10347 = vunpack.c.l.b16 %v9619
  %v10348 = vunpack.c.h.b16 %v9619
  %v10349 = vunpack.c.l.b16 %v9620
  %v10350 = vunpack.c.h.b16 %v9620
  %v10351 = vunpack.c.l.b16 %v9621
  %v10352 = vunpack.c.h.b16 %v9621
  %v10353 = vunpack.c.l.b16 %v9622
  %v10354 = vunpack.c.h.b16 %v9622
  %v10355 = vunpack.c.l.b16 %v9623
  %v10356 = vunpack.c.h.b16 %v9623
  %v10357 = vunpack.c.l.b16 %v9624
  %v10358 = vunpack.c.h.b16 %v9624
  %v10359 = vunpack.c.l.b16 %v9625
  %v10360 = vunpack.c.h.b16 %v9625
  %v10361 = vunpack.c.l.b16 %v9626
  %v10362 = vunpack.c.h.b16 %v9626
  %v10363 = vunpack.c.l.b16 %v9627
  %v10364 = vunpack.c.h.b16 %v9627
  %v10365 = vunpack.c.l.b16 %v9628
  %v10366 = vunpack.c.h.b16 %v9628
  %v10367 = vunpack.c.l.b16 %v9629
  %v10368 = vunpack.c.h.b16 %v9629
  %v10369 = vunpack.c.l.b16 %v9630
  %v10370 = vunpack.c.h.b16 %v9630
  %v10371 = vunpack.c.l.b16 %v9631
  %v10372 = vunpack.c.h.b16 %v9631
  %v10373 = vunpack.c.l.b16 %v9632
  %v10374 = vunpack.c.h.b16 %v9632
  %v10375 = vunpack.c.l.b16 %v9633
  %v10376 = vunpack.c.h.b16 %v9633
  %v10377 = vunpack.c.l.b16 %v9634
  %v10378 = vunpack.c.h.b16 %v9634
  %v10379 = vunpack.c.l.b16 %v9635
  %v10380 = vunpack.c.h.b16 %v9635
  %v10381 = vunpack.c.l.b16 %v9636
  %v10382 = vunpack.c.h.b16 %v9636
  %v10383 = vunpack.c.l.b16 %v9637
  %v10384 = vunpack.c.h.b16 %v9637
  %v10385 = vunpack.c.l.b16 %v9638
  %v10386 = vunpack.c.h.b16 %v9638
  %v10387 = vunpack.c.l.b16 %v9639
  %v10388 = vunpack.c.h.b16 %v9639
  %v10389 = vunpack.c.l.b16 %v9640
  %v10390 = vunpack.c.h.b16 %v9640
  %v10391 = vunpack.c.l.b16 %v9641
  %v10392 = vunpack.c.h.b16 %v9641
  %v10393 = vunpack.c.l.b16 %v9642
  %v10394 = vunpack.c.h.b16 %v9642
  %v10395 = vunpack.c.l.b16 %v9643
  %v10396 = vunpack.c.h.b16 %v9643
  %v10397 = vunpack.c.l.b16 %v9644
  %v10398 = vunpack.c.h.b16 %v9644
  %v10399 = vunpack.c.l.b16 %v9645
  %v10400 = vunpack.c.h.b16 %v9645
  %v10401 = vunpack.c.l.b16 %v9646
  %v10402 = vunpack.c.h.b16 %v9646
  %v10403 = vunpack.c.l.b16 %v9647
  %v10404 = vunpack.c.h.b16 %v9647
  %v10405 = vunpack.c.l.b16 %v9648
  %v10406 = vunpack.c.h.b16 %v9648
  %v10407 = vunpack.c.l.b16 %v9649
  %v10408 = vunpack.c.h.b16 %v9649
  %v10409 = vunpack.c.l.b16 %v9650
  %v10410 = vunpack.c.h.b16 %v9650
  %v10411 = vunpack.c.l.b16 %v9651
  %v10412 = vunpack.c.h.b16 %v9651
  %v10413 = vunpack.c.l.b16 %v9652
  %v10414 = vunpack.c.h.b16 %v9652
  %v10415 = vunpack.c.l.b16 %v9653
  %v10416 = vunpack.c.h.b16 %v9653
  %v10417 = vunpack.c.l.b16 %v9654
  %v10418 = vunpack.c.h.b16 %v9654
  %v10419 = vunpack.c.l.b16 %v9655
  %v10420 = vunpack.c.h.b16 %v9655
  %v10421 = vunpack.c.l.b16 %v9656
  %v10422 = vunpack.c.h.b16 %v9656
  %v10423 = vunpack.c.l.b16 %v9657
  %v10424 = vunpack.c.h.b16 %v9657
  %v10425 = vunpack.c.l.b16 %v9658
  %v10426 = vunpack.c.h.b16 %v9658
  %v10427 = vunpack.c.l.b16 %v9659
  %v10428 = vunpack.c.h.b16 %v9659
  %v10429 = vunpack.c.l.b16 %v9660
  %v10430 = vunpack.c.h.b16 %v9660
  %v10431 = vunpack.c.l.b16 %v9661
  %v10432 = vunpack.c.h.b16 %v9661
  %v10433 = vunpack.c.l.b16 %v9662
  %v10434 = vunpack.c.h.b16 %v9662
  %v10435 = vunpack.c.l.b16 %v9663
  %v10436 = vunpack.c.h.b16 %v9663
  %v10437 = vunpack.c.l.b16 %v9664
  %v10438 = vunpack.c.h.b16 %v9664
  %v10439 = vunpack.c.l.b16 %v9665
  %v10440 = vunpack.c.h.b16 %v9665
  %v10441 = vunpack.c.l.b16 %v9666
  %v10442 = vunpack.c.h.b16 %v9666
  %v10443 = vunpack.c.l.b16 %v9667
  %v10444 = vunpack.c.h.b16 %v9667
  %v10445 = vunpack.c.l.b16 %v9668
  %v10446 = vunpack.c.h.b16 %v9668
  %v10447 = vunpack.c.l.b16 %v9669
  %v10448 = vunpack.c.h.b16 %v9669
  %v10449 = vunpack.c.l.b16 %v9670
  %v10450 = vunpack.c.h.b16 %v9670
  %v10451 = vunpack.c.l.b16 %v9671
  %v10452 = vunpack.c.h.b16 %v9671
  %v10453 = vunpack.c.l.b16 %v9672
  %v10454 = vunpack.c.h.b16 %v9672
  %v10455 = vunpack.c.l.b16 %v9673
  %v10456 = vunpack.c.h.b16 %v9673
  %v10457 = vunpack.c.l.b16 %v9674
  %v10458 = vunpack.c.h.b16 %v9674
  %v10459 = vunpack.c.l.b16 %v9675
  %v10460 = vunpack.c.h.b16 %v9675
  %v10461 = vunpack.c.l.b16 %v9676
  %v10462 = vunpack.c.h.b16 %v9676
  %v10463 = vunpack.c.l.b16 %v9677
  %v10464 = vunpack.c.h.b16 %v9677
  %v10465 = vunpack.c.l.b16 %v9678
  %v10466 = vunpack.c.h.b16 %v9678
  %v10467 = vunpack.c.l.b16 %v9679
  %v10468 = vunpack.c.h.b16 %v9679
  %v10469 = vunpack.c.l.b16 %v9680
  %v10470 = vunpack.c.h.b16 %v9680
  %v10471 = vunpack.c.l.b16 %v9681
  %v10472 = vunpack.c.h.b16 %v9681
  %v10473 = vunpack.c.l.b16 %v9682
  %v10474 = vunpack.c.h.b16 %v9682
  %v10475 = vunpack.c.l.b16 %v9683
  %v10476 = vunpack.c.h.b16 %v9683
  %v10477 = vunpack.c.l.b16 %v9684
  %v10478 = vunpack.c.h.b16 %v9684
  %v10479 = vunpack.c.l.b16 %v9685
  %v10480 = vunpack.c.h.b16 %v9685
  %v10481 = vunpack.c.l.b16 %v9686
  %v10482 = vunpack.c.h.b16 %v9686
  %v10483 = vunpack.c.l.b16 %v9687
  %v10484 = vunpack.c.h.b16 %v9687
  %v10485 = vunpack.c.l.b16 %v9688
  %v10486 = vunpack.c.h.b16 %v9688
  %v10487 = vunpack.c.l.b16 %v9689
  %v10488 = vunpack.c.h.b16 %v9689
  %v10489 = vunpack.c.l.b16 %v9690
  %v10490 = vunpack.c.h.b16 %v9690
  %v10491 = vunpack.c.l.b16 %v9691
  %v10492 = vunpack.c.h.b16 %v9691
  %v10493 = vunpack.c.l.b16 %v9692
  %v10494 = vunpack.c.h.b16 %v9692
  %v10495 = vunpack.c.l.b16 %v9693
  %v10496 = vunpack.c.h.b16 %v9693
  %v10497 = vunpack.c.l.b16 %v9694
  %v10498 = vunpack.c.h.b16 %v9694
  %v10499 = vunpack.c.l.b16 %v9695
  %v10500 = vunpack.c.h.b16 %v9695
  %v10501 = vunpack.c.l.b16 %v9696
  %v10502 = vunpack.c.h.b16 %v9696
  %v10503 = vunpack.c.l.b16 %v9697
  %v10504 = vunpack.c.h.b16 %v9697
  %v10505 = vunpack.c.l.b16 %v9698
  %v10506 = vunpack.c.h.b16 %v9698
  %v10507 = vunpack.c.l.b16 %v9699
  %v10508 = vunpack.c.h.b16 %v9699
  %v10509 = vunpack.c.l.b16 %v9700
  %v10510 = vunpack.c.h.b16 %v9700
  %v10511 = vunpack.c.l.b16 %v9701
  %v10512 = vunpack.c.h.b16 %v9701
  %v10513 = vunpack.c.l.b16 %v9702
  %v10514 = vunpack.c.h.b16 %v9702
  %v10515 = vunpack.c.l.b16 %v9703
  %v10516 = vunpack.c.h.b16 %v9703
  %v10517 = vunpack.c.l.b16 %v9704
  %v10518 = vunpack.c.h.b16 %v9704
  %v10519 = vunpack.c.l.b16 %v9705
  %v10520 = vunpack.c.h.b16 %v9705
  %v10521 = vunpack.c.l.b16 %v9706
  %v10522 = vunpack.c.h.b16 %v9706
  %v10523 = vpack.c.b16 %v9985, %v9983
  %v10524 = vpack.c.b16 %v9986, %v9984
  %v10525 = vpack.c.b16 %v9989, %v9987
  %v10526 = vpack.c.b16 %v9990, %v9988
  %v10527 = vpack.c.b16 %v9993, %v9991
  %v10528 = vpack.c.b16 %v9994, %v9992
  %v10529 = vpack.c.b16 %v9997, %v9995
  %v10530 = vpack.c.b16 %v9998, %v9996
  %v10531 = vpack.c.b16 %v10001, %v9999
  %v10532 = vpack.c.b16 %v10002, %v10000
  %v10533 = vpack.c.b16 %v10005, %v10003
  %v10534 = vpack.c.b16 %v10006, %v10004
  %v10535 = vpack.c.b16 %v10009, %v10007
  %v10536 = vpack.c.b16 %v10010, %v10008
  %v10537 = vpack.c.b16 %v10013, %v10011
  %v10538 = vpack.c.b16 %v10014, %v10012
  %v10539 = vpack.c.b16 %v10017, %v10015
  %v10540 = vpack.c.b16 %v10018, %v10016
  %v10541 = vpack.c.b16 %v10021, %v10019
  %v10542 = vpack.c.b16 %v10022, %v10020
  %v10543 = vpack.c.b16 %v10025, %v10023
  %v10544 = vpack.c.b16 %v10026, %v10024
  %v10545 = vpack.c.b16 %v10029, %v10027
  %v10546 = vpack.c.b16 %v10030, %v10028
  %v10547 = vpack.c.b16 %v10033, %v10031
  %v10548 = vpack.c.b16 %v10034, %v10032
  %v10549 = vpack.c.b16 %v10037, %v10035
  %v10550 = vpack.c.b16 %v10038, %v10036
  %v10551 = vpack.c.b16 %v10041, %v10039
  %v10552 = vpack.c.b16 %v10042, %v10040
  %v10553 = vpack.c.b16 %v10045, %v10043
  %v10554 = vpack.c.b16 %v10046, %v10044
  %v10555 = vpack.c.b16 %v10049, %v10047
  %v10556 = vpack.c.b16 %v10050, %v10048
  %v10557 = vpack.c.b16 %v10053, %v10051
  %v10558 = vpack.c.b16 %v10054, %v10052
  %v10559 = vpack.c.b16 %v10057, %v10055
  %v10560 = vpack.c.b16 %v10058, %v10056
  %v10561 = vpack.c.b16 %v10061, %v10059
  %v10562 = vpack.c.b16 %v10062, %v10060
  %v10563 = vpack.c.b16 %v10065, %v10063
  %v10564 = vpack.c.b16 %v10066, %v10064
  %v10565 = vpack.c.b16 %v10069, %v10067
  %v10566 = vpack.c.b16 %v10070, %v10068
  %v10567 = vpack.c.b16 %v10073, %v10071
  %v10568 = vpack.c.b16 %v10074, %v10072
  %v10569 = vpack.c.b16 %v10077, %v10075
  %v10570 = vpack.c.b16 %v10078, %v10076
  %v10571 = vpack.c.b16 %v10081, %v10079
  %v10572 = vpack.c.b16 %v10082, %v10080
  %v10573 = vpack.c.b16 %v10085, %v10083
  %v10574 = vpack.c.b16 %v10086, %v10084
  %v10575 = vpack.c.b16 %v10089, %v10087
  %v10576 = vpack.c.b16 %v10090, %v10088
  %v10577 = vpack.c.b16 %v10093, %v10091
  %v10578 = vpack.c.b16 %v10094, %v10092
  %v10579 = vpack.c.b16 %v10097, %v10095
  %v10580 = vpack.c.b16 %v10098, %v10096
  %v10581 = vpack.c.b16 %v10101, %v10099
  %v10582 = vpack.c.b16 %v10102, %v10100
  %v10583 = vpack.c.b16 %v10105, %v10103
  %v10584 = vpack.c.b16 %v10106, %v10104
  %v10585 = vpack.c.b16 %v10109, %v10107
  %v10586 = vpack.c.b16 %v10110, %v10108
  %v10587 = vpack.c.b16 %v10113, %v10111
  %v10588 = vpack.c.b16 %v10114, %v10112
  %v10589 = vpack.c.b16 %v10117, %v10115
  %v10590 = vpack.c.b16 %v10118, %v10116
  %v10591 = vpack.c.b16 %v10121, %v10119
  %v10592 = vpack.c.b16 %v10122, %v10120
  %v10593 = vpack.c.b16 %v10125, %v10123
  %v10594 = vpack.c.b16 %v10126, %v10124
  %v10595 = vpack.c.b16 %v10129, %v10127
  %v10596 = vpack.c.b16 %v10130, %v10128
  %v10597 = vpack.c.b16 %v10133, %v10131
  %v10598 = vpack.c.b16 %v10134, %v10132
  %v10599 = vpack.c.b16 %v10137, %v10135
  %v10600 = vpack.c.b16 %v10138, %v10136
  %v10601 = vpack.c.b16 %v10141, %v10139
  %v10602 = vpack.c.b16 %v10142, %v10140
  %v10603 = vpack.c.b16 %v10145, %v10143
  %v10604 = vpack.c.b16 %v10146, %v10144
  %v10605 = vpack.c.b16 %v10149, %v10147
  %v10606 = vpack.c.b16 %v10150, %v10148
  %v10607 = vpack.c.b16 %v10153, %v10151
  %v10608 = vpack.c.b16 %v10154, %v10152
  %v10609 = vpack.c.b16 %v10157, %v10155
  %v10610 = vpack.c.b16 %v10158, %v10156
  %v10611 = vpack.c.b16 %v10161, %v10159
  %v10612 = vpack.c.b16 %v10162, %v10160
  %v10613 = vpack.c.b16 %v10165, %v10163
  %v10614 = vpack.c.b16 %v10166, %v10164
  %v10615 = vpack.c.b16 %v10169, %v10167
  %v10616 = vpack.c.b16 %v10170, %v10168
  %v10617 = vpack.c.b16 %v10173, %v10171
  %v10618 = vpack.c.b16 %v10174, %v10172
  %v10619 = vpack.c.b16 %v10177, %v10175
  %v10620 = vpack.c.b16 %v10178, %v10176
  %v10621 = vpack.c.b16 %v10181, %v10179
  %v10622 = vpack.c.b16 %v10182, %v10180
  %v10623 = vpack.c.b16 %v10185, %v10183
  %v10624 = vpack.c.b16 %v10186, %v10184
  %v10625 = vpack.c.b16 %v10189, %v10187
  %v10626 = vpack.c.b16 %v10190, %v10188
  %v10627 = vpack.c.b16 %v10193, %v10191
  %v10628 = vpack.c.b16 %v10194, %v10192
  %v10629 = vpack.c.b16 %v10197, %v10195
  %v10630 = vpack.c.b16 %v10198, %v10196
  %v10631 = vpack.c.b16 %v10201, %v10199
  %v10632 = vpack.c.b16 %v10202, %v10200
  %v10633 = vpack.c.b16 %v10205, %v10203
  %v10634 = vpack.c.b16 %v10206, %v10204
  %v10635 = vpack.c.b16 %v10209, %v10207
  %v10636 = vpack.c.b16 %v10210, %v10208
  %v10637 = vpack.c.b16 %v10213, %v10211
  %v10638 = vpack.c.b16 %v10214, %v10212
  %v10639 = vpack.c.b16 %v10217, %v10215
  %v10640 = vpack.c.b16 %v10218, %v10216
  %v10641 = vpack.c.b16 %v10221, %v10219
  %v10642 = vpack.c.b16 %v10222, %v10220
  %v10643 = vpack.c.b16 %v10225, %v10223
  %v10644 = vpack.c.b16 %v10226, %v10224
  %v10645 = vpack.c.b16 %v10229, %v10227
  %v10646 = vpack.c.b16 %v10230, %v10228
  %v10647 = vpack.c.b16 %v10233, %v10231
  %v10648 = vpack.c.b16 %v10234, %v10232
  %v10649 = vpack.c.b16 %v10237, %v10235
  %v10650 = vpack.c.b16 %v10238, %v10236
  %v10651 = vpack.c.b16 %v10241, %v10239
  %v10652 = vpack.c.b16 %v10242, %v10240
  %v10653 = vpack.c.b16 %v10245, %v10243
  %v10654 = vpack.c.b16 %v10246, %v10244
  %v10655 = vpack.c.b16 %v10249, %v10247
  %v10656 = vpack.c.b16 %v10250, %v10248
  %v10657 = vpack.c.b16 %v10253, %v10251
  %v10658 = vpack.c.b16 %v10254, %v10252
  %v10659 = vpack.c.b16 %v10257, %v10255
  %v10660 = vpack.c.b16 %v10258, %v10256
  %v10661 = vpack.c.b16 %v10261, %v10259
  %v10662 = vpack.c.b16 %v10262, %v10260
  %v10663 = vpack.c.b16 %v10265, %v10263
  %v10664 = vpack.c.b16 %v10266, %v10264
  %v10665 = vpack.c.b16 %v10269, %v10267
  %v10666 = vpack.c.b16 %v10270, %v10268
  %v10667 = vpack.c.b16 %v10273, %v10271
  %v10668 = vpack.c.b16 %v10274, %v10272
  %v10669 = vpack.c.b16 %v10277, %v10275
  %v10670 = vpack.c.b16 %v10278, %v10276
  %v10671 = vpack.c.b16 %v10281, %v10279
  %v10672 = vpack.c.b16 %v10282, %v10280
  %v10673 = vpack.c.b16 %v10285, %v10283
  %v10674 = vpack.c.b16 %v10286, %v10284
  %v10675 = vpack.c.b16 %v10289, %v10287
  %v10676 = vpack.c.b16 %v10290, %v10288
  %v10677 = vpack.c.b16 %v10293, %v10291
  %v10678 = vpack.c.b16 %v10294, %v10292
  %v10679 = vpack.c.b16 %v10297, %v10295
  %v10680 = vpack.c.b16 %v10298, %v10296
  %v10681 = vpack.c.b16 %v10301, %v10299
  %v10682 = vpack.c.b16 %v10302, %v10300
  %v10683 = vpack.c.b16 %v10305, %v10303
  %v10684 = vpack.c.b16 %v10306, %v10304
  %v10685 = vpack.c.b16 %v10309, %v10307
  %v10686 = vpack.c.b16 %v10310, %v10308
  %v10687 = vpack.c.b16 %v10313, %v10311
  %v10688 = vpack.c.b16 %v10314, %v10312
  %v10689 = vpack.c.b16 %v10317, %v10315
  %v10690 = vpack.c.b16 %v10318, %v10316
  %v10691 = vpack.c.b16 %v10321, %v10319
  %v10692 = vpack.c.b16 %v10322, %v10320
  %v10693 = vpack.c.b16 %v10325, %v10323
  %v10694 = vpack.c.b16 %v10326, %v10324
  %v10695 = vpack.c.b16 %v10329, %v10327
  %v10696 = vpack.c.b16 %v10330, %v10328
  %v10697 = vpack.c.b16 %v10333, %v10331
  %v10698 = vpack.c.b16 %v10334, %v10332
  %v10699 = vpack.c.b16 %v10337, %v10335
  %v10700 = vpack.c.b16 %v10338, %v10336
  %v10701 = vpack.c.b16 %v10341, %v10339
  %v10702 = vpack.c.b16 %v10342, %v10340
  %v10703 = vpack.c.b16 %v10345, %v10343
  %v10704 = vpack.c.b16 %v10346, %v10344
  %v10705 = vpack.c.b16 %v10349, %v10347
  %v10706 = vpack.c.b16 %v10350, %v10348
  %v10707 = vpack.c.b16 %v10353, %v10351
  %v10708 = vpack.c.b16 %v10354, %v10352
  %v10709 = vpack.c.b16 %v10357, %v10355
  %v10710 = vpack.c.b16 %v10358, %v10356
  %v10711 = vpack.c.b16 %v10361, %v10359
  %v10712 = vpack.c.b16 %v10362, %v10360
  %v10713 = vpack.c.b16 %v10365, %v10363
  %v10714 = vpack.c.b16 %v10366, %v10364
  %v10715 = vpack.c.b16 %v10369, %v10367
  %v10716 = vpack.c.b16 %v10370, %v10368
  %v10717 = vpack.c.b16 %v10373, %v10371
  %v10718 = vpack.c.b16 %v10374, %v10372
  %v10719 = vpack.c.b16 %v10377, %v10375
  %v10720 = vpack.c.b16 %v10378, %v10376
  %v10721 = vpack.c.b16 %v10381, %v10379
  %v10722 = vpack.c.b16 %v10382, %v10380
  %v10723 = vpack.c.b16 %v10385, %v10383
  %v10724 = vpack.c.b16 %v10386, %v10384
  %v10725 = vpack.c.b16 %v10389, %v10387
  %v10726 = vpack.c.b16 %v10390, %v10388
  %v10727 = vpack.c.b16 %v10393, %v10391
  %v10728 = vpack.c.b16 %v10394, %v10392
  %v10729 = vpack.c.b16 %v10397, %v10395
  %v10730 = vpack.c.b16 %v10398, %v10396
  %v10731 = vpack.c.b16 %v10401, %v10399
  %v10732 = vpack.c.b16 %v10402, %v10400
  %v10733 = vpack.c.b16 %v10405, %v10403
  %v10734 = vpack.c.b16 %v10406, %v10404
  %v10735 = vpack.c.b16 %v10409, %v10407
  %v10736 = vpack.c.b16 %v10410, %v10408
  %v10737 = vpack.c.b16 %v10413, %v10411
  %v10738 = vpack.c.b16 %v10414, %v10412
  %v10739 = vpack.c.b16 %v10417, %v10415
  %v10740 = vpack.c.b16 %v10418, %v10416
  %v10741 = vpack.c.b16 %v10421, %v10419
  %v10742 = vpack.c.b16 %v10422, %v10420
  %v10743 = vpack.c.b16 %v10425, %v10423
  %v10744 = vpack.c.b16 %v10426, %v10424
  %v10745 = vpack.c.b16 %v10429, %v10427
  %v10746 = vpack.c.b16 %v10430, %v10428
  %v10747 = vpack.c.b16 %v10433, %v10431
  %v10748 = vpack.c.b16 %v10434, %v10432
  %v10749 = vpack.c.b16 %v10437, %v10435
  %v10750 = vpack.c.b16 %v10438, %v10436
  %v10751 = vpack.c.b16 %v10441, %v10439
  %v10752 = vpack.c.b16 %v10442, %v10440
  %v10753 = vpack.c.b16 %v10445, %v10443
  %v10754 = vpack.c.b16 %v10446, %v10444
  %v10755 = vpack.c.b16 %v10449, %v10447
  %v10756 = vpack.c.b16 %v10450, %v10448
  %v10757 = vpack.c.b16 %v10453, %v10451
  %v10758 = vpack.c.b16 %v10454, %v10452
  %v10759 = vpack.c.b16 %v10457, %v10455
  %v10760 = vpack.c.b16 %v10458, %v10456
  %v10761 = vpack.c.b16 %v10461, %v10459
  %v10762 = vpack.c.b16 %v10462, %v10460
  %v10763 = vpack.c.b16 %v10465, %v10463
  %v10764 = vpack.c.b16 %v10466, %v10464
  %v10765 = vpack.c.b16 %v10469, %v10467
  %v10766 = vpack.c.b16 %v10470, %v10468
  %v10767 = vpack.c.b16 %v10473, %v10471
  %v10768 = vpack.c.b16 %v10474, %v10472
  %v10769 = vpack.c.b16 %v10477, %v10475
  %v10770 = vpack.c.b16 %v10478, %v10476
  %v10771 = vpack.c.b16 %v10481, %v10479
  %v10772 = vpack.c.b16 %v10482, %v10480
  %v10773 = vpack.c.b16 %v10485, %v10483
  %v10774 = vpack.c.b16 %v10486, %v10484
  %v10775 = vpack.c.b16 %v10489, %v10487
  %v10776 = vpack.c.b16 %v10490, %v10488
  %v10777 = vpack.c.b16 %v10493, %v10491
  %v10778 = vpack.c.b16 %v10494, %v10492
  %v10779 = vpack.c.b16 %v10497, %v10495
  %v10780 = vpack.c.b16 %v10498, %v10496
  %v10781 = vpack.c.b16 %v10501, %v10499
  %v10782 = vpack.c.b16 %v10502, %v10500
  %v10783 = vpack.c.b16 %v10505, %v10503
  %v10784 = vpack.c.b16 %v10506, %v10504
  %v10785 = vpack.c.b16 %v10509, %v10507
  %v10786 = vpack.c.b16 %v10510, %v10508
  %v10787 = vpack.c.b16 %v10513, %v10511
  %v10788 = vpack.c.b16 %v10514, %v10512
  %v10789 = vpack.c.b16 %v10517, %v10515
  %v10790 = vpack.c.b16 %v10518, %v10516
  %v10791 = vpack.c.b16 %v10521, %v10519
  %v10792 = vpack.c.b16 %v10522, %v10520
  %v11064 = vsel %vm9377, %v9372, 0
  %v11067 = vsel %vm9377, %v9374, 0
  %11069 = vmatpush.bf16.msra.mxu0 %v10537
  %11070 = vmatpush.bf16.msra.mxu0 %v10535
  %11071 = vmatpush.bf16.msra.mxu0 %v10533
  %11072 = vmatpush.bf16.msra.mxu0 %v10531
  %11073 = vmatpush.bf16.msra.mxu0 %v10529
  %11074 = vmatpush.bf16.msra.mxu0 %v10527
  %11075 = vmatpush.bf16.msra.mxu0 %v10525
  %11076 = vmatpush.bf16.msra.mxu0 %v10523
  %11077 = vmatmul.bf16.gmra.mxu0 %v9169
  %v11078 = vpop.f32.mrf.mxu0
  %v11079 = vadd.f32 %v9709, %v11078
  %v11080 = vpop.f32.mrf.mxu0
  %v11081 = vadd.f32 %v9709, %v11080
  %11082 = vmatmul.bf16.gmra.mxu0 %v9171
  %v11083 = vpop.f32.mrf.mxu0
  %v11084 = vadd.f32 %v9709, %v11083
  %v11085 = vpop.f32.mrf.mxu0
  %v11086 = vadd.f32 %v9709, %v11085
  %11087 = vdwg.mxu0
  %11088 = vmatpush.bf16.msra.mxu0 %v10553
  %11089 = vmatpush.bf16.msra.mxu0 %v10551
  %11090 = vmatpush.bf16.msra.mxu0 %v10549
  %11091 = vmatpush.bf16.msra.mxu0 %v10547
  %11092 = vmatpush.bf16.msra.mxu0 %v10545
  %11093 = vmatpush.bf16.msra.mxu0 %v10543
  %11094 = vmatpush.bf16.msra.mxu0 %v10541
  %11095 = vmatpush.bf16.msra.mxu0 %v10539
  %11096 = vmatmul.bf16.gmra.mxu0 %v9380
  %v11097 = vpop.f32.mrf.mxu0
  %v11098 = vadd.f32 %v11079, %v11097
  %v11099 = vpop.f32.mrf.mxu0
  %v11100 = vadd.f32 %v11081, %v11099
  %11101 = vmatmul.bf16.gmra.mxu0 %v9384
  %v11102 = vpop.f32.mrf.mxu0
  %v11103 = vadd.f32 %v11084, %v11102
  %v11104 = vpop.f32.mrf.mxu0
  %v11105 = vadd.f32 %v11086, %v11104
  %11106 = vdwg.mxu0
  %11107 = vmatpush.bf16.msra.mxu0 %v10569
  %11108 = vmatpush.bf16.msra.mxu0 %v10567
  %11109 = vmatpush.bf16.msra.mxu0 %v10565
  %11110 = vmatpush.bf16.msra.mxu0 %v10563
  %11111 = vmatpush.bf16.msra.mxu0 %v10561
  %11112 = vmatpush.bf16.msra.mxu0 %v10559
  %11113 = vmatpush.bf16.msra.mxu0 %v10557
  %11114 = vmatpush.bf16.msra.mxu0 %v10555
  %11115 = vmatmul.bf16.gmra.mxu0 %v9200
  %v11116 = vpop.f32.mrf.mxu0
  %v11117 = vadd.f32 %v11098, %v11116
  %v11118 = vpop.f32.mrf.mxu0
  %v11119 = vadd.f32 %v11100, %v11118
  %11120 = vmatmul.bf16.gmra.mxu0 %v9201
  %v11121 = vpop.f32.mrf.mxu0
  %v11122 = vadd.f32 %v11103, %v11121
  %v11123 = vpop.f32.mrf.mxu0
  %v11124 = vadd.f32 %v11105, %v11123
  %11125 = vdwg.mxu0
  %11126 = vmatpush.bf16.msra.mxu0 %v10585
  %11127 = vmatpush.bf16.msra.mxu0 %v10583
  %11128 = vmatpush.bf16.msra.mxu0 %v10581
  %11129 = vmatpush.bf16.msra.mxu0 %v10579
  %11130 = vmatpush.bf16.msra.mxu0 %v10577
  %11131 = vmatpush.bf16.msra.mxu0 %v10575
  %11132 = vmatpush.bf16.msra.mxu0 %v10573
  %11133 = vmatpush.bf16.msra.mxu0 %v10571
  %11134 = vmatmul.bf16.gmra.mxu0 %v9388
  %v11135 = vpop.f32.mrf.mxu0
  %v11136 = vadd.f32 %v11117, %v11135
  %v11137 = vpop.f32.mrf.mxu0
  %v11138 = vadd.f32 %v11119, %v11137
  %11139 = vmatmul.bf16.gmra.mxu0 %v9392
  %v11140 = vpop.f32.mrf.mxu0
  %v11141 = vadd.f32 %v11122, %v11140
  %v11142 = vpop.f32.mrf.mxu0
  %v11143 = vadd.f32 %v11124, %v11142
  %11144 = vdwg.mxu0
  %11145 = vmatpush.bf16.msra.mxu0 %v10601
  %11146 = vmatpush.bf16.msra.mxu0 %v10599
  %11147 = vmatpush.bf16.msra.mxu0 %v10597
  %11148 = vmatpush.bf16.msra.mxu0 %v10595
  %11149 = vmatpush.bf16.msra.mxu0 %v10593
  %11150 = vmatpush.bf16.msra.mxu0 %v10591
  %11151 = vmatpush.bf16.msra.mxu0 %v10589
  %11152 = vmatpush.bf16.msra.mxu0 %v10587
  %11153 = vmatmul.bf16.gmra.mxu0 %v9228
  %v11154 = vpop.f32.mrf.mxu0
  %v11155 = vadd.f32 %v11136, %v11154
  %v11156 = vpop.f32.mrf.mxu0
  %v11157 = vadd.f32 %v11138, %v11156
  %11158 = vmatmul.bf16.gmra.mxu0 %v9229
  %v11159 = vpop.f32.mrf.mxu0
  %v11160 = vadd.f32 %v11141, %v11159
  %v11161 = vpop.f32.mrf.mxu0
  %v11162 = vadd.f32 %v11143, %v11161
  %11163 = vdwg.mxu0
  %11164 = vmatpush.bf16.msra.mxu0 %v10617
  %11165 = vmatpush.bf16.msra.mxu0 %v10615
  %11166 = vmatpush.bf16.msra.mxu0 %v10613
  %11167 = vmatpush.bf16.msra.mxu0 %v10611
  %11168 = vmatpush.bf16.msra.mxu0 %v10609
  %11169 = vmatpush.bf16.msra.mxu0 %v10607
  %11170 = vmatpush.bf16.msra.mxu0 %v10605
  %11171 = vmatpush.bf16.msra.mxu0 %v10603
  %11172 = vmatmul.bf16.gmra.mxu0 %v9397
  %v11173 = vpop.f32.mrf.mxu0
  %v11174 = vadd.f32 %v11155, %v11173
  %v11175 = vpop.f32.mrf.mxu0
  %v11176 = vadd.f32 %v11157, %v11175
  %11177 = vmatmul.bf16.gmra.mxu0 %v9401
  %v11178 = vpop.f32.mrf.mxu0
  %v11179 = vadd.f32 %v11160, %v11178
  %v11180 = vpop.f32.mrf.mxu0
  %v11181 = vadd.f32 %v11162, %v11180
  %11182 = vdwg.mxu0
  %11183 = vmatpush.bf16.msra.mxu0 %v10633
  %11184 = vmatpush.bf16.msra.mxu0 %v10631
  %11185 = vmatpush.bf16.msra.mxu0 %v10629
  %11186 = vmatpush.bf16.msra.mxu0 %v10627
  %11187 = vmatpush.bf16.msra.mxu0 %v10625
  %11188 = vmatpush.bf16.msra.mxu0 %v10623
  %11189 = vmatpush.bf16.msra.mxu0 %v10621
  %11190 = vmatpush.bf16.msra.mxu0 %v10619
  %11191 = vmatmul.bf16.gmra.mxu0 %v9257
  %v11192 = vpop.f32.mrf.mxu0
  %v11193 = vadd.f32 %v11174, %v11192
  %v11194 = vpop.f32.mrf.mxu0
  %v11195 = vadd.f32 %v11176, %v11194
  %11196 = vmatmul.bf16.gmra.mxu0 %v9258
  %v11197 = vpop.f32.mrf.mxu0
  %v11198 = vadd.f32 %v11179, %v11197
  %v11199 = vpop.f32.mrf.mxu0
  %v11200 = vadd.f32 %v11181, %v11199
  %11201 = vdwg.mxu0
  %11202 = vmatpush.bf16.msra.mxu0 %v10649
  %11203 = vmatpush.bf16.msra.mxu0 %v10647
  %11204 = vmatpush.bf16.msra.mxu0 %v10645
  %11205 = vmatpush.bf16.msra.mxu0 %v10643
  %11206 = vmatpush.bf16.msra.mxu0 %v10641
  %11207 = vmatpush.bf16.msra.mxu0 %v10639
  %11208 = vmatpush.bf16.msra.mxu0 %v10637
  %11209 = vmatpush.bf16.msra.mxu0 %v10635
  %11210 = vmatmul.bf16.gmra.mxu0 %v9405
  %v11211 = vpop.f32.mrf.mxu0
  %v11212 = vadd.f32 %v11193, %v11211
  %v11213 = vpop.f32.mrf.mxu0
  %v11214 = vadd.f32 %v11195, %v11213
  %11215 = vmatmul.bf16.gmra.mxu0 %v9409
  %v11216 = vpop.f32.mrf.mxu0
  %v11217 = vadd.f32 %v11198, %v11216
  %v11218 = vpop.f32.mrf.mxu0
  %v11219 = vadd.f32 %v11200, %v11218
  %11220 = vdwg.mxu0
  %11221 = vmatpush.bf16.msra.mxu0 %v10665
  %11222 = vmatpush.bf16.msra.mxu0 %v10663
  %11223 = vmatpush.bf16.msra.mxu0 %v10661
  %11224 = vmatpush.bf16.msra.mxu0 %v10659
  %11225 = vmatpush.bf16.msra.mxu0 %v10657
  %11226 = vmatpush.bf16.msra.mxu0 %v10655
  %11227 = vmatpush.bf16.msra.mxu0 %v10653
  %11228 = vmatpush.bf16.msra.mxu0 %v10651
  %11229 = vmatmul.bf16.gmra.mxu0 %v9269
  %v11230 = vpop.f32.mrf.mxu0
  %v11231 = vadd.f32 %v11212, %v11230
  %v11232 = vpop.f32.mrf.mxu0
  %v11233 = vadd.f32 %v11214, %v11232
  %11234 = vmatmul.bf16.gmra.mxu0 %v9270
  %v11235 = vpop.f32.mrf.mxu0
  %v11236 = vadd.f32 %v11217, %v11235
  %v11237 = vpop.f32.mrf.mxu0
  %v11238 = vadd.f32 %v11219, %v11237
  %11239 = vdwg.mxu0
  %11240 = vmatpush.bf16.msra.mxu0 %v10681
  %11241 = vmatpush.bf16.msra.mxu0 %v10679
  %11242 = vmatpush.bf16.msra.mxu0 %v10677
  %11243 = vmatpush.bf16.msra.mxu0 %v10675
  %11244 = vmatpush.bf16.msra.mxu0 %v10673
  %11245 = vmatpush.bf16.msra.mxu0 %v10671
  %11246 = vmatpush.bf16.msra.mxu0 %v10669
  %11247 = vmatpush.bf16.msra.mxu0 %v10667
  %11248 = vmatmul.bf16.gmra.mxu0 %v9414
  %v11249 = vpop.f32.mrf.mxu0
  %v11250 = vadd.f32 %v11231, %v11249
  %v11251 = vpop.f32.mrf.mxu0
  %v11252 = vadd.f32 %v11233, %v11251
  %11253 = vmatmul.bf16.gmra.mxu0 %v9418
  %v11254 = vpop.f32.mrf.mxu0
  %v11255 = vadd.f32 %v11236, %v11254
  %v11256 = vpop.f32.mrf.mxu0
  %v11257 = vadd.f32 %v11238, %v11256
  %11258 = vdwg.mxu0
  %11259 = vmatpush.bf16.msra.mxu0 %v10697
  %11260 = vmatpush.bf16.msra.mxu0 %v10695
  %11261 = vmatpush.bf16.msra.mxu0 %v10693
  %11262 = vmatpush.bf16.msra.mxu0 %v10691
  %11263 = vmatpush.bf16.msra.mxu0 %v10689
  %11264 = vmatpush.bf16.msra.mxu0 %v10687
  %11265 = vmatpush.bf16.msra.mxu0 %v10685
  %11266 = vmatpush.bf16.msra.mxu0 %v10683
  %11267 = vmatmul.bf16.gmra.mxu0 %v9298
  %v11268 = vpop.f32.mrf.mxu0
  %v11269 = vadd.f32 %v11250, %v11268
  %v11270 = vpop.f32.mrf.mxu0
  %v11271 = vadd.f32 %v11252, %v11270
  %11272 = vmatmul.bf16.gmra.mxu0 %v9299
  %v11273 = vpop.f32.mrf.mxu0
  %v11274 = vadd.f32 %v11255, %v11273
  %v11275 = vpop.f32.mrf.mxu0
  %v11276 = vadd.f32 %v11257, %v11275
  %11277 = vdwg.mxu0
  %11278 = vmatpush.bf16.msra.mxu0 %v10713
  %11279 = vmatpush.bf16.msra.mxu0 %v10711
  %11280 = vmatpush.bf16.msra.mxu0 %v10709
  %11281 = vmatpush.bf16.msra.mxu0 %v10707
  %11282 = vmatpush.bf16.msra.mxu0 %v10705
  %11283 = vmatpush.bf16.msra.mxu0 %v10703
  %11284 = vmatpush.bf16.msra.mxu0 %v10701
  %11285 = vmatpush.bf16.msra.mxu0 %v10699
  %11286 = vmatmul.bf16.gmra.mxu0 %v9422
  %v11287 = vpop.f32.mrf.mxu0
  %v11288 = vadd.f32 %v11269, %v11287
  %v11289 = vpop.f32.mrf.mxu0
  %v11290 = vadd.f32 %v11271, %v11289
  %11291 = vmatmul.bf16.gmra.mxu0 %v9426
  %v11292 = vpop.f32.mrf.mxu0
  %v11293 = vadd.f32 %v11274, %v11292
  %v11294 = vpop.f32.mrf.mxu0
  %v11295 = vadd.f32 %v11276, %v11294
  %11296 = vdwg.mxu0
  %11297 = vmatpush.bf16.msra.mxu0 %v10729
  %11298 = vmatpush.bf16.msra.mxu0 %v10727
  %11299 = vmatpush.bf16.msra.mxu0 %v10725
  %11300 = vmatpush.bf16.msra.mxu0 %v10723
  %11301 = vmatpush.bf16.msra.mxu0 %v10721
  %11302 = vmatpush.bf16.msra.mxu0 %v10719
  %11303 = vmatpush.bf16.msra.mxu0 %v10717
  %11304 = vmatpush.bf16.msra.mxu0 %v10715
  %11305 = vmatmul.bf16.gmra.mxu0 %v9326
  %v11306 = vpop.f32.mrf.mxu0
  %v11307 = vadd.f32 %v11288, %v11306
  %v11308 = vpop.f32.mrf.mxu0
  %v11309 = vadd.f32 %v11290, %v11308
  %11310 = vmatmul.bf16.gmra.mxu0 %v9327
  %v11311 = vpop.f32.mrf.mxu0
  %v11312 = vadd.f32 %v11293, %v11311
  %v11313 = vpop.f32.mrf.mxu0
  %v11314 = vadd.f32 %v11295, %v11313
  %11315 = vdwg.mxu0
  %11316 = vmatpush.bf16.msra.mxu0 %v10745
  %11317 = vmatpush.bf16.msra.mxu0 %v10743
  %11318 = vmatpush.bf16.msra.mxu0 %v10741
  %11319 = vmatpush.bf16.msra.mxu0 %v10739
  %11320 = vmatpush.bf16.msra.mxu0 %v10737
  %11321 = vmatpush.bf16.msra.mxu0 %v10735
  %11322 = vmatpush.bf16.msra.mxu0 %v10733
  %11323 = vmatpush.bf16.msra.mxu0 %v10731
  %11324 = vmatmul.bf16.gmra.mxu0 %v9431
  %v11325 = vpop.f32.mrf.mxu0
  %v11326 = vadd.f32 %v11307, %v11325
  %v11327 = vpop.f32.mrf.mxu0
  %v11328 = vadd.f32 %v11309, %v11327
  %11329 = vmatmul.bf16.gmra.mxu0 %v9435
  %v11330 = vpop.f32.mrf.mxu0
  %v11331 = vadd.f32 %v11312, %v11330
  %v11332 = vpop.f32.mrf.mxu0
  %v11333 = vadd.f32 %v11314, %v11332
  %11334 = vdwg.mxu0
  %11335 = vmatpush.bf16.msra.mxu0 %v10761
  %11336 = vmatpush.bf16.msra.mxu0 %v10759
  %11337 = vmatpush.bf16.msra.mxu0 %v10757
  %11338 = vmatpush.bf16.msra.mxu0 %v10755
  %11339 = vmatpush.bf16.msra.mxu0 %v10753
  %11340 = vmatpush.bf16.msra.mxu0 %v10751
  %11341 = vmatpush.bf16.msra.mxu0 %v10749
  %11342 = vmatpush.bf16.msra.mxu0 %v10747
  %11343 = vmatmul.bf16.gmra.mxu0 %v9355
  %v11344 = vpop.f32.mrf.mxu0
  %v11345 = vadd.f32 %v11326, %v11344
  %v11346 = vpop.f32.mrf.mxu0
  %v11347 = vadd.f32 %v11328, %v11346
  %11348 = vmatmul.bf16.gmra.mxu0 %v9356
  %v11349 = vpop.f32.mrf.mxu0
  %v11350 = vadd.f32 %v11331, %v11349
  %v11351 = vpop.f32.mrf.mxu0
  %v11352 = vadd.f32 %v11333, %v11351
  %11353 = vdwg.mxu0
  %11354 = vmatpush.bf16.msra.mxu0 %v10777
  %11355 = vmatpush.bf16.msra.mxu0 %v10775
  %11356 = vmatpush.bf16.msra.mxu0 %v10773
  %11357 = vmatpush.bf16.msra.mxu0 %v10771
  %11358 = vmatpush.bf16.msra.mxu0 %v10769
  %11359 = vmatpush.bf16.msra.mxu0 %v10767
  %11360 = vmatpush.bf16.msra.mxu0 %v10765
  %11361 = vmatpush.bf16.msra.mxu0 %v10763
  %11362 = vmatmul.bf16.gmra.mxu0 %v9371
  %v11363 = vpop.f32.mrf.mxu0
  %v11364 = vadd.f32 %v11345, %v11363
  %v11365 = vpop.f32.mrf.mxu0
  %v11366 = vadd.f32 %v11347, %v11365
  %11367 = vmatmul.bf16.gmra.mxu0 %v9373
  %v11368 = vpop.f32.mrf.mxu0
  %v11369 = vadd.f32 %v11350, %v11368
  %v11370 = vpop.f32.mrf.mxu0
  %v11371 = vadd.f32 %v11352, %v11370
  %11372 = vdwg.mxu0
  %11373 = vmatpush.bf16.msra.mxu0 0
  %11374 = vmatpush.bf16.msra.mxu0 %v10791
  %11375 = vmatpush.bf16.msra.mxu0 %v10789
  %11376 = vmatpush.bf16.msra.mxu0 %v10787
  %11377 = vmatpush.bf16.msra.mxu0 %v10785
  %11378 = vmatpush.bf16.msra.mxu0 %v10783
  %11379 = vmatpush.bf16.msra.mxu0 %v10781
  %11380 = vmatpush.bf16.msra.mxu0 %v10779
  %11381 = vmatmul.bf16.gmra.mxu0 %v11064
  %v11382 = vpop.f32.mrf.mxu0
  %v11383 = vadd.f32 %v11364, %v11382
  %v11384 = vpop.f32.mrf.mxu0
  %v11385 = vadd.f32 %v11366, %v11384
  %11386 = vmatmul.bf16.gmra.mxu0 %v11067
  %v11387 = vpop.f32.mrf.mxu0
  %v11388 = vadd.f32 %v11369, %v11387
  %v11389 = vpop.f32.mrf.mxu0
  %v11390 = vadd.f32 %v11371, %v11389
  %11391 = vdwg.mxu0
  %11392 = vmatpush.bf16.msra.mxu0 %v10538
  %11393 = vmatpush.bf16.msra.mxu0 %v10536
  %11394 = vmatpush.bf16.msra.mxu0 %v10534
  %11395 = vmatpush.bf16.msra.mxu0 %v10532
  %11396 = vmatpush.bf16.msra.mxu0 %v10530
  %11397 = vmatpush.bf16.msra.mxu0 %v10528
  %11398 = vmatpush.bf16.msra.mxu0 %v10526
  %11399 = vmatpush.bf16.msra.mxu0 %v10524
  %11400 = vmatmul.bf16.gmra.mxu0 %v9169
  %v11401 = vpop.f32.mrf.mxu0
  %v11402 = vadd.f32 %v9710, %v11401
  %v11403 = vpop.f32.mrf.mxu0
  %v11404 = vadd.f32 %v9710, %v11403
  %11405 = vmatmul.bf16.gmra.mxu0 %v9171
  %v11406 = vpop.f32.mrf.mxu0
  %v11407 = vadd.f32 %v9710, %v11406
  %v11408 = vpop.f32.mrf.mxu0
  %v11409 = vadd.f32 %v9710, %v11408
  %11410 = vdwg.mxu0
  %11411 = vmatpush.bf16.msra.mxu0 %v10554
  %11412 = vmatpush.bf16.msra.mxu0 %v10552
  %11413 = vmatpush.bf16.msra.mxu0 %v10550
  %11414 = vmatpush.bf16.msra.mxu0 %v10548
  %11415 = vmatpush.bf16.msra.mxu0 %v10546
  %11416 = vmatpush.bf16.msra.mxu0 %v10544
  %11417 = vmatpush.bf16.msra.mxu0 %v10542
  %11418 = vmatpush.bf16.msra.mxu0 %v10540
  %11419 = vmatmul.bf16.gmra.mxu0 %v9380
  %v11420 = vpop.f32.mrf.mxu0
  %v11421 = vadd.f32 %v11402, %v11420
  %v11422 = vpop.f32.mrf.mxu0
  %v11423 = vadd.f32 %v11404, %v11422
  %11424 = vmatmul.bf16.gmra.mxu0 %v9384
  %v11425 = vpop.f32.mrf.mxu0
  %v11426 = vadd.f32 %v11407, %v11425
  %v11427 = vpop.f32.mrf.mxu0
  %v11428 = vadd.f32 %v11409, %v11427
  %11429 = vdwg.mxu0
  %11430 = vmatpush.bf16.msra.mxu0 %v10570
  %11431 = vmatpush.bf16.msra.mxu0 %v10568
  %11432 = vmatpush.bf16.msra.mxu0 %v10566
  %11433 = vmatpush.bf16.msra.mxu0 %v10564
  %11434 = vmatpush.bf16.msra.mxu0 %v10562
  %11435 = vmatpush.bf16.msra.mxu0 %v10560
  %11436 = vmatpush.bf16.msra.mxu0 %v10558
  %11437 = vmatpush.bf16.msra.mxu0 %v10556
  %11438 = vmatmul.bf16.gmra.mxu0 %v9200
  %v11439 = vpop.f32.mrf.mxu0
  %v11440 = vadd.f32 %v11421, %v11439
  %v11441 = vpop.f32.mrf.mxu0
  %v11442 = vadd.f32 %v11423, %v11441
  %11443 = vmatmul.bf16.gmra.mxu0 %v9201
  %v11444 = vpop.f32.mrf.mxu0
  %v11445 = vadd.f32 %v11426, %v11444
  %v11446 = vpop.f32.mrf.mxu0
  %v11447 = vadd.f32 %v11428, %v11446
  %11448 = vdwg.mxu0
  %11449 = vmatpush.bf16.msra.mxu0 %v10586
  %11450 = vmatpush.bf16.msra.mxu0 %v10584
  %11451 = vmatpush.bf16.msra.mxu0 %v10582
  %11452 = vmatpush.bf16.msra.mxu0 %v10580
  %11453 = vmatpush.bf16.msra.mxu0 %v10578
  %11454 = vmatpush.bf16.msra.mxu0 %v10576
  %11455 = vmatpush.bf16.msra.mxu0 %v10574
  %11456 = vmatpush.bf16.msra.mxu0 %v10572
  %11457 = vmatmul.bf16.gmra.mxu0 %v9388
  %v11458 = vpop.f32.mrf.mxu0
  %v11459 = vadd.f32 %v11440, %v11458
  %v11460 = vpop.f32.mrf.mxu0
  %v11461 = vadd.f32 %v11442, %v11460
  %11462 = vmatmul.bf16.gmra.mxu0 %v9392
  %v11463 = vpop.f32.mrf.mxu0
  %v11464 = vadd.f32 %v11445, %v11463
  %v11465 = vpop.f32.mrf.mxu0
  %v11466 = vadd.f32 %v11447, %v11465
  %11467 = vdwg.mxu0
  %11468 = vmatpush.bf16.msra.mxu0 %v10602
  %11469 = vmatpush.bf16.msra.mxu0 %v10600
  %11470 = vmatpush.bf16.msra.mxu0 %v10598
  %11471 = vmatpush.bf16.msra.mxu0 %v10596
  %11472 = vmatpush.bf16.msra.mxu0 %v10594
  %11473 = vmatpush.bf16.msra.mxu0 %v10592
  %11474 = vmatpush.bf16.msra.mxu0 %v10590
  %11475 = vmatpush.bf16.msra.mxu0 %v10588
  %11476 = vmatmul.bf16.gmra.mxu0 %v9228
  %v11477 = vpop.f32.mrf.mxu0
  %v11478 = vadd.f32 %v11459, %v11477
  %v11479 = vpop.f32.mrf.mxu0
  %v11480 = vadd.f32 %v11461, %v11479
  %11481 = vmatmul.bf16.gmra.mxu0 %v9229
  %v11482 = vpop.f32.mrf.mxu0
  %v11483 = vadd.f32 %v11464, %v11482
  %v11484 = vpop.f32.mrf.mxu0
  %v11485 = vadd.f32 %v11466, %v11484
  %11486 = vdwg.mxu0
  %11487 = vmatpush.bf16.msra.mxu0 %v10618
  %11488 = vmatpush.bf16.msra.mxu0 %v10616
  %11489 = vmatpush.bf16.msra.mxu0 %v10614
  %11490 = vmatpush.bf16.msra.mxu0 %v10612
  %11491 = vmatpush.bf16.msra.mxu0 %v10610
  %11492 = vmatpush.bf16.msra.mxu0 %v10608
  %11493 = vmatpush.bf16.msra.mxu0 %v10606
  %11494 = vmatpush.bf16.msra.mxu0 %v10604
  %11495 = vmatmul.bf16.gmra.mxu0 %v9397
  %v11496 = vpop.f32.mrf.mxu0
  %v11497 = vadd.f32 %v11478, %v11496
  %v11498 = vpop.f32.mrf.mxu0
  %v11499 = vadd.f32 %v11480, %v11498
  %11500 = vmatmul.bf16.gmra.mxu0 %v9401
  %v11501 = vpop.f32.mrf.mxu0
  %v11502 = vadd.f32 %v11483, %v11501
  %v11503 = vpop.f32.mrf.mxu0
  %v11504 = vadd.f32 %v11485, %v11503
  %11505 = vdwg.mxu0
  %11506 = vmatpush.bf16.msra.mxu0 %v10634
  %11507 = vmatpush.bf16.msra.mxu0 %v10632
  %11508 = vmatpush.bf16.msra.mxu0 %v10630
  %11509 = vmatpush.bf16.msra.mxu0 %v10628
  %11510 = vmatpush.bf16.msra.mxu0 %v10626
  %11511 = vmatpush.bf16.msra.mxu0 %v10624
  %11512 = vmatpush.bf16.msra.mxu0 %v10622
  %11513 = vmatpush.bf16.msra.mxu0 %v10620
  %11514 = vmatmul.bf16.gmra.mxu0 %v9257
  %v11515 = vpop.f32.mrf.mxu0
  %v11516 = vadd.f32 %v11497, %v11515
  %v11517 = vpop.f32.mrf.mxu0
  %v11518 = vadd.f32 %v11499, %v11517
  %11519 = vmatmul.bf16.gmra.mxu0 %v9258
  %v11520 = vpop.f32.mrf.mxu0
  %v11521 = vadd.f32 %v11502, %v11520
  %v11522 = vpop.f32.mrf.mxu0
  %v11523 = vadd.f32 %v11504, %v11522
  %11524 = vdwg.mxu0
  %11525 = vmatpush.bf16.msra.mxu0 %v10650
  %11526 = vmatpush.bf16.msra.mxu0 %v10648
  %11527 = vmatpush.bf16.msra.mxu0 %v10646
  %11528 = vmatpush.bf16.msra.mxu0 %v10644
  %11529 = vmatpush.bf16.msra.mxu0 %v10642
  %11530 = vmatpush.bf16.msra.mxu0 %v10640
  %11531 = vmatpush.bf16.msra.mxu0 %v10638
  %11532 = vmatpush.bf16.msra.mxu0 %v10636
  %11533 = vmatmul.bf16.gmra.mxu0 %v9405
  %v11534 = vpop.f32.mrf.mxu0
  %v11535 = vadd.f32 %v11516, %v11534
  %v11536 = vpop.f32.mrf.mxu0
  %v11537 = vadd.f32 %v11518, %v11536
  %11538 = vmatmul.bf16.gmra.mxu0 %v9409
  %v11539 = vpop.f32.mrf.mxu0
  %v11540 = vadd.f32 %v11521, %v11539
  %v11541 = vpop.f32.mrf.mxu0
  %v11542 = vadd.f32 %v11523, %v11541
  %11543 = vdwg.mxu0
  %11544 = vmatpush.bf16.msra.mxu0 %v10666
  %11545 = vmatpush.bf16.msra.mxu0 %v10664
  %11546 = vmatpush.bf16.msra.mxu0 %v10662
  %11547 = vmatpush.bf16.msra.mxu0 %v10660
  %11548 = vmatpush.bf16.msra.mxu0 %v10658
  %11549 = vmatpush.bf16.msra.mxu0 %v10656
  %11550 = vmatpush.bf16.msra.mxu0 %v10654
  %11551 = vmatpush.bf16.msra.mxu0 %v10652
  %11552 = vmatmul.bf16.gmra.mxu0 %v9269
  %v11553 = vpop.f32.mrf.mxu0
  %v11554 = vadd.f32 %v11535, %v11553
  %v11555 = vpop.f32.mrf.mxu0
  %v11556 = vadd.f32 %v11537, %v11555
  %11557 = vmatmul.bf16.gmra.mxu0 %v9270
  %v11558 = vpop.f32.mrf.mxu0
  %v11559 = vadd.f32 %v11540, %v11558
  %v11560 = vpop.f32.mrf.mxu0
  %v11561 = vadd.f32 %v11542, %v11560
  %11562 = vdwg.mxu0
  %11563 = vmatpush.bf16.msra.mxu0 %v10682
  %11564 = vmatpush.bf16.msra.mxu0 %v10680
  %11565 = vmatpush.bf16.msra.mxu0 %v10678
  %11566 = vmatpush.bf16.msra.mxu0 %v10676
  %11567 = vmatpush.bf16.msra.mxu0 %v10674
  %11568 = vmatpush.bf16.msra.mxu0 %v10672
  %11569 = vmatpush.bf16.msra.mxu0 %v10670
  %11570 = vmatpush.bf16.msra.mxu0 %v10668
  %11571 = vmatmul.bf16.gmra.mxu0 %v9414
  %v11572 = vpop.f32.mrf.mxu0
  %v11573 = vadd.f32 %v11554, %v11572
  %v11574 = vpop.f32.mrf.mxu0
  %v11575 = vadd.f32 %v11556, %v11574
  %11576 = vmatmul.bf16.gmra.mxu0 %v9418
  %v11577 = vpop.f32.mrf.mxu0
  %v11578 = vadd.f32 %v11559, %v11577
  %v11579 = vpop.f32.mrf.mxu0
  %v11580 = vadd.f32 %v11561, %v11579
  %11581 = vdwg.mxu0
  %11582 = vmatpush.bf16.msra.mxu0 %v10698
  %11583 = vmatpush.bf16.msra.mxu0 %v10696
  %11584 = vmatpush.bf16.msra.mxu0 %v10694
  %11585 = vmatpush.bf16.msra.mxu0 %v10692
  %11586 = vmatpush.bf16.msra.mxu0 %v10690
  %11587 = vmatpush.bf16.msra.mxu0 %v10688
  %11588 = vmatpush.bf16.msra.mxu0 %v10686
  %11589 = vmatpush.bf16.msra.mxu0 %v10684
  %11590 = vmatmul.bf16.gmra.mxu0 %v9298
  %v11591 = vpop.f32.mrf.mxu0
  %v11592 = vadd.f32 %v11573, %v11591
  %v11593 = vpop.f32.mrf.mxu0
  %v11594 = vadd.f32 %v11575, %v11593
  %11595 = vmatmul.bf16.gmra.mxu0 %v9299
  %v11596 = vpop.f32.mrf.mxu0
  %v11597 = vadd.f32 %v11578, %v11596
  %v11598 = vpop.f32.mrf.mxu0
  %v11599 = vadd.f32 %v11580, %v11598
  %11600 = vdwg.mxu0
  %11601 = vmatpush.bf16.msra.mxu0 %v10714
  %11602 = vmatpush.bf16.msra.mxu0 %v10712
  %11603 = vmatpush.bf16.msra.mxu0 %v10710
  %11604 = vmatpush.bf16.msra.mxu0 %v10708
  %11605 = vmatpush.bf16.msra.mxu0 %v10706
  %11606 = vmatpush.bf16.msra.mxu0 %v10704
  %11607 = vmatpush.bf16.msra.mxu0 %v10702
  %11608 = vmatpush.bf16.msra.mxu0 %v10700
  %11609 = vmatmul.bf16.gmra.mxu0 %v9422
  %v11610 = vpop.f32.mrf.mxu0
  %v11611 = vadd.f32 %v11592, %v11610
  %v11612 = vpop.f32.mrf.mxu0
  %v11613 = vadd.f32 %v11594, %v11612
  %11614 = vmatmul.bf16.gmra.mxu0 %v9426
  %v11615 = vpop.f32.mrf.mxu0
  %v11616 = vadd.f32 %v11597, %v11615
  %v11617 = vpop.f32.mrf.mxu0
  %v11618 = vadd.f32 %v11599, %v11617
  %11619 = vdwg.mxu0
  %11620 = vmatpush.bf16.msra.mxu0 %v10730
  %11621 = vmatpush.bf16.msra.mxu0 %v10728
  %11622 = vmatpush.bf16.msra.mxu0 %v10726
  %11623 = vmatpush.bf16.msra.mxu0 %v10724
  %11624 = vmatpush.bf16.msra.mxu0 %v10722
  %11625 = vmatpush.bf16.msra.mxu0 %v10720
  %11626 = vmatpush.bf16.msra.mxu0 %v10718
  %11627 = vmatpush.bf16.msra.mxu0 %v10716
  %11628 = vmatmul.bf16.gmra.mxu0 %v9326
  %v11629 = vpop.f32.mrf.mxu0
  %v11630 = vadd.f32 %v11611, %v11629
  %v11631 = vpop.f32.mrf.mxu0
  %v11632 = vadd.f32 %v11613, %v11631
  %11633 = vmatmul.bf16.gmra.mxu0 %v9327
  %v11634 = vpop.f32.mrf.mxu0
  %v11635 = vadd.f32 %v11616, %v11634
  %v11636 = vpop.f32.mrf.mxu0
  %v11637 = vadd.f32 %v11618, %v11636
  %11638 = vdwg.mxu0
  %11639 = vmatpush.bf16.msra.mxu0 %v10746
  %11640 = vmatpush.bf16.msra.mxu0 %v10744
  %11641 = vmatpush.bf16.msra.mxu0 %v10742
  %11642 = vmatpush.bf16.msra.mxu0 %v10740
  %11643 = vmatpush.bf16.msra.mxu0 %v10738
  %11644 = vmatpush.bf16.msra.mxu0 %v10736
  %11645 = vmatpush.bf16.msra.mxu0 %v10734
  %11646 = vmatpush.bf16.msra.mxu0 %v10732
  %11647 = vmatmul.bf16.gmra.mxu0 %v9431
  %v11648 = vpop.f32.mrf.mxu0
  %v11649 = vadd.f32 %v11630, %v11648
  %v11650 = vpop.f32.mrf.mxu0
  %v11651 = vadd.f32 %v11632, %v11650
  %11652 = vmatmul.bf16.gmra.mxu0 %v9435
  %v11653 = vpop.f32.mrf.mxu0
  %v11654 = vadd.f32 %v11635, %v11653
  %v11655 = vpop.f32.mrf.mxu0
  %v11656 = vadd.f32 %v11637, %v11655
  %11657 = vdwg.mxu0
  %11658 = vmatpush.bf16.msra.mxu0 %v10762
  %11659 = vmatpush.bf16.msra.mxu0 %v10760
  %11660 = vmatpush.bf16.msra.mxu0 %v10758
  %11661 = vmatpush.bf16.msra.mxu0 %v10756
  %11662 = vmatpush.bf16.msra.mxu0 %v10754
  %11663 = vmatpush.bf16.msra.mxu0 %v10752
  %11664 = vmatpush.bf16.msra.mxu0 %v10750
  %11665 = vmatpush.bf16.msra.mxu0 %v10748
  %11666 = vmatmul.bf16.gmra.mxu0 %v9355
  %v11667 = vpop.f32.mrf.mxu0
  %v11668 = vadd.f32 %v11649, %v11667
  %v11669 = vpop.f32.mrf.mxu0
  %v11670 = vadd.f32 %v11651, %v11669
  %11671 = vmatmul.bf16.gmra.mxu0 %v9356
  %v11672 = vpop.f32.mrf.mxu0
  %v11673 = vadd.f32 %v11654, %v11672
  %v11674 = vpop.f32.mrf.mxu0
  %v11675 = vadd.f32 %v11656, %v11674
  %11676 = vdwg.mxu0
  %11677 = vmatpush.bf16.msra.mxu0 %v10778
  %11678 = vmatpush.bf16.msra.mxu0 %v10776
  %11679 = vmatpush.bf16.msra.mxu0 %v10774
  %11680 = vmatpush.bf16.msra.mxu0 %v10772
  %11681 = vmatpush.bf16.msra.mxu0 %v10770
  %11682 = vmatpush.bf16.msra.mxu0 %v10768
  %11683 = vmatpush.bf16.msra.mxu0 %v10766
  %11684 = vmatpush.bf16.msra.mxu0 %v10764
  %11685 = vmatmul.bf16.gmra.mxu0 %v9371
  %v11686 = vpop.f32.mrf.mxu0
  %v11687 = vadd.f32 %v11668, %v11686
  %v11688 = vpop.f32.mrf.mxu0
  %v11689 = vadd.f32 %v11670, %v11688
  %11690 = vmatmul.bf16.gmra.mxu0 %v9373
  %v11691 = vpop.f32.mrf.mxu0
  %v11692 = vadd.f32 %v11673, %v11691
  %v11693 = vpop.f32.mrf.mxu0
  %v11694 = vadd.f32 %v11675, %v11693
  %11695 = vdwg.mxu0
  %11696 = vmatpush.bf16.msra.mxu0 0
  %11697 = vmatpush.bf16.msra.mxu0 %v10792
  %11698 = vmatpush.bf16.msra.mxu0 %v10790
  %11699 = vmatpush.bf16.msra.mxu0 %v10788
  %11700 = vmatpush.bf16.msra.mxu0 %v10786
  %11701 = vmatpush.bf16.msra.mxu0 %v10784
  %11702 = vmatpush.bf16.msra.mxu0 %v10782
  %11703 = vmatpush.bf16.msra.mxu0 %v10780
  %11704 = vmatmul.bf16.gmra.mxu0 %v11064
  %v11705 = vpop.f32.mrf.mxu0
  %v11706 = vadd.f32 %v11687, %v11705
  %v11707 = vpop.f32.mrf.mxu0
  %v11708 = vadd.f32 %v11689, %v11707
  %11709 = vmatmul.bf16.gmra.mxu0 %v11067
  %v11710 = vpop.f32.mrf.mxu0
  %v11711 = vadd.f32 %v11692, %v11710
  %v11712 = vpop.f32.mrf.mxu0
  %v11713 = vadd.f32 %v11694, %v11712
  %11714 = vdwg.mxu0
  %v11715 = vmax.f32 %v11383, 0.0
  %v11716 = vmax.f32 %v11706, 0.0
  %v11717 = vmax.f32 %v11385, 0.0
  %v11718 = vmax.f32 %v11708, 0.0
  %v11719 = vmax.f32 %v11388, 0.0
  %v11720 = vmax.f32 %v11711, 0.0
  %v11721 = vmax.f32 %v11390, 0.0
  %v11722 = vmax.f32 %v11713, 0.0
  %v11723 = vpack.c.bf16 %v11717, %v11715
  %v11724 = vpack.c.bf16 %v11718, %v11716
  %v11725 = vpack.c.bf16 %v11721, %v11719
  %v11726 = vpack.c.bf16 %v11722, %v11720
  %v11727 = vld [vmem:[%s19] sm:$0xff]
  %v11728 = vld [vmem:[%s19 + $0x8] sm:$0xff]
  %v11729 = vld [vmem:[%s19 + $0x10] sm:$0xff]
  %v11730 = vld [vmem:[%s19 + $0x18] sm:$0xff]
  %v11731 = vld [vmem:[%s19 + $0x20] sm:$0xff]
  %v11732 = vld [vmem:[%s19 + $0x28] sm:$0xff]
  %v11733 = vld [vmem:[%s19 + $0x30] sm:$0xff]
  %v11734 = vld [vmem:[%s19 + $0x38] sm:$0xff]
  %v11735 = vld [vmem:[%s19 + $0x40] sm:$0xff]
  %v11736 = vld [vmem:[%s19 + $0x48] sm:$0xff]
  %v11737 = vld [vmem:[%s19 + $0x50] sm:$0xff]
  %v11738 = vld [vmem:[%s19 + $0x58] sm:$0xff]
  %v11739 = vld [vmem:[%s19 + $0x60] sm:$0xff]
  %v11740 = vld [vmem:[%s19 + $0x68] sm:$0xff]
  %v11741 = vld [vmem:[%s19 + $0x70] sm:$0xff]
  %v11742 = vld [vmem:[%s19 + $0x78] sm:$0xff]
  %v11743 = vld [vmem:[%s19 + $0x80] sm:$0xff]
  %v11744 = vld [vmem:[%s19 + $0x88] sm:$0xff]
  %v11745 = vld [vmem:[%s19 + $0x90] sm:$0xff]
  %v11746 = vld [vmem:[%s19 + $0x98] sm:$0xff]
  %v11747 = vld [vmem:[%s19 + $0xa0] sm:$0xff]
  %v11748 = vld [vmem:[%s19 + $0xa8] sm:$0xff]
  %v11749 = vld [vmem:[%s19 + $0xb0] sm:$0xff]
  %v11750 = vld [vmem:[%s19 + $0xb8] sm:$0xff]
  %v11751 = vld [vmem:[%s19 + $0xc0] sm:$0xff]
  %v11752 = vld [vmem:[%s19 + $0xc8] sm:$0xff]
  %v11753 = vld [vmem:[%s19 + $0xd0] sm:$0xff]
  %v11754 = vld [vmem:[%s19 + $0xd8] sm:$0xff]
  %v11755 = vld [vmem:[%s19 + $0xe0] sm:$0xff]
  %v11756 = vld [vmem:[%s19 + $0xe8] sm:$0xff]
  %v11757 = vld [vmem:[%s19 + $0xf0] sm:$0xff]
  %v11758 = vld [vmem:[%s19 + $0xf8] sm:$0xff]
  %v11759 = vld [vmem:[%s19 + $0x100] sm:$0xff]
  %v11760 = vld [vmem:[%s19 + $0x108] sm:$0xff]
  %v11761 = vld [vmem:[%s19 + $0x110] sm:$0xff]
  %v11762 = vld [vmem:[%s19 + $0x118] sm:$0xff]
  %v11763 = vld [vmem:[%s19 + $0x120] sm:$0xff]
  %v11764 = vld [vmem:[%s19 + $0x128] sm:$0xff]
  %v11765 = vld [vmem:[%s19 + $0x130] sm:$0xff]
  %v11766 = vld [vmem:[%s19 + $0x138] sm:$0xff]
  %v11767 = vld [vmem:[%s19 + $0x140] sm:$0xff]
  %v11768 = vld [vmem:[%s19 + $0x148] sm:$0xff]
  %v11769 = vld [vmem:[%s19 + $0x150] sm:$0xff]
  %v11770 = vld [vmem:[%s19 + $0x158] sm:$0xff]
  %v11771 = vld [vmem:[%s19 + $0x160] sm:$0xff]
  %v11772 = vld [vmem:[%s19 + $0x168] sm:$0xff]
  %v11773 = vld [vmem:[%s19 + $0x170] sm:$0xff]
  %v11774 = vld [vmem:[%s19 + $0x178] sm:$0xff]
  %v11775 = vld [vmem:[%s19 + $0x180] sm:$0xff]
  %v11776 = vld [vmem:[%s19 + $0x188] sm:$0xff]
  %v11777 = vld [vmem:[%s19 + $0x190] sm:$0xff]
  %v11778 = vld [vmem:[%s19 + $0x198] sm:$0xff]
  %v11779 = vld [vmem:[%s19 + $0x1a0] sm:$0xff]
  %v11780 = vld [vmem:[%s19 + $0x1a8] sm:$0xff]
  %v11781 = vld [vmem:[%s19 + $0x1b0] sm:$0xff]
  %v11782 = vld [vmem:[%s19 + $0x1b8] sm:$0xff]
  %v11783 = vld [vmem:[%s19 + $0x1c0] sm:$0xff]
  %v11784 = vld [vmem:[%s19 + $0x1c8] sm:$0xff]
  %v11785 = vld [vmem:[%s19 + $0x1d0] sm:$0xff]
  %v11786 = vld [vmem:[%s19 + $0x1d8] sm:$0xff]
  %v11787 = vld [vmem:[%s19 + $0x1e0] sm:$0xff]
  %v11788 = vld [vmem:[%s19 + $0x1e8] sm:$0xff]
  %v11789 = vld [vmem:[%s19 + $0x1f0] sm:$0xff]
  %v11790 = vld [vmem:[%s19 + $0x1f8] sm:$0xff]
  %v11791 = vld [vmem:[%s19 + $0x200] sm:$0xff]
  %v11792 = vld [vmem:[%s19 + $0x208] sm:$0xff]
  %v11793 = vld [vmem:[%s19 + $0x210] sm:$0xff]
  %v11794 = vld [vmem:[%s19 + $0x218] sm:$0xff]
  %v11795 = vld [vmem:[%s19 + $0x220] sm:$0xff]
  %v11796 = vld [vmem:[%s19 + $0x228] sm:$0xff]
  %v11797 = vld [vmem:[%s19 + $0x230] sm:$0xff]
  %v11798 = vld [vmem:[%s19 + $0x238] sm:$0xff]
  %v11799 = vld [vmem:[%s19 + $0x240] sm:$0xff]
  %v11800 = vld [vmem:[%s19 + $0x248] sm:$0xff]
  %v11801 = vld [vmem:[%s19 + $0x250] sm:$0xff]
  %v11802 = vld [vmem:[%s19 + $0x258] sm:$0xff]
  %v11803 = vld [vmem:[%s19 + $0x260] sm:$0xff]
  %v11804 = vld [vmem:[%s19 + $0x268] sm:$0xff]
  %v11805 = vld [vmem:[%s19 + $0x270] sm:$0xff]
  %v11806 = vld [vmem:[%s19 + $0x278] sm:$0xff]
  %v11807 = vld [vmem:[%s19 + $0x280] sm:$0xff]
  %v11808 = vld [vmem:[%s19 + $0x288] sm:$0xff]
  %v11809 = vld [vmem:[%s19 + $0x290] sm:$0xff]
  %v11810 = vld [vmem:[%s19 + $0x298] sm:$0xff]
  %v11811 = vld [vmem:[%s19 + $0x2a0] sm:$0xff]
  %v11812 = vld [vmem:[%s19 + $0x2a8] sm:$0xff]
  %v11813 = vld [vmem:[%s19 + $0x2b0] sm:$0xff]
  %v11814 = vld [vmem:[%s19 + $0x2b8] sm:$0xff]
  %v11815 = vld [vmem:[%s19 + $0x2c0] sm:$0xff]
  %v11816 = vld [vmem:[%s19 + $0x2c8] sm:$0xff]
  %v11817 = vld [vmem:[%s19 + $0x2d0] sm:$0xff]
  %v11818 = vld [vmem:[%s19 + $0x2d8] sm:$0xff]
  %v11819 = vld [vmem:[%s19 + $0x2e0] sm:$0xff]
  %v11820 = vld [vmem:[%s19 + $0x2e8] sm:$0xff]
  %v11821 = vld [vmem:[%s19 + $0x2f0] sm:$0xff]
  %v11822 = vld [vmem:[%s19 + $0x2f8] sm:$0xff]
  %v11823 = vld [vmem:[%s19 + $0x300] sm:$0xff]
  %v11824 = vld [vmem:[%s19 + $0x308] sm:$0xff]
  %v11825 = vld [vmem:[%s19 + $0x310] sm:$0xff]
  %v11826 = vld [vmem:[%s19 + $0x318] sm:$0xff]
  %v11827 = vld [vmem:[%s19 + $0x320] sm:$0xff]
  %v11828 = vld [vmem:[%s19 + $0x328] sm:$0xff]
  %v11829 = vld [vmem:[%s19 + $0x330] sm:$0xff]
  %v11830 = vld [vmem:[%s19 + $0x338] sm:$0xff]
  %v11831 = vld [vmem:[%s19 + $0x340] sm:$0xff]
  %v11832 = vld [vmem:[%s19 + $0x348] sm:$0xff]
  %v11833 = vld [vmem:[%s19 + $0x350] sm:$0xff]
  %v11834 = vld [vmem:[%s19 + $0x358] sm:$0xff]
  %v11835 = vld [vmem:[%s19 + $0x360] sm:$0xff]
  %v11836 = vld [vmem:[%s19 + $0x368] sm:$0xff]
  %v11837 = vld [vmem:[%s19 + $0x370] sm:$0xff]
  %v11838 = vld [vmem:[%s19 + $0x378] sm:$0xff]
  %v11839 = vld [vmem:[%s19 + $0x380] sm:$0xff]
  %v11840 = vld [vmem:[%s19 + $0x388] sm:$0xff]
  %v11841 = vld [vmem:[%s19 + $0x390] sm:$0xff]
  %v11842 = vld [vmem:[%s19 + $0x398] sm:$0xff]
  %v11843 = vld [vmem:[%s19 + $0x3a0] sm:$0xff]
  %v11844 = vld [vmem:[%s19 + $0x3a8] sm:$0xff]
  %v11845 = vld [vmem:[%s19 + $0x3b0] sm:$0xff]
  %v11846 = vld [vmem:[%s19 + $0x3b8] sm:$0xff]
  %v11847 = vld [vmem:[%s20] sm:$0xff]
  %v11849 = vperm.slane %v11847, 0
  %v11850 = vperm.slane %v11847, 1
  %v11851 = vperm.slane %v11847, 2
  %v11852 = vperm.slane %v11847, 3
  %v11853 = vperm.slane %v11847, 4
  %v11854 = vperm.slane %v11847, 5
  %v11855 = vperm.slane %v11847, 6
  %v11856 = vperm.slane %v11847, 7
  %v11985 = vunpack.c.l.b16 %v11727
  %v11986 = vunpack.c.h.b16 %v11727
  %v11987 = vunpack.c.l.b16 %v11728
  %v11988 = vunpack.c.h.b16 %v11728
  %v11989 = vunpack.c.l.b16 %v11729
  %v11990 = vunpack.c.h.b16 %v11729
  %v11991 = vunpack.c.l.b16 %v11730
  %v11992 = vunpack.c.h.b16 %v11730
  %v11993 = vunpack.c.l.b16 %v11731
  %v11994 = vunpack.c.h.b16 %v11731
  %v11995 = vunpack.c.l.b16 %v11732
  %v11996 = vunpack.c.h.b16 %v11732
  %v11997 = vunpack.c.l.b16 %v11733
  %v11998 = vunpack.c.h.b16 %v11733
  %v11999 = vunpack.c.l.b16 %v11734
  %v12000 = vunpack.c.h.b16 %v11734
  %v12001 = vunpack.c.l.b16 %v11735
  %v12002 = vunpack.c.h.b16 %v11735
  %v12003 = vunpack.c.l.b16 %v11736
  %v12004 = vunpack.c.h.b16 %v11736
  %v12005 = vunpack.c.l.b16 %v11737
  %v12006 = vunpack.c.h.b16 %v11737
  %v12007 = vunpack.c.l.b16 %v11738
  %v12008 = vunpack.c.h.b16 %v11738
  %v12009 = vunpack.c.l.b16 %v11739
  %v12010 = vunpack.c.h.b16 %v11739
  %v12011 = vunpack.c.l.b16 %v11740
  %v12012 = vunpack.c.h.b16 %v11740
  %v12013 = vunpack.c.l.b16 %v11741
  %v12014 = vunpack.c.h.b16 %v11741
  %v12015 = vunpack.c.l.b16 %v11742
  %v12016 = vunpack.c.h.b16 %v11742
  %v12017 = vunpack.c.l.b16 %v11743
  %v12018 = vunpack.c.h.b16 %v11743
  %v12019 = vunpack.c.l.b16 %v11744
  %v12020 = vunpack.c.h.b16 %v11744
  %v12021 = vunpack.c.l.b16 %v11745
  %v12022 = vunpack.c.h.b16 %v11745
  %v12023 = vunpack.c.l.b16 %v11746
  %v12024 = vunpack.c.h.b16 %v11746
  %v12025 = vunpack.c.l.b16 %v11747
  %v12026 = vunpack.c.h.b16 %v11747
  %v12027 = vunpack.c.l.b16 %v11748
  %v12028 = vunpack.c.h.b16 %v11748
  %v12029 = vunpack.c.l.b16 %v11749
  %v12030 = vunpack.c.h.b16 %v11749
  %v12031 = vunpack.c.l.b16 %v11750
  %v12032 = vunpack.c.h.b16 %v11750
  %v12033 = vunpack.c.l.b16 %v11751
  %v12034 = vunpack.c.h.b16 %v11751
  %v12035 = vunpack.c.l.b16 %v11752
  %v12036 = vunpack.c.h.b16 %v11752
  %v12037 = vunpack.c.l.b16 %v11753
  %v12038 = vunpack.c.h.b16 %v11753
  %v12039 = vunpack.c.l.b16 %v11754
  %v12040 = vunpack.c.h.b16 %v11754
  %v12041 = vunpack.c.l.b16 %v11755
  %v12042 = vunpack.c.h.b16 %v11755
  %v12043 = vunpack.c.l.b16 %v11756
  %v12044 = vunpack.c.h.b16 %v11756
  %v12045 = vunpack.c.l.b16 %v11757
  %v12046 = vunpack.c.h.b16 %v11757
  %v12047 = vunpack.c.l.b16 %v11758
  %v12048 = vunpack.c.h.b16 %v11758
  %v12049 = vunpack.c.l.b16 %v11759
  %v12050 = vunpack.c.h.b16 %v11759
  %v12051 = vunpack.c.l.b16 %v11760
  %v12052 = vunpack.c.h.b16 %v11760
  %v12053 = vunpack.c.l.b16 %v11761
  %v12054 = vunpack.c.h.b16 %v11761
  %v12055 = vunpack.c.l.b16 %v11762
  %v12056 = vunpack.c.h.b16 %v11762
  %v12057 = vunpack.c.l.b16 %v11763
  %v12058 = vunpack.c.h.b16 %v11763
  %v12059 = vunpack.c.l.b16 %v11764
  %v12060 = vunpack.c.h.b16 %v11764
  %v12061 = vunpack.c.l.b16 %v11765
  %v12062 = vunpack.c.h.b16 %v11765
  %v12063 = vunpack.c.l.b16 %v11766
  %v12064 = vunpack.c.h.b16 %v11766
  %v12065 = vunpack.c.l.b16 %v11767
  %v12066 = vunpack.c.h.b16 %v11767
  %v12067 = vunpack.c.l.b16 %v11768
  %v12068 = vunpack.c.h.b16 %v11768
  %v12069 = vunpack.c.l.b16 %v11769
  %v12070 = vunpack.c.h.b16 %v11769
  %v12071 = vunpack.c.l.b16 %v11770
  %v12072 = vunpack.c.h.b16 %v11770
  %v12073 = vunpack.c.l.b16 %v11771
  %v12074 = vunpack.c.h.b16 %v11771
  %v12075 = vunpack.c.l.b16 %v11772
  %v12076 = vunpack.c.h.b16 %v11772
  %v12077 = vunpack.c.l.b16 %v11773
  %v12078 = vunpack.c.h.b16 %v11773
  %v12079 = vunpack.c.l.b16 %v11774
  %v12080 = vunpack.c.h.b16 %v11774
  %v12081 = vunpack.c.l.b16 %v11775
  %v12082 = vunpack.c.h.b16 %v11775
  %v12083 = vunpack.c.l.b16 %v11776
  %v12084 = vunpack.c.h.b16 %v11776
  %v12085 = vunpack.c.l.b16 %v11777
  %v12086 = vunpack.c.h.b16 %v11777
  %v12087 = vunpack.c.l.b16 %v11778
  %v12088 = vunpack.c.h.b16 %v11778
  %v12089 = vunpack.c.l.b16 %v11779
  %v12090 = vunpack.c.h.b16 %v11779
  %v12091 = vunpack.c.l.b16 %v11780
  %v12092 = vunpack.c.h.b16 %v11780
  %v12093 = vunpack.c.l.b16 %v11781
  %v12094 = vunpack.c.h.b16 %v11781
  %v12095 = vunpack.c.l.b16 %v11782
  %v12096 = vunpack.c.h.b16 %v11782
  %v12097 = vunpack.c.l.b16 %v11783
  %v12098 = vunpack.c.h.b16 %v11783
  %v12099 = vunpack.c.l.b16 %v11784
  %v12100 = vunpack.c.h.b16 %v11784
  %v12101 = vunpack.c.l.b16 %v11785
  %v12102 = vunpack.c.h.b16 %v11785
  %v12103 = vunpack.c.l.b16 %v11786
  %v12104 = vunpack.c.h.b16 %v11786
  %v12105 = vunpack.c.l.b16 %v11787
  %v12106 = vunpack.c.h.b16 %v11787
  %v12107 = vunpack.c.l.b16 %v11788
  %v12108 = vunpack.c.h.b16 %v11788
  %v12109 = vunpack.c.l.b16 %v11789
  %v12110 = vunpack.c.h.b16 %v11789
  %v12111 = vunpack.c.l.b16 %v11790
  %v12112 = vunpack.c.h.b16 %v11790
  %v12113 = vunpack.c.l.b16 %v11791
  %v12114 = vunpack.c.h.b16 %v11791
  %v12115 = vunpack.c.l.b16 %v11792
  %v12116 = vunpack.c.h.b16 %v11792
  %v12117 = vunpack.c.l.b16 %v11793
  %v12118 = vunpack.c.h.b16 %v11793
  %v12119 = vunpack.c.l.b16 %v11794
  %v12120 = vunpack.c.h.b16 %v11794
  %v12121 = vunpack.c.l.b16 %v11795
  %v12122 = vunpack.c.h.b16 %v11795
  %v12123 = vunpack.c.l.b16 %v11796
  %v12124 = vunpack.c.h.b16 %v11796
  %v12125 = vunpack.c.l.b16 %v11797
  %v12126 = vunpack.c.h.b16 %v11797
  %v12127 = vunpack.c.l.b16 %v11798
  %v12128 = vunpack.c.h.b16 %v11798
  %v12129 = vunpack.c.l.b16 %v11799
  %v12130 = vunpack.c.h.b16 %v11799
  %v12131 = vunpack.c.l.b16 %v11800
  %v12132 = vunpack.c.h.b16 %v11800
  %v12133 = vunpack.c.l.b16 %v11801
  %v12134 = vunpack.c.h.b16 %v11801
  %v12135 = vunpack.c.l.b16 %v11802
  %v12136 = vunpack.c.h.b16 %v11802
  %v12137 = vunpack.c.l.b16 %v11803
  %v12138 = vunpack.c.h.b16 %v11803
  %v12139 = vunpack.c.l.b16 %v11804
  %v12140 = vunpack.c.h.b16 %v11804
  %v12141 = vunpack.c.l.b16 %v11805
  %v12142 = vunpack.c.h.b16 %v11805
  %v12143 = vunpack.c.l.b16 %v11806
  %v12144 = vunpack.c.h.b16 %v11806
  %v12145 = vunpack.c.l.b16 %v11807
  %v12146 = vunpack.c.h.b16 %v11807
  %v12147 = vunpack.c.l.b16 %v11808
  %v12148 = vunpack.c.h.b16 %v11808
  %v12149 = vunpack.c.l.b16 %v11809
  %v12150 = vunpack.c.h.b16 %v11809
  %v12151 = vunpack.c.l.b16 %v11810
  %v12152 = vunpack.c.h.b16 %v11810
  %v12153 = vunpack.c.l.b16 %v11811
  %v12154 = vunpack.c.h.b16 %v11811
  %v12155 = vunpack.c.l.b16 %v11812
  %v12156 = vunpack.c.h.b16 %v11812
  %v12157 = vunpack.c.l.b16 %v11813
  %v12158 = vunpack.c.h.b16 %v11813
  %v12159 = vunpack.c.l.b16 %v11814
  %v12160 = vunpack.c.h.b16 %v11814
  %v12161 = vunpack.c.l.b16 %v11815
  %v12162 = vunpack.c.h.b16 %v11815
  %v12163 = vunpack.c.l.b16 %v11816
  %v12164 = vunpack.c.h.b16 %v11816
  %v12165 = vunpack.c.l.b16 %v11817
  %v12166 = vunpack.c.h.b16 %v11817
  %v12167 = vunpack.c.l.b16 %v11818
  %v12168 = vunpack.c.h.b16 %v11818
  %v12169 = vunpack.c.l.b16 %v11819
  %v12170 = vunpack.c.h.b16 %v11819
  %v12171 = vunpack.c.l.b16 %v11820
  %v12172 = vunpack.c.h.b16 %v11820
  %v12173 = vunpack.c.l.b16 %v11821
  %v12174 = vunpack.c.h.b16 %v11821
  %v12175 = vunpack.c.l.b16 %v11822
  %v12176 = vunpack.c.h.b16 %v11822
  %v12177 = vunpack.c.l.b16 %v11823
  %v12178 = vunpack.c.h.b16 %v11823
  %v12179 = vunpack.c.l.b16 %v11824
  %v12180 = vunpack.c.h.b16 %v11824
  %v12181 = vunpack.c.l.b16 %v11825
  %v12182 = vunpack.c.h.b16 %v11825
  %v12183 = vunpack.c.l.b16 %v11826
  %v12184 = vunpack.c.h.b16 %v11826
  %v12185 = vunpack.c.l.b16 %v11827
  %v12186 = vunpack.c.h.b16 %v11827
  %v12187 = vunpack.c.l.b16 %v11828
  %v12188 = vunpack.c.h.b16 %v11828
  %v12189 = vunpack.c.l.b16 %v11829
  %v12190 = vunpack.c.h.b16 %v11829
  %v12191 = vunpack.c.l.b16 %v11830
  %v12192 = vunpack.c.h.b16 %v11830
  %v12193 = vunpack.c.l.b16 %v11831
  %v12194 = vunpack.c.h.b16 %v11831
  %v12195 = vunpack.c.l.b16 %v11832
  %v12196 = vunpack.c.h.b16 %v11832
  %v12197 = vunpack.c.l.b16 %v11833
  %v12198 = vunpack.c.h.b16 %v11833
  %v12199 = vunpack.c.l.b16 %v11834
  %v12200 = vunpack.c.h.b16 %v11834
  %v12201 = vunpack.c.l.b16 %v11835
  %v12202 = vunpack.c.h.b16 %v11835
  %v12203 = vunpack.c.l.b16 %v11836
  %v12204 = vunpack.c.h.b16 %v11836
  %v12205 = vunpack.c.l.b16 %v11837
  %v12206 = vunpack.c.h.b16 %v11837
  %v12207 = vunpack.c.l.b16 %v11838
  %v12208 = vunpack.c.h.b16 %v11838
  %v12209 = vunpack.c.l.b16 %v11839
  %v12210 = vunpack.c.h.b16 %v11839
  %v12211 = vunpack.c.l.b16 %v11840
  %v12212 = vunpack.c.h.b16 %v11840
  %v12213 = vunpack.c.l.b16 %v11841
  %v12214 = vunpack.c.h.b16 %v11841
  %v12215 = vunpack.c.l.b16 %v11842
  %v12216 = vunpack.c.h.b16 %v11842
  %v12217 = vunpack.c.l.b16 %v11843
  %v12218 = vunpack.c.h.b16 %v11843
  %v12219 = vunpack.c.l.b16 %v11844
  %v12220 = vunpack.c.h.b16 %v11844
  %v12221 = vunpack.c.l.b16 %v11845
  %v12222 = vunpack.c.h.b16 %v11845
  %v12223 = vunpack.c.l.b16 %v11846
  %v12224 = vunpack.c.h.b16 %v11846
  %v12225 = vpack.c.b16 %v11993, %v11985
  %v12226 = vpack.c.b16 %v11994, %v11986
  %v12227 = vpack.c.b16 %v11995, %v11987
  %v12228 = vpack.c.b16 %v11996, %v11988
  %v12229 = vpack.c.b16 %v11997, %v11989
  %v12230 = vpack.c.b16 %v11998, %v11990
  %v12231 = vpack.c.b16 %v11999, %v11991
  %v12232 = vpack.c.b16 %v12000, %v11992
  %v12233 = vpack.c.b16 %v12009, %v12001
  %v12234 = vpack.c.b16 %v12010, %v12002
  %v12235 = vpack.c.b16 %v12011, %v12003
  %v12236 = vpack.c.b16 %v12012, %v12004
  %v12237 = vpack.c.b16 %v12013, %v12005
  %v12238 = vpack.c.b16 %v12014, %v12006
  %v12239 = vpack.c.b16 %v12015, %v12007
  %v12240 = vpack.c.b16 %v12016, %v12008
  %v12241 = vpack.c.b16 %v12025, %v12017
  %v12242 = vpack.c.b16 %v12026, %v12018
  %v12243 = vpack.c.b16 %v12027, %v12019
  %v12244 = vpack.c.b16 %v12028, %v12020
  %v12245 = vpack.c.b16 %v12029, %v12021
  %v12246 = vpack.c.b16 %v12030, %v12022
  %v12247 = vpack.c.b16 %v12031, %v12023
  %v12248 = vpack.c.b16 %v12032, %v12024
  %v12249 = vpack.c.b16 %v12041, %v12033
  %v12250 = vpack.c.b16 %v12042, %v12034
  %v12251 = vpack.c.b16 %v12043, %v12035
  %v12252 = vpack.c.b16 %v12044, %v12036
  %v12253 = vpack.c.b16 %v12045, %v12037
  %v12254 = vpack.c.b16 %v12046, %v12038
  %v12255 = vpack.c.b16 %v12047, %v12039
  %v12256 = vpack.c.b16 %v12048, %v12040
  %v12257 = vpack.c.b16 %v12057, %v12049
  %v12258 = vpack.c.b16 %v12058, %v12050
  %v12259 = vpack.c.b16 %v12059, %v12051
  %v12260 = vpack.c.b16 %v12060, %v12052
  %v12261 = vpack.c.b16 %v12061, %v12053
  %v12262 = vpack.c.b16 %v12062, %v12054
  %v12263 = vpack.c.b16 %v12063, %v12055
  %v12264 = vpack.c.b16 %v12064, %v12056
  %v12265 = vpack.c.b16 %v12073, %v12065
  %v12266 = vpack.c.b16 %v12074, %v12066
  %v12267 = vpack.c.b16 %v12075, %v12067
  %v12268 = vpack.c.b16 %v12076, %v12068
  %v12269 = vpack.c.b16 %v12077, %v12069
  %v12270 = vpack.c.b16 %v12078, %v12070
  %v12271 = vpack.c.b16 %v12079, %v12071
  %v12272 = vpack.c.b16 %v12080, %v12072
  %v12273 = vpack.c.b16 %v12089, %v12081
  %v12274 = vpack.c.b16 %v12090, %v12082
  %v12275 = vpack.c.b16 %v12091, %v12083
  %v12276 = vpack.c.b16 %v12092, %v12084
  %v12277 = vpack.c.b16 %v12093, %v12085
  %v12278 = vpack.c.b16 %v12094, %v12086
  %v12279 = vpack.c.b16 %v12095, %v12087
  %v12280 = vpack.c.b16 %v12096, %v12088
  %v12281 = vpack.c.b16 %v12105, %v12097
  %v12282 = vpack.c.b16 %v12106, %v12098
  %v12283 = vpack.c.b16 %v12107, %v12099
  %v12284 = vpack.c.b16 %v12108, %v12100
  %v12285 = vpack.c.b16 %v12109, %v12101
  %v12286 = vpack.c.b16 %v12110, %v12102
  %v12287 = vpack.c.b16 %v12111, %v12103
  %v12288 = vpack.c.b16 %v12112, %v12104
  %v12289 = vpack.c.b16 %v12121, %v12113
  %v12290 = vpack.c.b16 %v12122, %v12114
  %v12291 = vpack.c.b16 %v12123, %v12115
  %v12292 = vpack.c.b16 %v12124, %v12116
  %v12293 = vpack.c.b16 %v12125, %v12117
  %v12294 = vpack.c.b16 %v12126, %v12118
  %v12295 = vpack.c.b16 %v12127, %v12119
  %v12296 = vpack.c.b16 %v12128, %v12120
  %v12297 = vpack.c.b16 %v12137, %v12129
  %v12298 = vpack.c.b16 %v12138, %v12130
  %v12299 = vpack.c.b16 %v12139, %v12131
  %v12300 = vpack.c.b16 %v12140, %v12132
  %v12301 = vpack.c.b16 %v12141, %v12133
  %v12302 = vpack.c.b16 %v12142, %v12134
  %v12303 = vpack.c.b16 %v12143, %v12135
  %v12304 = vpack.c.b16 %v12144, %v12136
  %v12305 = vpack.c.b16 %v12153, %v12145
  %v12306 = vpack.c.b16 %v12154, %v12146
  %v12307 = vpack.c.b16 %v12155, %v12147
  %v12308 = vpack.c.b16 %v12156, %v12148
  %v12309 = vpack.c.b16 %v12157, %v12149
  %v12310 = vpack.c.b16 %v12158, %v12150
  %v12311 = vpack.c.b16 %v12159, %v12151
  %v12312 = vpack.c.b16 %v12160, %v12152
  %v12313 = vpack.c.b16 %v12169, %v12161
  %v12314 = vpack.c.b16 %v12170, %v12162
  %v12315 = vpack.c.b16 %v12171, %v12163
  %v12316 = vpack.c.b16 %v12172, %v12164
  %v12317 = vpack.c.b16 %v12173, %v12165
  %v12318 = vpack.c.b16 %v12174, %v12166
  %v12319 = vpack.c.b16 %v12175, %v12167
  %v12320 = vpack.c.b16 %v12176, %v12168
  %v12321 = vpack.c.b16 %v12185, %v12177
  %v12322 = vpack.c.b16 %v12186, %v12178
  %v12323 = vpack.c.b16 %v12187, %v12179
  %v12324 = vpack.c.b16 %v12188, %v12180
  %v12325 = vpack.c.b16 %v12189, %v12181
  %v12326 = vpack.c.b16 %v12190, %v12182
  %v12327 = vpack.c.b16 %v12191, %v12183
  %v12328 = vpack.c.b16 %v12192, %v12184
  %v12329 = vpack.c.b16 %v12201, %v12193
  %v12330 = vpack.c.b16 %v12202, %v12194
  %v12331 = vpack.c.b16 %v12203, %v12195
  %v12332 = vpack.c.b16 %v12204, %v12196
  %v12333 = vpack.c.b16 %v12205, %v12197
  %v12334 = vpack.c.b16 %v12206, %v12198
  %v12335 = vpack.c.b16 %v12207, %v12199
  %v12336 = vpack.c.b16 %v12208, %v12200
  %v12337 = vpack.c.b16 %v12217, %v12209
  %v12338 = vpack.c.b16 %v12218, %v12210
  %v12339 = vpack.c.b16 %v12219, %v12211
  %v12340 = vpack.c.b16 %v12220, %v12212
  %v12341 = vpack.c.b16 %v12221, %v12213
  %v12342 = vpack.c.b16 %v12222, %v12214
  %v12343 = vpack.c.b16 %v12223, %v12215
  %v12344 = vpack.c.b16 %v12224, %v12216
  %v12466 = vsel %vm9377, %v11724, 0
  %v12469 = vsel %vm9377, %v11726, 0
  %12471 = vmatpush.bf16.msra.mxu0 %v12281
  %12472 = vmatpush.bf16.msra.mxu0 %v12273
  %12473 = vmatpush.bf16.msra.mxu0 %v12265
  %12474 = vmatpush.bf16.msra.mxu0 %v12257
  %12475 = vmatpush.bf16.msra.mxu0 %v12249
  %12476 = vmatpush.bf16.msra.mxu0 %v12241
  %12477 = vmatpush.bf16.msra.mxu0 %v12233
  %12478 = vmatpush.bf16.msra.mxu0 %v12225
  %12479 = vmatmul.bf16.gmra.mxu0 %v11723
  %v12480 = vpop.f32.mrf.mxu0
  %v12481 = vadd.f32 %v11849, %v12480
  %v12482 = vpop.f32.mrf.mxu0
  %v12483 = vadd.f32 %v11849, %v12482
  %12484 = vmatmul.bf16.gmra.mxu0 %v11725
  %v12485 = vpop.f32.mrf.mxu0
  %v12486 = vadd.f32 %v11849, %v12485
  %v12487 = vpop.f32.mrf.mxu0
  %v12488 = vadd.f32 %v11849, %v12487
  %12489 = vdwg.mxu0
  %12490 = vmatpush.bf16.msra.mxu0 0
  %12491 = vmatpush.bf16.msra.mxu0 %v12337
  %12492 = vmatpush.bf16.msra.mxu0 %v12329
  %12493 = vmatpush.bf16.msra.mxu0 %v12321
  %12494 = vmatpush.bf16.msra.mxu0 %v12313
  %12495 = vmatpush.bf16.msra.mxu0 %v12305
  %12496 = vmatpush.bf16.msra.mxu0 %v12297
  %12497 = vmatpush.bf16.msra.mxu0 %v12289
  %12498 = vmatmul.bf16.gmra.mxu0 %v12466
  %v12499 = vpop.f32.mrf.mxu0
  %v12500 = vadd.f32 %v12481, %v12499
  %v12501 = vpop.f32.mrf.mxu0
  %v12502 = vadd.f32 %v12483, %v12501
  %12503 = vmatmul.bf16.gmra.mxu0 %v12469
  %v12504 = vpop.f32.mrf.mxu0
  %v12505 = vadd.f32 %v12486, %v12504
  %v12506 = vpop.f32.mrf.mxu0
  %v12507 = vadd.f32 %v12488, %v12506
  %12508 = vdwg.mxu0
  %12509 = vmatpush.bf16.msra.mxu0 %v12282
  %12510 = vmatpush.bf16.msra.mxu0 %v12274
  %12511 = vmatpush.bf16.msra.mxu0 %v12266
  %12512 = vmatpush.bf16.msra.mxu0 %v12258
  %12513 = vmatpush.bf16.msra.mxu0 %v12250
  %12514 = vmatpush.bf16.msra.mxu0 %v12242
  %12515 = vmatpush.bf16.msra.mxu0 %v12234
  %12516 = vmatpush.bf16.msra.mxu0 %v12226
  %12517 = vmatmul.bf16.gmra.mxu0 %v11723
  %v12518 = vpop.f32.mrf.mxu0
  %v12519 = vadd.f32 %v11850, %v12518
  %v12520 = vpop.f32.mrf.mxu0
  %v12521 = vadd.f32 %v11850, %v12520
  %12522 = vmatmul.bf16.gmra.mxu0 %v11725
  %v12523 = vpop.f32.mrf.mxu0
  %v12524 = vadd.f32 %v11850, %v12523
  %v12525 = vpop.f32.mrf.mxu0
  %v12526 = vadd.f32 %v11850, %v12525
  %12527 = vdwg.mxu0
  %12528 = vmatpush.bf16.msra.mxu0 0
  %12529 = vmatpush.bf16.msra.mxu0 %v12338
  %12530 = vmatpush.bf16.msra.mxu0 %v12330
  %12531 = vmatpush.bf16.msra.mxu0 %v12322
  %12532 = vmatpush.bf16.msra.mxu0 %v12314
  %12533 = vmatpush.bf16.msra.mxu0 %v12306
  %12534 = vmatpush.bf16.msra.mxu0 %v12298
  %12535 = vmatpush.bf16.msra.mxu0 %v12290
  %12536 = vmatmul.bf16.gmra.mxu0 %v12466
  %v12537 = vpop.f32.mrf.mxu0
  %v12538 = vadd.f32 %v12519, %v12537
  %v12539 = vpop.f32.mrf.mxu0
  %v12540 = vadd.f32 %v12521, %v12539
  %12541 = vmatmul.bf16.gmra.mxu0 %v12469
  %v12542 = vpop.f32.mrf.mxu0
  %v12543 = vadd.f32 %v12524, %v12542
  %v12544 = vpop.f32.mrf.mxu0
  %v12545 = vadd.f32 %v12526, %v12544
  %12546 = vdwg.mxu0
  %12547 = vmatpush.bf16.msra.mxu0 %v12283
  %12548 = vmatpush.bf16.msra.mxu0 %v12275
  %12549 = vmatpush.bf16.msra.mxu0 %v12267
  %12550 = vmatpush.bf16.msra.mxu0 %v12259
  %12551 = vmatpush.bf16.msra.mxu0 %v12251
  %12552 = vmatpush.bf16.msra.mxu0 %v12243
  %12553 = vmatpush.bf16.msra.mxu0 %v12235
  %12554 = vmatpush.bf16.msra.mxu0 %v12227
  %12555 = vmatmul.bf16.gmra.mxu0 %v11723
  %v12556 = vpop.f32.mrf.mxu0
  %v12557 = vadd.f32 %v11851, %v12556
  %v12558 = vpop.f32.mrf.mxu0
  %v12559 = vadd.f32 %v11851, %v12558
  %12560 = vmatmul.bf16.gmra.mxu0 %v11725
  %v12561 = vpop.f32.mrf.mxu0
  %v12562 = vadd.f32 %v11851, %v12561
  %v12563 = vpop.f32.mrf.mxu0
  %v12564 = vadd.f32 %v11851, %v12563
  %12565 = vdwg.mxu0
  %12566 = vmatpush.bf16.msra.mxu0 0
  %12567 = vmatpush.bf16.msra.mxu0 %v12339
  %12568 = vmatpush.bf16.msra.mxu0 %v12331
  %12569 = vmatpush.bf16.msra.mxu0 %v12323
  %12570 = vmatpush.bf16.msra.mxu0 %v12315
  %12571 = vmatpush.bf16.msra.mxu0 %v12307
  %12572 = vmatpush.bf16.msra.mxu0 %v12299
  %12573 = vmatpush.bf16.msra.mxu0 %v12291
  %12574 = vmatmul.bf16.gmra.mxu0 %v12466
  %v12575 = vpop.f32.mrf.mxu0
  %v12576 = vadd.f32 %v12557, %v12575
  %v12577 = vpop.f32.mrf.mxu0
  %v12578 = vadd.f32 %v12559, %v12577
  %12579 = vmatmul.bf16.gmra.mxu0 %v12469
  %v12580 = vpop.f32.mrf.mxu0
  %v12581 = vadd.f32 %v12562, %v12580
  %v12582 = vpop.f32.mrf.mxu0
  %v12583 = vadd.f32 %v12564, %v12582
  %12584 = vdwg.mxu0
  %12585 = vmatpush.bf16.msra.mxu0 %v12284
  %12586 = vmatpush.bf16.msra.mxu0 %v12276
  %12587 = vmatpush.bf16.msra.mxu0 %v12268
  %12588 = vmatpush.bf16.msra.mxu0 %v12260
  %12589 = vmatpush.bf16.msra.mxu0 %v12252
  %12590 = vmatpush.bf16.msra.mxu0 %v12244
  %12591 = vmatpush.bf16.msra.mxu0 %v12236
  %12592 = vmatpush.bf16.msra.mxu0 %v12228
  %12593 = vmatmul.bf16.gmra.mxu0 %v11723
  %v12594 = vpop.f32.mrf.mxu0
  %v12595 = vadd.f32 %v11852, %v12594
  %v12596 = vpop.f32.mrf.mxu0
  %v12597 = vadd.f32 %v11852, %v12596
  %12598 = vmatmul.bf16.gmra.mxu0 %v11725
  %v12599 = vpop.f32.mrf.mxu0
  %v12600 = vadd.f32 %v11852, %v12599
  %v12601 = vpop.f32.mrf.mxu0
  %v12602 = vadd.f32 %v11852, %v12601
  %12603 = vdwg.mxu0
  %12604 = vmatpush.bf16.msra.mxu0 0
  %12605 = vmatpush.bf16.msra.mxu0 %v12340
  %12606 = vmatpush.bf16.msra.mxu0 %v12332
  %12607 = vmatpush.bf16.msra.mxu0 %v12324
  %12608 = vmatpush.bf16.msra.mxu0 %v12316
  %12609 = vmatpush.bf16.msra.mxu0 %v12308
  %12610 = vmatpush.bf16.msra.mxu0 %v12300
  %12611 = vmatpush.bf16.msra.mxu0 %v12292
  %12612 = vmatmul.bf16.gmra.mxu0 %v12466
  %v12613 = vpop.f32.mrf.mxu0
  %v12614 = vadd.f32 %v12595, %v12613
  %v12615 = vpop.f32.mrf.mxu0
  %v12616 = vadd.f32 %v12597, %v12615
  %12617 = vmatmul.bf16.gmra.mxu0 %v12469
  %v12618 = vpop.f32.mrf.mxu0
  %v12619 = vadd.f32 %v12600, %v12618
  %v12620 = vpop.f32.mrf.mxu0
  %v12621 = vadd.f32 %v12602, %v12620
  %12622 = vdwg.mxu0
  %12623 = vmatpush.bf16.msra.mxu0 %v12285
  %12624 = vmatpush.bf16.msra.mxu0 %v12277
  %12625 = vmatpush.bf16.msra.mxu0 %v12269
  %12626 = vmatpush.bf16.msra.mxu0 %v12261
  %12627 = vmatpush.bf16.msra.mxu0 %v12253
  %12628 = vmatpush.bf16.msra.mxu0 %v12245
  %12629 = vmatpush.bf16.msra.mxu0 %v12237
  %12630 = vmatpush.bf16.msra.mxu0 %v12229
  %12631 = vmatmul.bf16.gmra.mxu0 %v11723
  %v12632 = vpop.f32.mrf.mxu0
  %v12633 = vadd.f32 %v11853, %v12632
  %v12634 = vpop.f32.mrf.mxu0
  %v12635 = vadd.f32 %v11853, %v12634
  %12636 = vmatmul.bf16.gmra.mxu0 %v11725
  %v12637 = vpop.f32.mrf.mxu0
  %v12638 = vadd.f32 %v11853, %v12637
  %v12639 = vpop.f32.mrf.mxu0
  %v12640 = vadd.f32 %v11853, %v12639
  %12641 = vdwg.mxu0
  %12642 = vmatpush.bf16.msra.mxu0 0
  %12643 = vmatpush.bf16.msra.mxu0 %v12341
  %12644 = vmatpush.bf16.msra.mxu0 %v12333
  %12645 = vmatpush.bf16.msra.mxu0 %v12325
  %12646 = vmatpush.bf16.msra.mxu0 %v12317
  %12647 = vmatpush.bf16.msra.mxu0 %v12309
  %12648 = vmatpush.bf16.msra.mxu0 %v12301
  %12649 = vmatpush.bf16.msra.mxu0 %v12293
  %12650 = vmatmul.bf16.gmra.mxu0 %v12466
  %v12651 = vpop.f32.mrf.mxu0
  %v12652 = vadd.f32 %v12633, %v12651
  %v12653 = vpop.f32.mrf.mxu0
  %v12654 = vadd.f32 %v12635, %v12653
  %12655 = vmatmul.bf16.gmra.mxu0 %v12469
  %v12656 = vpop.f32.mrf.mxu0
  %v12657 = vadd.f32 %v12638, %v12656
  %v12658 = vpop.f32.mrf.mxu0
  %v12659 = vadd.f32 %v12640, %v12658
  %12660 = vdwg.mxu0
  %12661 = vmatpush.bf16.msra.mxu0 %v12286
  %12662 = vmatpush.bf16.msra.mxu0 %v12278
  %12663 = vmatpush.bf16.msra.mxu0 %v12270
  %12664 = vmatpush.bf16.msra.mxu0 %v12262
  %12665 = vmatpush.bf16.msra.mxu0 %v12254
  %12666 = vmatpush.bf16.msra.mxu0 %v12246
  %12667 = vmatpush.bf16.msra.mxu0 %v12238
  %12668 = vmatpush.bf16.msra.mxu0 %v12230
  %12669 = vmatmul.bf16.gmra.mxu0 %v11723
  %v12670 = vpop.f32.mrf.mxu0
  %v12671 = vadd.f32 %v11854, %v12670
  %v12672 = vpop.f32.mrf.mxu0
  %v12673 = vadd.f32 %v11854, %v12672
  %12674 = vmatmul.bf16.gmra.mxu0 %v11725
  %v12675 = vpop.f32.mrf.mxu0
  %v12676 = vadd.f32 %v11854, %v12675
  %v12677 = vpop.f32.mrf.mxu0
  %v12678 = vadd.f32 %v11854, %v12677
  %12679 = vdwg.mxu0
  %12680 = vmatpush.bf16.msra.mxu0 0
  %12681 = vmatpush.bf16.msra.mxu0 %v12342
  %12682 = vmatpush.bf16.msra.mxu0 %v12334
  %12683 = vmatpush.bf16.msra.mxu0 %v12326
  %12684 = vmatpush.bf16.msra.mxu0 %v12318
  %12685 = vmatpush.bf16.msra.mxu0 %v12310
  %12686 = vmatpush.bf16.msra.mxu0 %v12302
  %12687 = vmatpush.bf16.msra.mxu0 %v12294
  %12688 = vmatmul.bf16.gmra.mxu0 %v12466
  %v12689 = vpop.f32.mrf.mxu0
  %v12690 = vadd.f32 %v12671, %v12689
  %v12691 = vpop.f32.mrf.mxu0
  %v12692 = vadd.f32 %v12673, %v12691
  %12693 = vmatmul.bf16.gmra.mxu0 %v12469
  %v12694 = vpop.f32.mrf.mxu0
  %v12695 = vadd.f32 %v12676, %v12694
  %v12696 = vpop.f32.mrf.mxu0
  %v12697 = vadd.f32 %v12678, %v12696
  %12698 = vdwg.mxu0
  %12699 = vmatpush.bf16.msra.mxu0 %v12287
  %12700 = vmatpush.bf16.msra.mxu0 %v12279
  %12701 = vmatpush.bf16.msra.mxu0 %v12271
  %12702 = vmatpush.bf16.msra.mxu0 %v12263
  %12703 = vmatpush.bf16.msra.mxu0 %v12255
  %12704 = vmatpush.bf16.msra.mxu0 %v12247
  %12705 = vmatpush.bf16.msra.mxu0 %v12239
  %12706 = vmatpush.bf16.msra.mxu0 %v12231
  %12707 = vmatmul.bf16.gmra.mxu0 %v11723
  %v12708 = vpop.f32.mrf.mxu0
  %v12709 = vadd.f32 %v11855, %v12708
  %v12710 = vpop.f32.mrf.mxu0
  %v12711 = vadd.f32 %v11855, %v12710
  %12712 = vmatmul.bf16.gmra.mxu0 %v11725
  %v12713 = vpop.f32.mrf.mxu0
  %v12714 = vadd.f32 %v11855, %v12713
  %v12715 = vpop.f32.mrf.mxu0
  %v12716 = vadd.f32 %v11855, %v12715
  %12717 = vdwg.mxu0
  %12718 = vmatpush.bf16.msra.mxu0 0
  %12719 = vmatpush.bf16.msra.mxu0 %v12343
  %12720 = vmatpush.bf16.msra.mxu0 %v12335
  %12721 = vmatpush.bf16.msra.mxu0 %v12327
  %12722 = vmatpush.bf16.msra.mxu0 %v12319
  %12723 = vmatpush.bf16.msra.mxu0 %v12311
  %12724 = vmatpush.bf16.msra.mxu0 %v12303
  %12725 = vmatpush.bf16.msra.mxu0 %v12295
  %12726 = vmatmul.bf16.gmra.mxu0 %v12466
  %v12727 = vpop.f32.mrf.mxu0
  %v12728 = vadd.f32 %v12709, %v12727
  %v12729 = vpop.f32.mrf.mxu0
  %v12730 = vadd.f32 %v12711, %v12729
  %12731 = vmatmul.bf16.gmra.mxu0 %v12469
  %v12732 = vpop.f32.mrf.mxu0
  %v12733 = vadd.f32 %v12714, %v12732
  %v12734 = vpop.f32.mrf.mxu0
  %v12735 = vadd.f32 %v12716, %v12734
  %12736 = vdwg.mxu0
  %12737 = vmatpush.bf16.msra.mxu0 %v12288
  %12738 = vmatpush.bf16.msra.mxu0 %v12280
  %12739 = vmatpush.bf16.msra.mxu0 %v12272
  %12740 = vmatpush.bf16.msra.mxu0 %v12264
  %12741 = vmatpush.bf16.msra.mxu0 %v12256
  %12742 = vmatpush.bf16.msra.mxu0 %v12248
  %12743 = vmatpush.bf16.msra.mxu0 %v12240
  %12744 = vmatpush.bf16.msra.mxu0 %v12232
  %12745 = vmatmul.bf16.gmra.mxu0 %v11723
  %v12746 = vpop.f32.mrf.mxu0
  %v12747 = vadd.f32 %v11856, %v12746
  %v12748 = vpop.f32.mrf.mxu0
  %v12749 = vadd.f32 %v11856, %v12748
  %12750 = vmatmul.bf16.gmra.mxu0 %v11725
  %v12751 = vpop.f32.mrf.mxu0
  %v12752 = vadd.f32 %v11856, %v12751
  %v12753 = vpop.f32.mrf.mxu0
  %v12754 = vadd.f32 %v11856, %v12753
  %12755 = vdwg.mxu0
  %12756 = vmatpush.bf16.msra.mxu0 0
  %12757 = vmatpush.bf16.msra.mxu0 %v12344
  %12758 = vmatpush.bf16.msra.mxu0 %v12336
  %12759 = vmatpush.bf16.msra.mxu0 %v12328
  %12760 = vmatpush.bf16.msra.mxu0 %v12320
  %12761 = vmatpush.bf16.msra.mxu0 %v12312
  %12762 = vmatpush.bf16.msra.mxu0 %v12304
  %12763 = vmatpush.bf16.msra.mxu0 %v12296
  %12764 = vmatmul.bf16.gmra.mxu0 %v12466
  %v12765 = vpop.f32.mrf.mxu0
  %v12766 = vadd.f32 %v12747, %v12765
  %v12767 = vpop.f32.mrf.mxu0
  %v12768 = vadd.f32 %v12749, %v12767
  %12769 = vmatmul.bf16.gmra.mxu0 %v12469
  %v12770 = vpop.f32.mrf.mxu0
  %v12771 = vadd.f32 %v12752, %v12770
  %v12772 = vpop.f32.mrf.mxu0
  %v12773 = vadd.f32 %v12754, %v12772
  %12774 = vdwg.mxu0
  %v12775 = vadd.f32 %v12500, %v7354
  %v12776 = vadd.f32 %v12538, %v7355
  %v12777 = vadd.f32 %v12576, %v7356
  %v12778 = vadd.f32 %v12614, %v7357
  %v12779 = vadd.f32 %v12652, %v7358
  %v12780 = vadd.f32 %v12690, %v7359
  %v12781 = vadd.f32 %v12728, %v7360
  %v12782 = vadd.f32 %v12766, %v7361
  %v12783 = vadd.f32 %v12502, %v7362
  %v12784 = vadd.f32 %v12540, %v7363
  %v12785 = vadd.f32 %v12578, %v7364
  %v12786 = vadd.f32 %v12616, %v7365
  %v12787 = vadd.f32 %v12654, %v7366
  %v12788 = vadd.f32 %v12692, %v7367
  %v12789 = vadd.f32 %v12730, %v7368
  %v12790 = vadd.f32 %v12768, %v7369
  %v12791 = vadd.f32 %v12505, %v7370
  %v12792 = vadd.f32 %v12543, %v7371
  %v12793 = vadd.f32 %v12581, %v7372
  %v12794 = vadd.f32 %v12619, %v7373
  %v12795 = vadd.f32 %v12657, %v7374
  %v12796 = vadd.f32 %v12695, %v7375
  %v12797 = vadd.f32 %v12733, %v7376
  %v12798 = vadd.f32 %v12771, %v7377
  %v12799 = vadd.f32 %v12507, %v7378
  %v12800 = vadd.f32 %v12545, %v7379
  %v12801 = vadd.f32 %v12583, %v7380
  %v12802 = vadd.f32 %v12621, %v7381
  %v12803 = vadd.f32 %v12659, %v7382
  %v12804 = vadd.f32 %v12697, %v7383
  %v12805 = vadd.f32 %v12735, %v7384
  %v12806 = vadd.f32 %v12773, %v7385
  %v12807 = vmax.f32 %v12775, 0.0
  %v12808 = vmax.f32 %v12776, 0.0
  %v12809 = vmax.f32 %v12777, 0.0
  %v12810 = vmax.f32 %v12778, 0.0
  %v12811 = vmax.f32 %v12779, 0.0
  %v12812 = vmax.f32 %v12780, 0.0
  %v12813 = vmax.f32 %v12781, 0.0
  %v12814 = vmax.f32 %v12782, 0.0
  %v12815 = vmax.f32 %v12783, 0.0
  %v12816 = vmax.f32 %v12784, 0.0
  %v12817 = vmax.f32 %v12785, 0.0
  %v12818 = vmax.f32 %v12786, 0.0
  %v12819 = vmax.f32 %v12787, 0.0
  %v12820 = vmax.f32 %v12788, 0.0
  %v12821 = vmax.f32 %v12789, 0.0
  %v12822 = vmax.f32 %v12790, 0.0
  %v12823 = vmax.f32 %v12791, 0.0
  %v12824 = vmax.f32 %v12792, 0.0
  %v12825 = vmax.f32 %v12793, 0.0
  %v12826 = vmax.f32 %v12794, 0.0
  %v12827 = vmax.f32 %v12795, 0.0
  %v12828 = vmax.f32 %v12796, 0.0
  %v12829 = vmax.f32 %v12797, 0.0
  %v12830 = vmax.f32 %v12798, 0.0
  %v12831 = vmax.f32 %v12799, 0.0
  %v12832 = vmax.f32 %v12800, 0.0
  %v12833 = vmax.f32 %v12801, 0.0
  %v12834 = vmax.f32 %v12802, 0.0
  %v12835 = vmax.f32 %v12803, 0.0
  %v12836 = vmax.f32 %v12804, 0.0
  %v12837 = vmax.f32 %v12805, 0.0
  %v12838 = vmax.f32 %v12806, 0.0
  %v12839 = vld [vmem:[%s2] sm:$0xff]
  %v12840 = vld [vmem:[%s2 + $0x8] sm:$0xff]
  %v12841 = vld [vmem:[%s2 + $0x10] sm:$0xff]
  %v12842 = vld [vmem:[%s2 + $0x18] sm:$0xff]
  %v12843 = vld [vmem:[%s2 + $0x20] sm:$0xff]
  %v12844 = vld [vmem:[%s2 + $0x28] sm:$0xff]
  %v12845 = vld [vmem:[%s2 + $0x30] sm:$0xff]
  %v12846 = vld [vmem:[%s2 + $0x38] sm:$0xff]
  %v12847 = vld [vmem:[%s21] sm:$0xf]
  %v12848 = vld [vmem:[%s21 + $0x4] sm:$0xf]
  %v12849 = vld [vmem:[%s21 + $0x8] sm:$0xf]
  %v12850 = vld [vmem:[%s21 + $0xc] sm:$0xf]
  %v12851 = vld [vmem:[%s21 + $0x10] sm:$0xf]
  %v12852 = vld [vmem:[%s21 + $0x14] sm:$0xf]
  %v12853 = vld [vmem:[%s21 + $0x18] sm:$0xf]
  %v12854 = vld [vmem:[%s21 + $0x1c] sm:$0xf]
  %v12855 = vld [vmem:[%s21 + $0x20] sm:$0xf]
  %v12856 = vld [vmem:[%s21 + $0x24] sm:$0xf]
  %v12857 = vld [vmem:[%s21 + $0x28] sm:$0xf]
  %v12858 = vld [vmem:[%s21 + $0x2c] sm:$0xf]
  %v12859 = vld [vmem:[%s21 + $0x30] sm:$0xf]
  %v12860 = vld [vmem:[%s21 + $0x34] sm:$0xf]
  %v12861 = vld [vmem:[%s21 + $0x38] sm:$0xf]
  %v12862 = vld [vmem:[%s21 + $0x3c] sm:$0xf]
  %v12863 = vld [vmem:[%s21 + $0x40] sm:$0xf]
  %v12864 = vld [vmem:[%s21 + $0x44] sm:$0xf]
  %v12865 = vld [vmem:[%s21 + $0x48] sm:$0xf]
  %v12866 = vld [vmem:[%s21 + $0x4c] sm:$0xf]
  %v12867 = vld [vmem:[%s21 + $0x50] sm:$0xf]
  %v12868 = vld [vmem:[%s21 + $0x54] sm:$0xf]
  %v12869 = vld [vmem:[%s21 + $0x58] sm:$0xf]
  %v12870 = vld [vmem:[%s21 + $0x5c] sm:$0xf]
  %v12871 = vld [vmem:[%s21 + $0x60] sm:$0xf]
  %v12872 = vld [vmem:[%s21 + $0x64] sm:$0xf]
  %v12873 = vld [vmem:[%s21 + $0x68] sm:$0xf]
  %v12874 = vld [vmem:[%s21 + $0x6c] sm:$0xf]
  %v12875 = vld [vmem:[%s21 + $0x70] sm:$0xf]
  %v12876 = vld [vmem:[%s21 + $0x74] sm:$0xf]
  %v12877 = vld [vmem:[%s21 + $0x78] sm:$0xf]
  %v12878 = vld [vmem:[%s21 + $0x7c] sm:$0xf]
  %v12879 = vld [vmem:[%s21 + $0x80] sm:$0xf]
  %v12880 = vld [vmem:[%s21 + $0x84] sm:$0xf]
  %v12881 = vld [vmem:[%s21 + $0x88] sm:$0xf]
  %v12882 = vld [vmem:[%s21 + $0x8c] sm:$0xf]
  %v12883 = vld [vmem:[%s21 + $0x90] sm:$0xf]
  %v12884 = vld [vmem:[%s21 + $0x94] sm:$0xf]
  %v12885 = vld [vmem:[%s21 + $0x98] sm:$0xf]
  %v12886 = vld [vmem:[%s21 + $0x9c] sm:$0xf]
  %v12887 = vld [vmem:[%s21 + $0xa0] sm:$0xf]
  %v12888 = vld [vmem:[%s21 + $0xa4] sm:$0xf]
  %v12889 = vld [vmem:[%s21 + $0xa8] sm:$0xf]
  %v12890 = vld [vmem:[%s21 + $0xac] sm:$0xf]
  %v12891 = vld [vmem:[%s21 + $0xb0] sm:$0xf]
  %v12892 = vld [vmem:[%s21 + $0xb4] sm:$0xf]
  %v12893 = vld [vmem:[%s21 + $0xb8] sm:$0xf]
  %v12894 = vld [vmem:[%s21 + $0xbc] sm:$0xf]
  %v12895 = vld [vmem:[%s21 + $0xc0] sm:$0xf]
  %v12896 = vld [vmem:[%s21 + $0xc4] sm:$0xf]
  %v12897 = vld [vmem:[%s21 + $0xc8] sm:$0xf]
  %v12898 = vld [vmem:[%s21 + $0xcc] sm:$0xf]
  %v12899 = vld [vmem:[%s21 + $0xd0] sm:$0xf]
  %v12900 = vld [vmem:[%s21 + $0xd4] sm:$0xf]
  %v12901 = vld [vmem:[%s21 + $0xd8] sm:$0xf]
  %v12902 = vld [vmem:[%s21 + $0xdc] sm:$0xf]
  %v12903 = vld [vmem:[%s21 + $0xe0] sm:$0xf]
  %v12904 = vld [vmem:[%s21 + $0xe4] sm:$0xf]
  %v12905 = vld [vmem:[%s21 + $0xe8] sm:$0xf]
  %v12906 = vld [vmem:[%s21 + $0xec] sm:$0xf]
  %v12907 = vld [vmem:[%s21 + $0xf0] sm:$0xf]
  %v12908 = vld [vmem:[%s21 + $0xf4] sm:$0xf]
  %v12909 = vld [vmem:[%s21 + $0xf8] sm:$0xf]
  %v12910 = vld [vmem:[%s21 + $0xfc] sm:$0xf]
  %v12911 = vld [vmem:[%s22] sm:$0x1]
  %v12913 = vperm.slane %v12911, 0
  %v12923 = vunpack.c.l.b16 %v12839
  %v12924 = vunpack.c.h.b16 %v12839
  %v12925 = vunpack.c.l.b16 %v12840
  %v12926 = vunpack.c.h.b16 %v12840
  %v12927 = vunpack.c.l.b16 %v12841
  %v12928 = vunpack.c.h.b16 %v12841
  %v12929 = vunpack.c.l.b16 %v12842
  %v12930 = vunpack.c.h.b16 %v12842
  %v12931 = vunpack.c.l.b16 %v12843
  %v12932 = vunpack.c.h.b16 %v12843
  %v12933 = vunpack.c.l.b16 %v12844
  %v12934 = vunpack.c.h.b16 %v12844
  %v12935 = vunpack.c.l.b16 %v12845
  %v12936 = vunpack.c.h.b16 %v12845
  %v12937 = vunpack.c.l.b16 %v12846
  %v12938 = vunpack.c.h.b16 %v12846
  %v12939 = vpack.c.b16 %v12927, %v12923
  %v12940 = vpack.c.b16 %v12928, %v12924
  %v12941 = vpack.c.b16 %v12929, %v12925
  %v12942 = vpack.c.b16 %v12930, %v12926
  %v12943 = vpack.c.b16 %v12935, %v12931
  %v12944 = vpack.c.b16 %v12936, %v12932
  %v12945 = vpack.c.b16 %v12937, %v12933
  %v12946 = vpack.c.b16 %v12938, %v12934
  %v13019 = vunpack.c.l.b16 %v12847
  %v13020 = vunpack.c.l.b16 %v12848
  %v13021 = vunpack.c.l.b16 %v12849
  %v13022 = vunpack.c.l.b16 %v12850
  %v13023 = vunpack.c.l.b16 %v12851
  %v13024 = vunpack.c.l.b16 %v12852
  %v13025 = vunpack.c.l.b16 %v12853
  %v13026 = vunpack.c.l.b16 %v12854
  %v13027 = vunpack.c.l.b16 %v12855
  %v13028 = vunpack.c.l.b16 %v12856
  %v13029 = vunpack.c.l.b16 %v12857
  %v13030 = vunpack.c.l.b16 %v12858
  %v13031 = vunpack.c.l.b16 %v12859
  %v13032 = vunpack.c.l.b16 %v12860
  %v13033 = vunpack.c.l.b16 %v12861
  %v13034 = vunpack.c.l.b16 %v12862
  %v13035 = vunpack.c.l.b16 %v12863
  %v13036 = vunpack.c.l.b16 %v12864
  %v13037 = vunpack.c.l.b16 %v12865
  %v13038 = vunpack.c.l.b16 %v12866
  %v13039 = vunpack.c.l.b16 %v12867
  %v13040 = vunpack.c.l.b16 %v12868
  %v13041 = vunpack.c.l.b16 %v12869
  %v13042 = vunpack.c.l.b16 %v12870
  %v13043 = vunpack.c.l.b16 %v12871
  %v13044 = vunpack.c.l.b16 %v12872
  %v13045 = vunpack.c.l.b16 %v12873
  %v13046 = vunpack.c.l.b16 %v12874
  %v13047 = vunpack.c.l.b16 %v12875
  %v13048 = vunpack.c.l.b16 %v12876
  %v13049 = vunpack.c.l.b16 %v12877
  %v13050 = vunpack.c.l.b16 %v12878
  %v13051 = vunpack.c.l.b16 %v12879
  %v13052 = vunpack.c.l.b16 %v12880
  %v13053 = vunpack.c.l.b16 %v12881
  %v13054 = vunpack.c.l.b16 %v12882
  %v13055 = vunpack.c.l.b16 %v12883
  %v13056 = vunpack.c.l.b16 %v12884
  %v13057 = vunpack.c.l.b16 %v12885
  %v13058 = vunpack.c.l.b16 %v12886
  %v13059 = vunpack.c.l.b16 %v12887
  %v13060 = vunpack.c.l.b16 %v12888
  %v13061 = vunpack.c.l.b16 %v12889
  %v13062 = vunpack.c.l.b16 %v12890
  %v13063 = vunpack.c.l.b16 %v12891
  %v13064 = vunpack.c.l.b16 %v12892
  %v13065 = vunpack.c.l.b16 %v12893
  %v13066 = vunpack.c.l.b16 %v12894
  %v13067 = vunpack.c.l.b16 %v12895
  %v13068 = vunpack.c.l.b16 %v12896
  %v13069 = vunpack.c.l.b16 %v12897
  %v13070 = vunpack.c.l.b16 %v12898
  %v13071 = vunpack.c.l.b16 %v12899
  %v13072 = vunpack.c.l.b16 %v12900
  %v13073 = vunpack.c.l.b16 %v12901
  %v13074 = vunpack.c.l.b16 %v12902
  %v13075 = vunpack.c.l.b16 %v12903
  %v13076 = vunpack.c.l.b16 %v12904
  %v13077 = vunpack.c.l.b16 %v12905
  %v13078 = vunpack.c.l.b16 %v12906
  %v13079 = vunpack.c.l.b16 %v12907
  %v13080 = vunpack.c.l.b16 %v12908
  %v13081 = vunpack.c.l.b16 %v12909
  %v13082 = vunpack.c.l.b16 %v12910
  %v13083 = vpack.c.b16 %v13020, %v13019
  %v13084 = vpack.c.b16 %v13022, %v13021
  %v13085 = vpack.c.b16 %v13024, %v13023
  %v13086 = vpack.c.b16 %v13026, %v13025
  %v13087 = vpack.c.b16 %v13028, %v13027
  %v13088 = vpack.c.b16 %v13030, %v13029
  %v13089 = vpack.c.b16 %v13032, %v13031
  %v13090 = vpack.c.b16 %v13034, %v13033
  %v13091 = vpack.c.b16 %v13036, %v13035
  %v13092 = vpack.c.b16 %v13038, %v13037
  %v13093 = vpack.c.b16 %v13040, %v13039
  %v13094 = vpack.c.b16 %v13042, %v13041
  %v13095 = vpack.c.b16 %v13044, %v13043
  %v13096 = vpack.c.b16 %v13046, %v13045
  %v13097 = vpack.c.b16 %v13048, %v13047
  %v13098 = vpack.c.b16 %v13050, %v13049
  %v13099 = vpack.c.b16 %v13052, %v13051
  %v13100 = vpack.c.b16 %v13054, %v13053
  %v13101 = vpack.c.b16 %v13056, %v13055
  %v13102 = vpack.c.b16 %v13058, %v13057
  %v13103 = vpack.c.b16 %v13060, %v13059
  %v13104 = vpack.c.b16 %v13062, %v13061
  %v13105 = vpack.c.b16 %v13064, %v13063
  %v13106 = vpack.c.b16 %v13066, %v13065
  %v13107 = vpack.c.b16 %v13068, %v13067
  %v13108 = vpack.c.b16 %v13070, %v13069
  %v13109 = vpack.c.b16 %v13072, %v13071
  %v13110 = vpack.c.b16 %v13074, %v13073
  %v13111 = vpack.c.b16 %v13076, %v13075
  %v13112 = vpack.c.b16 %v13078, %v13077
  %v13113 = vpack.c.b16 %v13080, %v13079
  %v13114 = vpack.c.b16 %v13082, %v13081
  %13147 = vmatpush.bf16.msra.mxu0 %v13090
  %13148 = vmatpush.bf16.msra.mxu0 %v13089
  %13149 = vmatpush.bf16.msra.mxu0 %v13088
  %13150 = vmatpush.bf16.msra.mxu0 %v13087
  %13151 = vmatpush.bf16.msra.mxu0 %v13086
  %13152 = vmatpush.bf16.msra.mxu0 %v13085
  %13153 = vmatpush.bf16.msra.mxu0 %v13084
  %13154 = vmatpush.bf16.msra.mxu0 %v13083
  %13155 = vmatmul.bf16.gmra.mxu0 %v12939
  %v13156 = vpop.f32.mrf.mxu0
  %v13157 = vadd.f32 %v12913, %v13156
  %v13158 = vpop.f32.mrf.mxu0
  %v13159 = vadd.f32 %v12913, %v13158
  %13160 = vmatmul.bf16.gmra.mxu0 %v12943
  %v13161 = vpop.f32.mrf.mxu0
  %v13162 = vadd.f32 %v12913, %v13161
  %v13163 = vpop.f32.mrf.mxu0
  %v13164 = vadd.f32 %v12913, %v13163
  %13165 = vdwg.mxu0
  %13166 = vmatpush.bf16.msra.mxu0 %v13098
  %13167 = vmatpush.bf16.msra.mxu0 %v13097
  %13168 = vmatpush.bf16.msra.mxu0 %v13096
  %13169 = vmatpush.bf16.msra.mxu0 %v13095
  %13170 = vmatpush.bf16.msra.mxu0 %v13094
  %13171 = vmatpush.bf16.msra.mxu0 %v13093
  %13172 = vmatpush.bf16.msra.mxu0 %v13092
  %13173 = vmatpush.bf16.msra.mxu0 %v13091
  %13174 = vmatmul.bf16.gmra.mxu0 %v12940
  %v13175 = vpop.f32.mrf.mxu0
  %v13176 = vadd.f32 %v13157, %v13175
  %v13177 = vpop.f32.mrf.mxu0
  %v13178 = vadd.f32 %v13159, %v13177
  %13179 = vmatmul.bf16.gmra.mxu0 %v12944
  %v13180 = vpop.f32.mrf.mxu0
  %v13181 = vadd.f32 %v13162, %v13180
  %v13182 = vpop.f32.mrf.mxu0
  %v13183 = vadd.f32 %v13164, %v13182
  %13184 = vdwg.mxu0
  %13185 = vmatpush.bf16.msra.mxu0 %v13106
  %13186 = vmatpush.bf16.msra.mxu0 %v13105
  %13187 = vmatpush.bf16.msra.mxu0 %v13104
  %13188 = vmatpush.bf16.msra.mxu0 %v13103
  %13189 = vmatpush.bf16.msra.mxu0 %v13102
  %13190 = vmatpush.bf16.msra.mxu0 %v13101
  %13191 = vmatpush.bf16.msra.mxu0 %v13100
  %13192 = vmatpush.bf16.msra.mxu0 %v13099
  %13193 = vmatmul.bf16.gmra.mxu0 %v12941
  %v13194 = vpop.f32.mrf.mxu0
  %v13195 = vadd.f32 %v13176, %v13194
  %v13196 = vpop.f32.mrf.mxu0
  %v13197 = vadd.f32 %v13178, %v13196
  %13198 = vmatmul.bf16.gmra.mxu0 %v12945
  %v13199 = vpop.f32.mrf.mxu0
  %v13200 = vadd.f32 %v13181, %v13199
  %v13201 = vpop.f32.mrf.mxu0
  %v13202 = vadd.f32 %v13183, %v13201
  %13203 = vdwg.mxu0
  %13204 = vmatpush.bf16.msra.mxu0 %v13114
  %13205 = vmatpush.bf16.msra.mxu0 %v13113
  %13206 = vmatpush.bf16.msra.mxu0 %v13112
  %13207 = vmatpush.bf16.msra.mxu0 %v13111
  %13208 = vmatpush.bf16.msra.mxu0 %v13110
  %13209 = vmatpush.bf16.msra.mxu0 %v13109
  %13210 = vmatpush.bf16.msra.mxu0 %v13108
  %13211 = vmatpush.bf16.msra.mxu0 %v13107
  %13212 = vmatmul.bf16.gmra.mxu0 %v12942
  %v13213 = vpop.f32.mrf.mxu0
  %v13214 = vadd.f32 %v13195, %v13213
  %v13215 = vpop.f32.mrf.mxu0
  %v13216 = vadd.f32 %v13197, %v13215
  %13217 = vmatmul.bf16.gmra.mxu0 %v12946
  %v13218 = vpop.f32.mrf.mxu0
  %v13219 = vadd.f32 %v13200, %v13218
  %v13220 = vpop.f32.mrf.mxu0
  %v13221 = vadd.f32 %v13202, %v13220
  %13222 = vdwg.mxu0
  %v13223 = vmax.f32 %v13214, 0.0
  %v13224 = vmax.f32 %v13216, 0.0
  %v13225 = vmax.f32 %v13219, 0.0
  %v13226 = vmax.f32 %v13221, 0.0
  %13231 = vrot.lane.b32.xlu0 %v13223, 64
  %v13232 = vpop.permute.xlu0 %13231
  %13233 = vrot.lane.b32.xlu0 %v13224, 64
  %v13234 = vpop.permute.xlu0 %13233
  %13235 = vrot.lane.b32.xlu0 %v13225, 64
  %v13236 = vpop.permute.xlu0 %13235
  %13237 = vrot.lane.b32.xlu0 %v13226, 64
  %v13238 = vpop.permute.xlu0 %13237
  %v13243 = vsel %vm1786, %v12814, %v13232
  %v13244 = vsel %vm1786, %v12822, %v13234
  %v13245 = vsel %vm1786, %v12830, %v13236
  %v13246 = vsel %vm1786, %v12838, %v13238
  %13247 = vst [vmem:[%s24] sm:$0xff] %v12807
  %13248 = vst [vmem:[%s24 + $0x8] sm:$0xff] %v12808
  %13249 = vst [vmem:[%s24 + $0x10] sm:$0xff] %v12809
  %13250 = vst [vmem:[%s24 + $0x18] sm:$0xff] %v12810
  %13251 = vst [vmem:[%s24 + $0x20] sm:$0xff] %v12811
  %13252 = vst [vmem:[%s24 + $0x28] sm:$0xff] %v12812
  %13253 = vst [vmem:[%s24 + $0x30] sm:$0xff] %v12813
  %13254 = vst [vmem:[%s24 + $0x38] sm:$0xff] %v13243
  %13255 = vst [vmem:[%s24 + $0x40] sm:$0xff] %v12815
  %13256 = vst [vmem:[%s24 + $0x48] sm:$0xff] %v12816
  %13257 = vst [vmem:[%s24 + $0x50] sm:$0xff] %v12817
  %13258 = vst [vmem:[%s24 + $0x58] sm:$0xff] %v12818
  %13259 = vst [vmem:[%s24 + $0x60] sm:$0xff] %v12819
  %13260 = vst [vmem:[%s24 + $0x68] sm:$0xff] %v12820
  %13261 = vst [vmem:[%s24 + $0x70] sm:$0xff] %v12821
  %13262 = vst [vmem:[%s24 + $0x78] sm:$0xff] %v13244
  %13263 = vst [vmem:[%s24 + $0x80] sm:$0xff] %v12823
  %13264 = vst [vmem:[%s24 + $0x88] sm:$0xff] %v12824
  %13265 = vst [vmem:[%s24 + $0x90] sm:$0xff] %v12825
  %13266 = vst [vmem:[%s24 + $0x98] sm:$0xff] %v12826
  %13267 = vst [vmem:[%s24 + $0xa0] sm:$0xff] %v12827
  %13268 = vst [vmem:[%s24 + $0xa8] sm:$0xff] %v12828
  %13269 = vst [vmem:[%s24 + $0xb0] sm:$0xff] %v12829
  %13270 = vst [vmem:[%s24 + $0xb8] sm:$0xff] %v13245
  %13271 = vst [vmem:[%s24 + $0xc0] sm:$0xff] %v12831
  %13272 = vst [vmem:[%s24 + $0xc8] sm:$0xff] %v12832
  %13273 = vst [vmem:[%s24 + $0xd0] sm:$0xff] %v12833
  %13274 = vst [vmem:[%s24 + $0xd8] sm:$0xff] %v12834
  %13275 = vst [vmem:[%s24 + $0xe0] sm:$0xff] %v12835
  %13276 = vst [vmem:[%s24 + $0xe8] sm:$0xff] %v12836
  %13277 = vst [vmem:[%s24 + $0xf0] sm:$0xff] %v12837
  %13278 = vst [vmem:[%s24 + $0xf8] sm:$0xff] %v13246
  // Predicated region
  $region94: #{branch1_forward.1} parent=0 // pred_check
    _
  $region95: #{branch1_forward.1} parent=0 // pred_check_branch
    %13280 = sbr.rel (0) target = $region97
  $region96: #{branch1_forward.1} parent=0 // pred_region
    _
  $region97: #{branch1_forward.1} parent=0 // pred_fallthru
    _
  // Predicated region
  $region98: #{branch1_forward.1} parent=0 // pred_check
    _
  $region99: #{branch1_forward.1} parent=0 // pred_check_branch
    %13282 = sbr.rel (0) target = $region101
  $region100: #{branch1_forward.1} parent=0 // pred_region
    _
  $region101: #{branch1_forward.1} parent=0 // pred_fallthru
    _
  // Predicated region
  $region102: #{branch1_forward.1} parent=0 // pred_check
    _
  $region103: #{branch1_forward.1} parent=0 // pred_check_branch
    %13284 = sbr.rel (0) target = $region105
  $region104: #{branch1_forward.1} parent=0 // pred_region
    _
  $region105: #{branch1_forward.1} parent=0 // pred_fallthru
    _
  // Predicated region
  $region106: #{branch1_forward.1} parent=0 // pred_check
    _
  $region107: #{branch1_forward.1} parent=0 // pred_check_branch
    %13286 = sbr.rel (0) target = $region109
  $region108: #{branch1_forward.1} parent=0 // pred_region
    _
  $region109: #{branch1_forward.1} parent=0 // pred_fallthru
    _

</llo_original>
